<compile_context>
chip_gen: v7x
topology: tpu7x:2x2x1
jax: 0.10.0
libtpu: 0.0.40
codegen_flags: <defaults>
</compile_context>

<pallas_src>
import math
import functools

import jax
import jax.numpy as jnp
from jax import lax
from jax.experimental import pallas as pl
from jax.experimental.pallas import tpu as pltpu

LANES = 128  # every HBM-resident feature axis is zero-padded to the lane width


# ----------------------------------------------------------------------------
# small helpers
# ----------------------------------------------------------------------------
def _detect_vmem_limit():
    """Generation-aware VMEM cap: ~80% of physical, capped at 112 MiB."""
    try:
        cap = int(pltpu.get_tpu_info().vmem_capacity_bytes)
    except Exception:
        cap = 64 * 1024 * 1024          # conservative (v7x per-core) fallback
    return max(32 * 1024 * 1024, min(int(cap * 0.8), 112 * 1024 * 1024))


_VMEM_LIMIT = _detect_vmem_limit()


def _pad_cols(a, width):
    pad = width - a.shape[-1]
    if pad == 0:
        return a
    return jnp.pad(a, [(0, 0)] * (a.ndim - 1) + [(0, pad)])


def _bytes(arrays, out_shape, out_dtype):
    nbytes = math.prod(out_shape) * jnp.dtype(out_dtype).itemsize
    for a in arrays:
        nbytes += math.prod(a.shape) * jnp.dtype(a.dtype).itemsize
    return int(nbytes)


def _row_tiling(n, target=512):
    """Row tile + padded row count for node-feature kernels (pad the rows, never
    fall back to a whole-array block or a tiny divisor)."""
    if n <= target:
        return n, n
    n_pad = -(-n // target) * target
    return target, n_pad


def _seq_block(n, target):
    """Largest tile <= target that divides n and is a multiple of 8.
    TODO(synk): for awkward (prime-ish) sequence lengths add a masked tail
    instead of falling back to the full axis."""
    if n <= target:
        return n
    for r in range(target, 7, -8):
        if n % r == 0:
            return r
    return n


# ----------------------------------------------------------------------------
# Pallas kernels
# ----------------------------------------------------------------------------
def _mab_kernel(q_ref, k_ref, wq_ref, bq_ref, wk_ref, bk_ref, wv_ref, bv_ref,
                wo_ref, bo_ref, *rest, num_heads, dv, apply_head):
    """One (batch, q-tile, kv-tile) step of a Set-Transformer MAB with online
    (flash-style) softmax over the kv axis.

    Lane layout: every feature axis is zero-padded to 128 lanes; heads are packed
    head-major in lanes [0:dv] (head h owns lanes [h*ds:(h+1)*ds]).
    The 1/sqrt(dv) attention scale is folded into (wk, bk) at prep time.
    """
    if apply_head:
        wh_ref, bh_ref, o_ref, qp_sc, q3_sc, m_sc, l_sc, acc_sc = rest
    else:
        o_ref, qp_sc, q3_sc, m_sc, l_sc, acc_sc = rest

    f32, bf16 = jnp.float32, jnp.bfloat16
    H = num_heads
    ds = dv // H
    k_idx = pl.program_id(2)

    @pl.when(k_idx == 0)
    def _init():
        # fc_q: single full 128-contraction matmul; residual copy kept in f32.
        qp = jnp.dot(q_ref[...], wq_ref[...], preferred_element_type=f32) + bq_ref[...]
        qp_sc[...] = qp
        for h in range(H):                               # static head split (lane slices)
            q3_sc[h] = qp[:, h * ds:(h + 1) * ds].astype(bf16)
        m_sc[...] = jnp.full(m_sc.shape, -jnp.inf, f32)
        l_sc[...] = jnp.zeros(l_sc.shape, f32)
        acc_sc[...] = jnp.zeros(acc_sc.shape, f32)

    # fc_k / fc_v for this kv tile (full-width matmuls, bf16 right after bias add).
    kv = k_ref[...]
    kp = jnp.dot(kv, wk_ref[...], preferred_element_type=f32) + bk_ref[...]
    vp = jnp.dot(kv, wv_ref[...], preferred_element_type=f32) + bv_ref[...]
    k3 = jnp.stack([kp[:, h * ds:(h + 1) * ds] for h in range(H)], axis=0).astype(bf16)
    v3 = jnp.stack([vp[:, h * ds:(h + 1) * ds] for h in range(H)], axis=0).astype(bf16)

    # Online softmax, batched over heads (no replicated activations / weights).
    s = jnp.einsum('hqd,hkd->hqk', q3_sc[...], k3, preferred_element_type=f32)
    m_new = jnp.maximum(m_sc[...], jnp.max(s, axis=-1, keepdims=True))
    alpha = jnp.exp(m_sc[...] - m_new)
    p = jnp.exp(s - m_new)
    l_sc[...] = alpha * l_sc[...] + jnp.sum(p, axis=-1, keepdims=True)
    acc_sc[...] = alpha * acc_sc[...] + jnp.einsum(
        'hqk,hkd->hqd', p.astype(bf16), v3, preferred_element_type=f32)
    m_sc[...] = m_new

    @pl.when(k_idx == pl.num_programs(2) - 1)
    def _finalize():
        ctx = acc_sc[...] * pl.reciprocal(l_sc[...], approx=True)     # (H, tq, ds)
        tq = qp_sc.shape[0]
        parts = [ctx[h] for h in range(H)]                            # heads -> lanes
        if LANES > dv:
            parts.append(jnp.zeros((tq, LANES - dv), f32))
        merged = jnp.concatenate(parts, axis=-1)                      # (tq, 128)
        o = qp_sc[...] + merged                                       # per-head residual
        g = jnp.dot(o.astype(bf16), wo_ref[...], preferred_element_type=f32) + bo_ref[...]
        y = o + jnp.maximum(g, 0.0)                                   # O += relu(fc_o(O))
        if apply_head:                                                # fused pred head
            y = jnp.dot(y.astype(bf16), wh_ref[...],
                        preferred_element_type=f32) + bh_ref[...]
        o_ref[...] = y.astype(o_ref.dtype)


def _gin_concat_kernel(x_ref, nbr_ref, w1_ref, b1_ref, w2_ref, b2_ref, o_ref):
    """Fused GIN MLP (Linear-ReLU-Linear) + GELU + concat-with-x (128-lane slab).

    w2/b2 are column-shifted so the MLP output lands at lanes
    [dim_input : dim_input + dim_hidden]; lanes [0:dim_input] carry x, so the
    sum reproduces torch.cat((x, gelu(GIN(x))), -1) zero-padded to 128 lanes.
    """
    f32, bf16 = jnp.float32, jnp.bfloat16
    x = x_ref[...].astype(f32)
    agg = x + nbr_ref[...].astype(f32)           # (1+eps)*x + sum_j x_j, eps=0 (f32 adds)
    h = jnp.dot(agg.astype(bf16), w1_ref[...], preferred_element_type=f32) + b1_ref[...]
    h = jnp.maximum(h, 0.0)
    y = jnp.dot(h.astype(bf16), w2_ref[...], preferred_element_type=f32) + b2_ref[...]
    # TODO(synk): torch.nn.GELU defaults to the exact erf form; tanh approximation
    #             used here for robust Mosaic lowering.
    y = jax.nn.gelu(y, approximate=True)
    o_ref[...] = (x + y).astype(o_ref.dtype)


# ----------------------------------------------------------------------------
# Kernel wrappers
# ----------------------------------------------------------------------------
def mab(Qin, Kin, mp, *, num_heads, dv, head=None, q_tile=256, k_tile=512):
    """Qin: (B, nq, 128) bf16, Kin: (B, nk, 128) bf16 -> (B, nq, 128).

    Grid = (batch, query tiles, kv tiles); query tiles "parallel", kv tiles
    "arbitrary" with flash accumulators resident in VMEM scratch, so both call
    sites (nq small / nk large and nq large / nk small) are covered.
    TODO(synk): when nq/q_tile is large the K/V projections are recomputed per
    query tile; pre-project K/V in a separate row-tiled kernel for that regime.
    """
    wq, bq, wk, bk, wv, bv, wo, bo = mp
    B, nq, P = Qin.shape
    _, nk, _ = Kin.shape
    tq = _seq_block(nq, q_tile)
    tk = _seq_block(nk, k_tile)
    grid = (B, nq // tq, nk // tk)
    ds = dv // num_heads

    qmap = lambda b, i, k: (b, i, 0)
    kmap = lambda b, i, k: (b, k, 0)
    wmap = lambda b, i, k: (0, 0)

    in_specs = [pl.BlockSpec((None, tq, P), qmap),
                pl.BlockSpec((None, tk, P), kmap)]
    in_specs += [pl.BlockSpec(w.shape, wmap)
                 for w in (wq, bq, wk, bk, wv, bv, wo, bo)]
    args = [Qin, Kin, wq, bq, wk, bk, wv, bv, wo, bo]

    apply_head = head is not None
    out_dtype = jnp.float32 if apply_head else jnp.bfloat16
    if apply_head:
        wh, bh = head
        in_specs += [pl.BlockSpec(wh.shape, wmap), pl.BlockSpec(bh.shape, wmap)]
        args += [wh, bh]

    flops = (2 * B * nq * P * P                           # fc_q
             + 4 * B * nk * P * P * (nq // tq)            # fc_k, fc_v
             + 4 * B * nq * nk * dv                       # QK^T + PV
             + 2 * B * nq * P * P                         # fc_o
             + (2 * B * nq * P * P if apply_head else 0))  # fused head
    cost = pl.CostEstimate(flops=int(flops),
                           transcendentals=int(B * num_heads * nq * nk),
                           bytes_accessed=_bytes(args, (B, nq, P), out_dtype))

    kernel = functools.partial(_mab_kernel, num_heads=num_heads, dv=dv,
                               apply_head=apply_head)
    return pl.pallas_call(
        kernel,
        out_shape=jax.ShapeDtypeStruct((B, nq, P), out_dtype),
        grid=grid,
        in_specs=in_specs,
        out_specs=pl.BlockSpec((None, tq, P), qmap),
        scratch_shapes=[
            pltpu.VMEM((tq, P), jnp.float32),                  # projected Q (residual)
            pltpu.VMEM((num_heads, tq, ds), jnp.bfloat16),     # per-head Q
            pltpu.VMEM((num_heads, tq, 1), jnp.float32),       # running max
            pltpu.VMEM((num_heads, tq, 1), jnp.float32),       # running denom
            pltpu.VMEM((num_heads, tq, ds), jnp.float32),      # running numerator
        ],
        compiler_params=pltpu.CompilerParams(
            dimension_semantics=("parallel", "parallel", "arbitrary"),
            vmem_limit_bytes=_VMEM_LIMIT),
        cost_estimate=cost,
    )(*args)


def gin_concat(x_pad, nbr_pad, gp):
    w1, b1, w2, b2 = gp
    n, P = x_pad.shape
    R, n_pad = _row_tiling(n)
    if n_pad != n:
        x_pad = jnp.pad(x_pad, ((0, n_pad - n), (0, 0)))
        nbr_pad = jnp.pad(nbr_pad, ((0, n_pad - n), (0, 0)))
    wmap = lambda i: (0, 0)
    cost = pl.CostEstimate(flops=4 * n_pad * P * P, transcendentals=n_pad * P,
                           bytes_accessed=_bytes((x_pad, nbr_pad, w1, b1, w2, b2),
                                                 (n_pad, P), jnp.bfloat16))
    out = pl.pallas_call(
        _gin_concat_kernel,
        out_shape=jax.ShapeDtypeStruct((n_pad, P), jnp.bfloat16),
        grid=(n_pad // R,),
        in_specs=[pl.BlockSpec((R, P), lambda i: (i, 0)),
                  pl.BlockSpec((R, P), lambda i: (i, 0)),
                  pl.BlockSpec(w1.shape, wmap), pl.BlockSpec(b1.shape, wmap),
                  pl.BlockSpec(w2.shape, wmap), pl.BlockSpec(b2.shape, wmap)],
        out_specs=pl.BlockSpec((R, P), lambda i: (i, 0)),
        compiler_params=pltpu.CompilerParams(
            dimension_semantics=("parallel",), vmem_limit_bytes=_VMEM_LIMIT),
        cost_estimate=cost,
    )(x_pad, nbr_pad, w1, b1, w2, b2)
    return out[:n]


# ----------------------------------------------------------------------------
# Parameter preparation (run ONCE, outside the jitted forward).
# ----------------------------------------------------------------------------
def _prep_linear(w, b, out_off=0, P=LANES):
    din, dout = w.shape
    wp = jnp.zeros((P, P), jnp.float32).at[:din, out_off:out_off + dout].set(w)
    bp = jnp.zeros((1, P), jnp.float32).at[:, out_off:out_off + dout].set(b)
    return wp.astype(jnp.bfloat16), bp


def _prep_gin(raw, dim_input):
    w1, b1, w2, b2 = raw
    w1p, b1p = _prep_linear(w1, b1)
    w2p, b2p = _prep_linear(w2, b2, out_off=dim_input)   # shift output next to x
    return (w1p, b1p, w2p, b2p)


def _prep_mab(raw, dv):
    wq, bq, wk, bk, wv, bv, wo, bo = raw
    scale = 1.0 / math.sqrt(dv)         # Set-Transformer scales QK^T by 1/sqrt(dim_V)
    return (_prep_linear(wq, bq) + _prep_linear(wk * scale, bk * scale)
            + _prep_linear(wv, bv) + _prep_linear(wo, bo))


def _prep_fpssab(raw, dv):
    return (_prep_mab(raw[0], dv), _prep_mab(raw[1], dv))


def prepare_params(params, dim_input, dim_hidden, num_heads):
    assert dim_hidden % num_heads == 0
    return {
        "gin": _prep_gin(params["gin"], dim_input),
        "st1": _prep_fpssab(params["st1"], dim_hidden),
        "st2": _prep_fpssab(params["st2"], dim_hidden),
        "st3": _prep_fpssab(params["st3"], dim_hidden),
        "head": _prep_linear(*params["head"]),
    }


# ----------------------------------------------------------------------------
# FPS (farthest point sampling) — plain JAX glue (iterative, data dependent).
# TODO(synk): torch_geometric fps uses random_start=True; we start at node 0.
# ----------------------------------------------------------------------------
def _fps_local(points, m):
    n = points.shape[0]

    def body(i, carry):
        idxs, dists, last = carry
        d = jnp.sum((points - points[last]) ** 2, axis=-1)
        dists = jnp.minimum(dists, d)
        nxt = jnp.argmax(dists).astype(jnp.int32)
        return idxs.at[i].set(nxt), dists, nxt

    idxs0 = jnp.zeros((m,), jnp.int32)
    dists0 = jnp.full((n,), jnp.inf, jnp.float32)
    idxs, _, _ = lax.fori_loop(1, m, body, (idxs0, dists0, jnp.int32(0)))
    return idxs


def fps_batched(x_b, m):
    return jax.vmap(_fps_local, in_axes=(0, None))(x_b, m)


# ----------------------------------------------------------------------------
# FPSSAB + full model forward
# ----------------------------------------------------------------------------
def fpssab(X, fps_idx, prepped_pair, *, num_heads, dv, head=None):
    """I = X[fps_idx]; H = MAB(I, X); out = MAB(X, H)."""
    mab0_p, mab1_p = prepped_pair
    B, N, P = X.shape
    m = fps_idx.shape[1]
    I = jnp.take_along_axis(
        X, jnp.broadcast_to(fps_idx[:, :, None], (B, m, P)), axis=1)
    Hs = mab(I, X, mab0_p, num_heads=num_heads, dv=dv)       # nq=m, flash over nk=N
    return mab(X, Hs, mab1_p, num_heads=num_heads, dv=dv, head=head)


@functools.partial(jax.jit, static_argnames=(
    "batch_size", "fps_ratio", "num_heads", "dim_hidden", "dim_output"))
def ginfpsst_forward(prepped, x, edge_index, *, batch_size, fps_ratio, num_heads,
                     dim_hidden, dim_output):
    n_total, dim_input = x.shape
    n_events = n_total // batch_size

    # --- GIN aggregation (glue: scatter-add) + fused MLP/GELU/concat kernel ---
    src, dst = edge_index[0], edge_index[1]
    nbr = jax.ops.segment_sum(x[src], dst, num_segments=n_total)
    x_pad = _pad_cols(x, LANES).astype(jnp.bfloat16)
    nbr_pad = _pad_cols(nbr, LANES).astype(jnp.bfloat16)
    x1 = gin_concat(x_pad, nbr_pad, prepped["gin"])          # (n_total, 128) bf16
    # x1 lanes: [0:dim_input]=x, [dim_input:dim_input+dim_hidden]=gelu(GIN(x)), rest 0

    # --- FPS indices per graph on the raw features (data dependent, glue) ---
    m = int(math.ceil(fps_ratio * n_events))
    fps_idx = fps_batched(x.reshape(batch_size, n_events, dim_input), m)

    # --- Set-Transformer stack (flash MAB kernels, bf16 / lane-dense) ---
    X = x1.reshape(batch_size, n_events, LANES)
    X = fpssab(X, fps_idx, prepped["st1"], num_heads=num_heads, dv=dim_hidden)
    X = fpssab(X, fps_idx, prepped["st2"], num_heads=num_heads, dv=dim_hidden)
    X = fpssab(X, fps_idx, prepped["st3"], num_heads=num_heads, dv=dim_hidden,
               head=prepped["head"])                         # pred head fused in epilogue
    return X.reshape(n_total, LANES)[:, :dim_output]


# ----------------------------------------------------------------------------
# Deterministic parameter init (torch.nn.Linear-style uniform bounds)
# ----------------------------------------------------------------------------
def _linear_params(key, fan_in, fan_out):
    k1, k2 = jax.random.split(key)
    bound = 1.0 / math.sqrt(fan_in)
    w = jax.random.uniform(k1, (fan_in, fan_out), jnp.float32, -bound, bound)
    b = jax.random.uniform(k2, (1, fan_out), jnp.float32, -bound, bound)
    return w, b


def _mab_params(key, dq, dk, dv):
    ks = jax.random.split(key, 4)
    wq, bq = _linear_params(ks[0], dq, dv)
    wk, bk = _linear_params(ks[1], dk, dv)
    wv, bv = _linear_params(ks[2], dk, dv)
    wo, bo = _linear_params(ks[3], dv, dv)
    return (wq, bq, wk, bk, wv, bv, wo, bo)


def _fpssab_params(key, dim_in, dim_out):
    k0, k1 = jax.random.split(key)
    return (_mab_params(k0, dim_in, dim_in, dim_out),
            _mab_params(k1, dim_in, dim_out, dim_out))


def init_params(key, dim_input, dim_hidden, dim_output):
    ks = jax.random.split(key, 6)
    w1, b1 = _linear_params(ks[0], dim_input, dim_hidden)
    w2, b2 = _linear_params(ks[1], dim_hidden, dim_hidden)
    return {
        "gin": (w1, b1, w2, b2),
        "st1": _fpssab_params(ks[2], dim_hidden + dim_input, dim_hidden),
        "st2": _fpssab_params(ks[3], dim_hidden, dim_hidden),
        "st3": _fpssab_params(ks[4], dim_hidden, dim_hidden),
        "head": _linear_params(ks[5], dim_hidden, dim_output),
    }


# ----------------------------------------------------------------------------
if __name__ == "__main__":
    batch_size, n_events = 2, 16
    dim_input, dim_hidden, dim_output = 8, 32, 4
    num_heads, fps_ratio = 4, 0.5
    n_total = batch_size * n_events

    key = jax.random.PRNGKey(0)
    kx, kp = jax.random.split(key)
    x = jax.random.normal(kx, (n_total, dim_input), jnp.float32)

    # deterministic bidirectional ring edges within each graph
    srcs, dsts = [], []
    for b in range(batch_size):
        for i in range(n_events):
            u = b * n_events + i
            v = b * n_events + (i + 1) % n_events
            srcs += [u, v]
            dsts += [v, u]
    edge_index = jnp.array([srcs, dsts], dtype=jnp.int32)

    params = init_params(kp, dim_input, dim_hidden, dim_output)
    prepped = prepare_params(params, dim_input, dim_hidden, num_heads)  # once, outside jit

    out = ginfpsst_forward(prepped, x, edge_index, batch_size=batch_size,
                           fps_ratio=fps_ratio, num_heads=num_heads,
                           dim_hidden=dim_hidden, dim_output=dim_output)
    out = jax.block_until_ready(out)
    assert out.shape == (n_total, dim_output), out.shape
    assert bool(jnp.all(jnp.isfinite(out)))
    print("KERNEL_OK")
</pallas_src>

<mosaic_0001>
module attributes {stable_mosaic.version = 11 : i64} {
  func.func private @main(%arg0: i32) attributes {dimension_semantics = [#tpu.dimension_semantics<core_parallel>], iteration_bounds = array<i64: 2>, tpu.core_type = #tpu.core_type<sc_scalar_subcore>, window_params = []} {
    return
  }
}

module attributes {stable_mosaic.version = 11 : i64} {
  func.func private @main(%arg0: i32) attributes {dimension_semantics = [#tpu.dimension_semantics<core_parallel>], iteration_bounds = array<i64: 2>, tpu.core_type = #tpu.core_type<sc_scalar_subcore>, window_params = []} {
    return
  }
}

module attributes {stable_mosaic.version = 11 : i64} {
  func.func @_gin_concat_kernel(%arg0: i32, %arg1: memref<32x128xbf16, #tpu.memory_space<vmem>>, %arg2: memref<32x128xbf16, #tpu.memory_space<vmem>>, %arg3: memref<128x128xbf16, #tpu.memory_space<vmem>>, %arg4: memref<1x128xf32, #tpu.memory_space<vmem>>, %arg5: memref<128x128xbf16, #tpu.memory_space<vmem>>, %arg6: memref<1x128xf32, #tpu.memory_space<vmem>>, %arg7: memref<32x128xbf16, #tpu.memory_space<vmem>>) attributes {dimension_semantics = [#tpu.dimension_semantics<parallel>], iteration_bounds = array<i64: 1>, scalar_prefetch = 0 : i64, scratch_operands = 0 : i64, tpu.core_type = #tpu.core_type<tc>, window_params = [{transform_indices = @transform_0, window_bounds = array<i64: 32, 128>}, {transform_indices = @transform_1, window_bounds = array<i64: 32, 128>}, {pipeline_mode = #tpu.pipeline_mode<synchronous>, transform_indices = @transform_2, window_bounds = array<i64: 128, 128>}, {pipeline_mode = #tpu.pipeline_mode<synchronous>, transform_indices = @transform_3, window_bounds = array<i64: 1, 128>}, {pipeline_mode = #tpu.pipeline_mode<synchronous>, transform_indices = @transform_4, window_bounds = array<i64: 128, 128>}, {pipeline_mode = #tpu.pipeline_mode<synchronous>, transform_indices = @transform_5, window_bounds = array<i64: 1, 128>}, {transform_indices = @transform_6, window_bounds = array<i64: 32, 128>}]} {
    %c0 = arith.constant 0 : index
    %c0_0 = arith.constant 0 : index
    %0 = vector.load %arg1[%c0, %c0_0] : memref<32x128xbf16, #tpu.memory_space<vmem>>, vector<32x128xbf16>
    %1 = arith.extf %0 : vector<32x128xbf16> to vector<32x128xf32>
    %c0_1 = arith.constant 0 : index
    %c0_2 = arith.constant 0 : index
    %2 = vector.load %arg2[%c0_1, %c0_2] : memref<32x128xbf16, #tpu.memory_space<vmem>>, vector<32x128xbf16>
    %3 = arith.extf %2 : vector<32x128xbf16> to vector<32x128xf32>
    %4 = arith.addf %1, %3 : vector<32x128xf32>
    %5 = arith.truncf %4 : vector<32x128xf32> to vector<32x128xbf16>
    %c0_3 = arith.constant 0 : index
    %c0_4 = arith.constant 0 : index
    %6 = vector.load %arg3[%c0_3, %c0_4] : memref<128x128xbf16, #tpu.memory_space<vmem>>, vector<128x128xbf16>
    %cst = arith.constant dense<0.000000e+00> : vector<32x128xf32>
    %7 = tpu.matmul %5, %6, %cst {dimension_numbers = #tpu.dot_dimension_numbers<[1], [0], [0], [1], [0, 0, 1, 1], [], []>} : vector<32x128xbf16>, vector<128x128xbf16>, vector<32x128xf32> -> vector<32x128xf32>
    %c0_5 = arith.constant 0 : index
    %c0_6 = arith.constant 0 : index
    %8 = vector.load %arg4[%c0_5, %c0_6] : memref<1x128xf32, #tpu.memory_space<vmem>>, vector<1x128xf32>
    %9 = vector.broadcast %8 : vector<1x128xf32> to vector<32x128xf32>
    %10 = arith.addf %7, %9 : vector<32x128xf32>
    %cst_7 = arith.constant 0.000000e+00 : f32
    %11 = vector.broadcast %cst_7 : f32 to vector<32x128xf32>
    %12 = arith.maximumf %10, %11 : vector<32x128xf32>
    %13 = arith.truncf %12 : vector<32x128xf32> to vector<32x128xbf16>
    %c0_8 = arith.constant 0 : index
    %c0_9 = arith.constant 0 : index
    %14 = vector.load %arg5[%c0_8, %c0_9] : memref<128x128xbf16, #tpu.memory_space<vmem>>, vector<128x128xbf16>
    %cst_10 = arith.constant dense<0.000000e+00> : vector<32x128xf32>
    %15 = tpu.matmul %13, %14, %cst_10 {dimension_numbers = #tpu.dot_dimension_numbers<[1], [0], [0], [1], [0, 0, 1, 1], [], []>} : vector<32x128xbf16>, vector<128x128xbf16>, vector<32x128xf32> -> vector<32x128xf32>
    %c0_11 = arith.constant 0 : index
    %c0_12 = arith.constant 0 : index
    %16 = vector.load %arg6[%c0_11, %c0_12] : memref<1x128xf32, #tpu.memory_space<vmem>>, vector<1x128xf32>
    %17 = vector.broadcast %16 : vector<1x128xf32> to vector<32x128xf32>
    %18 = arith.addf %15, %17 : vector<32x128xf32>
    %19 = arith.mulf %18, %18 : vector<32x128xf32>
    %20 = arith.mulf %18, %19 : vector<32x128xf32>
    %cst_13 = arith.constant 4.471500e-02 : f32
    %21 = vector.broadcast %cst_13 : f32 to vector<32x128xf32>
    %22 = arith.mulf %21, %20 : vector<32x128xf32>
    %23 = arith.addf %18, %22 : vector<32x128xf32>
    %cst_14 = arith.constant 0.797884583 : f32
    %24 = vector.broadcast %cst_14 : f32 to vector<32x128xf32>
    %25 = arith.mulf %24, %23 : vector<32x128xf32>
    %26 = math.tanh %25 : vector<32x128xf32>
    %cst_15 = arith.constant 1.000000e+00 : f32
    %27 = vector.broadcast %cst_15 : f32 to vector<32x128xf32>
    %28 = arith.addf %27, %26 : vector<32x128xf32>
    %cst_16 = arith.constant 5.000000e-01 : f32
    %29 = vector.broadcast %cst_16 : f32 to vector<32x128xf32>
    %30 = arith.mulf %29, %28 : vector<32x128xf32>
    %31 = arith.mulf %18, %30 : vector<32x128xf32>
    %32 = arith.addf %1, %31 : vector<32x128xf32>
    %33 = arith.truncf %32 : vector<32x128xf32> to vector<32x128xbf16>
    %c0_17 = arith.constant 0 : index
    %c0_18 = arith.constant 0 : index
    %34 = vector.load %arg7[%c0_17, %c0_18] : memref<32x128xbf16, #tpu.memory_space<vmem>>, vector<32x128xbf16>
    tpu.vector_store %arg7[%c0_17, %c0_18], %33 {strides = array<i32>} : memref<32x128xbf16, #tpu.memory_space<vmem>>, vector<32x128xbf16>,
    return
  }
  func.func @transform_0(%arg0: i32) -> (i32, i32) {
    %c0_i32 = arith.constant 0 : i32
    %c0_i32_0 = arith.constant 0 : i32
    return %arg0, %c0_i32 : i32, i32
  }
  func.func @transform_1(%arg0: i32) -> (i32, i32) {
    %c0_i32 = arith.constant 0 : i32
    %c0_i32_0 = arith.constant 0 : i32
    return %arg0, %c0_i32 : i32, i32
  }
  func.func @transform_2(%arg0: i32) -> (i32, i32) {
    %c0_i32 = arith.constant 0 : i32
    %c0_i32_0 = arith.constant 0 : i32
    %c0_i32_1 = arith.constant 0 : i32
    return %c0_i32, %c0_i32_0 : i32, i32
  }
  func.func @transform_3(%arg0: i32) -> (i32, i32) {
    %c0_i32 = arith.constant 0 : i32
    %c0_i32_0 = arith.constant 0 : i32
    %c0_i32_1 = arith.constant 0 : i32
    return %c0_i32, %c0_i32_0 : i32, i32
  }
  func.func @transform_4(%arg0: i32) -> (i32, i32) {
    %c0_i32 = arith.constant 0 : i32
    %c0_i32_0 = arith.constant 0 : i32
    %c0_i32_1 = arith.constant 0 : i32
    return %c0_i32, %c0_i32_0 : i32, i32
  }
  func.func @transform_5(%arg0: i32) -> (i32, i32) {
    %c0_i32 = arith.constant 0 : i32
    %c0_i32_0 = arith.constant 0 : i32
    %c0_i32_1 = arith.constant 0 : i32
    return %c0_i32, %c0_i32_0 : i32, i32
  }
  func.func @transform_6(%arg0: i32) -> (i32, i32) {
    %c0_i32 = arith.constant 0 : i32
    %c0_i32_0 = arith.constant 0 : i32
    return %arg0, %c0_i32 : i32, i32
  }
}

module attributes {stable_mosaic.version = 11 : i64} {
  func.func @_mab_kernel(%arg0: i32, %arg1: i32, %arg2: i32, %arg3: memref<1x8x128xbf16, #tpu.memory_space<vmem>>, %arg4: memref<1x16x128xbf16, #tpu.memory_space<vmem>>, %arg5: memref<128x128xbf16, #tpu.memory_space<vmem>>, %arg6: memref<1x128xf32, #tpu.memory_space<vmem>>, %arg7: memref<128x128xbf16, #tpu.memory_space<vmem>>, %arg8: memref<1x128xf32, #tpu.memory_space<vmem>>, %arg9: memref<128x128xbf16, #tpu.memory_space<vmem>>, %arg10: memref<1x128xf32, #tpu.memory_space<vmem>>, %arg11: memref<128x128xbf16, #tpu.memory_space<vmem>>, %arg12: memref<1x128xf32, #tpu.memory_space<vmem>>, %arg13: memref<1x8x128xbf16, #tpu.memory_space<vmem>>, %arg14: memref<8x128xf32, #tpu.memory_space<vmem>>, %arg15: memref<4x8x8xbf16, #tpu.memory_space<vmem>>, %arg16: memref<4x8x1xf32, #tpu.memory_space<vmem>>, %arg17: memref<4x8x1xf32, #tpu.memory_space<vmem>>, %arg18: memref<4x8x8xf32, #tpu.memory_space<vmem>>) attributes {dimension_semantics = [#tpu.dimension_semantics<parallel>, #tpu.dimension_semantics<parallel>, #tpu.dimension_semantics<arbitrary>], iteration_bounds = array<i64: 2, 1, 1>, scalar_prefetch = 0 : i64, scratch_operands = 5 : i64, tpu.core_type = #tpu.core_type<tc>, window_params = [{transform_indices = @transform_0, window_bounds = array<i64: 1, 8, 128>}, {transform_indices = @transform_1, window_bounds = array<i64: 1, 16, 128>}, {pipeline_mode = #tpu.pipeline_mode<synchronous>, transform_indices = @transform_2, window_bounds = array<i64: 128, 128>}, {pipeline_mode = #tpu.pipeline_mode<synchronous>, transform_indices = @transform_3, window_bounds = array<i64: 1, 128>}, {pipeline_mode = #tpu.pipeline_mode<synchronous>, transform_indices = @transform_4, window_bounds = array<i64: 128, 128>}, {pipeline_mode = #tpu.pipeline_mode<synchronous>, transform_indices = @transform_5, window_bounds = array<i64: 1, 128>}, {pipeline_mode = #tpu.pipeline_mode<synchronous>, transform_indices = @transform_6, window_bounds = array<i64: 128, 128>}, {pipeline_mode = #tpu.pipeline_mode<synchronous>, transform_indices = @transform_7, window_bounds = array<i64: 1, 128>}, {pipeline_mode = #tpu.pipeline_mode<synchronous>, transform_indices = @transform_8, window_bounds = array<i64: 128, 128>}, {pipeline_mode = #tpu.pipeline_mode<synchronous>, transform_indices = @transform_9, window_bounds = array<i64: 1, 128>}, {transform_indices = @transform_10, window_bounds = array<i64: 1, 8, 128>}]} {
    %c0_i32 = arith.constant 0 : i32
    %0 = arith.cmpi eq, %arg2, %c0_i32 : i32
    %1 = arith.extui %0 : i1 to i32
    %c0_i32_0 = arith.constant 0 : i32
    %2 = arith.cmpi ne, %1, %c0_i32_0 : i32
    scf.if %2 {
      %c0_42 = arith.constant 0 : index
      %c0_43 = arith.constant 0 : index
      %c0_44 = arith.constant 0 : index
      %64 = vector.load %arg3[%c0_42, %c0_43, %c0_44] : memref<1x8x128xbf16, #tpu.memory_space<vmem>>, vector<1x8x128xbf16>
      %65 = vector.shape_cast %64 : vector<1x8x128xbf16> to vector<8x128xbf16>
      %c0_45 = arith.constant 0 : index
      %c0_46 = arith.constant 0 : index
      %66 = vector.load %arg5[%c0_45, %c0_46] : memref<128x128xbf16, #tpu.memory_space<vmem>>, vector<128x128xbf16>
      %cst_47 = arith.constant dense<0.000000e+00> : vector<8x128xf32>
      %67 = tpu.matmul %65, %66, %cst_47 {dimension_numbers = #tpu.dot_dimension_numbers<[1], [0], [0], [1], [0, 0, 1, 1], [], []>} : vector<8x128xbf16>, vector<128x128xbf16>, vector<8x128xf32> -> vector<8x128xf32>
      %c0_48 = arith.constant 0 : index
      %c0_49 = arith.constant 0 : index
      %68 = vector.load %arg6[%c0_48, %c0_49] : memref<1x128xf32, #tpu.memory_space<vmem>>, vector<1x128xf32>
      %69 = vector.broadcast %68 : vector<1x128xf32> to vector<8x128xf32>
      %70 = arith.addf %67, %69 : vector<8x128xf32>
      %c0_50 = arith.constant 0 : index
      %c0_51 = arith.constant 0 : index
      %71 = vector.load %arg14[%c0_50, %c0_51] : memref<8x128xf32, #tpu.memory_space<vmem>>, vector<8x128xf32>
      tpu.vector_store %arg14[%c0_50, %c0_51], %70 {strides = array<i32>} : memref<8x128xf32, #tpu.memory_space<vmem>>, vector<8x128xf32>,
      %72 = vector.extract_strided_slice %70 {offsets = [0, 0], sizes = [8, 8], strides = [1, 1]} : vector<8x128xf32> to vector<8x8xf32>
      %73 = arith.truncf %72 : vector<8x8xf32> to vector<8x8xbf16>
      %c0_52 = arith.constant 0 : index
      %c0_53 = arith.constant 0 : index
      %c0_54 = arith.constant 0 : index
      %74 = vector.load %arg15[%c0_52, %c0_53, %c0_54] : memref<4x8x8xbf16, #tpu.memory_space<vmem>>, vector<1x8x8xbf16>
      %75 = vector.shape_cast %74 : vector<1x8x8xbf16> to vector<8x8xbf16>
      %76 = vector.shape_cast %73 : vector<8x8xbf16> to vector<1x8x8xbf16>
      tpu.vector_store %arg15[%c0_52, %c0_53, %c0_54], %76 {strides = array<i32>} : memref<4x8x8xbf16, #tpu.memory_space<vmem>>, vector<1x8x8xbf16>,
      %77 = vector.extract_strided_slice %70 {offsets = [0, 8], sizes = [8, 8], strides = [1, 1]} : vector<8x128xf32> to vector<8x8xf32>
      %78 = arith.truncf %77 : vector<8x8xf32> to vector<8x8xbf16>
      %c1 = arith.constant 1 : index
      %c0_55 = arith.constant 0 : index
      %c0_56 = arith.constant 0 : index
      %79 = vector.load %arg15[%c1, %c0_55, %c0_56] : memref<4x8x8xbf16, #tpu.memory_space<vmem>>, vector<1x8x8xbf16>
      %80 = vector.shape_cast %79 : vector<1x8x8xbf16> to vector<8x8xbf16>
      %81 = vector.shape_cast %78 : vector<8x8xbf16> to vector<1x8x8xbf16>
      tpu.vector_store %arg15[%c1, %c0_55, %c0_56], %81 {strides = array<i32>} : memref<4x8x8xbf16, #tpu.memory_space<vmem>>, vector<1x8x8xbf16>,
      %82 = vector.extract_strided_slice %70 {offsets = [0, 16], sizes = [8, 8], strides = [1, 1]} : vector<8x128xf32> to vector<8x8xf32>
      %83 = arith.truncf %82 : vector<8x8xf32> to vector<8x8xbf16>
      %c2 = arith.constant 2 : index
      %c0_57 = arith.constant 0 : index
      %c0_58 = arith.constant 0 : index
      %84 = vector.load %arg15[%c2, %c0_57, %c0_58] : memref<4x8x8xbf16, #tpu.memory_space<vmem>>, vector<1x8x8xbf16>
      %85 = vector.shape_cast %84 : vector<1x8x8xbf16> to vector<8x8xbf16>
      %86 = vector.shape_cast %83 : vector<8x8xbf16> to vector<1x8x8xbf16>
      tpu.vector_store %arg15[%c2, %c0_57, %c0_58], %86 {strides = array<i32>} : memref<4x8x8xbf16, #tpu.memory_space<vmem>>, vector<1x8x8xbf16>,
      %87 = vector.extract_strided_slice %70 {offsets = [0, 24], sizes = [8, 8], strides = [1, 1]} : vector<8x128xf32> to vector<8x8xf32>
      %88 = arith.truncf %87 : vector<8x8xf32> to vector<8x8xbf16>
      %c3 = arith.constant 3 : index
      %c0_59 = arith.constant 0 : index
      %c0_60 = arith.constant 0 : index
      %89 = vector.load %arg15[%c3, %c0_59, %c0_60] : memref<4x8x8xbf16, #tpu.memory_space<vmem>>, vector<1x8x8xbf16>
      %90 = vector.shape_cast %89 : vector<1x8x8xbf16> to vector<8x8xbf16>
      %91 = vector.shape_cast %88 : vector<8x8xbf16> to vector<1x8x8xbf16>
      tpu.vector_store %arg15[%c3, %c0_59, %c0_60], %91 {strides = array<i32>} : memref<4x8x8xbf16, #tpu.memory_space<vmem>>, vector<1x8x8xbf16>,
      %cst_61 = arith.constant 0xFF800000 : f32
      %92 = vector.broadcast %cst_61 : f32 to vector<4x8x1xf32>
      %c0_62 = arith.constant 0 : index
      %c0_63 = arith.constant 0 : index
      %c0_64 = arith.constant 0 : index
      %93 = vector.load %arg16[%c0_62, %c0_63, %c0_64] : memref<4x8x1xf32, #tpu.memory_space<vmem>>, vector<4x8x1xf32>
      tpu.vector_store %arg16[%c0_62, %c0_63, %c0_64], %92 {strides = array<i32>} : memref<4x8x1xf32, #tpu.memory_space<vmem>>, vector<4x8x1xf32>,
      %cst_65 = arith.constant 0.000000e+00 : f32
      %94 = vector.broadcast %cst_65 : f32 to vector<4x8x1xf32>
      %c0_66 = arith.constant 0 : index
      %c0_67 = arith.constant 0 : index
      %c0_68 = arith.constant 0 : index
      %95 = vector.load %arg17[%c0_66, %c0_67, %c0_68] : memref<4x8x1xf32, #tpu.memory_space<vmem>>, vector<4x8x1xf32>
      tpu.vector_store %arg17[%c0_66, %c0_67, %c0_68], %94 {strides = array<i32>} : memref<4x8x1xf32, #tpu.memory_space<vmem>>, vector<4x8x1xf32>,
      %cst_69 = arith.constant 0.000000e+00 : f32
      %96 = vector.broadcast %cst_69 : f32 to vector<4x8x8xf32>
      %c0_70 = arith.constant 0 : index
      %c0_71 = arith.constant 0 : index
      %c0_72 = arith.constant 0 : index
      %97 = vector.load %arg18[%c0_70, %c0_71, %c0_72] : memref<4x8x8xf32, #tpu.memory_space<vmem>>, vector<4x8x8xf32>
      tpu.vector_store %arg18[%c0_70, %c0_71, %c0_72], %96 {strides = array<i32>} : memref<4x8x8xf32, #tpu.memory_space<vmem>>, vector<4x8x8xf32>,
    } else {
    }
    %c0 = arith.constant 0 : index
    %c0_1 = arith.constant 0 : index
    %c0_2 = arith.constant 0 : index
    %3 = vector.load %arg4[%c0, %c0_1, %c0_2] : memref<1x16x128xbf16, #tpu.memory_space<vmem>>, vector<1x16x128xbf16>
    %4 = vector.shape_cast %3 : vector<1x16x128xbf16> to vector<16x128xbf16>
    %c0_3 = arith.constant 0 : index
    %c0_4 = arith.constant 0 : index
    %5 = vector.load %arg7[%c0_3, %c0_4] : memref<128x128xbf16, #tpu.memory_space<vmem>>, vector<128x128xbf16>
    %cst = arith.constant dense<0.000000e+00> : vector<16x128xf32>
    %6 = tpu.matmul %4, %5, %cst {dimension_numbers = #tpu.dot_dimension_numbers<[1], [0], [0], [1], [0, 0, 1, 1], [], []>} : vector<16x128xbf16>, vector<128x128xbf16>, vector<16x128xf32> -> vector<16x128xf32>
    %c0_5 = arith.constant 0 : index
    %c0_6 = arith.constant 0 : index
    %7 = vector.load %arg8[%c0_5, %c0_6] : memref<1x128xf32, #tpu.memory_space<vmem>>, vector<1x128xf32>
    %8 = vector.broadcast %7 : vector<1x128xf32> to vector<16x128xf32>
    %9 = arith.addf %6, %8 : vector<16x128xf32>
    %c0_7 = arith.constant 0 : index
    %c0_8 = arith.constant 0 : index
    %10 = vector.load %arg9[%c0_7, %c0_8] : memref<128x128xbf16, #tpu.memory_space<vmem>>, vector<128x128xbf16>
    %cst_9 = arith.constant dense<0.000000e+00> : vector<16x128xf32>
    %11 = tpu.matmul %4, %10, %cst_9 {dimension_numbers = #tpu.dot_dimension_numbers<[1], [0], [0], [1], [0, 0, 1, 1], [], []>} : vector<16x128xbf16>, vector<128x128xbf16>, vector<16x128xf32> -> vector<16x128xf32>
    %c0_10 = arith.constant 0 : index
    %c0_11 = arith.constant 0 : index
    %12 = vector.load %arg10[%c0_10, %c0_11] : memref<1x128xf32, #tpu.memory_space<vmem>>, vector<1x128xf32>
    %13 = vector.broadcast %12 : vector<1x128xf32> to vector<16x128xf32>
    %14 = arith.addf %11, %13 : vector<16x128xf32>
    %15 = vector.extract_strided_slice %9 {offsets = [0, 0], sizes = [16, 8], strides = [1, 1]} : vector<16x128xf32> to vector<16x8xf32>
    %16 = vector.extract_strided_slice %9 {offsets = [0, 8], sizes = [16, 8], strides = [1, 1]} : vector<16x128xf32> to vector<16x8xf32>
    %17 = vector.extract_strided_slice %9 {offsets = [0, 16], sizes = [16, 8], strides = [1, 1]} : vector<16x128xf32> to vector<16x8xf32>
    %18 = vector.extract_strided_slice %9 {offsets = [0, 24], sizes = [16, 8], strides = [1, 1]} : vector<16x128xf32> to vector<16x8xf32>
    %19 = vector.shape_cast %15 : vector<16x8xf32> to vector<1x16x8xf32>
    %20 = vector.shape_cast %16 : vector<16x8xf32> to vector<1x16x8xf32>
    %21 = vector.shape_cast %17 : vector<16x8xf32> to vector<1x16x8xf32>
    %22 = vector.shape_cast %18 : vector<16x8xf32> to vector<1x16x8xf32>
    %23 = tpu.concatenate %19, %20, %21, %22 in 0 : vector<1x16x8xf32>, vector<1x16x8xf32>, vector<1x16x8xf32>, vector<1x16x8xf32> -> vector<4x16x8xf32>
    %24 = arith.truncf %23 : vector<4x16x8xf32> to vector<4x16x8xbf16>
    %25 = vector.extract_strided_slice %14 {offsets = [0, 0], sizes = [16, 8], strides = [1, 1]} : vector<16x128xf32> to vector<16x8xf32>
    %26 = vector.extract_strided_slice %14 {offsets = [0, 8], sizes = [16, 8], strides = [1, 1]} : vector<16x128xf32> to vector<16x8xf32>
    %27 = vector.extract_strided_slice %14 {offsets = [0, 16], sizes = [16, 8], strides = [1, 1]} : vector<16x128xf32> to vector<16x8xf32>
    %28 = vector.extract_strided_slice %14 {offsets = [0, 24], sizes = [16, 8], strides = [1, 1]} : vector<16x128xf32> to vector<16x8xf32>
    %29 = vector.shape_cast %25 : vector<16x8xf32> to vector<1x16x8xf32>
    %30 = vector.shape_cast %26 : vector<16x8xf32> to vector<1x16x8xf32>
    %31 = vector.shape_cast %27 : vector<16x8xf32> to vector<1x16x8xf32>
    %32 = vector.shape_cast %28 : vector<16x8xf32> to vector<1x16x8xf32>
    %33 = tpu.concatenate %29, %30, %31, %32 in 0 : vector<1x16x8xf32>, vector<1x16x8xf32>, vector<1x16x8xf32>, vector<1x16x8xf32> -> vector<4x16x8xf32>
    %34 = arith.truncf %33 : vector<4x16x8xf32> to vector<4x16x8xbf16>
    %c0_12 = arith.constant 0 : index
    %c0_13 = arith.constant 0 : index
    %c0_14 = arith.constant 0 : index
    %35 = vector.load %arg15[%c0_12, %c0_13, %c0_14] : memref<4x8x8xbf16, #tpu.memory_space<vmem>>, vector<4x8x8xbf16>
    "tpu.trace_start"() <{level = 10 : i32, message = "hqd,hkd->hqk"}> : () -> ()
    %cst_15 = arith.constant dense<0.000000e+00> : vector<4x8x16xf32>
    %36 = tpu.matmul %35, %24, %cst_15 {dimension_numbers = #tpu.dot_dimension_numbers<[2], [2], [1], [1], [0, 0, 0, 1, 1, 1], [0], [0]>} : vector<4x8x8xbf16>, vector<4x16x8xbf16>, vector<4x8x16xf32> -> vector<4x8x16xf32>
    "tpu.trace_stop"() : () -> ()
    %c0_16 = arith.constant 0 : index
    %c0_17 = arith.constant 0 : index
    %c0_18 = arith.constant 0 : index
    %37 = vector.load %arg16[%c0_16, %c0_17, %c0_18] : memref<4x8x1xf32, #tpu.memory_space<vmem>>, vector<4x8x1xf32>
    %cst_19 = arith.constant dense<0xFF800000> : vector<4x8xf32>
    %38 = vector.multi_reduction <maximumf>, %36, %cst_19 [2] : vector<4x8x16xf32> to vector<4x8xf32>
    %39 = vector.shape_cast %38 : vector<4x8xf32> to vector<4x8x1xf32>
    %40 = arith.maximumf %37, %39 : vector<4x8x1xf32>
    %c0_20 = arith.constant 0 : index
    %c0_21 = arith.constant 0 : index
    %c0_22 = arith.constant 0 : index
    %41 = vector.load %arg16[%c0_20, %c0_21, %c0_22] : memref<4x8x1xf32, #tpu.memory_space<vmem>>, vector<4x8x1xf32>
    %42 = arith.subf %41, %40 : vector<4x8x1xf32>
    %43 = math.exp %42 : vector<4x8x1xf32>
    %44 = vector.broadcast %40 : vector<4x8x1xf32> to vector<4x8x16xf32>
    %45 = arith.subf %36, %44 : vector<4x8x16xf32>
    %46 = math.exp %45 : vector<4x8x16xf32>
    %c0_23 = arith.constant 0 : index
    %c0_24 = arith.constant 0 : index
    %c0_25 = arith.constant 0 : index
    %47 = vector.load %arg17[%c0_23, %c0_24, %c0_25] : memref<4x8x1xf32, #tpu.memory_space<vmem>>, vector<4x8x1xf32>
    %48 = arith.mulf %43, %47 : vector<4x8x1xf32>
    %cst_26 = arith.constant dense<0.000000e+00> : vector<4x8xf32>
    %49 = vector.multi_reduction <add>, %46, %cst_26 [2] : vector<4x8x16xf32> to vector<4x8xf32>
    %50 = vector.shape_cast %49 : vector<4x8xf32> to vector<4x8x1xf32>
    %51 = arith.addf %48, %50 : vector<4x8x1xf32>
    %c0_27 = arith.constant 0 : index
    %c0_28 = arith.constant 0 : index
    %c0_29 = arith.constant 0 : index
    %52 = vector.load %arg17[%c0_27, %c0_28, %c0_29] : memref<4x8x1xf32, #tpu.memory_space<vmem>>, vector<4x8x1xf32>
    tpu.vector_store %arg17[%c0_27, %c0_28, %c0_29], %51 {strides = array<i32>} : memref<4x8x1xf32, #tpu.memory_space<vmem>>, vector<4x8x1xf32>,
    %c0_30 = arith.constant 0 : index
    %c0_31 = arith.constant 0 : index
    %c0_32 = arith.constant 0 : index
    %53 = vector.load %arg18[%c0_30, %c0_31, %c0_32] : memref<4x8x8xf32, #tpu.memory_space<vmem>>, vector<4x8x8xf32>
    %54 = vector.broadcast %43 : vector<4x8x1xf32> to vector<4x8x8xf32>
    %55 = arith.mulf %54, %53 : vector<4x8x8xf32>
    %56 = arith.truncf %46 : vector<4x8x16xf32> to vector<4x8x16xbf16>
    "tpu.trace_start"() <{level = 10 : i32, message = "hqk,hkd->hqd"}> : () -> ()
    %cst_33 = arith.constant dense<0.000000e+00> : vector<4x8x8xf32>
    %57 = tpu.matmul %56, %34, %cst_33 {dimension_numbers = #tpu.dot_dimension_numbers<[2], [1], [1], [2], [0, 0, 0, 1, 1, 2], [0], [0]>} : vector<4x8x16xbf16>, vector<4x16x8xbf16>, vector<4x8x8xf32> -> vector<4x8x8xf32>
    "tpu.trace_stop"() : () -> ()
    %58 = arith.addf %55, %57 : vector<4x8x8xf32>
    %c0_34 = arith.constant 0 : index
    %c0_35 = arith.constant 0 : index
    %c0_36 = arith.constant 0 : index
    %59 = vector.load %arg18[%c0_34, %c0_35, %c0_36] : memref<4x8x8xf32, #tpu.memory_space<vmem>>, vector<4x8x8xf32>
    tpu.vector_store %arg18[%c0_34, %c0_35, %c0_36], %58 {strides = array<i32>} : memref<4x8x8xf32, #tpu.memory_space<vmem>>, vector<4x8x8xf32>,
    %c0_37 = arith.constant 0 : index
    %c0_38 = arith.constant 0 : index
    %c0_39 = arith.constant 0 : index
    %60 = vector.load %arg16[%c0_37, %c0_38, %c0_39] : memref<4x8x1xf32, #tpu.memory_space<vmem>>, vector<4x8x1xf32>
    tpu.vector_store %arg16[%c0_37, %c0_38, %c0_39], %40 {strides = array<i32>} : memref<4x8x1xf32, #tpu.memory_space<vmem>>, vector<4x8x1xf32>,
    %c0_i32_40 = arith.constant 0 : i32
    %61 = arith.cmpi eq, %arg2, %c0_i32_40 : i32
    %62 = arith.extui %61 : i1 to i32
    %c0_i32_41 = arith.constant 0 : i32
    %63 = arith.cmpi ne, %62, %c0_i32_41 : i32
    scf.if %63 {
      %c0_42 = arith.constant 0 : index
      %c0_43 = arith.constant 0 : index
      %c0_44 = arith.constant 0 : index
      %64 = vector.load %arg18[%c0_42, %c0_43, %c0_44] : memref<4x8x8xf32, #tpu.memory_space<vmem>>, vector<4x8x8xf32>
      %c0_45 = arith.constant 0 : index
      %c0_46 = arith.constant 0 : index
      %c0_47 = arith.constant 0 : index
      %65 = vector.load %arg17[%c0_45, %c0_46, %c0_47] : memref<4x8x1xf32, #tpu.memory_space<vmem>>, vector<4x8x1xf32>
      %66 = tpu.reciprocal %65 {approx = true} : vector<4x8x1xf32> -> vector<4x8x1xf32>
      %67 = vector.broadcast %66 : vector<4x8x1xf32> to vector<4x8x8xf32>
      %68 = arith.mulf %64, %67 : vector<4x8x8xf32>
      %69 = vector.extract_strided_slice %68 {offsets = [0, 0, 0], sizes = [1, 8, 8], strides = [1, 1, 1]} : vector<4x8x8xf32> to vector<1x8x8xf32>
      %70 = vector.shape_cast %69 : vector<1x8x8xf32> to vector<8x8xf32>
      %71 = vector.extract_strided_slice %68 {offsets = [1, 0, 0], sizes = [1, 8, 8], strides = [1, 1, 1]} : vector<4x8x8xf32> to vector<1x8x8xf32>
      %72 = vector.shape_cast %71 : vector<1x8x8xf32> to vector<8x8xf32>
      %73 = vector.extract_strided_slice %68 {offsets = [2, 0, 0], sizes = [1, 8, 8], strides = [1, 1, 1]} : vector<4x8x8xf32> to vector<1x8x8xf32>
      %74 = vector.shape_cast %73 : vector<1x8x8xf32> to vector<8x8xf32>
      %75 = vector.extract_strided_slice %68 {offsets = [3, 0, 0], sizes = [1, 8, 8], strides = [1, 1, 1]} : vector<4x8x8xf32> to vector<1x8x8xf32>
      %76 = vector.shape_cast %75 : vector<1x8x8xf32> to vector<8x8xf32>
      %cst_48 = arith.constant 0.000000e+00 : f32
      %77 = vector.broadcast %cst_48 : f32 to vector<8x96xf32>
      %78 = tpu.concatenate %70, %72, %74, %76, %77 in 1 : vector<8x8xf32>, vector<8x8xf32>, vector<8x8xf32>, vector<8x8xf32>, vector<8x96xf32> -> vector<8x128xf32>
      %c0_49 = arith.constant 0 : index
      %c0_50 = arith.constant 0 : index
      %79 = vector.load %arg14[%c0_49, %c0_50] : memref<8x128xf32, #tpu.memory_space<vmem>>, vector<8x128xf32>
      %80 = arith.addf %79, %78 : vector<8x128xf32>
      %81 = arith.truncf %80 : vector<8x128xf32> to vector<8x128xbf16>
      %c0_51 = arith.constant 0 : index
      %c0_52 = arith.constant 0 : index
      %82 = vector.load %arg11[%c0_51, %c0_52] : memref<128x128xbf16, #tpu.memory_space<vmem>>, vector<128x128xbf16>
      %cst_53 = arith.constant dense<0.000000e+00> : vector<8x128xf32>
      %83 = tpu.matmul %81, %82, %cst_53 {dimension_numbers = #tpu.dot_dimension_numbers<[1], [0], [0], [1], [0, 0, 1, 1], [], []>} : vector<8x128xbf16>, vector<128x128xbf16>, vector<8x128xf32> -> vector<8x128xf32>
      %c0_54 = arith.constant 0 : index
      %c0_55 = arith.constant 0 : index
      %84 = vector.load %arg12[%c0_54, %c0_55] : memref<1x128xf32, #tpu.memory_space<vmem>>, vector<1x128xf32>
      %85 = vector.broadcast %84 : vector<1x128xf32> to vector<8x128xf32>
      %86 = arith.addf %83, %85 : vector<8x128xf32>
      %cst_56 = arith.constant 0.000000e+00 : f32
      %87 = vector.broadcast %cst_56 : f32 to vector<8x128xf32>
      %88 = arith.maximumf %86, %87 : vector<8x128xf32>
      %89 = arith.addf %80, %88 : vector<8x128xf32>
      %90 = arith.truncf %89 : vector<8x128xf32> to vector<8x128xbf16>
      %c0_57 = arith.constant 0 : index
      %c0_58 = arith.constant 0 : index
      %c0_59 = arith.constant 0 : index
      %91 = vector.load %arg13[%c0_57, %c0_58, %c0_59] : memref<1x8x128xbf16, #tpu.memory_space<vmem>>, vector<1x8x128xbf16>
      %92 = vector.shape_cast %91 : vector<1x8x128xbf16> to vector<8x128xbf16>
      %93 = vector.shape_cast %90 : vector<8x128xbf16> to vector<1x8x128xbf16>
      tpu.vector_store %arg13[%c0_57, %c0_58, %c0_59], %93 {strides = array<i32>} : memref<1x8x128xbf16, #tpu.memory_space<vmem>>, vector<1x8x128xbf16>,
    } else {
    }
    return
  }
  func.func @transform_0(%arg0: i32, %arg1: i32, %arg2: i32) -> (i32, i32, i32) {
    %c0_i32 = arith.constant 0 : i32
    %c0_i32_0 = arith.constant 0 : i32
    return %arg0, %arg1, %c0_i32 : i32, i32, i32
  }
  func.func @transform_1(%arg0: i32, %arg1: i32, %arg2: i32) -> (i32, i32, i32) {
    %c0_i32 = arith.constant 0 : i32
    %c0_i32_0 = arith.constant 0 : i32
    return %arg0, %arg2, %c0_i32 : i32, i32, i32
  }
  func.func @transform_2(%arg0: i32, %arg1: i32, %arg2: i32) -> (i32, i32) {
    %c0_i32 = arith.constant 0 : i32
    %c0_i32_0 = arith.constant 0 : i32
    %c0_i32_1 = arith.constant 0 : i32
    return %c0_i32, %c0_i32_0 : i32, i32
  }
  func.func @transform_3(%arg0: i32, %arg1: i32, %arg2: i32) -> (i32, i32) {
    %c0_i32 = arith.constant 0 : i32
    %c0_i32_0 = arith.constant 0 : i32
    %c0_i32_1 = arith.constant 0 : i32
    return %c0_i32, %c0_i32_0 : i32, i32
  }
  func.func @transform_4(%arg0: i32, %arg1: i32, %arg2: i32) -> (i32, i32) {
    %c0_i32 = arith.constant 0 : i32
    %c0_i32_0 = arith.constant 0 : i32
    %c0_i32_1 = arith.constant 0 : i32
    return %c0_i32, %c0_i32_0 : i32, i32
  }
  func.func @transform_5(%arg0: i32, %arg1: i32, %arg2: i32) -> (i32, i32) {
    %c0_i32 = arith.constant 0 : i32
    %c0_i32_0 = arith.constant 0 : i32
    %c0_i32_1 = arith.constant 0 : i32
    return %c0_i32, %c0_i32_0 : i32, i32
  }
  func.func @transform_6(%arg0: i32, %arg1: i32, %arg2: i32) -> (i32, i32) {
    %c0_i32 = arith.constant 0 : i32
    %c0_i32_0 = arith.constant 0 : i32
    %c0_i32_1 = arith.constant 0 : i32
    return %c0_i32, %c0_i32_0 : i32, i32
  }
  func.func @transform_7(%arg0: i32, %arg1: i32, %arg2: i32) -> (i32, i32) {
    %c0_i32 = arith.constant 0 : i32
    %c0_i32_0 = arith.constant 0 : i32
    %c0_i32_1 = arith.constant 0 : i32
    return %c0_i32, %c0_i32_0 : i32, i32
  }
  func.func @transform_8(%arg0: i32, %arg1: i32, %arg2: i32) -> (i32, i32) {
    %c0_i32 = arith.constant 0 : i32
    %c0_i32_0 = arith.constant 0 : i32
    %c0_i32_1 = arith.constant 0 : i32
    return %c0_i32, %c0_i32_0 : i32, i32
  }
  func.func @transform_9(%arg0: i32, %arg1: i32, %arg2: i32) -> (i32, i32) {
    %c0_i32 = arith.constant 0 : i32
    %c0_i32_0 = arith.constant 0 : i32
    %c0_i32_1 = arith.constant 0 : i32
    return %c0_i32, %c0_i32_0 : i32, i32
  }
  func.func @transform_10(%arg0: i32, %arg1: i32, %arg2: i32) -> (i32, i32, i32) {
    %c0_i32 = arith.constant 0 : i32
    %c0_i32_0 = arith.constant 0 : i32
    return %arg0, %arg1, %c0_i32 : i32, i32, i32
  }
}

module attributes {stable_mosaic.version = 11 : i64} {
  func.func @_mab_kernel(%arg0: i32, %arg1: i32, %arg2: i32, %arg3: memref<1x16x128xbf16, #tpu.memory_space<vmem>>, %arg4: memref<1x8x128xbf16, #tpu.memory_space<vmem>>, %arg5: memref<128x128xbf16, #tpu.memory_space<vmem>>, %arg6: memref<1x128xf32, #tpu.memory_space<vmem>>, %arg7: memref<128x128xbf16, #tpu.memory_space<vmem>>, %arg8: memref<1x128xf32, #tpu.memory_space<vmem>>, %arg9: memref<128x128xbf16, #tpu.memory_space<vmem>>, %arg10: memref<1x128xf32, #tpu.memory_space<vmem>>, %arg11: memref<128x128xbf16, #tpu.memory_space<vmem>>, %arg12: memref<1x128xf32, #tpu.memory_space<vmem>>, %arg13: memref<1x16x128xbf16, #tpu.memory_space<vmem>>, %arg14: memref<16x128xf32, #tpu.memory_space<vmem>>, %arg15: memref<4x16x8xbf16, #tpu.memory_space<vmem>>, %arg16: memref<4x16x1xf32, #tpu.memory_space<vmem>>, %arg17: memref<4x16x1xf32, #tpu.memory_space<vmem>>, %arg18: memref<4x16x8xf32, #tpu.memory_space<vmem>>) attributes {dimension_semantics = [#tpu.dimension_semantics<parallel>, #tpu.dimension_semantics<parallel>, #tpu.dimension_semantics<arbitrary>], iteration_bounds = array<i64: 2, 1, 1>, scalar_prefetch = 0 : i64, scratch_operands = 5 : i64, tpu.core_type = #tpu.core_type<tc>, window_params = [{transform_indices = @transform_0, window_bounds = array<i64: 1, 16, 128>}, {transform_indices = @transform_1, window_bounds = array<i64: 1, 8, 128>}, {pipeline_mode = #tpu.pipeline_mode<synchronous>, transform_indices = @transform_2, window_bounds = array<i64: 128, 128>}, {pipeline_mode = #tpu.pipeline_mode<synchronous>, transform_indices = @transform_3, window_bounds = array<i64: 1, 128>}, {pipeline_mode = #tpu.pipeline_mode<synchronous>, transform_indices = @transform_4, window_bounds = array<i64: 128, 128>}, {pipeline_mode = #tpu.pipeline_mode<synchronous>, transform_indices = @transform_5, window_bounds = array<i64: 1, 128>}, {pipeline_mode = #tpu.pipeline_mode<synchronous>, transform_indices = @transform_6, window_bounds = array<i64: 128, 128>}, {pipeline_mode = #tpu.pipeline_mode<synchronous>, transform_indices = @transform_7, window_bounds = array<i64: 1, 128>}, {pipeline_mode = #tpu.pipeline_mode<synchronous>, transform_indices = @transform_8, window_bounds = array<i64: 128, 128>}, {pipeline_mode = #tpu.pipeline_mode<synchronous>, transform_indices = @transform_9, window_bounds = array<i64: 1, 128>}, {transform_indices = @transform_10, window_bounds = array<i64: 1, 16, 128>}]} {
    %c0_i32 = arith.constant 0 : i32
    %0 = arith.cmpi eq, %arg2, %c0_i32 : i32
    %1 = arith.extui %0 : i1 to i32
    %c0_i32_0 = arith.constant 0 : i32
    %2 = arith.cmpi ne, %1, %c0_i32_0 : i32
    scf.if %2 {
      %c0_42 = arith.constant 0 : index
      %c0_43 = arith.constant 0 : index
      %c0_44 = arith.constant 0 : index
      %64 = vector.load %arg3[%c0_42, %c0_43, %c0_44] : memref<1x16x128xbf16, #tpu.memory_space<vmem>>, vector<1x16x128xbf16>
      %65 = vector.shape_cast %64 : vector<1x16x128xbf16> to vector<16x128xbf16>
      %c0_45 = arith.constant 0 : index
      %c0_46 = arith.constant 0 : index
      %66 = vector.load %arg5[%c0_45, %c0_46] : memref<128x128xbf16, #tpu.memory_space<vmem>>, vector<128x128xbf16>
      %cst_47 = arith.constant dense<0.000000e+00> : vector<16x128xf32>
      %67 = tpu.matmul %65, %66, %cst_47 {dimension_numbers = #tpu.dot_dimension_numbers<[1], [0], [0], [1], [0, 0, 1, 1], [], []>} : vector<16x128xbf16>, vector<128x128xbf16>, vector<16x128xf32> -> vector<16x128xf32>
      %c0_48 = arith.constant 0 : index
      %c0_49 = arith.constant 0 : index
      %68 = vector.load %arg6[%c0_48, %c0_49] : memref<1x128xf32, #tpu.memory_space<vmem>>, vector<1x128xf32>
      %69 = vector.broadcast %68 : vector<1x128xf32> to vector<16x128xf32>
      %70 = arith.addf %67, %69 : vector<16x128xf32>
      %c0_50 = arith.constant 0 : index
      %c0_51 = arith.constant 0 : index
      %71 = vector.load %arg14[%c0_50, %c0_51] : memref<16x128xf32, #tpu.memory_space<vmem>>, vector<16x128xf32>
      tpu.vector_store %arg14[%c0_50, %c0_51], %70 {strides = array<i32>} : memref<16x128xf32, #tpu.memory_space<vmem>>, vector<16x128xf32>,
      %72 = vector.extract_strided_slice %70 {offsets = [0, 0], sizes = [16, 8], strides = [1, 1]} : vector<16x128xf32> to vector<16x8xf32>
      %73 = arith.truncf %72 : vector<16x8xf32> to vector<16x8xbf16>
      %c0_52 = arith.constant 0 : index
      %c0_53 = arith.constant 0 : index
      %c0_54 = arith.constant 0 : index
      %74 = vector.load %arg15[%c0_52, %c0_53, %c0_54] : memref<4x16x8xbf16, #tpu.memory_space<vmem>>, vector<1x16x8xbf16>
      %75 = vector.shape_cast %74 : vector<1x16x8xbf16> to vector<16x8xbf16>
      %76 = vector.shape_cast %73 : vector<16x8xbf16> to vector<1x16x8xbf16>
      tpu.vector_store %arg15[%c0_52, %c0_53, %c0_54], %76 {strides = array<i32>} : memref<4x16x8xbf16, #tpu.memory_space<vmem>>, vector<1x16x8xbf16>,
      %77 = vector.extract_strided_slice %70 {offsets = [0, 8], sizes = [16, 8], strides = [1, 1]} : vector<16x128xf32> to vector<16x8xf32>
      %78 = arith.truncf %77 : vector<16x8xf32> to vector<16x8xbf16>
      %c1 = arith.constant 1 : index
      %c0_55 = arith.constant 0 : index
      %c0_56 = arith.constant 0 : index
      %79 = vector.load %arg15[%c1, %c0_55, %c0_56] : memref<4x16x8xbf16, #tpu.memory_space<vmem>>, vector<1x16x8xbf16>
      %80 = vector.shape_cast %79 : vector<1x16x8xbf16> to vector<16x8xbf16>
      %81 = vector.shape_cast %78 : vector<16x8xbf16> to vector<1x16x8xbf16>
      tpu.vector_store %arg15[%c1, %c0_55, %c0_56], %81 {strides = array<i32>} : memref<4x16x8xbf16, #tpu.memory_space<vmem>>, vector<1x16x8xbf16>,
      %82 = vector.extract_strided_slice %70 {offsets = [0, 16], sizes = [16, 8], strides = [1, 1]} : vector<16x128xf32> to vector<16x8xf32>
      %83 = arith.truncf %82 : vector<16x8xf32> to vector<16x8xbf16>
      %c2 = arith.constant 2 : index
      %c0_57 = arith.constant 0 : index
      %c0_58 = arith.constant 0 : index
      %84 = vector.load %arg15[%c2, %c0_57, %c0_58] : memref<4x16x8xbf16, #tpu.memory_space<vmem>>, vector<1x16x8xbf16>
      %85 = vector.shape_cast %84 : vector<1x16x8xbf16> to vector<16x8xbf16>
      %86 = vector.shape_cast %83 : vector<16x8xbf16> to vector<1x16x8xbf16>
      tpu.vector_store %arg15[%c2, %c0_57, %c0_58], %86 {strides = array<i32>} : memref<4x16x8xbf16, #tpu.memory_space<vmem>>, vector<1x16x8xbf16>,
      %87 = vector.extract_strided_slice %70 {offsets = [0, 24], sizes = [16, 8], strides = [1, 1]} : vector<16x128xf32> to vector<16x8xf32>
      %88 = arith.truncf %87 : vector<16x8xf32> to vector<16x8xbf16>
      %c3 = arith.constant 3 : index
      %c0_59 = arith.constant 0 : index
      %c0_60 = arith.constant 0 : index
      %89 = vector.load %arg15[%c3, %c0_59, %c0_60] : memref<4x16x8xbf16, #tpu.memory_space<vmem>>, vector<1x16x8xbf16>
      %90 = vector.shape_cast %89 : vector<1x16x8xbf16> to vector<16x8xbf16>
      %91 = vector.shape_cast %88 : vector<16x8xbf16> to vector<1x16x8xbf16>
      tpu.vector_store %arg15[%c3, %c0_59, %c0_60], %91 {strides = array<i32>} : memref<4x16x8xbf16, #tpu.memory_space<vmem>>, vector<1x16x8xbf16>,
      %cst_61 = arith.constant 0xFF800000 : f32
      %92 = vector.broadcast %cst_61 : f32 to vector<4x16x1xf32>
      %c0_62 = arith.constant 0 : index
      %c0_63 = arith.constant 0 : index
      %c0_64 = arith.constant 0 : index
      %93 = vector.load %arg16[%c0_62, %c0_63, %c0_64] : memref<4x16x1xf32, #tpu.memory_space<vmem>>, vector<4x16x1xf32>
      tpu.vector_store %arg16[%c0_62, %c0_63, %c0_64], %92 {strides = array<i32>} : memref<4x16x1xf32, #tpu.memory_space<vmem>>, vector<4x16x1xf32>,
      %cst_65 = arith.constant 0.000000e+00 : f32
      %94 = vector.broadcast %cst_65 : f32 to vector<4x16x1xf32>
      %c0_66 = arith.constant 0 : index
      %c0_67 = arith.constant 0 : index
      %c0_68 = arith.constant 0 : index
      %95 = vector.load %arg17[%c0_66, %c0_67, %c0_68] : memref<4x16x1xf32, #tpu.memory_space<vmem>>, vector<4x16x1xf32>
      tpu.vector_store %arg17[%c0_66, %c0_67, %c0_68], %94 {strides = array<i32>} : memref<4x16x1xf32, #tpu.memory_space<vmem>>, vector<4x16x1xf32>,
      %cst_69 = arith.constant 0.000000e+00 : f32
      %96 = vector.broadcast %cst_69 : f32 to vector<4x16x8xf32>
      %c0_70 = arith.constant 0 : index
      %c0_71 = arith.constant 0 : index
      %c0_72 = arith.constant 0 : index
      %97 = vector.load %arg18[%c0_70, %c0_71, %c0_72] : memref<4x16x8xf32, #tpu.memory_space<vmem>>, vector<4x16x8xf32>
      tpu.vector_store %arg18[%c0_70, %c0_71, %c0_72], %96 {strides = array<i32>} : memref<4x16x8xf32, #tpu.memory_space<vmem>>, vector<4x16x8xf32>,
    } else {
    }
    %c0 = arith.constant 0 : index
    %c0_1 = arith.constant 0 : index
    %c0_2 = arith.constant 0 : index
    %3 = vector.load %arg4[%c0, %c0_1, %c0_2] : memref<1x8x128xbf16, #tpu.memory_space<vmem>>, vector<1x8x128xbf16>
    %4 = vector.shape_cast %3 : vector<1x8x128xbf16> to vector<8x128xbf16>
    %c0_3 = arith.constant 0 : index
    %c0_4 = arith.constant 0 : index
    %5 = vector.load %arg7[%c0_3, %c0_4] : memref<128x128xbf16, #tpu.memory_space<vmem>>, vector<128x128xbf16>
    %cst = arith.constant dense<0.000000e+00> : vector<8x128xf32>
    %6 = tpu.matmul %4, %5, %cst {dimension_numbers = #tpu.dot_dimension_numbers<[1], [0], [0], [1], [0, 0, 1, 1], [], []>} : vector<8x128xbf16>, vector<128x128xbf16>, vector<8x128xf32> -> vector<8x128xf32>
    %c0_5 = arith.constant 0 : index
    %c0_6 = arith.constant 0 : index
    %7 = vector.load %arg8[%c0_5, %c0_6] : memref<1x128xf32, #tpu.memory_space<vmem>>, vector<1x128xf32>
    %8 = vector.broadcast %7 : vector<1x128xf32> to vector<8x128xf32>
    %9 = arith.addf %6, %8 : vector<8x128xf32>
    %c0_7 = arith.constant 0 : index
    %c0_8 = arith.constant 0 : index
    %10 = vector.load %arg9[%c0_7, %c0_8] : memref<128x128xbf16, #tpu.memory_space<vmem>>, vector<128x128xbf16>
    %cst_9 = arith.constant dense<0.000000e+00> : vector<8x128xf32>
    %11 = tpu.matmul %4, %10, %cst_9 {dimension_numbers = #tpu.dot_dimension_numbers<[1], [0], [0], [1], [0, 0, 1, 1], [], []>} : vector<8x128xbf16>, vector<128x128xbf16>, vector<8x128xf32> -> vector<8x128xf32>
    %c0_10 = arith.constant 0 : index
    %c0_11 = arith.constant 0 : index
    %12 = vector.load %arg10[%c0_10, %c0_11] : memref<1x128xf32, #tpu.memory_space<vmem>>, vector<1x128xf32>
    %13 = vector.broadcast %12 : vector<1x128xf32> to vector<8x128xf32>
    %14 = arith.addf %11, %13 : vector<8x128xf32>
    %15 = vector.extract_strided_slice %9 {offsets = [0, 0], sizes = [8, 8], strides = [1, 1]} : vector<8x128xf32> to vector<8x8xf32>
    %16 = vector.extract_strided_slice %9 {offsets = [0, 8], sizes = [8, 8], strides = [1, 1]} : vector<8x128xf32> to vector<8x8xf32>
    %17 = vector.extract_strided_slice %9 {offsets = [0, 16], sizes = [8, 8], strides = [1, 1]} : vector<8x128xf32> to vector<8x8xf32>
    %18 = vector.extract_strided_slice %9 {offsets = [0, 24], sizes = [8, 8], strides = [1, 1]} : vector<8x128xf32> to vector<8x8xf32>
    %19 = vector.shape_cast %15 : vector<8x8xf32> to vector<1x8x8xf32>
    %20 = vector.shape_cast %16 : vector<8x8xf32> to vector<1x8x8xf32>
    %21 = vector.shape_cast %17 : vector<8x8xf32> to vector<1x8x8xf32>
    %22 = vector.shape_cast %18 : vector<8x8xf32> to vector<1x8x8xf32>
    %23 = tpu.concatenate %19, %20, %21, %22 in 0 : vector<1x8x8xf32>, vector<1x8x8xf32>, vector<1x8x8xf32>, vector<1x8x8xf32> -> vector<4x8x8xf32>
    %24 = arith.truncf %23 : vector<4x8x8xf32> to vector<4x8x8xbf16>
    %25 = vector.extract_strided_slice %14 {offsets = [0, 0], sizes = [8, 8], strides = [1, 1]} : vector<8x128xf32> to vector<8x8xf32>
    %26 = vector.extract_strided_slice %14 {offsets = [0, 8], sizes = [8, 8], strides = [1, 1]} : vector<8x128xf32> to vector<8x8xf32>
    %27 = vector.extract_strided_slice %14 {offsets = [0, 16], sizes = [8, 8], strides = [1, 1]} : vector<8x128xf32> to vector<8x8xf32>
    %28 = vector.extract_strided_slice %14 {offsets = [0, 24], sizes = [8, 8], strides = [1, 1]} : vector<8x128xf32> to vector<8x8xf32>
    %29 = vector.shape_cast %25 : vector<8x8xf32> to vector<1x8x8xf32>
    %30 = vector.shape_cast %26 : vector<8x8xf32> to vector<1x8x8xf32>
    %31 = vector.shape_cast %27 : vector<8x8xf32> to vector<1x8x8xf32>
    %32 = vector.shape_cast %28 : vector<8x8xf32> to vector<1x8x8xf32>
    %33 = tpu.concatenate %29, %30, %31, %32 in 0 : vector<1x8x8xf32>, vector<1x8x8xf32>, vector<1x8x8xf32>, vector<1x8x8xf32> -> vector<4x8x8xf32>
    %34 = arith.truncf %33 : vector<4x8x8xf32> to vector<4x8x8xbf16>
    %c0_12 = arith.constant 0 : index
    %c0_13 = arith.constant 0 : index
    %c0_14 = arith.constant 0 : index
    %35 = vector.load %arg15[%c0_12, %c0_13, %c0_14] : memref<4x16x8xbf16, #tpu.memory_space<vmem>>, vector<4x16x8xbf16>
    "tpu.trace_start"() <{level = 10 : i32, message = "hqd,hkd->hqk"}> : () -> ()
    %cst_15 = arith.constant dense<0.000000e+00> : vector<4x16x8xf32>
    %36 = tpu.matmul %35, %24, %cst_15 {dimension_numbers = #tpu.dot_dimension_numbers<[2], [2], [1], [1], [0, 0, 0, 1, 1, 1], [0], [0]>} : vector<4x16x8xbf16>, vector<4x8x8xbf16>, vector<4x16x8xf32> -> vector<4x16x8xf32>
    "tpu.trace_stop"() : () -> ()
    %c0_16 = arith.constant 0 : index
    %c0_17 = arith.constant 0 : index
    %c0_18 = arith.constant 0 : index
    %37 = vector.load %arg16[%c0_16, %c0_17, %c0_18] : memref<4x16x1xf32, #tpu.memory_space<vmem>>, vector<4x16x1xf32>
    %cst_19 = arith.constant dense<0xFF800000> : vector<4x16xf32>
    %38 = vector.multi_reduction <maximumf>, %36, %cst_19 [2] : vector<4x16x8xf32> to vector<4x16xf32>
    %39 = vector.shape_cast %38 : vector<4x16xf32> to vector<4x16x1xf32>
    %40 = arith.maximumf %37, %39 : vector<4x16x1xf32>
    %c0_20 = arith.constant 0 : index
    %c0_21 = arith.constant 0 : index
    %c0_22 = arith.constant 0 : index
    %41 = vector.load %arg16[%c0_20, %c0_21, %c0_22] : memref<4x16x1xf32, #tpu.memory_space<vmem>>, vector<4x16x1xf32>
    %42 = arith.subf %41, %40 : vector<4x16x1xf32>
    %43 = math.exp %42 : vector<4x16x1xf32>
    %44 = vector.broadcast %40 : vector<4x16x1xf32> to vector<4x16x8xf32>
    %45 = arith.subf %36, %44 : vector<4x16x8xf32>
    %46 = math.exp %45 : vector<4x16x8xf32>
    %c0_23 = arith.constant 0 : index
    %c0_24 = arith.constant 0 : index
    %c0_25 = arith.constant 0 : index
    %47 = vector.load %arg17[%c0_23, %c0_24, %c0_25] : memref<4x16x1xf32, #tpu.memory_space<vmem>>, vector<4x16x1xf32>
    %48 = arith.mulf %43, %47 : vector<4x16x1xf32>
    %cst_26 = arith.constant dense<0.000000e+00> : vector<4x16xf32>
    %49 = vector.multi_reduction <add>, %46, %cst_26 [2] : vector<4x16x8xf32> to vector<4x16xf32>
    %50 = vector.shape_cast %49 : vector<4x16xf32> to vector<4x16x1xf32>
    %51 = arith.addf %48, %50 : vector<4x16x1xf32>
    %c0_27 = arith.constant 0 : index
    %c0_28 = arith.constant 0 : index
    %c0_29 = arith.constant 0 : index
    %52 = vector.load %arg17[%c0_27, %c0_28, %c0_29] : memref<4x16x1xf32, #tpu.memory_space<vmem>>, vector<4x16x1xf32>
    tpu.vector_store %arg17[%c0_27, %c0_28, %c0_29], %51 {strides = array<i32>} : memref<4x16x1xf32, #tpu.memory_space<vmem>>, vector<4x16x1xf32>,
    %c0_30 = arith.constant 0 : index
    %c0_31 = arith.constant 0 : index
    %c0_32 = arith.constant 0 : index
    %53 = vector.load %arg18[%c0_30, %c0_31, %c0_32] : memref<4x16x8xf32, #tpu.memory_space<vmem>>, vector<4x16x8xf32>
    %54 = vector.broadcast %43 : vector<4x16x1xf32> to vector<4x16x8xf32>
    %55 = arith.mulf %54, %53 : vector<4x16x8xf32>
    %56 = arith.truncf %46 : vector<4x16x8xf32> to vector<4x16x8xbf16>
    "tpu.trace_start"() <{level = 10 : i32, message = "hqk,hkd->hqd"}> : () -> ()
    %cst_33 = arith.constant dense<0.000000e+00> : vector<4x16x8xf32>
    %57 = tpu.matmul %56, %34, %cst_33 {dimension_numbers = #tpu.dot_dimension_numbers<[2], [1], [1], [2], [0, 0, 0, 1, 1, 2], [0], [0]>} : vector<4x16x8xbf16>, vector<4x8x8xbf16>, vector<4x16x8xf32> -> vector<4x16x8xf32>
    "tpu.trace_stop"() : () -> ()
    %58 = arith.addf %55, %57 : vector<4x16x8xf32>
    %c0_34 = arith.constant 0 : index
    %c0_35 = arith.constant 0 : index
    %c0_36 = arith.constant 0 : index
    %59 = vector.load %arg18[%c0_34, %c0_35, %c0_36] : memref<4x16x8xf32, #tpu.memory_space<vmem>>, vector<4x16x8xf32>
    tpu.vector_store %arg18[%c0_34, %c0_35, %c0_36], %58 {strides = array<i32>} : memref<4x16x8xf32, #tpu.memory_space<vmem>>, vector<4x16x8xf32>,
    %c0_37 = arith.constant 0 : index
    %c0_38 = arith.constant 0 : index
    %c0_39 = arith.constant 0 : index
    %60 = vector.load %arg16[%c0_37, %c0_38, %c0_39] : memref<4x16x1xf32, #tpu.memory_space<vmem>>, vector<4x16x1xf32>
    tpu.vector_store %arg16[%c0_37, %c0_38, %c0_39], %40 {strides = array<i32>} : memref<4x16x1xf32, #tpu.memory_space<vmem>>, vector<4x16x1xf32>,
    %c0_i32_40 = arith.constant 0 : i32
    %61 = arith.cmpi eq, %arg2, %c0_i32_40 : i32
    %62 = arith.extui %61 : i1 to i32
    %c0_i32_41 = arith.constant 0 : i32
    %63 = arith.cmpi ne, %62, %c0_i32_41 : i32
    scf.if %63 {
      %c0_42 = arith.constant 0 : index
      %c0_43 = arith.constant 0 : index
      %c0_44 = arith.constant 0 : index
      %64 = vector.load %arg18[%c0_42, %c0_43, %c0_44] : memref<4x16x8xf32, #tpu.memory_space<vmem>>, vector<4x16x8xf32>
      %c0_45 = arith.constant 0 : index
      %c0_46 = arith.constant 0 : index
      %c0_47 = arith.constant 0 : index
      %65 = vector.load %arg17[%c0_45, %c0_46, %c0_47] : memref<4x16x1xf32, #tpu.memory_space<vmem>>, vector<4x16x1xf32>
      %66 = tpu.reciprocal %65 {approx = true} : vector<4x16x1xf32> -> vector<4x16x1xf32>
      %67 = vector.broadcast %66 : vector<4x16x1xf32> to vector<4x16x8xf32>
      %68 = arith.mulf %64, %67 : vector<4x16x8xf32>
      %69 = vector.extract_strided_slice %68 {offsets = [0, 0, 0], sizes = [1, 16, 8], strides = [1, 1, 1]} : vector<4x16x8xf32> to vector<1x16x8xf32>
      %70 = vector.shape_cast %69 : vector<1x16x8xf32> to vector<16x8xf32>
      %71 = vector.extract_strided_slice %68 {offsets = [1, 0, 0], sizes = [1, 16, 8], strides = [1, 1, 1]} : vector<4x16x8xf32> to vector<1x16x8xf32>
      %72 = vector.shape_cast %71 : vector<1x16x8xf32> to vector<16x8xf32>
      %73 = vector.extract_strided_slice %68 {offsets = [2, 0, 0], sizes = [1, 16, 8], strides = [1, 1, 1]} : vector<4x16x8xf32> to vector<1x16x8xf32>
      %74 = vector.shape_cast %73 : vector<1x16x8xf32> to vector<16x8xf32>
      %75 = vector.extract_strided_slice %68 {offsets = [3, 0, 0], sizes = [1, 16, 8], strides = [1, 1, 1]} : vector<4x16x8xf32> to vector<1x16x8xf32>
      %76 = vector.shape_cast %75 : vector<1x16x8xf32> to vector<16x8xf32>
      %cst_48 = arith.constant 0.000000e+00 : f32
      %77 = vector.broadcast %cst_48 : f32 to vector<16x96xf32>
      %78 = tpu.concatenate %70, %72, %74, %76, %77 in 1 : vector<16x8xf32>, vector<16x8xf32>, vector<16x8xf32>, vector<16x8xf32>, vector<16x96xf32> -> vector<16x128xf32>
      %c0_49 = arith.constant 0 : index
      %c0_50 = arith.constant 0 : index
      %79 = vector.load %arg14[%c0_49, %c0_50] : memref<16x128xf32, #tpu.memory_space<vmem>>, vector<16x128xf32>
      %80 = arith.addf %79, %78 : vector<16x128xf32>
      %81 = arith.truncf %80 : vector<16x128xf32> to vector<16x128xbf16>
      %c0_51 = arith.constant 0 : index
      %c0_52 = arith.constant 0 : index
      %82 = vector.load %arg11[%c0_51, %c0_52] : memref<128x128xbf16, #tpu.memory_space<vmem>>, vector<128x128xbf16>
      %cst_53 = arith.constant dense<0.000000e+00> : vector<16x128xf32>
      %83 = tpu.matmul %81, %82, %cst_53 {dimension_numbers = #tpu.dot_dimension_numbers<[1], [0], [0], [1], [0, 0, 1, 1], [], []>} : vector<16x128xbf16>, vector<128x128xbf16>, vector<16x128xf32> -> vector<16x128xf32>
      %c0_54 = arith.constant 0 : index
      %c0_55 = arith.constant 0 : index
      %84 = vector.load %arg12[%c0_54, %c0_55] : memref<1x128xf32, #tpu.memory_space<vmem>>, vector<1x128xf32>
      %85 = vector.broadcast %84 : vector<1x128xf32> to vector<16x128xf32>
      %86 = arith.addf %83, %85 : vector<16x128xf32>
      %cst_56 = arith.constant 0.000000e+00 : f32
      %87 = vector.broadcast %cst_56 : f32 to vector<16x128xf32>
      %88 = arith.maximumf %86, %87 : vector<16x128xf32>
      %89 = arith.addf %80, %88 : vector<16x128xf32>
      %90 = arith.truncf %89 : vector<16x128xf32> to vector<16x128xbf16>
      %c0_57 = arith.constant 0 : index
      %c0_58 = arith.constant 0 : index
      %c0_59 = arith.constant 0 : index
      %91 = vector.load %arg13[%c0_57, %c0_58, %c0_59] : memref<1x16x128xbf16, #tpu.memory_space<vmem>>, vector<1x16x128xbf16>
      %92 = vector.shape_cast %91 : vector<1x16x128xbf16> to vector<16x128xbf16>
      %93 = vector.shape_cast %90 : vector<16x128xbf16> to vector<1x16x128xbf16>
      tpu.vector_store %arg13[%c0_57, %c0_58, %c0_59], %93 {strides = array<i32>} : memref<1x16x128xbf16, #tpu.memory_space<vmem>>, vector<1x16x128xbf16>,
    } else {
    }
    return
  }
  func.func @transform_0(%arg0: i32, %arg1: i32, %arg2: i32) -> (i32, i32, i32) {
    %c0_i32 = arith.constant 0 : i32
    %c0_i32_0 = arith.constant 0 : i32
    return %arg0, %arg1, %c0_i32 : i32, i32, i32
  }
  func.func @transform_1(%arg0: i32, %arg1: i32, %arg2: i32) -> (i32, i32, i32) {
    %c0_i32 = arith.constant 0 : i32
    %c0_i32_0 = arith.constant 0 : i32
    return %arg0, %arg2, %c0_i32 : i32, i32, i32
  }
  func.func @transform_2(%arg0: i32, %arg1: i32, %arg2: i32) -> (i32, i32) {
    %c0_i32 = arith.constant 0 : i32
    %c0_i32_0 = arith.constant 0 : i32
    %c0_i32_1 = arith.constant 0 : i32
    return %c0_i32, %c0_i32_0 : i32, i32
  }
  func.func @transform_3(%arg0: i32, %arg1: i32, %arg2: i32) -> (i32, i32) {
    %c0_i32 = arith.constant 0 : i32
    %c0_i32_0 = arith.constant 0 : i32
    %c0_i32_1 = arith.constant 0 : i32
    return %c0_i32, %c0_i32_0 : i32, i32
  }
  func.func @transform_4(%arg0: i32, %arg1: i32, %arg2: i32) -> (i32, i32) {
    %c0_i32 = arith.constant 0 : i32
    %c0_i32_0 = arith.constant 0 : i32
    %c0_i32_1 = arith.constant 0 : i32
    return %c0_i32, %c0_i32_0 : i32, i32
  }
  func.func @transform_5(%arg0: i32, %arg1: i32, %arg2: i32) -> (i32, i32) {
    %c0_i32 = arith.constant 0 : i32
    %c0_i32_0 = arith.constant 0 : i32
    %c0_i32_1 = arith.constant 0 : i32
    return %c0_i32, %c0_i32_0 : i32, i32
  }
  func.func @transform_6(%arg0: i32, %arg1: i32, %arg2: i32) -> (i32, i32) {
    %c0_i32 = arith.constant 0 : i32
    %c0_i32_0 = arith.constant 0 : i32
    %c0_i32_1 = arith.constant 0 : i32
    return %c0_i32, %c0_i32_0 : i32, i32
  }
  func.func @transform_7(%arg0: i32, %arg1: i32, %arg2: i32) -> (i32, i32) {
    %c0_i32 = arith.constant 0 : i32
    %c0_i32_0 = arith.constant 0 : i32
    %c0_i32_1 = arith.constant 0 : i32
    return %c0_i32, %c0_i32_0 : i32, i32
  }
  func.func @transform_8(%arg0: i32, %arg1: i32, %arg2: i32) -> (i32, i32) {
    %c0_i32 = arith.constant 0 : i32
    %c0_i32_0 = arith.constant 0 : i32
    %c0_i32_1 = arith.constant 0 : i32
    return %c0_i32, %c0_i32_0 : i32, i32
  }
  func.func @transform_9(%arg0: i32, %arg1: i32, %arg2: i32) -> (i32, i32) {
    %c0_i32 = arith.constant 0 : i32
    %c0_i32_0 = arith.constant 0 : i32
    %c0_i32_1 = arith.constant 0 : i32
    return %c0_i32, %c0_i32_0 : i32, i32
  }
  func.func @transform_10(%arg0: i32, %arg1: i32, %arg2: i32) -> (i32, i32, i32) {
    %c0_i32 = arith.constant 0 : i32
    %c0_i32_0 = arith.constant 0 : i32
    return %arg0, %arg1, %c0_i32 : i32, i32, i32
  }
}

module attributes {stable_mosaic.version = 11 : i64} {
  func.func @_mab_kernel(%arg0: i32, %arg1: i32, %arg2: i32, %arg3: memref<1x16x128xbf16, #tpu.memory_space<vmem>>, %arg4: memref<1x8x128xbf16, #tpu.memory_space<vmem>>, %arg5: memref<128x128xbf16, #tpu.memory_space<vmem>>, %arg6: memref<1x128xf32, #tpu.memory_space<vmem>>, %arg7: memref<128x128xbf16, #tpu.memory_space<vmem>>, %arg8: memref<1x128xf32, #tpu.memory_space<vmem>>, %arg9: memref<128x128xbf16, #tpu.memory_space<vmem>>, %arg10: memref<1x128xf32, #tpu.memory_space<vmem>>, %arg11: memref<128x128xbf16, #tpu.memory_space<vmem>>, %arg12: memref<1x128xf32, #tpu.memory_space<vmem>>, %arg13: memref<128x128xbf16, #tpu.memory_space<vmem>>, %arg14: memref<1x128xf32, #tpu.memory_space<vmem>>, %arg15: memref<1x16x128xf32, #tpu.memory_space<vmem>>, %arg16: memref<16x128xf32, #tpu.memory_space<vmem>>, %arg17: memref<4x16x8xbf16, #tpu.memory_space<vmem>>, %arg18: memref<4x16x1xf32, #tpu.memory_space<vmem>>, %arg19: memref<4x16x1xf32, #tpu.memory_space<vmem>>, %arg20: memref<4x16x8xf32, #tpu.memory_space<vmem>>) attributes {dimension_semantics = [#tpu.dimension_semantics<parallel>, #tpu.dimension_semantics<parallel>, #tpu.dimension_semantics<arbitrary>], iteration_bounds = array<i64: 2, 1, 1>, scalar_prefetch = 0 : i64, scratch_operands = 5 : i64, tpu.core_type = #tpu.core_type<tc>, window_params = [{transform_indices = @transform_0, window_bounds = array<i64: 1, 16, 128>}, {transform_indices = @transform_1, window_bounds = array<i64: 1, 8, 128>}, {pipeline_mode = #tpu.pipeline_mode<synchronous>, transform_indices = @transform_2, window_bounds = array<i64: 128, 128>}, {pipeline_mode = #tpu.pipeline_mode<synchronous>, transform_indices = @transform_3, window_bounds = array<i64: 1, 128>}, {pipeline_mode = #tpu.pipeline_mode<synchronous>, transform_indices = @transform_4, window_bounds = array<i64: 128, 128>}, {pipeline_mode = #tpu.pipeline_mode<synchronous>, transform_indices = @transform_5, window_bounds = array<i64: 1, 128>}, {pipeline_mode = #tpu.pipeline_mode<synchronous>, transform_indices = @transform_6, window_bounds = array<i64: 128, 128>}, {pipeline_mode = #tpu.pipeline_mode<synchronous>, transform_indices = @transform_7, window_bounds = array<i64: 1, 128>}, {pipeline_mode = #tpu.pipeline_mode<synchronous>, transform_indices = @transform_8, window_bounds = array<i64: 128, 128>}, {pipeline_mode = #tpu.pipeline_mode<synchronous>, transform_indices = @transform_9, window_bounds = array<i64: 1, 128>}, {pipeline_mode = #tpu.pipeline_mode<synchronous>, transform_indices = @transform_10, window_bounds = array<i64: 128, 128>}, {pipeline_mode = #tpu.pipeline_mode<synchronous>, transform_indices = @transform_11, window_bounds = array<i64: 1, 128>}, {transform_indices = @transform_12, window_bounds = array<i64: 1, 16, 128>}]} {
    %c0_i32 = arith.constant 0 : i32
    %0 = arith.cmpi eq, %arg2, %c0_i32 : i32
    %1 = arith.extui %0 : i1 to i32
    %c0_i32_0 = arith.constant 0 : i32
    %2 = arith.cmpi ne, %1, %c0_i32_0 : i32
    scf.if %2 {
      %c0_42 = arith.constant 0 : index
      %c0_43 = arith.constant 0 : index
      %c0_44 = arith.constant 0 : index
      %64 = vector.load %arg3[%c0_42, %c0_43, %c0_44] : memref<1x16x128xbf16, #tpu.memory_space<vmem>>, vector<1x16x128xbf16>
      %65 = vector.shape_cast %64 : vector<1x16x128xbf16> to vector<16x128xbf16>
      %c0_45 = arith.constant 0 : index
      %c0_46 = arith.constant 0 : index
      %66 = vector.load %arg5[%c0_45, %c0_46] : memref<128x128xbf16, #tpu.memory_space<vmem>>, vector<128x128xbf16>
      %cst_47 = arith.constant dense<0.000000e+00> : vector<16x128xf32>
      %67 = tpu.matmul %65, %66, %cst_47 {dimension_numbers = #tpu.dot_dimension_numbers<[1], [0], [0], [1], [0, 0, 1, 1], [], []>} : vector<16x128xbf16>, vector<128x128xbf16>, vector<16x128xf32> -> vector<16x128xf32>
      %c0_48 = arith.constant 0 : index
      %c0_49 = arith.constant 0 : index
      %68 = vector.load %arg6[%c0_48, %c0_49] : memref<1x128xf32, #tpu.memory_space<vmem>>, vector<1x128xf32>
      %69 = vector.broadcast %68 : vector<1x128xf32> to vector<16x128xf32>
      %70 = arith.addf %67, %69 : vector<16x128xf32>
      %c0_50 = arith.constant 0 : index
      %c0_51 = arith.constant 0 : index
      %71 = vector.load %arg16[%c0_50, %c0_51] : memref<16x128xf32, #tpu.memory_space<vmem>>, vector<16x128xf32>
      tpu.vector_store %arg16[%c0_50, %c0_51], %70 {strides = array<i32>} : memref<16x128xf32, #tpu.memory_space<vmem>>, vector<16x128xf32>,
      %72 = vector.extract_strided_slice %70 {offsets = [0, 0], sizes = [16, 8], strides = [1, 1]} : vector<16x128xf32> to vector<16x8xf32>
      %73 = arith.truncf %72 : vector<16x8xf32> to vector<16x8xbf16>
      %c0_52 = arith.constant 0 : index
      %c0_53 = arith.constant 0 : index
      %c0_54 = arith.constant 0 : index
      %74 = vector.load %arg17[%c0_52, %c0_53, %c0_54] : memref<4x16x8xbf16, #tpu.memory_space<vmem>>, vector<1x16x8xbf16>
      %75 = vector.shape_cast %74 : vector<1x16x8xbf16> to vector<16x8xbf16>
      %76 = vector.shape_cast %73 : vector<16x8xbf16> to vector<1x16x8xbf16>
      tpu.vector_store %arg17[%c0_52, %c0_53, %c0_54], %76 {strides = array<i32>} : memref<4x16x8xbf16, #tpu.memory_space<vmem>>, vector<1x16x8xbf16>,
      %77 = vector.extract_strided_slice %70 {offsets = [0, 8], sizes = [16, 8], strides = [1, 1]} : vector<16x128xf32> to vector<16x8xf32>
      %78 = arith.truncf %77 : vector<16x8xf32> to vector<16x8xbf16>
      %c1 = arith.constant 1 : index
      %c0_55 = arith.constant 0 : index
      %c0_56 = arith.constant 0 : index
      %79 = vector.load %arg17[%c1, %c0_55, %c0_56] : memref<4x16x8xbf16, #tpu.memory_space<vmem>>, vector<1x16x8xbf16>
      %80 = vector.shape_cast %79 : vector<1x16x8xbf16> to vector<16x8xbf16>
      %81 = vector.shape_cast %78 : vector<16x8xbf16> to vector<1x16x8xbf16>
      tpu.vector_store %arg17[%c1, %c0_55, %c0_56], %81 {strides = array<i32>} : memref<4x16x8xbf16, #tpu.memory_space<vmem>>, vector<1x16x8xbf16>,
      %82 = vector.extract_strided_slice %70 {offsets = [0, 16], sizes = [16, 8], strides = [1, 1]} : vector<16x128xf32> to vector<16x8xf32>
      %83 = arith.truncf %82 : vector<16x8xf32> to vector<16x8xbf16>
      %c2 = arith.constant 2 : index
      %c0_57 = arith.constant 0 : index
      %c0_58 = arith.constant 0 : index
      %84 = vector.load %arg17[%c2, %c0_57, %c0_58] : memref<4x16x8xbf16, #tpu.memory_space<vmem>>, vector<1x16x8xbf16>
      %85 = vector.shape_cast %84 : vector<1x16x8xbf16> to vector<16x8xbf16>
      %86 = vector.shape_cast %83 : vector<16x8xbf16> to vector<1x16x8xbf16>
      tpu.vector_store %arg17[%c2, %c0_57, %c0_58], %86 {strides = array<i32>} : memref<4x16x8xbf16, #tpu.memory_space<vmem>>, vector<1x16x8xbf16>,
      %87 = vector.extract_strided_slice %70 {offsets = [0, 24], sizes = [16, 8], strides = [1, 1]} : vector<16x128xf32> to vector<16x8xf32>
      %88 = arith.truncf %87 : vector<16x8xf32> to vector<16x8xbf16>
      %c3 = arith.constant 3 : index
      %c0_59 = arith.constant 0 : index
      %c0_60 = arith.constant 0 : index
      %89 = vector.load %arg17[%c3, %c0_59, %c0_60] : memref<4x16x8xbf16, #tpu.memory_space<vmem>>, vector<1x16x8xbf16>
      %90 = vector.shape_cast %89 : vector<1x16x8xbf16> to vector<16x8xbf16>
      %91 = vector.shape_cast %88 : vector<16x8xbf16> to vector<1x16x8xbf16>
      tpu.vector_store %arg17[%c3, %c0_59, %c0_60], %91 {strides = array<i32>} : memref<4x16x8xbf16, #tpu.memory_space<vmem>>, vector<1x16x8xbf16>,
      %cst_61 = arith.constant 0xFF800000 : f32
      %92 = vector.broadcast %cst_61 : f32 to vector<4x16x1xf32>
      %c0_62 = arith.constant 0 : index
      %c0_63 = arith.constant 0 : index
      %c0_64 = arith.constant 0 : index
      %93 = vector.load %arg18[%c0_62, %c0_63, %c0_64] : memref<4x16x1xf32, #tpu.memory_space<vmem>>, vector<4x16x1xf32>
      tpu.vector_store %arg18[%c0_62, %c0_63, %c0_64], %92 {strides = array<i32>} : memref<4x16x1xf32, #tpu.memory_space<vmem>>, vector<4x16x1xf32>,
      %cst_65 = arith.constant 0.000000e+00 : f32
      %94 = vector.broadcast %cst_65 : f32 to vector<4x16x1xf32>
      %c0_66 = arith.constant 0 : index
      %c0_67 = arith.constant 0 : index
      %c0_68 = arith.constant 0 : index
      %95 = vector.load %arg19[%c0_66, %c0_67, %c0_68] : memref<4x16x1xf32, #tpu.memory_space<vmem>>, vector<4x16x1xf32>
      tpu.vector_store %arg19[%c0_66, %c0_67, %c0_68], %94 {strides = array<i32>} : memref<4x16x1xf32, #tpu.memory_space<vmem>>, vector<4x16x1xf32>,
      %cst_69 = arith.constant 0.000000e+00 : f32
      %96 = vector.broadcast %cst_69 : f32 to vector<4x16x8xf32>
      %c0_70 = arith.constant 0 : index
      %c0_71 = arith.constant 0 : index
      %c0_72 = arith.constant 0 : index
      %97 = vector.load %arg20[%c0_70, %c0_71, %c0_72] : memref<4x16x8xf32, #tpu.memory_space<vmem>>, vector<4x16x8xf32>
      tpu.vector_store %arg20[%c0_70, %c0_71, %c0_72], %96 {strides = array<i32>} : memref<4x16x8xf32, #tpu.memory_space<vmem>>, vector<4x16x8xf32>,
    } else {
    }
    %c0 = arith.constant 0 : index
    %c0_1 = arith.constant 0 : index
    %c0_2 = arith.constant 0 : index
    %3 = vector.load %arg4[%c0, %c0_1, %c0_2] : memref<1x8x128xbf16, #tpu.memory_space<vmem>>, vector<1x8x128xbf16>
    %4 = vector.shape_cast %3 : vector<1x8x128xbf16> to vector<8x128xbf16>
    %c0_3 = arith.constant 0 : index
    %c0_4 = arith.constant 0 : index
    %5 = vector.load %arg7[%c0_3, %c0_4] : memref<128x128xbf16, #tpu.memory_space<vmem>>, vector<128x128xbf16>
    %cst = arith.constant dense<0.000000e+00> : vector<8x128xf32>
    %6 = tpu.matmul %4, %5, %cst {dimension_numbers = #tpu.dot_dimension_numbers<[1], [0], [0], [1], [0, 0, 1, 1], [], []>} : vector<8x128xbf16>, vector<128x128xbf16>, vector<8x128xf32> -> vector<8x128xf32>
    %c0_5 = arith.constant 0 : index
    %c0_6 = arith.constant 0 : index
    %7 = vector.load %arg8[%c0_5, %c0_6] : memref<1x128xf32, #tpu.memory_space<vmem>>, vector<1x128xf32>
    %8 = vector.broadcast %7 : vector<1x128xf32> to vector<8x128xf32>
    %9 = arith.addf %6, %8 : vector<8x128xf32>
    %c0_7 = arith.constant 0 : index
    %c0_8 = arith.constant 0 : index
    %10 = vector.load %arg9[%c0_7, %c0_8] : memref<128x128xbf16, #tpu.memory_space<vmem>>, vector<128x128xbf16>
    %cst_9 = arith.constant dense<0.000000e+00> : vector<8x128xf32>
    %11 = tpu.matmul %4, %10, %cst_9 {dimension_numbers = #tpu.dot_dimension_numbers<[1], [0], [0], [1], [0, 0, 1, 1], [], []>} : vector<8x128xbf16>, vector<128x128xbf16>, vector<8x128xf32> -> vector<8x128xf32>
    %c0_10 = arith.constant 0 : index
    %c0_11 = arith.constant 0 : index
    %12 = vector.load %arg10[%c0_10, %c0_11] : memref<1x128xf32, #tpu.memory_space<vmem>>, vector<1x128xf32>
    %13 = vector.broadcast %12 : vector<1x128xf32> to vector<8x128xf32>
    %14 = arith.addf %11, %13 : vector<8x128xf32>
    %15 = vector.extract_strided_slice %9 {offsets = [0, 0], sizes = [8, 8], strides = [1, 1]} : vector<8x128xf32> to vector<8x8xf32>
    %16 = vector.extract_strided_slice %9 {offsets = [0, 8], sizes = [8, 8], strides = [1, 1]} : vector<8x128xf32> to vector<8x8xf32>
    %17 = vector.extract_strided_slice %9 {offsets = [0, 16], sizes = [8, 8], strides = [1, 1]} : vector<8x128xf32> to vector<8x8xf32>
    %18 = vector.extract_strided_slice %9 {offsets = [0, 24], sizes = [8, 8], strides = [1, 1]} : vector<8x128xf32> to vector<8x8xf32>
    %19 = vector.shape_cast %15 : vector<8x8xf32> to vector<1x8x8xf32>
    %20 = vector.shape_cast %16 : vector<8x8xf32> to vector<1x8x8xf32>
    %21 = vector.shape_cast %17 : vector<8x8xf32> to vector<1x8x8xf32>
    %22 = vector.shape_cast %18 : vector<8x8xf32> to vector<1x8x8xf32>
    %23 = tpu.concatenate %19, %20, %21, %22 in 0 : vector<1x8x8xf32>, vector<1x8x8xf32>, vector<1x8x8xf32>, vector<1x8x8xf32> -> vector<4x8x8xf32>
    %24 = arith.truncf %23 : vector<4x8x8xf32> to vector<4x8x8xbf16>
    %25 = vector.extract_strided_slice %14 {offsets = [0, 0], sizes = [8, 8], strides = [1, 1]} : vector<8x128xf32> to vector<8x8xf32>
    %26 = vector.extract_strided_slice %14 {offsets = [0, 8], sizes = [8, 8], strides = [1, 1]} : vector<8x128xf32> to vector<8x8xf32>
    %27 = vector.extract_strided_slice %14 {offsets = [0, 16], sizes = [8, 8], strides = [1, 1]} : vector<8x128xf32> to vector<8x8xf32>
    %28 = vector.extract_strided_slice %14 {offsets = [0, 24], sizes = [8, 8], strides = [1, 1]} : vector<8x128xf32> to vector<8x8xf32>
    %29 = vector.shape_cast %25 : vector<8x8xf32> to vector<1x8x8xf32>
    %30 = vector.shape_cast %26 : vector<8x8xf32> to vector<1x8x8xf32>
    %31 = vector.shape_cast %27 : vector<8x8xf32> to vector<1x8x8xf32>
    %32 = vector.shape_cast %28 : vector<8x8xf32> to vector<1x8x8xf32>
    %33 = tpu.concatenate %29, %30, %31, %32 in 0 : vector<1x8x8xf32>, vector<1x8x8xf32>, vector<1x8x8xf32>, vector<1x8x8xf32> -> vector<4x8x8xf32>
    %34 = arith.truncf %33 : vector<4x8x8xf32> to vector<4x8x8xbf16>
    %c0_12 = arith.constant 0 : index
    %c0_13 = arith.constant 0 : index
    %c0_14 = arith.constant 0 : index
    %35 = vector.load %arg17[%c0_12, %c0_13, %c0_14] : memref<4x16x8xbf16, #tpu.memory_space<vmem>>, vector<4x16x8xbf16>
    "tpu.trace_start"() <{level = 10 : i32, message = "hqd,hkd->hqk"}> : () -> ()
    %cst_15 = arith.constant dense<0.000000e+00> : vector<4x16x8xf32>
    %36 = tpu.matmul %35, %24, %cst_15 {dimension_numbers = #tpu.dot_dimension_numbers<[2], [2], [1], [1], [0, 0, 0, 1, 1, 1], [0], [0]>} : vector<4x16x8xbf16>, vector<4x8x8xbf16>, vector<4x16x8xf32> -> vector<4x16x8xf32>
    "tpu.trace_stop"() : () -> ()
    %c0_16 = arith.constant 0 : index
    %c0_17 = arith.constant 0 : index
    %c0_18 = arith.constant 0 : index
    %37 = vector.load %arg18[%c0_16, %c0_17, %c0_18] : memref<4x16x1xf32, #tpu.memory_space<vmem>>, vector<4x16x1xf32>
    %cst_19 = arith.constant dense<0xFF800000> : vector<4x16xf32>
    %38 = vector.multi_reduction <maximumf>, %36, %cst_19 [2] : vector<4x16x8xf32> to vector<4x16xf32>
    %39 = vector.shape_cast %38 : vector<4x16xf32> to vector<4x16x1xf32>
    %40 = arith.maximumf %37, %39 : vector<4x16x1xf32>
    %c0_20 = arith.constant 0 : index
    %c0_21 = arith.constant 0 : index
    %c0_22 = arith.constant 0 : index
    %41 = vector.load %arg18[%c0_20, %c0_21, %c0_22] : memref<4x16x1xf32, #tpu.memory_space<vmem>>, vector<4x16x1xf32>
    %42 = arith.subf %41, %40 : vector<4x16x1xf32>
    %43 = math.exp %42 : vector<4x16x1xf32>
    %44 = vector.broadcast %40 : vector<4x16x1xf32> to vector<4x16x8xf32>
    %45 = arith.subf %36, %44 : vector<4x16x8xf32>
    %46 = math.exp %45 : vector<4x16x8xf32>
    %c0_23 = arith.constant 0 : index
    %c0_24 = arith.constant 0 : index
    %c0_25 = arith.constant 0 : index
    %47 = vector.load %arg19[%c0_23, %c0_24, %c0_25] : memref<4x16x1xf32, #tpu.memory_space<vmem>>, vector<4x16x1xf32>
    %48 = arith.mulf %43, %47 : vector<4x16x1xf32>
    %cst_26 = arith.constant dense<0.000000e+00> : vector<4x16xf32>
    %49 = vector.multi_reduction <add>, %46, %cst_26 [2] : vector<4x16x8xf32> to vector<4x16xf32>
    %50 = vector.shape_cast %49 : vector<4x16xf32> to vector<4x16x1xf32>
    %51 = arith.addf %48, %50 : vector<4x16x1xf32>
    %c0_27 = arith.constant 0 : index
    %c0_28 = arith.constant 0 : index
    %c0_29 = arith.constant 0 : index
    %52 = vector.load %arg19[%c0_27, %c0_28, %c0_29] : memref<4x16x1xf32, #tpu.memory_space<vmem>>, vector<4x16x1xf32>
    tpu.vector_store %arg19[%c0_27, %c0_28, %c0_29], %51 {strides = array<i32>} : memref<4x16x1xf32, #tpu.memory_space<vmem>>, vector<4x16x1xf32>,
    %c0_30 = arith.constant 0 : index
    %c0_31 = arith.constant 0 : index
    %c0_32 = arith.constant 0 : index
    %53 = vector.load %arg20[%c0_30, %c0_31, %c0_32] : memref<4x16x8xf32, #tpu.memory_space<vmem>>, vector<4x16x8xf32>
    %54 = vector.broadcast %43 : vector<4x16x1xf32> to vector<4x16x8xf32>
    %55 = arith.mulf %54, %53 : vector<4x16x8xf32>
    %56 = arith.truncf %46 : vector<4x16x8xf32> to vector<4x16x8xbf16>
    "tpu.trace_start"() <{level = 10 : i32, message = "hqk,hkd->hqd"}> : () -> ()
    %cst_33 = arith.constant dense<0.000000e+00> : vector<4x16x8xf32>
    %57 = tpu.matmul %56, %34, %cst_33 {dimension_numbers = #tpu.dot_dimension_numbers<[2], [1], [1], [2], [0, 0, 0, 1, 1, 2], [0], [0]>} : vector<4x16x8xbf16>, vector<4x8x8xbf16>, vector<4x16x8xf32> -> vector<4x16x8xf32>
    "tpu.trace_stop"() : () -> ()
    %58 = arith.addf %55, %57 : vector<4x16x8xf32>
    %c0_34 = arith.constant 0 : index
    %c0_35 = arith.constant 0 : index
    %c0_36 = arith.constant 0 : index
    %59 = vector.load %arg20[%c0_34, %c0_35, %c0_36] : memref<4x16x8xf32, #tpu.memory_space<vmem>>, vector<4x16x8xf32>
    tpu.vector_store %arg20[%c0_34, %c0_35, %c0_36], %58 {strides = array<i32>} : memref<4x16x8xf32, #tpu.memory_space<vmem>>, vector<4x16x8xf32>,
    %c0_37 = arith.constant 0 : index
    %c0_38 = arith.constant 0 : index
    %c0_39 = arith.constant 0 : index
    %60 = vector.load %arg18[%c0_37, %c0_38, %c0_39] : memref<4x16x1xf32, #tpu.memory_space<vmem>>, vector<4x16x1xf32>
    tpu.vector_store %arg18[%c0_37, %c0_38, %c0_39], %40 {strides = array<i32>} : memref<4x16x1xf32, #tpu.memory_space<vmem>>, vector<4x16x1xf32>,
    %c0_i32_40 = arith.constant 0 : i32
    %61 = arith.cmpi eq, %arg2, %c0_i32_40 : i32
    %62 = arith.extui %61 : i1 to i32
    %c0_i32_41 = arith.constant 0 : i32
    %63 = arith.cmpi ne, %62, %c0_i32_41 : i32
    scf.if %63 {
      %c0_42 = arith.constant 0 : index
      %c0_43 = arith.constant 0 : index
      %c0_44 = arith.constant 0 : index
      %64 = vector.load %arg20[%c0_42, %c0_43, %c0_44] : memref<4x16x8xf32, #tpu.memory_space<vmem>>, vector<4x16x8xf32>
      %c0_45 = arith.constant 0 : index
      %c0_46 = arith.constant 0 : index
      %c0_47 = arith.constant 0 : index
      %65 = vector.load %arg19[%c0_45, %c0_46, %c0_47] : memref<4x16x1xf32, #tpu.memory_space<vmem>>, vector<4x16x1xf32>
      %66 = tpu.reciprocal %65 {approx = true} : vector<4x16x1xf32> -> vector<4x16x1xf32>
      %67 = vector.broadcast %66 : vector<4x16x1xf32> to vector<4x16x8xf32>
      %68 = arith.mulf %64, %67 : vector<4x16x8xf32>
      %69 = vector.extract_strided_slice %68 {offsets = [0, 0, 0], sizes = [1, 16, 8], strides = [1, 1, 1]} : vector<4x16x8xf32> to vector<1x16x8xf32>
      %70 = vector.shape_cast %69 : vector<1x16x8xf32> to vector<16x8xf32>
      %71 = vector.extract_strided_slice %68 {offsets = [1, 0, 0], sizes = [1, 16, 8], strides = [1, 1, 1]} : vector<4x16x8xf32> to vector<1x16x8xf32>
      %72 = vector.shape_cast %71 : vector<1x16x8xf32> to vector<16x8xf32>
      %73 = vector.extract_strided_slice %68 {offsets = [2, 0, 0], sizes = [1, 16, 8], strides = [1, 1, 1]} : vector<4x16x8xf32> to vector<1x16x8xf32>
      %74 = vector.shape_cast %73 : vector<1x16x8xf32> to vector<16x8xf32>
      %75 = vector.extract_strided_slice %68 {offsets = [3, 0, 0], sizes = [1, 16, 8], strides = [1, 1, 1]} : vector<4x16x8xf32> to vector<1x16x8xf32>
      %76 = vector.shape_cast %75 : vector<1x16x8xf32> to vector<16x8xf32>
      %cst_48 = arith.constant 0.000000e+00 : f32
      %77 = vector.broadcast %cst_48 : f32 to vector<16x96xf32>
      %78 = tpu.concatenate %70, %72, %74, %76, %77 in 1 : vector<16x8xf32>, vector<16x8xf32>, vector<16x8xf32>, vector<16x8xf32>, vector<16x96xf32> -> vector<16x128xf32>
      %c0_49 = arith.constant 0 : index
      %c0_50 = arith.constant 0 : index
      %79 = vector.load %arg16[%c0_49, %c0_50] : memref<16x128xf32, #tpu.memory_space<vmem>>, vector<16x128xf32>
      %80 = arith.addf %79, %78 : vector<16x128xf32>
      %81 = arith.truncf %80 : vector<16x128xf32> to vector<16x128xbf16>
      %c0_51 = arith.constant 0 : index
      %c0_52 = arith.constant 0 : index
      %82 = vector.load %arg11[%c0_51, %c0_52] : memref<128x128xbf16, #tpu.memory_space<vmem>>, vector<128x128xbf16>
      %cst_53 = arith.constant dense<0.000000e+00> : vector<16x128xf32>
      %83 = tpu.matmul %81, %82, %cst_53 {dimension_numbers = #tpu.dot_dimension_numbers<[1], [0], [0], [1], [0, 0, 1, 1], [], []>} : vector<16x128xbf16>, vector<128x128xbf16>, vector<16x128xf32> -> vector<16x128xf32>
      %c0_54 = arith.constant 0 : index
      %c0_55 = arith.constant 0 : index
      %84 = vector.load %arg12[%c0_54, %c0_55] : memref<1x128xf32, #tpu.memory_space<vmem>>, vector<1x128xf32>
      %85 = vector.broadcast %84 : vector<1x128xf32> to vector<16x128xf32>
      %86 = arith.addf %83, %85 : vector<16x128xf32>
      %cst_56 = arith.constant 0.000000e+00 : f32
      %87 = vector.broadcast %cst_56 : f32 to vector<16x128xf32>
      %88 = arith.maximumf %86, %87 : vector<16x128xf32>
      %89 = arith.addf %80, %88 : vector<16x128xf32>
      %90 = arith.truncf %89 : vector<16x128xf32> to vector<16x128xbf16>
      %c0_57 = arith.constant 0 : index
      %c0_58 = arith.constant 0 : index
      %91 = vector.load %arg13[%c0_57, %c0_58] : memref<128x128xbf16, #tpu.memory_space<vmem>>, vector<128x128xbf16>
      %cst_59 = arith.constant dense<0.000000e+00> : vector<16x128xf32>
      %92 = tpu.matmul %90, %91, %cst_59 {dimension_numbers = #tpu.dot_dimension_numbers<[1], [0], [0], [1], [0, 0, 1, 1], [], []>} : vector<16x128xbf16>, vector<128x128xbf16>, vector<16x128xf32> -> vector<16x128xf32>
      %c0_60 = arith.constant 0 : index
      %c0_61 = arith.constant 0 : index
      %93 = vector.load %arg14[%c0_60, %c0_61] : memref<1x128xf32, #tpu.memory_space<vmem>>, vector<1x128xf32>
      %94 = vector.broadcast %93 : vector<1x128xf32> to vector<16x128xf32>
      %95 = arith.addf %92, %94 : vector<16x128xf32>
      %c0_62 = arith.constant 0 : index
      %c0_63 = arith.constant 0 : index
      %c0_64 = arith.constant 0 : index
      %96 = vector.load %arg15[%c0_62, %c0_63, %c0_64] : memref<1x16x128xf32, #tpu.memory_space<vmem>>, vector<1x16x128xf32>
      %97 = vector.shape_cast %96 : vector<1x16x128xf32> to vector<16x128xf32>
      %98 = vector.shape_cast %95 : vector<16x128xf32> to vector<1x16x128xf32>
      tpu.vector_store %arg15[%c0_62, %c0_63, %c0_64], %98 {strides = array<i32>} : memref<1x16x128xf32, #tpu.memory_space<vmem>>, vector<1x16x128xf32>,
    } else {
    }
    return
  }
  func.func @transform_0(%arg0: i32, %arg1: i32, %arg2: i32) -> (i32, i32, i32) {
    %c0_i32 = arith.constant 0 : i32
    %c0_i32_0 = arith.constant 0 : i32
    return %arg0, %arg1, %c0_i32 : i32, i32, i32
  }
  func.func @transform_1(%arg0: i32, %arg1: i32, %arg2: i32) -> (i32, i32, i32) {
    %c0_i32 = arith.constant 0 : i32
    %c0_i32_0 = arith.constant 0 : i32
    return %arg0, %arg2, %c0_i32 : i32, i32, i32
  }
  func.func @transform_2(%arg0: i32, %arg1: i32, %arg2: i32) -> (i32, i32) {
    %c0_i32 = arith.constant 0 : i32
    %c0_i32_0 = arith.constant 0 : i32
    %c0_i32_1 = arith.constant 0 : i32
    return %c0_i32, %c0_i32_0 : i32, i32
  }
  func.func @transform_3(%arg0: i32, %arg1: i32, %arg2: i32) -> (i32, i32) {
    %c0_i32 = arith.constant 0 : i32
    %c0_i32_0 = arith.constant 0 : i32
    %c0_i32_1 = arith.constant 0 : i32
    return %c0_i32, %c0_i32_0 : i32, i32
  }
  func.func @transform_4(%arg0: i32, %arg1: i32, %arg2: i32) -> (i32, i32) {
    %c0_i32 = arith.constant 0 : i32
    %c0_i32_0 = arith.constant 0 : i32
    %c0_i32_1 = arith.constant 0 : i32
    return %c0_i32, %c0_i32_0 : i32, i32
  }
  func.func @transform_5(%arg0: i32, %arg1: i32, %arg2: i32) -> (i32, i32) {
    %c0_i32 = arith.constant 0 : i32
    %c0_i32_0 = arith.constant 0 : i32
    %c0_i32_1 = arith.constant 0 : i32
    return %c0_i32, %c0_i32_0 : i32, i32
  }
  func.func @transform_6(%arg0: i32, %arg1: i32, %arg2: i32) -> (i32, i32) {
    %c0_i32 = arith.constant 0 : i32
    %c0_i32_0 = arith.constant 0 : i32
    %c0_i32_1 = arith.constant 0 : i32
    return %c0_i32, %c0_i32_0 : i32, i32
  }
  func.func @transform_7(%arg0: i32, %arg1: i32, %arg2: i32) -> (i32, i32) {
    %c0_i32 = arith.constant 0 : i32
    %c0_i32_0 = arith.constant 0 : i32
    %c0_i32_1 = arith.constant 0 : i32
    return %c0_i32, %c0_i32_0 : i32, i32
  }
  func.func @transform_8(%arg0: i32, %arg1: i32, %arg2: i32) -> (i32, i32) {
    %c0_i32 = arith.constant 0 : i32
    %c0_i32_0 = arith.constant 0 : i32
    %c0_i32_1 = arith.constant 0 : i32
    return %c0_i32, %c0_i32_0 : i32, i32
  }
  func.func @transform_9(%arg0: i32, %arg1: i32, %arg2: i32) -> (i32, i32) {
    %c0_i32 = arith.constant 0 : i32
    %c0_i32_0 = arith.constant 0 : i32
    %c0_i32_1 = arith.constant 0 : i32
    return %c0_i32, %c0_i32_0 : i32, i32
  }
  func.func @transform_10(%arg0: i32, %arg1: i32, %arg2: i32) -> (i32, i32) {
    %c0_i32 = arith.constant 0 : i32
    %c0_i32_0 = arith.constant 0 : i32
    %c0_i32_1 = arith.constant 0 : i32
    return %c0_i32, %c0_i32_0 : i32, i32
  }
  func.func @transform_11(%arg0: i32, %arg1: i32, %arg2: i32) -> (i32, i32) {
    %c0_i32 = arith.constant 0 : i32
    %c0_i32_0 = arith.constant 0 : i32
    %c0_i32_1 = arith.constant 0 : i32
    return %c0_i32, %c0_i32_0 : i32, i32
  }
  func.func @transform_12(%arg0: i32, %arg1: i32, %arg2: i32) -> (i32, i32, i32) {
    %c0_i32 = arith.constant 0 : i32
    %c0_i32_0 = arith.constant 0 : i32
    return %arg0, %arg1, %c0_i32 : i32, i32, i32
  }
}

</mosaic_0001>

<llo_original>
// kernel: custom-call.8
$region0: #{custom-call.8}
  %s0 = inlined_call_operand.vmem [shape: f32[2,16], index: 0, kind: output, shape index: {}]

// kernel: ginfpsst_forward.7
$region0: #{ginfpsst_forward.7}
  #allocation0 [shape = 'u32[]', space=smem, size = 0x4, offset = 0x4, fixed_abs, tag = 'smem constant byte address 0x4 - core index']
  #allocation1 [shape = 'u32[144,128]{1,0:T(1,128)}', space=vmem, size = 0x12000, scoped, tag = 'internal scratch']
  %s0 = inlined_call_operand.vmem [shape: bf16[32,128], index: 0, kind: input, shape index: {}]
  %s1 = inlined_call_operand.vmem [shape: bf16[32,128], index: 1, kind: input, shape index: {}]
  %s2 = inlined_call_operand.vmem [shape: bf16[128,128], index: 2, kind: input, shape index: {}]
  %s3 = inlined_call_operand.vmem [shape: f32[1,128], index: 3, kind: input, shape index: {}]
  %s4 = inlined_call_operand.vmem [shape: bf16[128,128], index: 4, kind: input, shape index: {}]
  %s5 = inlined_call_operand.vmem [shape: f32[1,128], index: 5, kind: input, shape index: {}]
  %s6 = inlined_call_operand.hbm [shape: bf16[32,128], index: 6, kind: output, shape index: {}]
  %s7 = sld [smem:[#allocation0]]
  $region34: #{ginfpsst_forward.7} parent=0
    _
  %s9 = ssub.s32 1, %s7
  %s10 = scalar_select 0, %s9, %s7
  $region1: #{ginfpsst_forward.7} parent=0
    #allocation2 [shape = 'u8[8192]{0}', space=vmem, size = 0x2000, scoped, tag = 'output window, operand 0, single buffered']
    #allocation3 [shape = 's32[1]{0}', space=sflag, size = 0x4, scoped, tag = 'scoped memory for ginfpsst_forward.7']
    %11 = vsyncpa [#allocation3], 0
    // Predicated region
    $region2: #{ginfpsst_forward.7} parent=1 // pred_check
      _
    $region3: #{ginfpsst_forward.7} parent=1 // pred_check_branch
      %13 = sbr.rel (0) target = $region5
    $region4: #{ginfpsst_forward.7} parent=1 // pred_region
      _
    $region5: #{ginfpsst_forward.7} parent=1 // pred_fallthru
      _
    // Predicated region
    $region6: #{ginfpsst_forward.7} parent=1 // pred_check
      _
    $region7: #{ginfpsst_forward.7} parent=1 // pred_check_branch
      %15 = sbr.rel (0) target = $region9
    $region8: #{ginfpsst_forward.7} parent=1 // pred_region
      _
    $region9: #{ginfpsst_forward.7} parent=1 // pred_fallthru
      _
    // Predicated region
    $region10: #{ginfpsst_forward.7} parent=1 // pred_check
      _
    $region11: #{ginfpsst_forward.7} parent=1 // pred_check_branch
      %17 = sbr.rel (0) target = $region13
    $region12: #{ginfpsst_forward.7} parent=1 // pred_region
      _
    $region13: #{ginfpsst_forward.7} parent=1 // pred_fallthru
      _
    // Predicated region
    $region14: #{ginfpsst_forward.7} parent=1 // pred_check
      _
    $region15: #{ginfpsst_forward.7} parent=1 // pred_check_branch
      %19 = sbr.rel (0) target = $region17
    $region16: #{ginfpsst_forward.7} parent=1 // pred_region
      _
    $region17: #{ginfpsst_forward.7} parent=1 // pred_fallthru
      _
    // Predicated region
    $region18: #{ginfpsst_forward.7} parent=1 // pred_check
      _
    $region19: #{ginfpsst_forward.7} parent=1 // pred_check_branch
      %21 = sbr.rel (0) target = $region21
    $region20: #{ginfpsst_forward.7} parent=1 // pred_region
      _
    $region21: #{ginfpsst_forward.7} parent=1 // pred_fallthru
      _
    // Predicated region
    $region22: #{ginfpsst_forward.7} parent=1 // pred_check
      _
    $region23: #{ginfpsst_forward.7} parent=1 // pred_check_branch
      %23 = sbr.rel (0) target = $region25
    $region24: #{ginfpsst_forward.7} parent=1 // pred_region
      _
    $region25: #{ginfpsst_forward.7} parent=1 // pred_fallthru
      _
    %v25 = vld [vmem:[%s0] sm:$0xf]
    %v26 = vld [vmem:[%s0 + $0x4] sm:$0xf]
    %v27 = vld [vmem:[%s0 + $0x8] sm:$0xf]
    %v28 = vld [vmem:[%s0 + $0xc] sm:$0xf]
    %v29 = vunpack.c.l.bf16 %v25
    %v30 = vunpack.c.l.bf16 %v26
    %v31 = vunpack.c.l.bf16 %v27
    %v32 = vunpack.c.l.bf16 %v28
    %v33 = vld [vmem:[%s1] sm:$0xf]
    %v34 = vld [vmem:[%s1 + $0x4] sm:$0xf]
    %v35 = vld [vmem:[%s1 + $0x8] sm:$0xf]
    %v36 = vld [vmem:[%s1 + $0xc] sm:$0xf]
    %v37 = vunpack.c.l.bf16 %v33
    %v38 = vunpack.c.l.bf16 %v34
    %v39 = vunpack.c.l.bf16 %v35
    %v40 = vunpack.c.l.bf16 %v36
    %v41 = vadd.f32 %v29, %v37
    %v42 = vadd.f32 %v30, %v38
    %v43 = vadd.f32 %v31, %v39
    %v44 = vadd.f32 %v32, %v40
    %v45 = vpack.c.bf16 %v42, %v41
    %v46 = vpack.c.bf16 %v44, %v43
    %v47 = vld [vmem:[%s2] sm:$0xf]
    %v48 = vld [vmem:[%s2 + $0x4] sm:$0xf]
    %v49 = vld [vmem:[%s2 + $0x8] sm:$0xf]
    %v50 = vld [vmem:[%s2 + $0xc] sm:$0xf]
    %v51 = vld [vmem:[%s2 + $0x10] sm:$0xf]
    %v52 = vld [vmem:[%s2 + $0x14] sm:$0xf]
    %v53 = vld [vmem:[%s2 + $0x18] sm:$0xf]
    %v54 = vld [vmem:[%s2 + $0x1c] sm:$0xf]
    %v55 = vld [vmem:[%s2 + $0x20] sm:$0xf]
    %v56 = vld [vmem:[%s2 + $0x24] sm:$0xf]
    %v57 = vld [vmem:[%s2 + $0x28] sm:$0xf]
    %v58 = vld [vmem:[%s2 + $0x2c] sm:$0xf]
    %v59 = vld [vmem:[%s2 + $0x30] sm:$0xf]
    %v60 = vld [vmem:[%s2 + $0x34] sm:$0xf]
    %v61 = vld [vmem:[%s2 + $0x38] sm:$0xf]
    %v62 = vld [vmem:[%s2 + $0x3c] sm:$0xf]
    %v63 = vld [vmem:[%s3] sm:$0x1]
    %v65 = vlaneseq
    %v66 = vshrl.u32 %v65, 7
    %v67 = vsub.s32 0, %v66
    %v68 = vrot.slane %v63, %v67
    %v86 = vunpack.c.l.b16 %v47
    %v87 = vunpack.c.l.b16 %v48
    %v88 = vunpack.c.l.b16 %v49
    %v89 = vunpack.c.l.b16 %v50
    %v90 = vunpack.c.l.b16 %v51
    %v91 = vunpack.c.l.b16 %v52
    %v92 = vunpack.c.l.b16 %v53
    %v93 = vunpack.c.l.b16 %v54
    %v94 = vunpack.c.l.b16 %v55
    %v95 = vunpack.c.l.b16 %v56
    %v96 = vunpack.c.l.b16 %v57
    %v97 = vunpack.c.l.b16 %v58
    %v98 = vunpack.c.l.b16 %v59
    %v99 = vunpack.c.l.b16 %v60
    %v100 = vunpack.c.l.b16 %v61
    %v101 = vunpack.c.l.b16 %v62
    %v102 = vpack.c.b16 %v87, %v86
    %v103 = vpack.c.b16 %v89, %v88
    %v104 = vpack.c.b16 %v91, %v90
    %v105 = vpack.c.b16 %v93, %v92
    %v106 = vpack.c.b16 %v95, %v94
    %v107 = vpack.c.b16 %v97, %v96
    %v108 = vpack.c.b16 %v99, %v98
    %v109 = vpack.c.b16 %v101, %v100
    %118 = vmatprep.subr.bf16.mxu0 0
    %119 = vmatpush1.bf16.msra.mxu0 %v102
    %120 = vmatprep.subr.bf16.mxu0 0
    %121 = vmatpush1.bf16.msra.mxu0 %v103
    %122 = vmatprep.subr.bf16.mxu0 0
    %123 = vmatpush1.bf16.msra.mxu0 %v104
    %124 = vmatprep.subr.bf16.mxu0 0
    %125 = vmatpush1.bf16.msra.mxu0 %v105
    %126 = vmatprep.subr.bf16.mxu0 0
    %127 = vmatpush1.bf16.msra.mxu0 %v106
    %128 = vmatprep.subr.bf16.mxu0 0
    %129 = vmatpush1.bf16.msra.mxu0 %v107
    %130 = vmatprep.subr.bf16.mxu0 0
    %131 = vmatpush1.bf16.msra.mxu0 %v108
    %132 = vmatprep.subr.bf16.mxu0 0
    %133 = vmatpush1.bf16.msra.mxu0 %v109
    %134 = vmatprep.subr.bf16.mxu0 0
    %135 = vmatpush1.bf16.msra.mxu0 0
    %136 = vmatprep.subr.bf16.mxu0 0
    %137 = vmatpush1.bf16.msra.mxu0 0
    %138 = vmatprep.subr.bf16.mxu0 0
    %139 = vmatpush1.bf16.msra.mxu0 0
    %140 = vmatprep.subr.bf16.mxu0 0
    %141 = vmatpush1.bf16.msra.mxu0 0
    %142 = vmatprep.subr.bf16.mxu0 0
    %143 = vmatpush1.bf16.msra.mxu0 0
    %144 = vmatprep.subr.bf16.mxu0 0
    %145 = vmatpush1.bf16.msra.mxu0 0
    %146 = vmatprep.subr.bf16.mxu0 0
    %147 = vmatpush1.bf16.msra.mxu0 0
    %148 = vmatprep.subr.bf16.mxu0 0
    %149 = vmatpush1.bf16.msra.mxu0 0
    %150 = vmatprep.mubr.bf16.mxu0 0
    %151 = vmatmul.mubr.bf16.gmra.mrb[0].mxu0 %v45
    %v152 = vpop.f32.mrb[0].mxu0
    %v153 = vadd.f32 %v68, %v152
    %v154 = vpop.f32.mrb[0].mxu0
    %v155 = vpop.f32.mrb[0].mxu0
    %v156 = vadd.f32 %v68, %v155
    %v157 = vpop.f32.mrb[0].mxu0
    %158 = vmatprep.mubr.bf16.mxu0 0
    %159 = vmatmul.mubr.bf16.gmra.mrb[0].mxu0 %v46
    %v160 = vpop.f32.mrb[0].mxu0
    %v161 = vadd.f32 %v68, %v160
    %v162 = vpop.f32.mrb[0].mxu0
    %v163 = vpop.f32.mrb[0].mxu0
    %v164 = vadd.f32 %v68, %v163
    %v165 = vpop.f32.mrb[0].mxu0
    %166 = vdwg.mxu0
    %v167 = vmax.f32 %v153, 0.0
    %v168 = vmax.f32 %v156, 0.0
    %v169 = vmax.f32 %v161, 0.0
    %v170 = vmax.f32 %v164, 0.0
    %v171 = vpack.c.bf16 %v168, %v167
    %v172 = vpack.c.bf16 %v170, %v169
    %v173 = vld [vmem:[%s4] sm:$0xf]
    %v174 = vld [vmem:[%s4 + $0x4] sm:$0xf]
    %v175 = vld [vmem:[%s4 + $0x8] sm:$0xf]
    %v176 = vld [vmem:[%s4 + $0xc] sm:$0xf]
    %v177 = vld [vmem:[%s4 + $0x10] sm:$0xf]
    %v178 = vld [vmem:[%s4 + $0x14] sm:$0xf]
    %v179 = vld [vmem:[%s4 + $0x18] sm:$0xf]
    %v180 = vld [vmem:[%s4 + $0x1c] sm:$0xf]
    %v181 = vld [vmem:[%s4 + $0x20] sm:$0xf]
    %v182 = vld [vmem:[%s4 + $0x24] sm:$0xf]
    %v183 = vld [vmem:[%s4 + $0x28] sm:$0xf]
    %v184 = vld [vmem:[%s4 + $0x2c] sm:$0xf]
    %v185 = vld [vmem:[%s4 + $0x30] sm:$0xf]
    %v186 = vld [vmem:[%s4 + $0x34] sm:$0xf]
    %v187 = vld [vmem:[%s4 + $0x38] sm:$0xf]
    %v188 = vld [vmem:[%s4 + $0x3c] sm:$0xf]
    %v189 = vld [vmem:[%s5] sm:$0x1]
    %v191 = vlaneseq
    %v192 = vshrl.u32 %v191, 7
    %v193 = vsub.s32 0, %v192
    %v194 = vrot.slane %v189, %v193
    %v212 = vunpack.c.l.b16 %v173
    %v213 = vunpack.c.l.b16 %v174
    %v214 = vunpack.c.l.b16 %v175
    %v215 = vunpack.c.l.b16 %v176
    %v216 = vunpack.c.l.b16 %v177
    %v217 = vunpack.c.l.b16 %v178
    %v218 = vunpack.c.l.b16 %v179
    %v219 = vunpack.c.l.b16 %v180
    %v220 = vunpack.c.l.b16 %v181
    %v221 = vunpack.c.l.b16 %v182
    %v222 = vunpack.c.l.b16 %v183
    %v223 = vunpack.c.l.b16 %v184
    %v224 = vunpack.c.l.b16 %v185
    %v225 = vunpack.c.l.b16 %v186
    %v226 = vunpack.c.l.b16 %v187
    %v227 = vunpack.c.l.b16 %v188
    %v228 = vpack.c.b16 %v213, %v212
    %v229 = vpack.c.b16 %v215, %v214
    %v230 = vpack.c.b16 %v217, %v216
    %v231 = vpack.c.b16 %v219, %v218
    %v232 = vpack.c.b16 %v221, %v220
    %v233 = vpack.c.b16 %v223, %v222
    %v234 = vpack.c.b16 %v225, %v224
    %v235 = vpack.c.b16 %v227, %v226
    %244 = vmatprep.subr.bf16.mxu0 0
    %245 = vmatpush1.bf16.msra.mxu0 %v228
    %246 = vmatprep.subr.bf16.mxu0 0
    %247 = vmatpush1.bf16.msra.mxu0 %v229
    %248 = vmatprep.subr.bf16.mxu0 0
    %249 = vmatpush1.bf16.msra.mxu0 %v230
    %250 = vmatprep.subr.bf16.mxu0 0
    %251 = vmatpush1.bf16.msra.mxu0 %v231
    %252 = vmatprep.subr.bf16.mxu0 0
    %253 = vmatpush1.bf16.msra.mxu0 %v232
    %254 = vmatprep.subr.bf16.mxu0 0
    %255 = vmatpush1.bf16.msra.mxu0 %v233
    %256 = vmatprep.subr.bf16.mxu0 0
    %257 = vmatpush1.bf16.msra.mxu0 %v234
    %258 = vmatprep.subr.bf16.mxu0 0
    %259 = vmatpush1.bf16.msra.mxu0 %v235
    %260 = vmatprep.subr.bf16.mxu0 0
    %261 = vmatpush1.bf16.msra.mxu0 0
    %262 = vmatprep.subr.bf16.mxu0 0
    %263 = vmatpush1.bf16.msra.mxu0 0
    %264 = vmatprep.subr.bf16.mxu0 0
    %265 = vmatpush1.bf16.msra.mxu0 0
    %266 = vmatprep.subr.bf16.mxu0 0
    %267 = vmatpush1.bf16.msra.mxu0 0
    %268 = vmatprep.subr.bf16.mxu0 0
    %269 = vmatpush1.bf16.msra.mxu0 0
    %270 = vmatprep.subr.bf16.mxu0 0
    %271 = vmatpush1.bf16.msra.mxu0 0
    %272 = vmatprep.subr.bf16.mxu0 0
    %273 = vmatpush1.bf16.msra.mxu0 0
    %274 = vmatprep.subr.bf16.mxu0 0
    %275 = vmatpush1.bf16.msra.mxu0 0
    %276 = vmatprep.mubr.bf16.mxu0 0
    %277 = vmatmul.mubr.bf16.gmra.mrb[0].mxu0 %v171
    %v278 = vpop.f32.mrb[0].mxu0
    %v279 = vadd.f32 %v194, %v278
    %v280 = vpop.f32.mrb[0].mxu0
    %v281 = vpop.f32.mrb[0].mxu0
    %v282 = vadd.f32 %v194, %v281
    %v283 = vpop.f32.mrb[0].mxu0
    %284 = vmatprep.mubr.bf16.mxu0 0
    %285 = vmatmul.mubr.bf16.gmra.mrb[0].mxu0 %v172
    %v286 = vpop.f32.mrb[0].mxu0
    %v287 = vadd.f32 %v194, %v286
    %v288 = vpop.f32.mrb[0].mxu0
    %v289 = vpop.f32.mrb[0].mxu0
    %v290 = vadd.f32 %v194, %v289
    %v291 = vpop.f32.mrb[0].mxu0
    %292 = vdwg.mxu0
    %v293 = vmul.f32 %v279, %v279
    %v294 = vmul.f32 %v282, %v282
    %v295 = vmul.f32 %v287, %v287
    %v296 = vmul.f32 %v290, %v290
    %v297 = vmul.f32 %v279, %v293
    %v298 = vmul.f32 %v282, %v294
    %v299 = vmul.f32 %v287, %v295
    %v300 = vmul.f32 %v290, %v296
    %v301 = vmul.f32 %v297, 0.044715
    %v302 = vmul.f32 %v298, 0.044715
    %v303 = vmul.f32 %v299, 0.044715
    %v304 = vmul.f32 %v300, 0.044715
    %v305 = vadd.f32 %v279, %v301
    %v306 = vadd.f32 %v282, %v302
    %v307 = vadd.f32 %v287, %v303
    %v308 = vadd.f32 %v290, %v304
    %v309 = vmul.f32 %v305, 0.7978846
    %v310 = vmul.f32 %v306, 0.7978846
    %v311 = vmul.f32 %v307, 0.7978846
    %v312 = vmul.f32 %v308, 0.7978846
    %v313 = vtanh.pop %v309
    %v314 = vtanh.pop %v310
    %v315 = vtanh.pop %v311
    %v316 = vtanh.pop %v312
    %v317 = vadd.f32 %v313, 1.0
    %v318 = vadd.f32 %v314, 1.0
    %v319 = vadd.f32 %v315, 1.0
    %v320 = vadd.f32 %v316, 1.0
    %v321 = vmul.f32 %v317, 0.5
    %v322 = vmul.f32 %v318, 0.5
    %v323 = vmul.f32 %v319, 0.5
    %v324 = vmul.f32 %v320, 0.5
    %v325 = vmul.f32 %v279, %v321
    %v326 = vmul.f32 %v282, %v322
    %v327 = vmul.f32 %v287, %v323
    %v328 = vmul.f32 %v290, %v324
    %v329 = vadd.f32 %v29, %v325
    %v330 = vadd.f32 %v30, %v326
    %v331 = vadd.f32 %v31, %v327
    %v332 = vadd.f32 %v32, %v328
    %v333 = vpack.c.bf16 %v330, %v329
    %v334 = vpack.c.bf16 %v332, %v331
    %v337 = vunpack.c.l.b16 %v333
    %v338 = vunpack.c.h.b16 %v333
    %v339 = vunpack.c.l.b16 %v334
    %v340 = vunpack.c.h.b16 %v334
    %v341 = vpack.c.b16 %v337, %v337
    %v342 = vpack.c.b16 %v338, %v338
    %v343 = vpack.c.b16 %v339, %v339
    %v344 = vpack.c.b16 %v340, %v340
    %349 = vst [vmem:[#allocation2] sm:$0xf] %v341
    %350 = vst [vmem:[#allocation2 + $0x4] sm:$0xf] %v342
    %351 = vst [vmem:[#allocation2 + $0x8] sm:$0xf] %v343
    %352 = vst [vmem:[#allocation2 + $0xc] sm:$0xf] %v344
    // Predicated region
    $region26: #{ginfpsst_forward.7} parent=1 // pred_check
      _
    $region27: #{ginfpsst_forward.7} parent=1 // pred_check_branch
      %354 = sbr.rel (0) target = $region29
    $region28: #{ginfpsst_forward.7} parent=1 // pred_region
      %s356 = ssub.s32 256, 256
      %357 = vsyncadd [#allocation3], %s356
      %s358 = sshll.u32 [#allocation2], 4
      %s359 = int_to_ptr.vmem [resolvable:$true] %s358
      %364 = dma.vmem_to_hbm [thread:$0]  %s359, 256, %s6, [#allocation3], 64, 64, 4
    $region29: #{ginfpsst_forward.7} parent=1 // pred_fallthru
      _
    // Predicated region
    $region30: #{ginfpsst_forward.7} parent=1 // pred_check
      _
    $region31: #{ginfpsst_forward.7} parent=1 // pred_check_branch
      %366 = sbr.rel (0) target = $region33
    $region32: #{ginfpsst_forward.7} parent=1 // pred_region
      %367 = dma.done [#allocation3], 256
    $region33: #{ginfpsst_forward.7} parent=1 // pred_fallthru
      _
    %368 = vsyncpa [#allocation3], 1

// kernel: ginfpsst_forward.8
$region0: #{ginfpsst_forward.8}
  #allocation0 [shape = 'u32[]', space=smem, size = 0x4, offset = 0x4, fixed_abs, tag = 'smem constant byte address 0x4 - core index']
  #allocation1 [shape = 'u32[144,128]{1,0:T(1,128)}', space=vmem, size = 0x12000, scoped, tag = 'internal scratch']
  #allocation2 [shape = 'f32[8,128]{1,0:T(8,128)}', space=vmem, size = 0x1000, scoped, tag = 'scratch operand']
  #allocation3 [shape = 'bf16[4,8,8]{2,1,0:T(8,128)(2,1)}', space=vmem, size = 0x2000, scoped, tag = 'scratch operand']
  #allocation4 [shape = 'f32[4,8,1]{2,1,0:T(8,128)}', space=vmem, size = 0x4000, scoped, tag = 'scratch operand']
  #allocation5 [shape = 'f32[4,8,1]{2,1,0:T(8,128)}', space=vmem, size = 0x4000, scoped, tag = 'scratch operand']
  #allocation6 [shape = 'f32[4,8,8]{2,1,0:T(8,128)}', space=vmem, size = 0x4000, scoped, tag = 'scratch operand']
  %s0 = inlined_call_operand.vmem [shape: bf16[2,8,128], index: 0, kind: input, shape index: {}]
  %s1 = inlined_call_operand.vmem [shape: bf16[2,16,128], index: 1, kind: input, shape index: {}]
  %s2 = inlined_call_operand.vmem [shape: bf16[128,128], index: 2, kind: input, shape index: {}]
  %s3 = inlined_call_operand.vmem [shape: f32[1,128], index: 3, kind: input, shape index: {}]
  %s4 = inlined_call_operand.vmem [shape: bf16[128,128], index: 4, kind: input, shape index: {}]
  %s5 = inlined_call_operand.vmem [shape: f32[1,128], index: 5, kind: input, shape index: {}]
  %s6 = inlined_call_operand.vmem [shape: bf16[128,128], index: 6, kind: input, shape index: {}]
  %s7 = inlined_call_operand.vmem [shape: f32[1,128], index: 7, kind: input, shape index: {}]
  %s8 = inlined_call_operand.vmem [shape: bf16[128,128], index: 8, kind: input, shape index: {}]
  %s9 = inlined_call_operand.vmem [shape: f32[1,128], index: 9, kind: input, shape index: {}]
  %s10 = inlined_call_operand.vmem [shape: bf16[2,8,128], index: 10, kind: output, shape index: {}]
  %s11 = sld [smem:[#allocation0]]
  $region81: #{ginfpsst_forward.8} parent=0
    _
  %s13 = ssub.s32 1, %s11
  %s14 = scalar_select 0, %s13, %s11
  loop: start=0, step=1, limit=4
  $region2: #{ginfpsst_forward.8} parent=0 // loop_pre_header
    _
  $region3: #{ginfpsst_forward.8} parent=0 // loop_header
    %s16 = sphi 0, %s20
    %p17 = scmp.ge.s32.totalorder %s16, 4
    %s23 = sphi 0, %s42
    %s24 = sphi 0, %s38
    %s25 = sphi 0, %s34
    %s26 = sphi 0, %s23
    %s27 = sphi 0, %s24
    %s28 = sphi 0, %s25
    %s29 = sphi 0, %s26
    %s30 = sphi 0, %s27
    %s31 = sphi 0, %s28
    %s47 = sphi 0, %s49
    %s50 = sphi 0, %s47
    %s51 = sphi 0, %s50
    %s67 = sphi 0, %s51
    %s75 = sphi 0, %s77
    %s78 = sphi 0, %s75
    %s79 = sphi 0, %s78
    %s95 = sphi 0, %s79
    %s99 = sphi 0, %s99
    %s101 = sphi 0, %s99
    %s102 = sphi 0, %s101
    %s116 = sphi 0, %s102
    %s120 = sphi 0, %s120
    %s122 = sphi 0, %s120
    %s123 = sphi 0, %s122
    %s137 = sphi 0, %s123
    %s141 = sphi 0, %s141
    %s143 = sphi 0, %s141
    %s144 = sphi 0, %s143
    %s158 = sphi 0, %s144
    %s162 = sphi 0, %s162
    %s164 = sphi 0, %s162
    %s165 = sphi 0, %s164
    %s179 = sphi 0, %s165
    %s183 = sphi 0, %s183
    %s185 = sphi 0, %s183
    %s186 = sphi 0, %s185
    %s200 = sphi 0, %s186
    %s204 = sphi 0, %s204
    %s206 = sphi 0, %s204
    %s207 = sphi 0, %s206
    %s221 = sphi 0, %s207
    %s225 = sphi 0, %s225
    %s227 = sphi 0, %s225
    %s228 = sphi 0, %s227
    %s242 = sphi 0, %s228
    %s246 = sphi 0, %s246
    %s248 = sphi 0, %s246
    %s249 = sphi 0, %s248
    %s263 = sphi 0, %s249
    %s271 = sphi 0, %s273
    %s274 = sphi 0, %s271
    %s275 = sphi 0, %s274
    %s291 = sphi 0, %s275
  $region4: #{ginfpsst_forward.8} parent=0 // loop_header_branch
    %19 = sbr.rel (%p17) target = $region8
  $region5: #{ginfpsst_forward.8} parent=0 // loop_body
    %s21 = ssub.s32 %s16, 1
    %s22 = ssub.s32 %s16, 2
    %s32 = sadd.s32 1, %s25
    %p33 = scmp.ge.s32.totalorder %s32, 1
    %s34 = scalar_select %p33, 0, %s32
    %s35 = sadd.s32 1, %s24
    %s36 = scalar_select %p33, %s35, %s24
    %p37 = scmp.ge.s32.totalorder %s36, 1
    %s38 = scalar_select %p37, 0, %s36
    %s39 = sadd.s32 1, %s23
    %s40 = scalar_select %p37, %s39, %s23
    %p41 = scmp.ge.s32.totalorder %s40, 2
    %s42 = scalar_select %p41, 0, %s40
    %s43 = ssub.s32 %s23, %s42
    %s44 = ssub.s32 %s24, %s38
    %s45 = sor.u32 %s43, %s44
    %p46 = scmp.eq.s32.totalorder %s45, 0
    %s48 = sadd.s32 %s47, 1
    %s49 = scalar_select %p46, %s47, %s48
    %p52 = pneg %p46
    %p53 = scmp.eq.s32.totalorder %s16, 1
    %p54 = por %p52, %p53
    %p55 = scmp.ne.s32.totalorder %s47, %s50
    %p56 = scmp.eq.s32.totalorder %s16, 0
    %p57 = por %p55, %p56
    %p58 = scmp.ne.s32.totalorder %s47, %s50
    %p59 = scmp.eq.s32.totalorder %s21, 1
    %p60 = por %p58, %p59
    %p61 = scmp.ne.s32.totalorder %s50, %s51
    %p62 = scmp.eq.s32.totalorder %s21, 0
    %p63 = por %p61, %p62
    %p64 = scmp.ne.s32.totalorder %s50, %s51
    %p65 = scmp.eq.s32.totalorder %s22, 1
    %p66 = por %p64, %p65
    %p68 = scmp.ne.s32.totalorder %s51, %s67
    %p69 = scmp.eq.s32.totalorder %s22, 0
    %p70 = por %p68, %p69
    %s71 = ssub.s32 %s23, %s42
    %s72 = ssub.s32 %s25, %s34
    %s73 = sor.u32 %s71, %s72
    %p74 = scmp.eq.s32.totalorder %s73, 0
    %s76 = sadd.s32 %s75, 1
    %s77 = scalar_select %p74, %s75, %s76
    %p80 = pneg %p74
    %p81 = scmp.eq.s32.totalorder %s16, 1
    %p82 = por %p80, %p81
    %p83 = scmp.ne.s32.totalorder %s75, %s78
    %p84 = scmp.eq.s32.totalorder %s16, 0
    %p85 = por %p83, %p84
    %p86 = scmp.ne.s32.totalorder %s75, %s78
    %p87 = scmp.eq.s32.totalorder %s21, 1
    %p88 = por %p86, %p87
    %p89 = scmp.ne.s32.totalorder %s78, %s79
    %p90 = scmp.eq.s32.totalorder %s21, 0
    %p91 = por %p89, %p90
    %p92 = scmp.ne.s32.totalorder %s78, %s79
    %p93 = scmp.eq.s32.totalorder %s22, 1
    %p94 = por %p92, %p93
    %p96 = scmp.ne.s32.totalorder %s79, %s95
    %p97 = scmp.eq.s32.totalorder %s22, 0
    %p98 = por %p96, %p97
    %s100 = sadd.s32 %s99, 1
    %p103 = scmp.eq.s32.totalorder %s16, 1
    %p104 = scmp.ne.s32.totalorder %s99, %s101
    %p105 = scmp.eq.s32.totalorder %s16, 0
    %p106 = por %p104, %p105
    %p107 = scmp.ne.s32.totalorder %s99, %s101
    %p108 = scmp.eq.s32.totalorder %s21, 1
    %p109 = por %p107, %p108
    %p110 = scmp.ne.s32.totalorder %s101, %s102
    %p111 = scmp.eq.s32.totalorder %s21, 0
    %p112 = por %p110, %p111
    %p113 = scmp.ne.s32.totalorder %s101, %s102
    %p114 = scmp.eq.s32.totalorder %s22, 1
    %p115 = por %p113, %p114
    %p117 = scmp.ne.s32.totalorder %s102, %s116
    %p118 = scmp.eq.s32.totalorder %s22, 0
    %p119 = por %p117, %p118
    %s121 = sadd.s32 %s120, 1
    %p124 = scmp.eq.s32.totalorder %s16, 1
    %p125 = scmp.ne.s32.totalorder %s120, %s122
    %p126 = scmp.eq.s32.totalorder %s16, 0
    %p127 = por %p125, %p126
    %p128 = scmp.ne.s32.totalorder %s120, %s122
    %p129 = scmp.eq.s32.totalorder %s21, 1
    %p130 = por %p128, %p129
    %p131 = scmp.ne.s32.totalorder %s122, %s123
    %p132 = scmp.eq.s32.totalorder %s21, 0
    %p133 = por %p131, %p132
    %p134 = scmp.ne.s32.totalorder %s122, %s123
    %p135 = scmp.eq.s32.totalorder %s22, 1
    %p136 = por %p134, %p135
    %p138 = scmp.ne.s32.totalorder %s123, %s137
    %p139 = scmp.eq.s32.totalorder %s22, 0
    %p140 = por %p138, %p139
    %s142 = sadd.s32 %s141, 1
    %p145 = scmp.eq.s32.totalorder %s16, 1
    %p146 = scmp.ne.s32.totalorder %s141, %s143
    %p147 = scmp.eq.s32.totalorder %s16, 0
    %p148 = por %p146, %p147
    %p149 = scmp.ne.s32.totalorder %s141, %s143
    %p150 = scmp.eq.s32.totalorder %s21, 1
    %p151 = por %p149, %p150
    %p152 = scmp.ne.s32.totalorder %s143, %s144
    %p153 = scmp.eq.s32.totalorder %s21, 0
    %p154 = por %p152, %p153
    %p155 = scmp.ne.s32.totalorder %s143, %s144
    %p156 = scmp.eq.s32.totalorder %s22, 1
    %p157 = por %p155, %p156
    %p159 = scmp.ne.s32.totalorder %s144, %s158
    %p160 = scmp.eq.s32.totalorder %s22, 0
    %p161 = por %p159, %p160
    %s163 = sadd.s32 %s162, 1
    %p166 = scmp.eq.s32.totalorder %s16, 1
    %p167 = scmp.ne.s32.totalorder %s162, %s164
    %p168 = scmp.eq.s32.totalorder %s16, 0
    %p169 = por %p167, %p168
    %p170 = scmp.ne.s32.totalorder %s162, %s164
    %p171 = scmp.eq.s32.totalorder %s21, 1
    %p172 = por %p170, %p171
    %p173 = scmp.ne.s32.totalorder %s164, %s165
    %p174 = scmp.eq.s32.totalorder %s21, 0
    %p175 = por %p173, %p174
    %p176 = scmp.ne.s32.totalorder %s164, %s165
    %p177 = scmp.eq.s32.totalorder %s22, 1
    %p178 = por %p176, %p177
    %p180 = scmp.ne.s32.totalorder %s165, %s179
    %p181 = scmp.eq.s32.totalorder %s22, 0
    %p182 = por %p180, %p181
    %s184 = sadd.s32 %s183, 1
    %p187 = scmp.eq.s32.totalorder %s16, 1
    %p188 = scmp.ne.s32.totalorder %s183, %s185
    %p189 = scmp.eq.s32.totalorder %s16, 0
    %p190 = por %p188, %p189
    %p191 = scmp.ne.s32.totalorder %s183, %s185
    %p192 = scmp.eq.s32.totalorder %s21, 1
    %p193 = por %p191, %p192
    %p194 = scmp.ne.s32.totalorder %s185, %s186
    %p195 = scmp.eq.s32.totalorder %s21, 0
    %p196 = por %p194, %p195
    %p197 = scmp.ne.s32.totalorder %s185, %s186
    %p198 = scmp.eq.s32.totalorder %s22, 1
    %p199 = por %p197, %p198
    %p201 = scmp.ne.s32.totalorder %s186, %s200
    %p202 = scmp.eq.s32.totalorder %s22, 0
    %p203 = por %p201, %p202
    %s205 = sadd.s32 %s204, 1
    %p208 = scmp.eq.s32.totalorder %s16, 1
    %p209 = scmp.ne.s32.totalorder %s204, %s206
    %p210 = scmp.eq.s32.totalorder %s16, 0
    %p211 = por %p209, %p210
    %p212 = scmp.ne.s32.totalorder %s204, %s206
    %p213 = scmp.eq.s32.totalorder %s21, 1
    %p214 = por %p212, %p213
    %p215 = scmp.ne.s32.totalorder %s206, %s207
    %p216 = scmp.eq.s32.totalorder %s21, 0
    %p217 = por %p215, %p216
    %p218 = scmp.ne.s32.totalorder %s206, %s207
    %p219 = scmp.eq.s32.totalorder %s22, 1
    %p220 = por %p218, %p219
    %p222 = scmp.ne.s32.totalorder %s207, %s221
    %p223 = scmp.eq.s32.totalorder %s22, 0
    %p224 = por %p222, %p223
    %s226 = sadd.s32 %s225, 1
    %p229 = scmp.eq.s32.totalorder %s16, 1
    %p230 = scmp.ne.s32.totalorder %s225, %s227
    %p231 = scmp.eq.s32.totalorder %s16, 0
    %p232 = por %p230, %p231
    %p233 = scmp.ne.s32.totalorder %s225, %s227
    %p234 = scmp.eq.s32.totalorder %s21, 1
    %p235 = por %p233, %p234
    %p236 = scmp.ne.s32.totalorder %s227, %s228
    %p237 = scmp.eq.s32.totalorder %s21, 0
    %p238 = por %p236, %p237
    %p239 = scmp.ne.s32.totalorder %s227, %s228
    %p240 = scmp.eq.s32.totalorder %s22, 1
    %p241 = por %p239, %p240
    %p243 = scmp.ne.s32.totalorder %s228, %s242
    %p244 = scmp.eq.s32.totalorder %s22, 0
    %p245 = por %p243, %p244
    %s247 = sadd.s32 %s246, 1
    %p250 = scmp.eq.s32.totalorder %s16, 1
    %p251 = scmp.ne.s32.totalorder %s246, %s248
    %p252 = scmp.eq.s32.totalorder %s16, 0
    %p253 = por %p251, %p252
    %p254 = scmp.ne.s32.totalorder %s246, %s248
    %p255 = scmp.eq.s32.totalorder %s21, 1
    %p256 = por %p254, %p255
    %p257 = scmp.ne.s32.totalorder %s248, %s249
    %p258 = scmp.eq.s32.totalorder %s21, 0
    %p259 = por %p257, %p258
    %p260 = scmp.ne.s32.totalorder %s248, %s249
    %p261 = scmp.eq.s32.totalorder %s22, 1
    %p262 = por %p260, %p261
    %p264 = scmp.ne.s32.totalorder %s249, %s263
    %p265 = scmp.eq.s32.totalorder %s22, 0
    %p266 = por %p264, %p265
    %s267 = ssub.s32 %s23, %s42
    %s268 = ssub.s32 %s24, %s38
    %s269 = sor.u32 %s267, %s268
    %p270 = scmp.eq.s32.totalorder %s269, 0
    %s272 = sadd.s32 %s271, 1
    %s273 = scalar_select %p270, %s271, %s272
    %p276 = pneg %p270
    %p277 = scmp.eq.s32.totalorder %s16, 1
    %p278 = por %p276, %p277
    %p279 = scmp.ne.s32.totalorder %s271, %s274
    %p280 = scmp.eq.s32.totalorder %s16, 0
    %p281 = por %p279, %p280
    %p282 = scmp.ne.s32.totalorder %s271, %s274
    %p283 = scmp.eq.s32.totalorder %s21, 1
    %p284 = por %p282, %p283
    %p285 = scmp.ne.s32.totalorder %s274, %s275
    %p286 = scmp.eq.s32.totalorder %s21, 0
    %p287 = por %p285, %p286
    %p288 = scmp.ne.s32.totalorder %s274, %s275
    %p289 = scmp.eq.s32.totalorder %s22, 1
    %p290 = por %p288, %p289
    %p292 = scmp.ne.s32.totalorder %s275, %s291
    %p293 = scmp.eq.s32.totalorder %s22, 0
    %p294 = por %p292, %p293
    %p295 = scmp.le.s32.totalorder 1, %s16
    %p296 = scmp.lt.s32.totalorder %s16, 3
    %p297 = pnand %p295, %p296
    %p298 = pneg %p297
    // Predicated region
    $region9: #{ginfpsst_forward.8} parent=5 // pred_check
      _
    $region10: #{ginfpsst_forward.8} parent=5 // pred_check_branch
      %300 = sbr.rel (%p297) target = $region12
    $region11: #{ginfpsst_forward.8} parent=5 // pred_region
      %s301 = ssub.s32 %s16, 1
      // Predicated region
      $region13: #{ginfpsst_forward.8} parent=11 // pred_check
        %p302 = pneg %p112
      $region14: #{ginfpsst_forward.8} parent=11 // pred_check_branch
        %304 = sbr.rel (%p302) target = $region16
      $region15: #{ginfpsst_forward.8} parent=11 // pred_region
        _
      $region16: #{ginfpsst_forward.8} parent=11 // pred_fallthru
        _
      // Predicated region
      $region17: #{ginfpsst_forward.8} parent=11 // pred_check
        %p305 = pneg %p133
      $region18: #{ginfpsst_forward.8} parent=11 // pred_check_branch
        %307 = sbr.rel (%p305) target = $region20
      $region19: #{ginfpsst_forward.8} parent=11 // pred_region
        _
      $region20: #{ginfpsst_forward.8} parent=11 // pred_fallthru
        _
      // Predicated region
      $region21: #{ginfpsst_forward.8} parent=11 // pred_check
        %p308 = pneg %p154
      $region22: #{ginfpsst_forward.8} parent=11 // pred_check_branch
        %310 = sbr.rel (%p308) target = $region24
      $region23: #{ginfpsst_forward.8} parent=11 // pred_region
        _
      $region24: #{ginfpsst_forward.8} parent=11 // pred_fallthru
        _
      // Predicated region
      $region25: #{ginfpsst_forward.8} parent=11 // pred_check
        %p311 = pneg %p175
      $region26: #{ginfpsst_forward.8} parent=11 // pred_check_branch
        %313 = sbr.rel (%p311) target = $region28
      $region27: #{ginfpsst_forward.8} parent=11 // pred_region
        _
      $region28: #{ginfpsst_forward.8} parent=11 // pred_fallthru
        _
      // Predicated region
      $region29: #{ginfpsst_forward.8} parent=11 // pred_check
        %p314 = pneg %p196
      $region30: #{ginfpsst_forward.8} parent=11 // pred_check_branch
        %316 = sbr.rel (%p314) target = $region32
      $region31: #{ginfpsst_forward.8} parent=11 // pred_region
        _
      $region32: #{ginfpsst_forward.8} parent=11 // pred_fallthru
        _
      // Predicated region
      $region33: #{ginfpsst_forward.8} parent=11 // pred_check
        %p317 = pneg %p217
      $region34: #{ginfpsst_forward.8} parent=11 // pred_check_branch
        %319 = sbr.rel (%p317) target = $region36
      $region35: #{ginfpsst_forward.8} parent=11 // pred_region
        _
      $region36: #{ginfpsst_forward.8} parent=11 // pred_fallthru
        _
      // Predicated region
      $region37: #{ginfpsst_forward.8} parent=11 // pred_check
        %p320 = pneg %p238
      $region38: #{ginfpsst_forward.8} parent=11 // pred_check_branch
        %322 = sbr.rel (%p320) target = $region40
      $region39: #{ginfpsst_forward.8} parent=11 // pred_region
        _
      $region40: #{ginfpsst_forward.8} parent=11 // pred_fallthru
        _
      // Predicated region
      $region41: #{ginfpsst_forward.8} parent=11 // pred_check
        %p323 = pneg %p259
      $region42: #{ginfpsst_forward.8} parent=11 // pred_check_branch
        %325 = sbr.rel (%p323) target = $region44
      $region43: #{ginfpsst_forward.8} parent=11 // pred_region
        _
      $region44: #{ginfpsst_forward.8} parent=11 // pred_fallthru
        _
    $region12: #{ginfpsst_forward.8} parent=5 // pred_fallthru
      _
    %p326 = scmp.lt.s32.totalorder %s16, 2
    // Predicated region
    $region45: #{ginfpsst_forward.8} parent=5 // pred_check
      %p327 = pneg %p326
    $region46: #{ginfpsst_forward.8} parent=5 // pred_check_branch
      %329 = sbr.rel (%p327) target = $region48
    $region47: #{ginfpsst_forward.8} parent=5 // pred_region
      // Predicated region
      $region49: #{ginfpsst_forward.8} parent=47 // pred_check
        %p330 = pneg %p57
      $region50: #{ginfpsst_forward.8} parent=47 // pred_check_branch
        %332 = sbr.rel (%p330) target = $region52
      $region51: #{ginfpsst_forward.8} parent=47 // pred_region
        %p333 = scmp.lt.s32.totalorder %s23, 1
        %s334 = scalar_select %p333, %s23, 1
        %p335 = scmp.lt.s32.totalorder %s24, 0
        %s336 = scalar_select %p335, %s24, 0
        %s337 = sadd.s32 %s336, %s334
        %s338 = smul.addr %s337, 4
        %s339 = scalar_lea.vmem %s0, %s338
      $region52: #{ginfpsst_forward.8} parent=47 // pred_fallthru
        _
      // Predicated region
      $region53: #{ginfpsst_forward.8} parent=47 // pred_check
        %p340 = pneg %p85
      $region54: #{ginfpsst_forward.8} parent=47 // pred_check_branch
        %342 = sbr.rel (%p340) target = $region56
      $region55: #{ginfpsst_forward.8} parent=47 // pred_region
        %s343 = smul.u32 2, %s25
        %p344 = scmp.lt.s32.totalorder %s23, 1
        %s345 = scalar_select %p344, %s23, 1
        %p346 = scmp.lt.s32.totalorder %s343, 1
        %s347 = scalar_select %p346, %s343, 1
        %s348 = smul.addr %s345, 2
        %s349 = sadd.s32 %s347, %s348
        %s350 = smul.addr %s349, 4
        %s351 = scalar_lea.vmem %s1, %s350
        %s352 = smul.u32 2, %s25
      $region56: #{ginfpsst_forward.8} parent=47 // pred_fallthru
        _
    $region48: #{ginfpsst_forward.8} parent=5 // pred_fallthru
      _
    %p353 = scmp.le.s32.totalorder 1, %s16
    %p354 = scmp.lt.s32.totalorder %s16, 3
    %p355 = pnand %p353, %p354
    %p356 = pneg %p355
    // Predicated region
    $region57: #{ginfpsst_forward.8} parent=5 // pred_check
      _
    $region58: #{ginfpsst_forward.8} parent=5 // pred_check_branch
      %358 = sbr.rel (%p355) target = $region60
    $region59: #{ginfpsst_forward.8} parent=5 // pred_region
      %s359 = ssub.s32 %s16, 1
      %p360 = scmp.lt.s32.totalorder %s26, 1
      %s361 = scalar_select %p360, %s26, 1
      %p362 = scmp.lt.s32.totalorder %s27, 0
      %s363 = scalar_select %p362, %s27, 0
      %s364 = sadd.s32 %s363, %s361
      %s365 = smul.addr %s364, 4
      %s366 = scalar_lea.vmem %s0, %s365
      %p367 = pneg %p63
      %p368 = pneg %p60
      %s369 = smul.u32 2, %s28
      %p370 = scmp.lt.s32.totalorder %s26, 1
      %s371 = scalar_select %p370, %s26, 1
      %p372 = scmp.lt.s32.totalorder %s369, 1
      %s373 = scalar_select %p372, %s369, 1
      %s374 = smul.addr %s371, 2
      %s375 = sadd.s32 %s373, %s374
      %s376 = smul.addr %s375, 4
      %s377 = scalar_lea.vmem %s1, %s376
      %p378 = pneg %p91
      %p379 = pneg %p88
      %p380 = pneg %p112
      %p381 = pneg %p109
      %p382 = pneg %p133
      %p383 = pneg %p130
      %p384 = pneg %p154
      %p385 = pneg %p151
      %p386 = pneg %p175
      %p387 = pneg %p172
      %p388 = pneg %p196
      %p389 = pneg %p193
      %p390 = pneg %p217
      %p391 = pneg %p214
      %p392 = pneg %p238
      %p393 = pneg %p235
      %p394 = pneg %p259
      %p395 = pneg %p256
      %p396 = pneg %p287
      %p397 = pneg %p284
      %p398 = scmp.lt.s32.totalorder %s26, 1
      %s399 = scalar_select %p398, %s26, 1
      %p400 = scmp.lt.s32.totalorder %s27, 0
      %s401 = scalar_select %p400, %s27, 0
      %s402 = sadd.s32 %s401, %s399
      %s403 = smul.addr %s402, 4
      %s404 = scalar_lea.vmem %s10, %s403
      %p405 = scmp.lt.s32.totalorder %s26, 1
      %s406 = scalar_select %p405, %s26, 1
      %p407 = scmp.lt.s32.totalorder %s27, 0
      %s408 = scalar_select %p407, %s27, 0
      %s409 = sadd.s32 %s408, %s406
      %s410 = smul.addr %s409, 4
      %s411 = scalar_lea.vmem %s0, %s410
      %s412 = smul.u32 2, %s28
      %p413 = scmp.lt.s32.totalorder %s26, 1
      %s414 = scalar_select %p413, %s26, 1
      %p415 = scmp.lt.s32.totalorder %s412, 1
      %s416 = scalar_select %p415, %s412, 1
      %s417 = smul.addr %s414, 2
      %s418 = sadd.s32 %s416, %s417
      %s419 = smul.addr %s418, 4
      %s420 = scalar_lea.vmem %s1, %s419
      %s421 = smul.u32 2, %s28
      %p422 = scmp.lt.s32.totalorder %s26, 1
      %s423 = scalar_select %p422, %s26, 1
      %p424 = scmp.lt.s32.totalorder %s27, 0
      %s425 = scalar_select %p424, %s27, 0
      %s426 = sadd.s32 %s425, %s423
      %s427 = smul.addr %s426, 4
      %s428 = scalar_lea.vmem %s10, %s427
      %p430 = scmp.eq.s32.totalorder %s28, 0
      // Predicated region
      $region61: #{ginfpsst_forward.8} parent=59 // pred_check
        %p431 = pneg %p430
      $region62: #{ginfpsst_forward.8} parent=59 // pred_check_branch
        %433 = sbr.rel (%p431) target = $region64
      $region63: #{ginfpsst_forward.8} parent=59 // pred_region
        %v434 = vld [vmem:[%s411] sm:$0xf]
        %v435 = vld [vmem:[%s2] sm:$0xf]
        %v436 = vld [vmem:[%s2 + $0x4] sm:$0xf]
        %v437 = vld [vmem:[%s2 + $0x8] sm:$0xf]
        %v438 = vld [vmem:[%s2 + $0xc] sm:$0xf]
        %v439 = vld [vmem:[%s2 + $0x10] sm:$0xf]
        %v440 = vld [vmem:[%s2 + $0x14] sm:$0xf]
        %v441 = vld [vmem:[%s2 + $0x18] sm:$0xf]
        %v442 = vld [vmem:[%s2 + $0x1c] sm:$0xf]
        %v443 = vld [vmem:[%s2 + $0x20] sm:$0xf]
        %v444 = vld [vmem:[%s2 + $0x24] sm:$0xf]
        %v445 = vld [vmem:[%s2 + $0x28] sm:$0xf]
        %v446 = vld [vmem:[%s2 + $0x2c] sm:$0xf]
        %v447 = vld [vmem:[%s2 + $0x30] sm:$0xf]
        %v448 = vld [vmem:[%s2 + $0x34] sm:$0xf]
        %v449 = vld [vmem:[%s2 + $0x38] sm:$0xf]
        %v450 = vld [vmem:[%s2 + $0x3c] sm:$0xf]
        %v451 = vld [vmem:[%s3] sm:$0x1]
        %v453 = vlaneseq
        %v454 = vshrl.u32 %v453, 7
        %v455 = vsub.s32 0, %v454
        %v456 = vrot.slane %v451, %v455
        %v474 = vunpack.c.l.b16 %v435
        %v475 = vunpack.c.l.b16 %v436
        %v476 = vunpack.c.l.b16 %v437
        %v477 = vunpack.c.l.b16 %v438
        %v478 = vunpack.c.l.b16 %v439
        %v479 = vunpack.c.l.b16 %v440
        %v480 = vunpack.c.l.b16 %v441
        %v481 = vunpack.c.l.b16 %v442
        %v482 = vunpack.c.l.b16 %v443
        %v483 = vunpack.c.l.b16 %v444
        %v484 = vunpack.c.l.b16 %v445
        %v485 = vunpack.c.l.b16 %v446
        %v486 = vunpack.c.l.b16 %v447
        %v487 = vunpack.c.l.b16 %v448
        %v488 = vunpack.c.l.b16 %v449
        %v489 = vunpack.c.l.b16 %v450
        %v490 = vpack.c.b16 %v475, %v474
        %v491 = vpack.c.b16 %v477, %v476
        %v492 = vpack.c.b16 %v479, %v478
        %v493 = vpack.c.b16 %v481, %v480
        %v494 = vpack.c.b16 %v483, %v482
        %v495 = vpack.c.b16 %v485, %v484
        %v496 = vpack.c.b16 %v487, %v486
        %v497 = vpack.c.b16 %v489, %v488
        %506 = vmatprep.subr.bf16.mxu0 0
        %507 = vmatpush1.bf16.msra.mxu0 %v490
        %508 = vmatprep.subr.bf16.mxu0 0
        %509 = vmatpush1.bf16.msra.mxu0 %v491
        %510 = vmatprep.subr.bf16.mxu0 0
        %511 = vmatpush1.bf16.msra.mxu0 %v492
        %512 = vmatprep.subr.bf16.mxu0 0
        %513 = vmatpush1.bf16.msra.mxu0 %v493
        %514 = vmatprep.subr.bf16.mxu0 0
        %515 = vmatpush1.bf16.msra.mxu0 %v494
        %516 = vmatprep.subr.bf16.mxu0 0
        %517 = vmatpush1.bf16.msra.mxu0 %v495
        %518 = vmatprep.subr.bf16.mxu0 0
        %519 = vmatpush1.bf16.msra.mxu0 %v496
        %520 = vmatprep.subr.bf16.mxu0 0
        %521 = vmatpush1.bf16.msra.mxu0 %v497
        %522 = vmatprep.subr.bf16.mxu0 0
        %523 = vmatpush1.bf16.msra.mxu0 0
        %524 = vmatprep.subr.bf16.mxu0 0
        %525 = vmatpush1.bf16.msra.mxu0 0
        %526 = vmatprep.subr.bf16.mxu0 0
        %527 = vmatpush1.bf16.msra.mxu0 0
        %528 = vmatprep.subr.bf16.mxu0 0
        %529 = vmatpush1.bf16.msra.mxu0 0
        %530 = vmatprep.subr.bf16.mxu0 0
        %531 = vmatpush1.bf16.msra.mxu0 0
        %532 = vmatprep.subr.bf16.mxu0 0
        %533 = vmatpush1.bf16.msra.mxu0 0
        %534 = vmatprep.subr.bf16.mxu0 0
        %535 = vmatpush1.bf16.msra.mxu0 0
        %536 = vmatprep.subr.bf16.mxu0 0
        %537 = vmatpush1.bf16.msra.mxu0 0
        %538 = vmatprep.mubr.bf16.mxu0 0
        %539 = vmatmul.mubr.bf16.gmra.mrb[0].mxu0 %v434
        %v540 = vpop.f32.mrb[0].mxu0
        %v541 = vadd.f32 %v456, %v540
        %v542 = vpop.f32.mrb[0].mxu0
        %v543 = vpop.f32.mrb[0].mxu0
        %v544 = vpop.f32.mrb[0].mxu0
        %545 = vdwg.mxu0
        %546 = vst [vmem:[#allocation2] sm:$0xff] %v541
        %v547 = vpack.c.bf16 %v541, %v541
        %vm548 = vcmask 60416
        %549 = vst.msk [vmem:[#allocation3] sm:$0xf] %vm548, %v547
        %v551 = vunpack.c.l.b16 %v547
        %v552 = vpack.c.b16 %v551, %v551
        %553 = vrot.lane.b32.xlu0 %v552, 120
        %v554 = vpop.permute.xlu0 %553
        %s556 = scalar_lea.vmem [#allocation3], 4
        %557 = vst.msk [vmem:[%s556] sm:$0xf] %vm548, %v554
        %558 = vrot.lane.b32.xlu0 %v552, 112
        %v559 = vpop.permute.xlu0 %558
        %s561 = scalar_lea.vmem [#allocation3], 8
        %562 = vst.msk [vmem:[%s561] sm:$0xf] %vm548, %v559
        %563 = vrot.lane.b32.xlu0 %v552, 104
        %v564 = vpop.permute.xlu0 %563
        %s566 = scalar_lea.vmem [#allocation3], 12
        %567 = vst.msk [vmem:[%s566] sm:$0xf] %vm548, %v564
        %vm568 = vcmask 7168
        %569 = vst.msk [vmem:[#allocation4] sm:$0xff] %vm568, -inf
        %570 = vst.msk [vmem:[#allocation4 + $0x8] sm:$0xff] %vm568, -inf
        %571 = vst.msk [vmem:[#allocation4 + $0x10] sm:$0xff] %vm568, -inf
        %572 = vst.msk [vmem:[#allocation4 + $0x18] sm:$0xff] %vm568, -inf
        %573 = vst.msk [vmem:[#allocation5] sm:$0xff] %vm568, 0.0
        %574 = vst.msk [vmem:[#allocation5 + $0x8] sm:$0xff] %vm568, 0.0
        %575 = vst.msk [vmem:[#allocation5 + $0x10] sm:$0xff] %vm568, 0.0
        %576 = vst.msk [vmem:[#allocation5 + $0x18] sm:$0xff] %vm568, 0.0
        %vm577 = vcmask 64512
        %578 = vst.msk [vmem:[#allocation6] sm:$0xff] %vm577, 0.0
        %579 = vst.msk [vmem:[#allocation6 + $0x8] sm:$0xff] %vm577, 0.0
        %580 = vst.msk [vmem:[#allocation6 + $0x10] sm:$0xff] %vm577, 0.0
        %581 = vst.msk [vmem:[#allocation6 + $0x18] sm:$0xff] %vm577, 0.0
      $region64: #{ginfpsst_forward.8} parent=59 // pred_fallthru
        _
      %v582 = vld [vmem:[%s420] sm:$0xf]
      %v583 = vld [vmem:[%s420 + $0x4] sm:$0xf]
      %v584 = vld [vmem:[%s4] sm:$0xf]
      %v585 = vld [vmem:[%s4 + $0x4] sm:$0xf]
      %v586 = vld [vmem:[%s4 + $0x8] sm:$0xf]
      %v587 = vld [vmem:[%s4 + $0xc] sm:$0xf]
      %v588 = vld [vmem:[%s4 + $0x10] sm:$0xf]
      %v589 = vld [vmem:[%s4 + $0x14] sm:$0xf]
      %v590 = vld [vmem:[%s4 + $0x18] sm:$0xf]
      %v591 = vld [vmem:[%s4 + $0x1c] sm:$0xf]
      %v592 = vld [vmem:[%s4 + $0x20] sm:$0xf]
      %v593 = vld [vmem:[%s4 + $0x24] sm:$0xf]
      %v594 = vld [vmem:[%s4 + $0x28] sm:$0xf]
      %v595 = vld [vmem:[%s4 + $0x2c] sm:$0xf]
      %v596 = vld [vmem:[%s4 + $0x30] sm:$0xf]
      %v597 = vld [vmem:[%s4 + $0x34] sm:$0xf]
      %v598 = vld [vmem:[%s4 + $0x38] sm:$0xf]
      %v599 = vld [vmem:[%s4 + $0x3c] sm:$0xf]
      %v600 = vld [vmem:[%s5] sm:$0x1]
      %v602 = vlaneseq
      %v603 = vshrl.u32 %v602, 7
      %v604 = vsub.s32 0, %v603
      %v605 = vrot.slane %v600, %v604
      %v609 = vunpack.c.l.b16 %v582
      %v610 = vunpack.c.l.b16 %v583
      %v611 = vpack.c.b16 %v610, %v609
      %v629 = vunpack.c.l.b16 %v584
      %v630 = vunpack.c.l.b16 %v585
      %v631 = vunpack.c.l.b16 %v586
      %v632 = vunpack.c.l.b16 %v587
      %v633 = vunpack.c.l.b16 %v588
      %v634 = vunpack.c.l.b16 %v589
      %v635 = vunpack.c.l.b16 %v590
      %v636 = vunpack.c.l.b16 %v591
      %v637 = vunpack.c.l.b16 %v592
      %v638 = vunpack.c.l.b16 %v593
      %v639 = vunpack.c.l.b16 %v594
      %v640 = vunpack.c.l.b16 %v595
      %v641 = vunpack.c.l.b16 %v596
      %v642 = vunpack.c.l.b16 %v597
      %v643 = vunpack.c.l.b16 %v598
      %v644 = vunpack.c.l.b16 %v599
      %v645 = vpack.c.b16 %v630, %v629
      %v646 = vpack.c.b16 %v632, %v631
      %v647 = vpack.c.b16 %v634, %v633
      %v648 = vpack.c.b16 %v636, %v635
      %v649 = vpack.c.b16 %v638, %v637
      %v650 = vpack.c.b16 %v640, %v639
      %v651 = vpack.c.b16 %v642, %v641
      %v652 = vpack.c.b16 %v644, %v643
      %661 = vmatprep.subr.bf16.mxu0 0
      %662 = vmatpush1.bf16.msra.mxu0 %v645
      %663 = vmatprep.subr.bf16.mxu0 0
      %664 = vmatpush1.bf16.msra.mxu0 %v646
      %665 = vmatprep.subr.bf16.mxu0 0
      %666 = vmatpush1.bf16.msra.mxu0 %v647
      %667 = vmatprep.subr.bf16.mxu0 0
      %668 = vmatpush1.bf16.msra.mxu0 %v648
      %669 = vmatprep.subr.bf16.mxu0 0
      %670 = vmatpush1.bf16.msra.mxu0 %v649
      %671 = vmatprep.subr.bf16.mxu0 0
      %672 = vmatpush1.bf16.msra.mxu0 %v650
      %673 = vmatprep.subr.bf16.mxu0 0
      %674 = vmatpush1.bf16.msra.mxu0 %v651
      %675 = vmatprep.subr.bf16.mxu0 0
      %676 = vmatpush1.bf16.msra.mxu0 %v652
      %677 = vmatprep.subr.bf16.mxu0 0
      %678 = vmatpush1.bf16.msra.mxu0 0
      %679 = vmatprep.subr.bf16.mxu0 0
      %680 = vmatpush1.bf16.msra.mxu0 0
      %681 = vmatprep.subr.bf16.mxu0 0
      %682 = vmatpush1.bf16.msra.mxu0 0
      %683 = vmatprep.subr.bf16.mxu0 0
      %684 = vmatpush1.bf16.msra.mxu0 0
      %685 = vmatprep.subr.bf16.mxu0 0
      %686 = vmatpush1.bf16.msra.mxu0 0
      %687 = vmatprep.subr.bf16.mxu0 0
      %688 = vmatpush1.bf16.msra.mxu0 0
      %689 = vmatprep.subr.bf16.mxu0 0
      %690 = vmatpush1.bf16.msra.mxu0 0
      %691 = vmatprep.subr.bf16.mxu0 0
      %692 = vmatpush1.bf16.msra.mxu0 0
      %693 = vmatprep.mubr.bf16.mxu0 0
      %694 = vmatmul.mubr.bf16.gmra.mrb[0].mxu0 %v611
      %v695 = vpop.f32.mrb[0].mxu0
      %v696 = vadd.f32 %v605, %v695
      %v697 = vpop.f32.mrb[0].mxu0
      %v698 = vpop.f32.mrb[0].mxu0
      %v699 = vadd.f32 %v605, %v698
      %v700 = vpop.f32.mrb[0].mxu0
      %701 = vdwg.mxu0
      %v702 = vld [vmem:[%s6] sm:$0xf]
      %v703 = vld [vmem:[%s6 + $0x4] sm:$0xf]
      %v704 = vld [vmem:[%s6 + $0x8] sm:$0xf]
      %v705 = vld [vmem:[%s6 + $0xc] sm:$0xf]
      %v706 = vld [vmem:[%s6 + $0x10] sm:$0xf]
      %v707 = vld [vmem:[%s6 + $0x14] sm:$0xf]
      %v708 = vld [vmem:[%s6 + $0x18] sm:$0xf]
      %v709 = vld [vmem:[%s6 + $0x1c] sm:$0xf]
      %v710 = vld [vmem:[%s6 + $0x20] sm:$0xf]
      %v711 = vld [vmem:[%s6 + $0x24] sm:$0xf]
      %v712 = vld [vmem:[%s6 + $0x28] sm:$0xf]
      %v713 = vld [vmem:[%s6 + $0x2c] sm:$0xf]
      %v714 = vld [vmem:[%s6 + $0x30] sm:$0xf]
      %v715 = vld [vmem:[%s6 + $0x34] sm:$0xf]
      %v716 = vld [vmem:[%s6 + $0x38] sm:$0xf]
      %v717 = vld [vmem:[%s6 + $0x3c] sm:$0xf]
      %v718 = vld [vmem:[%s7] sm:$0x1]
      %v720 = vlaneseq
      %v721 = vshrl.u32 %v720, 7
      %v722 = vsub.s32 0, %v721
      %v723 = vrot.slane %v718, %v722
      %v741 = vunpack.c.l.b16 %v702
      %v742 = vunpack.c.l.b16 %v703
      %v743 = vunpack.c.l.b16 %v704
      %v744 = vunpack.c.l.b16 %v705
      %v745 = vunpack.c.l.b16 %v706
      %v746 = vunpack.c.l.b16 %v707
      %v747 = vunpack.c.l.b16 %v708
      %v748 = vunpack.c.l.b16 %v709
      %v749 = vunpack.c.l.b16 %v710
      %v750 = vunpack.c.l.b16 %v711
      %v751 = vunpack.c.l.b16 %v712
      %v752 = vunpack.c.l.b16 %v713
      %v753 = vunpack.c.l.b16 %v714
      %v754 = vunpack.c.l.b16 %v715
      %v755 = vunpack.c.l.b16 %v716
      %v756 = vunpack.c.l.b16 %v717
      %v757 = vpack.c.b16 %v742, %v741
      %v758 = vpack.c.b16 %v744, %v743
      %v759 = vpack.c.b16 %v746, %v745
      %v760 = vpack.c.b16 %v748, %v747
      %v761 = vpack.c.b16 %v750, %v749
      %v762 = vpack.c.b16 %v752, %v751
      %v763 = vpack.c.b16 %v754, %v753
      %v764 = vpack.c.b16 %v756, %v755
      %773 = vmatprep.subr.bf16.mxu0 0
      %774 = vmatpush1.bf16.msra.mxu0 %v757
      %775 = vmatprep.subr.bf16.mxu0 0
      %776 = vmatpush1.bf16.msra.mxu0 %v758
      %777 = vmatprep.subr.bf16.mxu0 0
      %778 = vmatpush1.bf16.msra.mxu0 %v759
      %779 = vmatprep.subr.bf16.mxu0 0
      %780 = vmatpush1.bf16.msra.mxu0 %v760
      %781 = vmatprep.subr.bf16.mxu0 0
      %782 = vmatpush1.bf16.msra.mxu0 %v761
      %783 = vmatprep.subr.bf16.mxu0 0
      %784 = vmatpush1.bf16.msra.mxu0 %v762
      %785 = vmatprep.subr.bf16.mxu0 0
      %786 = vmatpush1.bf16.msra.mxu0 %v763
      %787 = vmatprep.subr.bf16.mxu0 0
      %788 = vmatpush1.bf16.msra.mxu0 %v764
      %789 = vmatprep.subr.bf16.mxu0 0
      %790 = vmatpush1.bf16.msra.mxu0 0
      %791 = vmatprep.subr.bf16.mxu0 0
      %792 = vmatpush1.bf16.msra.mxu0 0
      %793 = vmatprep.subr.bf16.mxu0 0
      %794 = vmatpush1.bf16.msra.mxu0 0
      %795 = vmatprep.subr.bf16.mxu0 0
      %796 = vmatpush1.bf16.msra.mxu0 0
      %797 = vmatprep.subr.bf16.mxu0 0
      %798 = vmatpush1.bf16.msra.mxu0 0
      %799 = vmatprep.subr.bf16.mxu0 0
      %800 = vmatpush1.bf16.msra.mxu0 0
      %801 = vmatprep.subr.bf16.mxu0 0
      %802 = vmatpush1.bf16.msra.mxu0 0
      %803 = vmatprep.subr.bf16.mxu0 0
      %804 = vmatpush1.bf16.msra.mxu0 0
      %805 = vmatprep.mubr.bf16.mxu0 0
      %806 = vmatmul.mubr.bf16.gmra.mrb[0].mxu0 %v611
      %v807 = vpop.f32.mrb[0].mxu0
      %v808 = vadd.f32 %v723, %v807
      %v809 = vpop.f32.mrb[0].mxu0
      %v810 = vpop.f32.mrb[0].mxu0
      %v811 = vadd.f32 %v723, %v810
      %v812 = vpop.f32.mrb[0].mxu0
      %813 = vdwg.mxu0
      %816 = vrot.lane.b32.xlu0 %v696, 120
      %v817 = vpop.permute.xlu0 %816
      %818 = vrot.lane.b32.xlu0 %v699, 120
      %v819 = vpop.permute.xlu0 %818
      %822 = vrot.lane.b32.xlu0 %v696, 112
      %v823 = vpop.permute.xlu0 %822
      %824 = vrot.lane.b32.xlu0 %v699, 112
      %v825 = vpop.permute.xlu0 %824
      %828 = vrot.lane.b32.xlu0 %v696, 104
      %v829 = vpop.permute.xlu0 %828
      %830 = vrot.lane.b32.xlu0 %v699, 104
      %v831 = vpop.permute.xlu0 %830
      %v834 = vpack.c.bf16 %v699, %v696
      %v835 = vpack.c.bf16 %v819, %v817
      %v836 = vpack.c.bf16 %v825, %v823
      %v837 = vpack.c.bf16 %v831, %v829
      %840 = vrot.lane.b32.xlu0 %v808, 120
      %v841 = vpop.permute.xlu0 %840
      %842 = vrot.lane.b32.xlu0 %v811, 120
      %v843 = vpop.permute.xlu0 %842
      %846 = vrot.lane.b32.xlu0 %v808, 112
      %v847 = vpop.permute.xlu0 %846
      %848 = vrot.lane.b32.xlu0 %v811, 112
      %v849 = vpop.permute.xlu0 %848
      %852 = vrot.lane.b32.xlu0 %v808, 104
      %v853 = vpop.permute.xlu0 %852
      %854 = vrot.lane.b32.xlu0 %v811, 104
      %v855 = vpop.permute.xlu0 %854
      %v858 = vpack.c.bf16 %v811, %v808
      %v859 = vpack.c.bf16 %v843, %v841
      %v860 = vpack.c.bf16 %v849, %v847
      %v861 = vpack.c.bf16 %v855, %v853
      %v862 = vld [vmem:[#allocation3] sm:$0xf]
      %v863 = vld [vmem:[#allocation3 + $0x4] sm:$0xf]
      %v864 = vld [vmem:[#allocation3 + $0x8] sm:$0xf]
      %v865 = vld [vmem:[#allocation3 + $0xc] sm:$0xf]
      %vm866 = vcmask 64512
      %v868 = vsel %vm866, %v862, 0
      %v871 = vsel %vm866, %v834, 0
      %873 = vmatprep.subr.bf16.mxu0 0
      %874 = vmatpush1.bf16.xpose.msra.mxu0 %v871
      %875 = vmatprep.subr.bf16.mxu0 0
      %876 = vmatpush1.bf16.xpose.msra.mxu0 0
      %877 = vmatprep.subr.bf16.mxu0 0
      %878 = vmatpush1.bf16.xpose.msra.mxu0 0
      %879 = vmatprep.subr.bf16.mxu0 0
      %880 = vmatpush1.bf16.xpose.msra.mxu0 0
      %881 = vmatprep.subr.bf16.mxu0 0
      %882 = vmatpush1.bf16.xpose.msra.mxu0 0
      %883 = vmatprep.subr.bf16.mxu0 0
      %884 = vmatpush1.bf16.xpose.msra.mxu0 0
      %885 = vmatprep.subr.bf16.mxu0 0
      %886 = vmatpush1.bf16.xpose.msra.mxu0 0
      %887 = vmatprep.subr.bf16.mxu0 0
      %888 = vmatpush1.bf16.xpose.msra.mxu0 0
      %889 = vmatprep.subr.bf16.mxu0 0
      %890 = vmatpush1.bf16.xpose.msra.mxu0 0
      %891 = vmatprep.subr.bf16.mxu0 0
      %892 = vmatpush1.bf16.xpose.msra.mxu0 0
      %893 = vmatprep.subr.bf16.mxu0 0
      %894 = vmatpush1.bf16.xpose.msra.mxu0 0
      %895 = vmatprep.subr.bf16.mxu0 0
      %896 = vmatpush1.bf16.xpose.msra.mxu0 0
      %897 = vmatprep.subr.bf16.mxu0 0
      %898 = vmatpush1.bf16.xpose.msra.mxu0 0
      %899 = vmatprep.subr.bf16.mxu0 0
      %900 = vmatpush1.bf16.xpose.msra.mxu0 0
      %901 = vmatprep.subr.bf16.mxu0 0
      %902 = vmatpush1.bf16.xpose.msra.mxu0 0
      %903 = vmatprep.subr.bf16.mxu0 0
      %904 = vmatpush1.bf16.xpose.msra.mxu0 0
      %905 = vmatprep.mubr.bf16.mxu0 0
      %906 = vmatmul.mubr.bf16.gmra.mrb[0].mxu0 %v868
      %v907 = vpop.f32.mrb[0].mxu0
      %v908 = vadd.f32 0.0, %v907
      %v909 = vpop.f32.mrb[0].mxu0
      %v910 = vpop.f32.mrb[0].mxu0
      %v911 = vpop.f32.mrb[0].mxu0
      %912 = vdwg.mxu0
      %v914 = vsel %vm866, %v863, 0
      %v917 = vsel %vm866, %v835, 0
      %919 = vmatprep.subr.bf16.mxu0 0
      %920 = vmatpush1.bf16.xpose.msra.mxu0 %v917
      %921 = vmatprep.subr.bf16.mxu0 0
      %922 = vmatpush1.bf16.xpose.msra.mxu0 0
      %923 = vmatprep.subr.bf16.mxu0 0
      %924 = vmatpush1.bf16.xpose.msra.mxu0 0
      %925 = vmatprep.subr.bf16.mxu0 0
      %926 = vmatpush1.bf16.xpose.msra.mxu0 0
      %927 = vmatprep.subr.bf16.mxu0 0
      %928 = vmatpush1.bf16.xpose.msra.mxu0 0
      %929 = vmatprep.subr.bf16.mxu0 0
      %930 = vmatpush1.bf16.xpose.msra.mxu0 0
      %931 = vmatprep.subr.bf16.mxu0 0
      %932 = vmatpush1.bf16.xpose.msra.mxu0 0
      %933 = vmatprep.subr.bf16.mxu0 0
      %934 = vmatpush1.bf16.xpose.msra.mxu0 0
      %935 = vmatprep.subr.bf16.mxu0 0
      %936 = vmatpush1.bf16.xpose.msra.mxu0 0
      %937 = vmatprep.subr.bf16.mxu0 0
      %938 = vmatpush1.bf16.xpose.msra.mxu0 0
      %939 = vmatprep.subr.bf16.mxu0 0
      %940 = vmatpush1.bf16.xpose.msra.mxu0 0
      %941 = vmatprep.subr.bf16.mxu0 0
      %942 = vmatpush1.bf16.xpose.msra.mxu0 0
      %943 = vmatprep.subr.bf16.mxu0 0
      %944 = vmatpush1.bf16.xpose.msra.mxu0 0
      %945 = vmatprep.subr.bf16.mxu0 0
      %946 = vmatpush1.bf16.xpose.msra.mxu0 0
      %947 = vmatprep.subr.bf16.mxu0 0
      %948 = vmatpush1.bf16.xpose.msra.mxu0 0
      %949 = vmatprep.subr.bf16.mxu0 0
      %950 = vmatpush1.bf16.xpose.msra.mxu0 0
      %951 = vmatprep.mubr.bf16.mxu0 0
      %952 = vmatmul.mubr.bf16.gmra.mrb[0].mxu0 %v914
      %v953 = vpop.f32.mrb[0].mxu0
      %v954 = vadd.f32 0.0, %v953
      %v955 = vpop.f32.mrb[0].mxu0
      %v956 = vpop.f32.mrb[0].mxu0
      %v957 = vpop.f32.mrb[0].mxu0
      %958 = vdwg.mxu0
      %v960 = vsel %vm866, %v864, 0
      %v963 = vsel %vm866, %v836, 0
      %965 = vmatprep.subr.bf16.mxu0 0
      %966 = vmatpush1.bf16.xpose.msra.mxu0 %v963
      %967 = vmatprep.subr.bf16.mxu0 0
      %968 = vmatpush1.bf16.xpose.msra.mxu0 0
      %969 = vmatprep.subr.bf16.mxu0 0
      %970 = vmatpush1.bf16.xpose.msra.mxu0 0
      %971 = vmatprep.subr.bf16.mxu0 0
      %972 = vmatpush1.bf16.xpose.msra.mxu0 0
      %973 = vmatprep.subr.bf16.mxu0 0
      %974 = vmatpush1.bf16.xpose.msra.mxu0 0
      %975 = vmatprep.subr.bf16.mxu0 0
      %976 = vmatpush1.bf16.xpose.msra.mxu0 0
      %977 = vmatprep.subr.bf16.mxu0 0
      %978 = vmatpush1.bf16.xpose.msra.mxu0 0
      %979 = vmatprep.subr.bf16.mxu0 0
      %980 = vmatpush1.bf16.xpose.msra.mxu0 0
      %981 = vmatprep.subr.bf16.mxu0 0
      %982 = vmatpush1.bf16.xpose.msra.mxu0 0
      %983 = vmatprep.subr.bf16.mxu0 0
      %984 = vmatpush1.bf16.xpose.msra.mxu0 0
      %985 = vmatprep.subr.bf16.mxu0 0
      %986 = vmatpush1.bf16.xpose.msra.mxu0 0
      %987 = vmatprep.subr.bf16.mxu0 0
      %988 = vmatpush1.bf16.xpose.msra.mxu0 0
      %989 = vmatprep.subr.bf16.mxu0 0
      %990 = vmatpush1.bf16.xpose.msra.mxu0 0
      %991 = vmatprep.subr.bf16.mxu0 0
      %992 = vmatpush1.bf16.xpose.msra.mxu0 0
      %993 = vmatprep.subr.bf16.mxu0 0
      %994 = vmatpush1.bf16.xpose.msra.mxu0 0
      %995 = vmatprep.subr.bf16.mxu0 0
      %996 = vmatpush1.bf16.xpose.msra.mxu0 0
      %997 = vmatprep.mubr.bf16.mxu0 0
      %998 = vmatmul.mubr.bf16.gmra.mrb[0].mxu0 %v960
      %v999 = vpop.f32.mrb[0].mxu0
      %v1000 = vadd.f32 0.0, %v999
      %v1001 = vpop.f32.mrb[0].mxu0
      %v1002 = vpop.f32.mrb[0].mxu0
      %v1003 = vpop.f32.mrb[0].mxu0
      %1004 = vdwg.mxu0
      %v1006 = vsel %vm866, %v865, 0
      %v1009 = vsel %vm866, %v837, 0
      %1011 = vmatprep.subr.bf16.mxu0 0
      %1012 = vmatpush1.bf16.xpose.msra.mxu0 %v1009
      %1013 = vmatprep.subr.bf16.mxu0 0
      %1014 = vmatpush1.bf16.xpose.msra.mxu0 0
      %1015 = vmatprep.subr.bf16.mxu0 0
      %1016 = vmatpush1.bf16.xpose.msra.mxu0 0
      %1017 = vmatprep.subr.bf16.mxu0 0
      %1018 = vmatpush1.bf16.xpose.msra.mxu0 0
      %1019 = vmatprep.subr.bf16.mxu0 0
      %1020 = vmatpush1.bf16.xpose.msra.mxu0 0
      %1021 = vmatprep.subr.bf16.mxu0 0
      %1022 = vmatpush1.bf16.xpose.msra.mxu0 0
      %1023 = vmatprep.subr.bf16.mxu0 0
      %1024 = vmatpush1.bf16.xpose.msra.mxu0 0
      %1025 = vmatprep.subr.bf16.mxu0 0
      %1026 = vmatpush1.bf16.xpose.msra.mxu0 0
      %1027 = vmatprep.subr.bf16.mxu0 0
      %1028 = vmatpush1.bf16.xpose.msra.mxu0 0
      %1029 = vmatprep.subr.bf16.mxu0 0
      %1030 = vmatpush1.bf16.xpose.msra.mxu0 0
      %1031 = vmatprep.subr.bf16.mxu0 0
      %1032 = vmatpush1.bf16.xpose.msra.mxu0 0
      %1033 = vmatprep.subr.bf16.mxu0 0
      %1034 = vmatpush1.bf16.xpose.msra.mxu0 0
      %1035 = vmatprep.subr.bf16.mxu0 0
      %1036 = vmatpush1.bf16.xpose.msra.mxu0 0
      %1037 = vmatprep.subr.bf16.mxu0 0
      %1038 = vmatpush1.bf16.xpose.msra.mxu0 0
      %1039 = vmatprep.subr.bf16.mxu0 0
      %1040 = vmatpush1.bf16.xpose.msra.mxu0 0
      %1041 = vmatprep.subr.bf16.mxu0 0
      %1042 = vmatpush1.bf16.xpose.msra.mxu0 0
      %1043 = vmatprep.mubr.bf16.mxu0 0
      %1044 = vmatmul.mubr.bf16.gmra.mrb[0].mxu0 %v1006
      %v1045 = vpop.f32.mrb[0].mxu0
      %v1046 = vadd.f32 0.0, %v1045
      %v1047 = vpop.f32.mrb[0].mxu0
      %v1048 = vpop.f32.mrb[0].mxu0
      %v1049 = vpop.f32.mrb[0].mxu0
      %1050 = vdwg.mxu0
      %v1051 = vld [vmem:[#allocation4] sm:$0xff]
      %v1052 = vld [vmem:[#allocation4 + $0x8] sm:$0xff]
      %v1053 = vld [vmem:[#allocation4 + $0x10] sm:$0xff]
      %v1054 = vld [vmem:[#allocation4 + $0x18] sm:$0xff]
      %vm1055 = vcmask 130048
      %v1056 = vsel %vm1055, %v908, -inf
      %1057 = vmax.xlane.f32.xlu0 %v1056
      %v1058 = vpop.xlane.xlu0 %1057
      %v1059 = vsel %vm1055, %v954, -inf
      %1060 = vmax.xlane.f32.xlu0 %v1059
      %v1061 = vpop.xlane.xlu0 %1060
      %v1062 = vsel %vm1055, %v1000, -inf
      %1063 = vmax.xlane.f32.xlu0 %v1062
      %v1064 = vpop.xlane.xlu0 %1063
      %v1065 = vsel %vm1055, %v1046, -inf
      %1066 = vmax.xlane.f32.xlu0 %v1065
      %v1067 = vpop.xlane.xlu0 %1066
      %v1068 = vmax.f32 %v1051, %v1058
      %v1069 = vmax.f32 %v1052, %v1061
      %v1070 = vmax.f32 %v1053, %v1064
      %v1071 = vmax.f32 %v1054, %v1067
      %v1072 = vsub.f32 %v1051, %v1068
      %v1073 = vsub.f32 %v1052, %v1069
      %v1074 = vsub.f32 %v1053, %v1070
      %v1075 = vsub.f32 %v1054, %v1071
      %v1076 = vmul.f32 %v1072, 1.442695
      %v1077 = vpow.pop %v1076
      %v1078 = vmul.f32 %v1073, 1.442695
      %v1079 = vpow.pop %v1078
      %v1080 = vmul.f32 %v1074, 1.442695
      %v1081 = vpow.pop %v1080
      %v1082 = vmul.f32 %v1075, 1.442695
      %v1083 = vpow.pop %v1082
      %1085 = vset.pattern.permute.xlu0 0
      %1086 = vperm.xlu0 %1085, %v1068
      %v1087 = vpop.permute.xlu0 %1086
      %1090 = vset.pattern.permute.xlu0 0
      %1091 = vperm.xlu0 %1090, %v1069
      %v1092 = vpop.permute.xlu0 %1091
      %1095 = vset.pattern.permute.xlu0 0
      %1096 = vperm.xlu0 %1095, %v1070
      %v1097 = vpop.permute.xlu0 %1096
      %1100 = vset.pattern.permute.xlu0 0
      %1101 = vperm.xlu0 %1100, %v1071
      %v1102 = vpop.permute.xlu0 %1101
      %v1104 = vsub.f32 %v908, %v1087
      %v1105 = vsub.f32 %v954, %v1092
      %v1106 = vsub.f32 %v1000, %v1097
      %v1107 = vsub.f32 %v1046, %v1102
      %v1108 = vmul.f32 %v1104, 1.442695
      %v1109 = vpow.pop %v1108
      %v1110 = vmul.f32 %v1105, 1.442695
      %v1111 = vpow.pop %v1110
      %v1112 = vmul.f32 %v1106, 1.442695
      %v1113 = vpow.pop %v1112
      %v1114 = vmul.f32 %v1107, 1.442695
      %v1115 = vpow.pop %v1114
      %v1116 = vld [vmem:[#allocation5] sm:$0xff]
      %v1117 = vld [vmem:[#allocation5 + $0x8] sm:$0xff]
      %v1118 = vld [vmem:[#allocation5 + $0x10] sm:$0xff]
      %v1119 = vld [vmem:[#allocation5 + $0x18] sm:$0xff]
      %v1120 = vmul.f32 %v1077, %v1116
      %v1121 = vmul.f32 %v1079, %v1117
      %v1122 = vmul.f32 %v1081, %v1118
      %v1123 = vmul.f32 %v1083, %v1119
      %v1124 = vsel %vm1055, %v1109, 0.0
      %1125 = vadd.xlane.f32.xlu0 %v1124
      %v1126 = vpop.xlane.xlu0 %1125
      %v1127 = vsel %vm1055, %v1111, 0.0
      %1128 = vadd.xlane.f32.xlu0 %v1127
      %v1129 = vpop.xlane.xlu0 %1128
      %v1130 = vsel %vm1055, %v1113, 0.0
      %1131 = vadd.xlane.f32.xlu0 %v1130
      %v1132 = vpop.xlane.xlu0 %1131
      %v1133 = vsel %vm1055, %v1115, 0.0
      %1134 = vadd.xlane.f32.xlu0 %v1133
      %v1135 = vpop.xlane.xlu0 %1134
      %v1136 = vadd.f32 %v1120, %v1126
      %v1137 = vadd.f32 %v1121, %v1129
      %v1138 = vadd.f32 %v1122, %v1132
      %v1139 = vadd.f32 %v1123, %v1135
      %vm1140 = vcmask 7168
      %1141 = vst.msk [vmem:[#allocation5] sm:$0xff] %vm1140, %v1136
      %1142 = vst.msk [vmem:[#allocation5 + $0x8] sm:$0xff] %vm1140, %v1137
      %1143 = vst.msk [vmem:[#allocation5 + $0x10] sm:$0xff] %vm1140, %v1138
      %1144 = vst.msk [vmem:[#allocation5 + $0x18] sm:$0xff] %vm1140, %v1139
      %v1145 = vld [vmem:[#allocation6] sm:$0xff]
      %v1146 = vld [vmem:[#allocation6 + $0x8] sm:$0xff]
      %v1147 = vld [vmem:[#allocation6 + $0x10] sm:$0xff]
      %v1148 = vld [vmem:[#allocation6 + $0x18] sm:$0xff]
      %1150 = vset.pattern.permute.xlu0 0
      %1151 = vperm.xlu0 %1150, %v1077
      %v1152 = vpop.permute.xlu0 %1151
      %1155 = vset.pattern.permute.xlu0 0
      %1156 = vperm.xlu0 %1155, %v1079
      %v1157 = vpop.permute.xlu0 %1156
      %1160 = vset.pattern.permute.xlu0 0
      %1161 = vperm.xlu0 %1160, %v1081
      %v1162 = vpop.permute.xlu0 %1161
      %1165 = vset.pattern.permute.xlu0 0
      %1166 = vperm.xlu0 %1165, %v1083
      %v1167 = vpop.permute.xlu0 %1166
      %v1169 = vmul.f32 %v1152, %v1145
      %v1170 = vmul.f32 %v1157, %v1146
      %v1171 = vmul.f32 %v1162, %v1147
      %v1172 = vmul.f32 %v1167, %v1148
      %v1173 = vpack.c.bf16 %v1109, %v1109
      %v1174 = vpack.c.bf16 %v1111, %v1111
      %v1175 = vpack.c.bf16 %v1113, %v1113
      %v1176 = vpack.c.bf16 %v1115, %v1115
      %v1178 = vsel %vm1055, %v1173, 0
      %1180 = vmatprep.subr.bf16.mxu0 0
      %1181 = vmatpush1.bf16.msra.mxu0 %v858
      %1182 = vmatprep.subr.bf16.mxu0 0
      %1183 = vmatpush1.bf16.msra.mxu0 0
      %1184 = vmatprep.subr.bf16.mxu0 0
      %1185 = vmatpush1.bf16.msra.mxu0 0
      %1186 = vmatprep.subr.bf16.mxu0 0
      %1187 = vmatpush1.bf16.msra.mxu0 0
      %1188 = vmatprep.subr.bf16.mxu0 0
      %1189 = vmatpush1.bf16.msra.mxu0 0
      %1190 = vmatprep.subr.bf16.mxu0 0
      %1191 = vmatpush1.bf16.msra.mxu0 0
      %1192 = vmatprep.subr.bf16.mxu0 0
      %1193 = vmatpush1.bf16.msra.mxu0 0
      %1194 = vmatprep.subr.bf16.mxu0 0
      %1195 = vmatpush1.bf16.msra.mxu0 0
      %1196 = vmatprep.subr.bf16.mxu0 0
      %1197 = vmatpush1.bf16.msra.mxu0 0
      %1198 = vmatprep.subr.bf16.mxu0 0
      %1199 = vmatpush1.bf16.msra.mxu0 0
      %1200 = vmatprep.subr.bf16.mxu0 0
      %1201 = vmatpush1.bf16.msra.mxu0 0
      %1202 = vmatprep.subr.bf16.mxu0 0
      %1203 = vmatpush1.bf16.msra.mxu0 0
      %1204 = vmatprep.subr.bf16.mxu0 0
      %1205 = vmatpush1.bf16.msra.mxu0 0
      %1206 = vmatprep.subr.bf16.mxu0 0
      %1207 = vmatpush1.bf16.msra.mxu0 0
      %1208 = vmatprep.subr.bf16.mxu0 0
      %1209 = vmatpush1.bf16.msra.mxu0 0
      %1210 = vmatprep.subr.bf16.mxu0 0
      %1211 = vmatpush1.bf16.msra.mxu0 0
      %1212 = vmatprep.mubr.bf16.mxu0 0
      %1213 = vmatmul.mubr.bf16.gmra.mrb[0].mxu0 %v1178
      %v1214 = vpop.f32.mrb[0].mxu0
      %v1215 = vadd.f32 0.0, %v1214
      %v1216 = vpop.f32.mrb[0].mxu0
      %v1217 = vpop.f32.mrb[0].mxu0
      %v1218 = vpop.f32.mrb[0].mxu0
      %1219 = vdwg.mxu0
      %v1221 = vsel %vm1055, %v1174, 0
      %1223 = vmatprep.subr.bf16.mxu0 0
      %1224 = vmatpush1.bf16.msra.mxu0 %v859
      %1225 = vmatprep.subr.bf16.mxu0 0
      %1226 = vmatpush1.bf16.msra.mxu0 0
      %1227 = vmatprep.subr.bf16.mxu0 0
      %1228 = vmatpush1.bf16.msra.mxu0 0
      %1229 = vmatprep.subr.bf16.mxu0 0
      %1230 = vmatpush1.bf16.msra.mxu0 0
      %1231 = vmatprep.subr.bf16.mxu0 0
      %1232 = vmatpush1.bf16.msra.mxu0 0
      %1233 = vmatprep.subr.bf16.mxu0 0
      %1234 = vmatpush1.bf16.msra.mxu0 0
      %1235 = vmatprep.subr.bf16.mxu0 0
      %1236 = vmatpush1.bf16.msra.mxu0 0
      %1237 = vmatprep.subr.bf16.mxu0 0
      %1238 = vmatpush1.bf16.msra.mxu0 0
      %1239 = vmatprep.subr.bf16.mxu0 0
      %1240 = vmatpush1.bf16.msra.mxu0 0
      %1241 = vmatprep.subr.bf16.mxu0 0
      %1242 = vmatpush1.bf16.msra.mxu0 0
      %1243 = vmatprep.subr.bf16.mxu0 0
      %1244 = vmatpush1.bf16.msra.mxu0 0
      %1245 = vmatprep.subr.bf16.mxu0 0
      %1246 = vmatpush1.bf16.msra.mxu0 0
      %1247 = vmatprep.subr.bf16.mxu0 0
      %1248 = vmatpush1.bf16.msra.mxu0 0
      %1249 = vmatprep.subr.bf16.mxu0 0
      %1250 = vmatpush1.bf16.msra.mxu0 0
      %1251 = vmatprep.subr.bf16.mxu0 0
      %1252 = vmatpush1.bf16.msra.mxu0 0
      %1253 = vmatprep.subr.bf16.mxu0 0
      %1254 = vmatpush1.bf16.msra.mxu0 0
      %1255 = vmatprep.mubr.bf16.mxu0 0
      %1256 = vmatmul.mubr.bf16.gmra.mrb[0].mxu0 %v1221
      %v1257 = vpop.f32.mrb[0].mxu0
      %v1258 = vadd.f32 0.0, %v1257
      %v1259 = vpop.f32.mrb[0].mxu0
      %v1260 = vpop.f32.mrb[0].mxu0
      %v1261 = vpop.f32.mrb[0].mxu0
      %1262 = vdwg.mxu0
      %v1264 = vsel %vm1055, %v1175, 0
      %1266 = vmatprep.subr.bf16.mxu0 0
      %1267 = vmatpush1.bf16.msra.mxu0 %v860
      %1268 = vmatprep.subr.bf16.mxu0 0
      %1269 = vmatpush1.bf16.msra.mxu0 0
      %1270 = vmatprep.subr.bf16.mxu0 0
      %1271 = vmatpush1.bf16.msra.mxu0 0
      %1272 = vmatprep.subr.bf16.mxu0 0
      %1273 = vmatpush1.bf16.msra.mxu0 0
      %1274 = vmatprep.subr.bf16.mxu0 0
      %1275 = vmatpush1.bf16.msra.mxu0 0
      %1276 = vmatprep.subr.bf16.mxu0 0
      %1277 = vmatpush1.bf16.msra.mxu0 0
      %1278 = vmatprep.subr.bf16.mxu0 0
      %1279 = vmatpush1.bf16.msra.mxu0 0
      %1280 = vmatprep.subr.bf16.mxu0 0
      %1281 = vmatpush1.bf16.msra.mxu0 0
      %1282 = vmatprep.subr.bf16.mxu0 0
      %1283 = vmatpush1.bf16.msra.mxu0 0
      %1284 = vmatprep.subr.bf16.mxu0 0
      %1285 = vmatpush1.bf16.msra.mxu0 0
      %1286 = vmatprep.subr.bf16.mxu0 0
      %1287 = vmatpush1.bf16.msra.mxu0 0
      %1288 = vmatprep.subr.bf16.mxu0 0
      %1289 = vmatpush1.bf16.msra.mxu0 0
      %1290 = vmatprep.subr.bf16.mxu0 0
      %1291 = vmatpush1.bf16.msra.mxu0 0
      %1292 = vmatprep.subr.bf16.mxu0 0
      %1293 = vmatpush1.bf16.msra.mxu0 0
      %1294 = vmatprep.subr.bf16.mxu0 0
      %1295 = vmatpush1.bf16.msra.mxu0 0
      %1296 = vmatprep.subr.bf16.mxu0 0
      %1297 = vmatpush1.bf16.msra.mxu0 0
      %1298 = vmatprep.mubr.bf16.mxu0 0
      %1299 = vmatmul.mubr.bf16.gmra.mrb[0].mxu0 %v1264
      %v1300 = vpop.f32.mrb[0].mxu0
      %v1301 = vadd.f32 0.0, %v1300
      %v1302 = vpop.f32.mrb[0].mxu0
      %v1303 = vpop.f32.mrb[0].mxu0
      %v1304 = vpop.f32.mrb[0].mxu0
      %1305 = vdwg.mxu0
      %v1307 = vsel %vm1055, %v1176, 0
      %1309 = vmatprep.subr.bf16.mxu0 0
      %1310 = vmatpush1.bf16.msra.mxu0 %v861
      %1311 = vmatprep.subr.bf16.mxu0 0
      %1312 = vmatpush1.bf16.msra.mxu0 0
      %1313 = vmatprep.subr.bf16.mxu0 0
      %1314 = vmatpush1.bf16.msra.mxu0 0
      %1315 = vmatprep.subr.bf16.mxu0 0
      %1316 = vmatpush1.bf16.msra.mxu0 0
      %1317 = vmatprep.subr.bf16.mxu0 0
      %1318 = vmatpush1.bf16.msra.mxu0 0
      %1319 = vmatprep.subr.bf16.mxu0 0
      %1320 = vmatpush1.bf16.msra.mxu0 0
      %1321 = vmatprep.subr.bf16.mxu0 0
      %1322 = vmatpush1.bf16.msra.mxu0 0
      %1323 = vmatprep.subr.bf16.mxu0 0
      %1324 = vmatpush1.bf16.msra.mxu0 0
      %1325 = vmatprep.subr.bf16.mxu0 0
      %1326 = vmatpush1.bf16.msra.mxu0 0
      %1327 = vmatprep.subr.bf16.mxu0 0
      %1328 = vmatpush1.bf16.msra.mxu0 0
      %1329 = vmatprep.subr.bf16.mxu0 0
      %1330 = vmatpush1.bf16.msra.mxu0 0
      %1331 = vmatprep.subr.bf16.mxu0 0
      %1332 = vmatpush1.bf16.msra.mxu0 0
      %1333 = vmatprep.subr.bf16.mxu0 0
      %1334 = vmatpush1.bf16.msra.mxu0 0
      %1335 = vmatprep.subr.bf16.mxu0 0
      %1336 = vmatpush1.bf16.msra.mxu0 0
      %1337 = vmatprep.subr.bf16.mxu0 0
      %1338 = vmatpush1.bf16.msra.mxu0 0
      %1339 = vmatprep.subr.bf16.mxu0 0
      %1340 = vmatpush1.bf16.msra.mxu0 0
      %1341 = vmatprep.mubr.bf16.mxu0 0
      %1342 = vmatmul.mubr.bf16.gmra.mrb[0].mxu0 %v1307
      %v1343 = vpop.f32.mrb[0].mxu0
      %v1344 = vadd.f32 0.0, %v1343
      %v1345 = vpop.f32.mrb[0].mxu0
      %v1346 = vpop.f32.mrb[0].mxu0
      %v1347 = vpop.f32.mrb[0].mxu0
      %1348 = vdwg.mxu0
      %v1349 = vadd.f32 %v1169, %v1215
      %v1350 = vadd.f32 %v1170, %v1258
      %v1351 = vadd.f32 %v1171, %v1301
      %v1352 = vadd.f32 %v1172, %v1344
      %1353 = vst.msk [vmem:[#allocation6] sm:$0xff] %vm866, %v1349
      %1354 = vst.msk [vmem:[#allocation6 + $0x8] sm:$0xff] %vm866, %v1350
      %1355 = vst.msk [vmem:[#allocation6 + $0x10] sm:$0xff] %vm866, %v1351
      %1356 = vst.msk [vmem:[#allocation6 + $0x18] sm:$0xff] %vm866, %v1352
      %1357 = vst.msk [vmem:[#allocation4] sm:$0xff] %vm1140, %v1068
      %1358 = vst.msk [vmem:[#allocation4 + $0x8] sm:$0xff] %vm1140, %v1069
      %1359 = vst.msk [vmem:[#allocation4 + $0x10] sm:$0xff] %vm1140, %v1070
      %1360 = vst.msk [vmem:[#allocation4 + $0x18] sm:$0xff] %vm1140, %v1071
      // Predicated region
      $region65: #{ginfpsst_forward.8} parent=59 // pred_check
        %p1361 = pneg %p430
      $region66: #{ginfpsst_forward.8} parent=59 // pred_check_branch
        %1363 = sbr.rel (%p1361) target = $region68
      $region67: #{ginfpsst_forward.8} parent=59 // pred_region
        %v1364 = vld [vmem:[#allocation6] sm:$0xff]
        %v1365 = vld [vmem:[#allocation6 + $0x8] sm:$0xff]
        %v1366 = vld [vmem:[#allocation6 + $0x10] sm:$0xff]
        %v1367 = vld [vmem:[#allocation6 + $0x18] sm:$0xff]
        %v1368 = vld [vmem:[#allocation5] sm:$0xff]
        %v1369 = vld [vmem:[#allocation5 + $0x8] sm:$0xff]
        %v1370 = vld [vmem:[#allocation5 + $0x10] sm:$0xff]
        %v1371 = vld [vmem:[#allocation5 + $0x18] sm:$0xff]
        %v1372 = vrcp.pop %v1368
        %v1373 = vrcp.pop %v1369
        %v1374 = vrcp.pop %v1370
        %v1375 = vrcp.pop %v1371
        %1377 = vset.pattern.permute.xlu0 0
        %1378 = vperm.xlu0 %1377, %v1372
        %v1379 = vpop.permute.xlu0 %1378
        %1382 = vset.pattern.permute.xlu0 0
        %1383 = vperm.xlu0 %1382, %v1373
        %v1384 = vpop.permute.xlu0 %1383
        %1387 = vset.pattern.permute.xlu0 0
        %1388 = vperm.xlu0 %1387, %v1374
        %v1389 = vpop.permute.xlu0 %1388
        %1392 = vset.pattern.permute.xlu0 0
        %1393 = vperm.xlu0 %1392, %v1375
        %v1394 = vpop.permute.xlu0 %1393
        %v1396 = vmul.f32 %v1364, %v1379
        %v1397 = vmul.f32 %v1365, %v1384
        %v1398 = vmul.f32 %v1366, %v1389
        %v1399 = vmul.f32 %v1367, %v1394
        %1401 = vrot.lane.b32.xlu0 %v1397, 8
        %v1402 = vpop.permute.xlu0 %1401
        %1405 = vrot.lane.b32.xlu0 %v1398, 16
        %v1406 = vpop.permute.xlu0 %1405
        %1409 = vrot.lane.b32.xlu0 %v1399, 24
        %v1410 = vpop.permute.xlu0 %1409
        %v1412 = vsel %vm866, %v1396, %v1402
        %v1413 = vsel %vm1055, %v1412, %v1406
        %vm1414 = vcmask 195584
        %v1415 = vsel %vm1414, %v1413, %v1410
        %vm1416 = vcmask 261120
        %v1417 = vsel %vm1416, %v1415, 0.0
        %v1418 = vld [vmem:[#allocation2] sm:$0xff]
        %v1419 = vadd.f32 %v1418, %v1417
        %v1420 = vpack.c.bf16 %v1419, %v1419
        %v1421 = vld [vmem:[%s8] sm:$0xf]
        %v1422 = vld [vmem:[%s8 + $0x4] sm:$0xf]
        %v1423 = vld [vmem:[%s8 + $0x8] sm:$0xf]
        %v1424 = vld [vmem:[%s8 + $0xc] sm:$0xf]
        %v1425 = vld [vmem:[%s8 + $0x10] sm:$0xf]
        %v1426 = vld [vmem:[%s8 + $0x14] sm:$0xf]
        %v1427 = vld [vmem:[%s8 + $0x18] sm:$0xf]
        %v1428 = vld [vmem:[%s8 + $0x1c] sm:$0xf]
        %v1429 = vld [vmem:[%s8 + $0x20] sm:$0xf]
        %v1430 = vld [vmem:[%s8 + $0x24] sm:$0xf]
        %v1431 = vld [vmem:[%s8 + $0x28] sm:$0xf]
        %v1432 = vld [vmem:[%s8 + $0x2c] sm:$0xf]
        %v1433 = vld [vmem:[%s8 + $0x30] sm:$0xf]
        %v1434 = vld [vmem:[%s8 + $0x34] sm:$0xf]
        %v1435 = vld [vmem:[%s8 + $0x38] sm:$0xf]
        %v1436 = vld [vmem:[%s8 + $0x3c] sm:$0xf]
        %v1437 = vld [vmem:[%s9] sm:$0x1]
        %v1439 = vlaneseq
        %v1440 = vshrl.u32 %v1439, 7
        %v1441 = vsub.s32 0, %v1440
        %v1442 = vrot.slane %v1437, %v1441
        %v1460 = vunpack.c.l.b16 %v1421
        %v1461 = vunpack.c.l.b16 %v1422
        %v1462 = vunpack.c.l.b16 %v1423
        %v1463 = vunpack.c.l.b16 %v1424
        %v1464 = vunpack.c.l.b16 %v1425
        %v1465 = vunpack.c.l.b16 %v1426
        %v1466 = vunpack.c.l.b16 %v1427
        %v1467 = vunpack.c.l.b16 %v1428
        %v1468 = vunpack.c.l.b16 %v1429
        %v1469 = vunpack.c.l.b16 %v1430
        %v1470 = vunpack.c.l.b16 %v1431
        %v1471 = vunpack.c.l.b16 %v1432
        %v1472 = vunpack.c.l.b16 %v1433
        %v1473 = vunpack.c.l.b16 %v1434
        %v1474 = vunpack.c.l.b16 %v1435
        %v1475 = vunpack.c.l.b16 %v1436
        %v1476 = vpack.c.b16 %v1461, %v1460
        %v1477 = vpack.c.b16 %v1463, %v1462
        %v1478 = vpack.c.b16 %v1465, %v1464
        %v1479 = vpack.c.b16 %v1467, %v1466
        %v1480 = vpack.c.b16 %v1469, %v1468
        %v1481 = vpack.c.b16 %v1471, %v1470
        %v1482 = vpack.c.b16 %v1473, %v1472
        %v1483 = vpack.c.b16 %v1475, %v1474
        %1492 = vmatprep.subr.bf16.mxu0 0
        %1493 = vmatpush1.bf16.msra.mxu0 %v1476
        %1494 = vmatprep.subr.bf16.mxu0 0
        %1495 = vmatpush1.bf16.msra.mxu0 %v1477
        %1496 = vmatprep.subr.bf16.mxu0 0
        %1497 = vmatpush1.bf16.msra.mxu0 %v1478
        %1498 = vmatprep.subr.bf16.mxu0 0
        %1499 = vmatpush1.bf16.msra.mxu0 %v1479
        %1500 = vmatprep.subr.bf16.mxu0 0
        %1501 = vmatpush1.bf16.msra.mxu0 %v1480
        %1502 = vmatprep.subr.bf16.mxu0 0
        %1503 = vmatpush1.bf16.msra.mxu0 %v1481
        %1504 = vmatprep.subr.bf16.mxu0 0
        %1505 = vmatpush1.bf16.msra.mxu0 %v1482
        %1506 = vmatprep.subr.bf16.mxu0 0
        %1507 = vmatpush1.bf16.msra.mxu0 %v1483
        %1508 = vmatprep.subr.bf16.mxu0 0
        %1509 = vmatpush1.bf16.msra.mxu0 0
        %1510 = vmatprep.subr.bf16.mxu0 0
        %1511 = vmatpush1.bf16.msra.mxu0 0
        %1512 = vmatprep.subr.bf16.mxu0 0
        %1513 = vmatpush1.bf16.msra.mxu0 0
        %1514 = vmatprep.subr.bf16.mxu0 0
        %1515 = vmatpush1.bf16.msra.mxu0 0
        %1516 = vmatprep.subr.bf16.mxu0 0
        %1517 = vmatpush1.bf16.msra.mxu0 0
        %1518 = vmatprep.subr.bf16.mxu0 0
        %1519 = vmatpush1.bf16.msra.mxu0 0
        %1520 = vmatprep.subr.bf16.mxu0 0
        %1521 = vmatpush1.bf16.msra.mxu0 0
        %1522 = vmatprep.subr.bf16.mxu0 0
        %1523 = vmatpush1.bf16.msra.mxu0 0
        %1524 = vmatprep.mubr.bf16.mxu0 0
        %1525 = vmatmul.mubr.bf16.gmra.mrb[0].mxu0 %v1420
        %v1526 = vpop.f32.mrb[0].mxu0
        %v1527 = vadd.f32 %v1442, %v1526
        %v1528 = vpop.f32.mrb[0].mxu0
        %v1529 = vpop.f32.mrb[0].mxu0
        %v1530 = vpop.f32.mrb[0].mxu0
        %1531 = vdwg.mxu0
        %v1532 = vmax.f32 %v1527, 0.0
        %v1533 = vadd.f32 %v1419, %v1532
        %v1534 = vpack.c.bf16 %v1533, %v1533
        %1535 = vst [vmem:[%s428] sm:$0xf] %v1534
      $region68: #{ginfpsst_forward.8} parent=59 // pred_fallthru
        _
      %p1536 = scmp.lt.s32.totalorder %s26, 1
      %s1537 = scalar_select %p1536, %s26, 1
      %p1538 = scmp.lt.s32.totalorder %s27, 0
      %s1539 = scalar_select %p1538, %s27, 0
      %s1540 = sadd.s32 %s1539, %s1537
      %s1541 = smul.addr %s1540, 4
      %s1542 = scalar_lea.vmem %s10, %s1541
      // Predicated region
      $region69: #{ginfpsst_forward.8} parent=59 // pred_check
        %p1543 = pneg %p284
      $region70: #{ginfpsst_forward.8} parent=59 // pred_check_branch
        %1545 = sbr.rel (%p1543) target = $region72
      $region71: #{ginfpsst_forward.8} parent=59 // pred_region
        _
      $region72: #{ginfpsst_forward.8} parent=59 // pred_fallthru
        _
    $region60: #{ginfpsst_forward.8} parent=5 // pred_fallthru
      _
    %p1546 = scmp.le.s32.totalorder 2, %s16
    // Predicated region
    $region73: #{ginfpsst_forward.8} parent=5 // pred_check
      %p1547 = pneg %p1546
    $region74: #{ginfpsst_forward.8} parent=5 // pred_check_branch
      %1549 = sbr.rel (%p1547) target = $region76
    $region75: #{ginfpsst_forward.8} parent=5 // pred_region
      %s1550 = ssub.s32 %s16, 2
      // Predicated region
      $region77: #{ginfpsst_forward.8} parent=75 // pred_check
        %p1551 = pneg %p290
      $region78: #{ginfpsst_forward.8} parent=75 // pred_check_branch
        %1553 = sbr.rel (%p1551) target = $region80
      $region79: #{ginfpsst_forward.8} parent=75 // pred_region
        %p1554 = scmp.lt.s32.totalorder %s29, 1
        %s1555 = scalar_select %p1554, %s29, 1
        %p1556 = scmp.lt.s32.totalorder %s30, 0
        %s1557 = scalar_select %p1556, %s30, 0
        %s1558 = sadd.s32 %s1557, %s1555
        %s1559 = smul.addr %s1558, 4
        %s1560 = scalar_lea.vmem %s10, %s1559
      $region80: #{ginfpsst_forward.8} parent=75 // pred_fallthru
        _
    $region76: #{ginfpsst_forward.8} parent=5 // pred_fallthru
      _
  $region6: #{ginfpsst_forward.8} parent=0 // loop_footer
    %s20 = sadd.s32 1, %s16
  $region7: #{ginfpsst_forward.8} parent=0 // loop_footer_branch
    %15 = sbr.rel target = $region3
  $region8: #{ginfpsst_forward.8} parent=0 // loop_exit
    _

// kernel: ginfpsst_forward.9
$region0: #{ginfpsst_forward.9}
  #allocation0 [shape = 'u32[]', space=smem, size = 0x4, offset = 0x4, fixed_abs, tag = 'smem constant byte address 0x4 - core index']
  #allocation1 [shape = 'u32[144,128]{1,0:T(1,128)}', space=vmem, size = 0x12000, scoped, tag = 'internal scratch']
  #allocation2 [shape = 'f32[16,128]{1,0:T(8,128)}', space=vmem, size = 0x2000, scoped, tag = 'scratch operand']
  #allocation3 [shape = 'bf16[4,16,8]{2,1,0:T(16,128)(2,1)}', space=vmem, size = 0x4000, scoped, tag = 'scratch operand']
  #allocation4 [shape = 'f32[4,16,1]{2,1,0:T(8,128)}', space=vmem, size = 0x8000, scoped, tag = 'scratch operand']
  #allocation5 [shape = 'f32[4,16,1]{2,1,0:T(8,128)}', space=vmem, size = 0x8000, scoped, tag = 'scratch operand']
  #allocation6 [shape = 'f32[4,16,8]{2,1,0:T(8,128)}', space=vmem, size = 0x8000, scoped, tag = 'scratch operand']
  %s0 = inlined_call_operand.vmem [shape: bf16[2,16,128], index: 0, kind: input, shape index: {}]
  %s1 = inlined_call_operand.vmem [shape: bf16[2,8,128], index: 1, kind: input, shape index: {}]
  %s2 = inlined_call_operand.vmem [shape: bf16[128,128], index: 2, kind: input, shape index: {}]
  %s3 = inlined_call_operand.vmem [shape: f32[1,128], index: 3, kind: input, shape index: {}]
  %s4 = inlined_call_operand.vmem [shape: bf16[128,128], index: 4, kind: input, shape index: {}]
  %s5 = inlined_call_operand.vmem [shape: f32[1,128], index: 5, kind: input, shape index: {}]
  %s6 = inlined_call_operand.vmem [shape: bf16[128,128], index: 6, kind: input, shape index: {}]
  %s7 = inlined_call_operand.vmem [shape: f32[1,128], index: 7, kind: input, shape index: {}]
  %s8 = inlined_call_operand.vmem [shape: bf16[128,128], index: 8, kind: input, shape index: {}]
  %s9 = inlined_call_operand.vmem [shape: f32[1,128], index: 9, kind: input, shape index: {}]
  %s10 = inlined_call_operand.hbm [shape: bf16[2,16,128], index: 10, kind: output, shape index: {}]
  %s11 = sld [smem:[#allocation0]]
  $region81: #{ginfpsst_forward.9} parent=0
    _
  %s13 = ssub.s32 1, %s11
  %s14 = scalar_select 0, %s13, %s11
  $region1: #{ginfpsst_forward.9} parent=0
    #allocation7 [shape = 'u8[8192]{0}', space=vmem, size = 0x2000, scoped, tag = 'output window, operand 0']
    #allocation8 [shape = 's32[2]{0}', space=sflag, size = 0x8, scoped, tag = 'scoped memory for ginfpsst_forward.9']
    %15 = vsyncpa [#allocation8], 0
    %s16 = scalar_lea.sflag [#allocation8], 1
    %17 = vsyncpa %s16, 0
    loop: start=0, step=1, limit=4
    $region2: #{ginfpsst_forward.9} parent=1 // loop_pre_header
      _
    $region3: #{ginfpsst_forward.9} parent=1 // loop_header
      %s19 = sphi 0, %s23
      %p20 = scmp.ge.s32.totalorder %s19, 4
      %s26 = sphi 0, %s45
      %s27 = sphi 0, %s41
      %s28 = sphi 0, %s37
      %s29 = sphi 0, %s26
      %s30 = sphi 0, %s27
      %s31 = sphi 0, %s28
      %s32 = sphi 0, %s29
      %s33 = sphi 0, %s30
      %s34 = sphi 0, %s31
      %s50 = sphi 0, %s52
      %s53 = sphi 0, %s50
      %s54 = sphi 0, %s53
      %s70 = sphi 0, %s54
      %s78 = sphi 0, %s80
      %s81 = sphi 0, %s78
      %s82 = sphi 0, %s81
      %s98 = sphi 0, %s82
      %s102 = sphi 0, %s102
      %s104 = sphi 0, %s102
      %s105 = sphi 0, %s104
      %s119 = sphi 0, %s105
      %s123 = sphi 0, %s123
      %s125 = sphi 0, %s123
      %s126 = sphi 0, %s125
      %s140 = sphi 0, %s126
      %s144 = sphi 0, %s144
      %s146 = sphi 0, %s144
      %s147 = sphi 0, %s146
      %s161 = sphi 0, %s147
      %s165 = sphi 0, %s165
      %s167 = sphi 0, %s165
      %s168 = sphi 0, %s167
      %s182 = sphi 0, %s168
      %s186 = sphi 0, %s186
      %s188 = sphi 0, %s186
      %s189 = sphi 0, %s188
      %s203 = sphi 0, %s189
      %s207 = sphi 0, %s207
      %s209 = sphi 0, %s207
      %s210 = sphi 0, %s209
      %s224 = sphi 0, %s210
      %s228 = sphi 0, %s228
      %s230 = sphi 0, %s228
      %s231 = sphi 0, %s230
      %s245 = sphi 0, %s231
      %s249 = sphi 0, %s249
      %s251 = sphi 0, %s249
      %s252 = sphi 0, %s251
      %s266 = sphi 0, %s252
      %s274 = sphi 0, %s276
      %s277 = sphi 0, %s274
      %s278 = sphi 0, %s277
      %s294 = sphi 0, %s278
    $region4: #{ginfpsst_forward.9} parent=1 // loop_header_branch
      %22 = sbr.rel (%p20) target = $region8
    $region5: #{ginfpsst_forward.9} parent=1 // loop_body
      %s24 = ssub.s32 %s19, 1
      %s25 = ssub.s32 %s19, 2
      %s35 = sadd.s32 1, %s28
      %p36 = scmp.ge.s32.totalorder %s35, 1
      %s37 = scalar_select %p36, 0, %s35
      %s38 = sadd.s32 1, %s27
      %s39 = scalar_select %p36, %s38, %s27
      %p40 = scmp.ge.s32.totalorder %s39, 1
      %s41 = scalar_select %p40, 0, %s39
      %s42 = sadd.s32 1, %s26
      %s43 = scalar_select %p40, %s42, %s26
      %p44 = scmp.ge.s32.totalorder %s43, 2
      %s45 = scalar_select %p44, 0, %s43
      %s46 = ssub.s32 %s26, %s45
      %s47 = ssub.s32 %s27, %s41
      %s48 = sor.u32 %s46, %s47
      %p49 = scmp.eq.s32.totalorder %s48, 0
      %s51 = sadd.s32 %s50, 1
      %s52 = scalar_select %p49, %s50, %s51
      %p55 = pneg %p49
      %p56 = scmp.eq.s32.totalorder %s19, 1
      %p57 = por %p55, %p56
      %p58 = scmp.ne.s32.totalorder %s50, %s53
      %p59 = scmp.eq.s32.totalorder %s19, 0
      %p60 = por %p58, %p59
      %p61 = scmp.ne.s32.totalorder %s50, %s53
      %p62 = scmp.eq.s32.totalorder %s24, 1
      %p63 = por %p61, %p62
      %p64 = scmp.ne.s32.totalorder %s53, %s54
      %p65 = scmp.eq.s32.totalorder %s24, 0
      %p66 = por %p64, %p65
      %p67 = scmp.ne.s32.totalorder %s53, %s54
      %p68 = scmp.eq.s32.totalorder %s25, 1
      %p69 = por %p67, %p68
      %p71 = scmp.ne.s32.totalorder %s54, %s70
      %p72 = scmp.eq.s32.totalorder %s25, 0
      %p73 = por %p71, %p72
      %s74 = ssub.s32 %s26, %s45
      %s75 = ssub.s32 %s28, %s37
      %s76 = sor.u32 %s74, %s75
      %p77 = scmp.eq.s32.totalorder %s76, 0
      %s79 = sadd.s32 %s78, 1
      %s80 = scalar_select %p77, %s78, %s79
      %p83 = pneg %p77
      %p84 = scmp.eq.s32.totalorder %s19, 1
      %p85 = por %p83, %p84
      %p86 = scmp.ne.s32.totalorder %s78, %s81
      %p87 = scmp.eq.s32.totalorder %s19, 0
      %p88 = por %p86, %p87
      %p89 = scmp.ne.s32.totalorder %s78, %s81
      %p90 = scmp.eq.s32.totalorder %s24, 1
      %p91 = por %p89, %p90
      %p92 = scmp.ne.s32.totalorder %s81, %s82
      %p93 = scmp.eq.s32.totalorder %s24, 0
      %p94 = por %p92, %p93
      %p95 = scmp.ne.s32.totalorder %s81, %s82
      %p96 = scmp.eq.s32.totalorder %s25, 1
      %p97 = por %p95, %p96
      %p99 = scmp.ne.s32.totalorder %s82, %s98
      %p100 = scmp.eq.s32.totalorder %s25, 0
      %p101 = por %p99, %p100
      %s103 = sadd.s32 %s102, 1
      %p106 = scmp.eq.s32.totalorder %s19, 1
      %p107 = scmp.ne.s32.totalorder %s102, %s104
      %p108 = scmp.eq.s32.totalorder %s19, 0
      %p109 = por %p107, %p108
      %p110 = scmp.ne.s32.totalorder %s102, %s104
      %p111 = scmp.eq.s32.totalorder %s24, 1
      %p112 = por %p110, %p111
      %p113 = scmp.ne.s32.totalorder %s104, %s105
      %p114 = scmp.eq.s32.totalorder %s24, 0
      %p115 = por %p113, %p114
      %p116 = scmp.ne.s32.totalorder %s104, %s105
      %p117 = scmp.eq.s32.totalorder %s25, 1
      %p118 = por %p116, %p117
      %p120 = scmp.ne.s32.totalorder %s105, %s119
      %p121 = scmp.eq.s32.totalorder %s25, 0
      %p122 = por %p120, %p121
      %s124 = sadd.s32 %s123, 1
      %p127 = scmp.eq.s32.totalorder %s19, 1
      %p128 = scmp.ne.s32.totalorder %s123, %s125
      %p129 = scmp.eq.s32.totalorder %s19, 0
      %p130 = por %p128, %p129
      %p131 = scmp.ne.s32.totalorder %s123, %s125
      %p132 = scmp.eq.s32.totalorder %s24, 1
      %p133 = por %p131, %p132
      %p134 = scmp.ne.s32.totalorder %s125, %s126
      %p135 = scmp.eq.s32.totalorder %s24, 0
      %p136 = por %p134, %p135
      %p137 = scmp.ne.s32.totalorder %s125, %s126
      %p138 = scmp.eq.s32.totalorder %s25, 1
      %p139 = por %p137, %p138
      %p141 = scmp.ne.s32.totalorder %s126, %s140
      %p142 = scmp.eq.s32.totalorder %s25, 0
      %p143 = por %p141, %p142
      %s145 = sadd.s32 %s144, 1
      %p148 = scmp.eq.s32.totalorder %s19, 1
      %p149 = scmp.ne.s32.totalorder %s144, %s146
      %p150 = scmp.eq.s32.totalorder %s19, 0
      %p151 = por %p149, %p150
      %p152 = scmp.ne.s32.totalorder %s144, %s146
      %p153 = scmp.eq.s32.totalorder %s24, 1
      %p154 = por %p152, %p153
      %p155 = scmp.ne.s32.totalorder %s146, %s147
      %p156 = scmp.eq.s32.totalorder %s24, 0
      %p157 = por %p155, %p156
      %p158 = scmp.ne.s32.totalorder %s146, %s147
      %p159 = scmp.eq.s32.totalorder %s25, 1
      %p160 = por %p158, %p159
      %p162 = scmp.ne.s32.totalorder %s147, %s161
      %p163 = scmp.eq.s32.totalorder %s25, 0
      %p164 = por %p162, %p163
      %s166 = sadd.s32 %s165, 1
      %p169 = scmp.eq.s32.totalorder %s19, 1
      %p170 = scmp.ne.s32.totalorder %s165, %s167
      %p171 = scmp.eq.s32.totalorder %s19, 0
      %p172 = por %p170, %p171
      %p173 = scmp.ne.s32.totalorder %s165, %s167
      %p174 = scmp.eq.s32.totalorder %s24, 1
      %p175 = por %p173, %p174
      %p176 = scmp.ne.s32.totalorder %s167, %s168
      %p177 = scmp.eq.s32.totalorder %s24, 0
      %p178 = por %p176, %p177
      %p179 = scmp.ne.s32.totalorder %s167, %s168
      %p180 = scmp.eq.s32.totalorder %s25, 1
      %p181 = por %p179, %p180
      %p183 = scmp.ne.s32.totalorder %s168, %s182
      %p184 = scmp.eq.s32.totalorder %s25, 0
      %p185 = por %p183, %p184
      %s187 = sadd.s32 %s186, 1
      %p190 = scmp.eq.s32.totalorder %s19, 1
      %p191 = scmp.ne.s32.totalorder %s186, %s188
      %p192 = scmp.eq.s32.totalorder %s19, 0
      %p193 = por %p191, %p192
      %p194 = scmp.ne.s32.totalorder %s186, %s188
      %p195 = scmp.eq.s32.totalorder %s24, 1
      %p196 = por %p194, %p195
      %p197 = scmp.ne.s32.totalorder %s188, %s189
      %p198 = scmp.eq.s32.totalorder %s24, 0
      %p199 = por %p197, %p198
      %p200 = scmp.ne.s32.totalorder %s188, %s189
      %p201 = scmp.eq.s32.totalorder %s25, 1
      %p202 = por %p200, %p201
      %p204 = scmp.ne.s32.totalorder %s189, %s203
      %p205 = scmp.eq.s32.totalorder %s25, 0
      %p206 = por %p204, %p205
      %s208 = sadd.s32 %s207, 1
      %p211 = scmp.eq.s32.totalorder %s19, 1
      %p212 = scmp.ne.s32.totalorder %s207, %s209
      %p213 = scmp.eq.s32.totalorder %s19, 0
      %p214 = por %p212, %p213
      %p215 = scmp.ne.s32.totalorder %s207, %s209
      %p216 = scmp.eq.s32.totalorder %s24, 1
      %p217 = por %p215, %p216
      %p218 = scmp.ne.s32.totalorder %s209, %s210
      %p219 = scmp.eq.s32.totalorder %s24, 0
      %p220 = por %p218, %p219
      %p221 = scmp.ne.s32.totalorder %s209, %s210
      %p222 = scmp.eq.s32.totalorder %s25, 1
      %p223 = por %p221, %p222
      %p225 = scmp.ne.s32.totalorder %s210, %s224
      %p226 = scmp.eq.s32.totalorder %s25, 0
      %p227 = por %p225, %p226
      %s229 = sadd.s32 %s228, 1
      %p232 = scmp.eq.s32.totalorder %s19, 1
      %p233 = scmp.ne.s32.totalorder %s228, %s230
      %p234 = scmp.eq.s32.totalorder %s19, 0
      %p235 = por %p233, %p234
      %p236 = scmp.ne.s32.totalorder %s228, %s230
      %p237 = scmp.eq.s32.totalorder %s24, 1
      %p238 = por %p236, %p237
      %p239 = scmp.ne.s32.totalorder %s230, %s231
      %p240 = scmp.eq.s32.totalorder %s24, 0
      %p241 = por %p239, %p240
      %p242 = scmp.ne.s32.totalorder %s230, %s231
      %p243 = scmp.eq.s32.totalorder %s25, 1
      %p244 = por %p242, %p243
      %p246 = scmp.ne.s32.totalorder %s231, %s245
      %p247 = scmp.eq.s32.totalorder %s25, 0
      %p248 = por %p246, %p247
      %s250 = sadd.s32 %s249, 1
      %p253 = scmp.eq.s32.totalorder %s19, 1
      %p254 = scmp.ne.s32.totalorder %s249, %s251
      %p255 = scmp.eq.s32.totalorder %s19, 0
      %p256 = por %p254, %p255
      %p257 = scmp.ne.s32.totalorder %s249, %s251
      %p258 = scmp.eq.s32.totalorder %s24, 1
      %p259 = por %p257, %p258
      %p260 = scmp.ne.s32.totalorder %s251, %s252
      %p261 = scmp.eq.s32.totalorder %s24, 0
      %p262 = por %p260, %p261
      %p263 = scmp.ne.s32.totalorder %s251, %s252
      %p264 = scmp.eq.s32.totalorder %s25, 1
      %p265 = por %p263, %p264
      %p267 = scmp.ne.s32.totalorder %s252, %s266
      %p268 = scmp.eq.s32.totalorder %s25, 0
      %p269 = por %p267, %p268
      %s270 = ssub.s32 %s26, %s45
      %s271 = ssub.s32 %s27, %s41
      %s272 = sor.u32 %s270, %s271
      %p273 = scmp.eq.s32.totalorder %s272, 0
      %s275 = sadd.s32 %s274, 1
      %s276 = scalar_select %p273, %s274, %s275
      %p279 = pneg %p273
      %p280 = scmp.eq.s32.totalorder %s19, 1
      %p281 = por %p279, %p280
      %p282 = scmp.ne.s32.totalorder %s274, %s277
      %p283 = scmp.eq.s32.totalorder %s19, 0
      %p284 = por %p282, %p283
      %p285 = scmp.ne.s32.totalorder %s274, %s277
      %p286 = scmp.eq.s32.totalorder %s24, 1
      %p287 = por %p285, %p286
      %p288 = scmp.ne.s32.totalorder %s277, %s278
      %p289 = scmp.eq.s32.totalorder %s24, 0
      %p290 = por %p288, %p289
      %p291 = scmp.ne.s32.totalorder %s277, %s278
      %p292 = scmp.eq.s32.totalorder %s25, 1
      %p293 = por %p291, %p292
      %p295 = scmp.ne.s32.totalorder %s278, %s294
      %p296 = scmp.eq.s32.totalorder %s25, 0
      %p297 = por %p295, %p296
      %p298 = scmp.le.s32.totalorder 1, %s19
      %p299 = scmp.lt.s32.totalorder %s19, 3
      %p300 = pnand %p298, %p299
      %p301 = pneg %p300
      // Predicated region
      $region9: #{ginfpsst_forward.9} parent=5 // pred_check
        _
      $region10: #{ginfpsst_forward.9} parent=5 // pred_check_branch
        %303 = sbr.rel (%p300) target = $region12
      $region11: #{ginfpsst_forward.9} parent=5 // pred_region
        %s304 = ssub.s32 %s19, 1
        // Predicated region
        $region13: #{ginfpsst_forward.9} parent=11 // pred_check
          %p305 = pneg %p115
        $region14: #{ginfpsst_forward.9} parent=11 // pred_check_branch
          %307 = sbr.rel (%p305) target = $region16
        $region15: #{ginfpsst_forward.9} parent=11 // pred_region
          _
        $region16: #{ginfpsst_forward.9} parent=11 // pred_fallthru
          _
        // Predicated region
        $region17: #{ginfpsst_forward.9} parent=11 // pred_check
          %p308 = pneg %p136
        $region18: #{ginfpsst_forward.9} parent=11 // pred_check_branch
          %310 = sbr.rel (%p308) target = $region20
        $region19: #{ginfpsst_forward.9} parent=11 // pred_region
          _
        $region20: #{ginfpsst_forward.9} parent=11 // pred_fallthru
          _
        // Predicated region
        $region21: #{ginfpsst_forward.9} parent=11 // pred_check
          %p311 = pneg %p157
        $region22: #{ginfpsst_forward.9} parent=11 // pred_check_branch
          %313 = sbr.rel (%p311) target = $region24
        $region23: #{ginfpsst_forward.9} parent=11 // pred_region
          _
        $region24: #{ginfpsst_forward.9} parent=11 // pred_fallthru
          _
        // Predicated region
        $region25: #{ginfpsst_forward.9} parent=11 // pred_check
          %p314 = pneg %p178
        $region26: #{ginfpsst_forward.9} parent=11 // pred_check_branch
          %316 = sbr.rel (%p314) target = $region28
        $region27: #{ginfpsst_forward.9} parent=11 // pred_region
          _
        $region28: #{ginfpsst_forward.9} parent=11 // pred_fallthru
          _
        // Predicated region
        $region29: #{ginfpsst_forward.9} parent=11 // pred_check
          %p317 = pneg %p199
        $region30: #{ginfpsst_forward.9} parent=11 // pred_check_branch
          %319 = sbr.rel (%p317) target = $region32
        $region31: #{ginfpsst_forward.9} parent=11 // pred_region
          _
        $region32: #{ginfpsst_forward.9} parent=11 // pred_fallthru
          _
        // Predicated region
        $region33: #{ginfpsst_forward.9} parent=11 // pred_check
          %p320 = pneg %p220
        $region34: #{ginfpsst_forward.9} parent=11 // pred_check_branch
          %322 = sbr.rel (%p320) target = $region36
        $region35: #{ginfpsst_forward.9} parent=11 // pred_region
          _
        $region36: #{ginfpsst_forward.9} parent=11 // pred_fallthru
          _
        // Predicated region
        $region37: #{ginfpsst_forward.9} parent=11 // pred_check
          %p323 = pneg %p241
        $region38: #{ginfpsst_forward.9} parent=11 // pred_check_branch
          %325 = sbr.rel (%p323) target = $region40
        $region39: #{ginfpsst_forward.9} parent=11 // pred_region
          _
        $region40: #{ginfpsst_forward.9} parent=11 // pred_fallthru
          _
        // Predicated region
        $region41: #{ginfpsst_forward.9} parent=11 // pred_check
          %p326 = pneg %p262
        $region42: #{ginfpsst_forward.9} parent=11 // pred_check_branch
          %328 = sbr.rel (%p326) target = $region44
        $region43: #{ginfpsst_forward.9} parent=11 // pred_region
          _
        $region44: #{ginfpsst_forward.9} parent=11 // pred_fallthru
          _
      $region12: #{ginfpsst_forward.9} parent=5 // pred_fallthru
        _
      %p329 = scmp.lt.s32.totalorder %s19, 2
      // Predicated region
      $region45: #{ginfpsst_forward.9} parent=5 // pred_check
        %p330 = pneg %p329
      $region46: #{ginfpsst_forward.9} parent=5 // pred_check_branch
        %332 = sbr.rel (%p330) target = $region48
      $region47: #{ginfpsst_forward.9} parent=5 // pred_region
        // Predicated region
        $region49: #{ginfpsst_forward.9} parent=47 // pred_check
          %p333 = pneg %p60
        $region50: #{ginfpsst_forward.9} parent=47 // pred_check_branch
          %335 = sbr.rel (%p333) target = $region52
        $region51: #{ginfpsst_forward.9} parent=47 // pred_region
          %s336 = smul.u32 2, %s27
          %p337 = scmp.lt.s32.totalorder %s26, 1
          %s338 = scalar_select %p337, %s26, 1
          %p339 = scmp.lt.s32.totalorder %s336, 1
          %s340 = scalar_select %p339, %s336, 1
          %s341 = smul.addr %s338, 2
          %s342 = sadd.s32 %s340, %s341
          %s343 = smul.addr %s342, 4
          %s344 = scalar_lea.vmem %s0, %s343
          %s345 = smul.u32 2, %s27
        $region52: #{ginfpsst_forward.9} parent=47 // pred_fallthru
          _
        // Predicated region
        $region53: #{ginfpsst_forward.9} parent=47 // pred_check
          %p346 = pneg %p88
        $region54: #{ginfpsst_forward.9} parent=47 // pred_check_branch
          %348 = sbr.rel (%p346) target = $region56
        $region55: #{ginfpsst_forward.9} parent=47 // pred_region
          %p349 = scmp.lt.s32.totalorder %s26, 1
          %s350 = scalar_select %p349, %s26, 1
          %p351 = scmp.lt.s32.totalorder %s28, 0
          %s352 = scalar_select %p351, %s28, 0
          %s353 = sadd.s32 %s352, %s350
          %s354 = smul.addr %s353, 4
          %s355 = scalar_lea.vmem %s1, %s354
        $region56: #{ginfpsst_forward.9} parent=47 // pred_fallthru
          _
      $region48: #{ginfpsst_forward.9} parent=5 // pred_fallthru
        _
      %p356 = scmp.le.s32.totalorder 1, %s19
      %p357 = scmp.lt.s32.totalorder %s19, 3
      %p358 = pnand %p356, %p357
      %p359 = pneg %p358
      // Predicated region
      $region57: #{ginfpsst_forward.9} parent=5 // pred_check
        _
      $region58: #{ginfpsst_forward.9} parent=5 // pred_check_branch
        %361 = sbr.rel (%p358) target = $region60
      $region59: #{ginfpsst_forward.9} parent=5 // pred_region
        %s362 = ssub.s32 %s19, 1
        %s363 = smul.u32 2, %s30
        %p364 = scmp.lt.s32.totalorder %s29, 1
        %s365 = scalar_select %p364, %s29, 1
        %p366 = scmp.lt.s32.totalorder %s363, 1
        %s367 = scalar_select %p366, %s363, 1
        %s368 = smul.addr %s365, 2
        %s369 = sadd.s32 %s367, %s368
        %s370 = smul.addr %s369, 4
        %s371 = scalar_lea.vmem %s0, %s370
        %p372 = pneg %p66
        %p373 = pneg %p63
        %p374 = scmp.lt.s32.totalorder %s29, 1
        %s375 = scalar_select %p374, %s29, 1
        %p376 = scmp.lt.s32.totalorder %s31, 0
        %s377 = scalar_select %p376, %s31, 0
        %s378 = sadd.s32 %s377, %s375
        %s379 = smul.addr %s378, 4
        %s380 = scalar_lea.vmem %s1, %s379
        %p381 = pneg %p94
        %p382 = pneg %p91
        %p383 = pneg %p115
        %p384 = pneg %p112
        %p385 = pneg %p136
        %p386 = pneg %p133
        %p387 = pneg %p157
        %p388 = pneg %p154
        %p389 = pneg %p178
        %p390 = pneg %p175
        %p391 = pneg %p199
        %p392 = pneg %p196
        %p393 = pneg %p220
        %p394 = pneg %p217
        %p395 = pneg %p241
        %p396 = pneg %p238
        %p397 = pneg %p262
        %p398 = pneg %p259
        %p399 = pneg %p290
        %p400 = pneg %p287
        %s401 = sand.u32 %s277, 1
        %s402 = scalar_lea.sflag [#allocation8], %s401
        %s403 = sand.u32 %s277, 1
        %s404 = smul.addr %s403, 8
        %s405 = scalar_lea.vmem [#allocation7], %s404
        %s406 = smul.u32 2, %s30
        %p407 = scmp.lt.s32.totalorder %s29, 1
        %s408 = scalar_select %p407, %s29, 1
        %p409 = scmp.lt.s32.totalorder %s406, 1
        %s410 = scalar_select %p409, %s406, 1
        %s411 = smul.addr %s408, 2
        %s412 = sadd.s32 %s410, %s411
        %s413 = smul.addr %s412, 4
        %s414 = scalar_lea.vmem %s0, %s413
        %s415 = smul.u32 2, %s30
        %p416 = scmp.lt.s32.totalorder %s29, 1
        %s417 = scalar_select %p416, %s29, 1
        %p418 = scmp.lt.s32.totalorder %s31, 0
        %s419 = scalar_select %p418, %s31, 0
        %s420 = sadd.s32 %s419, %s417
        %s421 = smul.addr %s420, 4
        %s422 = scalar_lea.vmem %s1, %s421
        %s423 = smul.u32 2, %s30
        %p425 = scmp.eq.s32.totalorder %s31, 0
        // Predicated region
        $region61: #{ginfpsst_forward.9} parent=59 // pred_check
          %p426 = pneg %p425
        $region62: #{ginfpsst_forward.9} parent=59 // pred_check_branch
          %428 = sbr.rel (%p426) target = $region64
        $region63: #{ginfpsst_forward.9} parent=59 // pred_region
          %v429 = vld [vmem:[%s414] sm:$0xf]
          %v430 = vld [vmem:[%s414 + $0x4] sm:$0xf]
          %v431 = vld [vmem:[%s2] sm:$0xf]
          %v432 = vld [vmem:[%s2 + $0x4] sm:$0xf]
          %v433 = vld [vmem:[%s2 + $0x8] sm:$0xf]
          %v434 = vld [vmem:[%s2 + $0xc] sm:$0xf]
          %v435 = vld [vmem:[%s2 + $0x10] sm:$0xf]
          %v436 = vld [vmem:[%s2 + $0x14] sm:$0xf]
          %v437 = vld [vmem:[%s2 + $0x18] sm:$0xf]
          %v438 = vld [vmem:[%s2 + $0x1c] sm:$0xf]
          %v439 = vld [vmem:[%s2 + $0x20] sm:$0xf]
          %v440 = vld [vmem:[%s2 + $0x24] sm:$0xf]
          %v441 = vld [vmem:[%s2 + $0x28] sm:$0xf]
          %v442 = vld [vmem:[%s2 + $0x2c] sm:$0xf]
          %v443 = vld [vmem:[%s2 + $0x30] sm:$0xf]
          %v444 = vld [vmem:[%s2 + $0x34] sm:$0xf]
          %v445 = vld [vmem:[%s2 + $0x38] sm:$0xf]
          %v446 = vld [vmem:[%s2 + $0x3c] sm:$0xf]
          %v447 = vld [vmem:[%s3] sm:$0x1]
          %v449 = vlaneseq
          %v450 = vshrl.u32 %v449, 7
          %v451 = vsub.s32 0, %v450
          %v452 = vrot.slane %v447, %v451
          %v456 = vunpack.c.l.b16 %v429
          %v457 = vunpack.c.l.b16 %v430
          %v458 = vpack.c.b16 %v457, %v456
          %v476 = vunpack.c.l.b16 %v431
          %v477 = vunpack.c.l.b16 %v432
          %v478 = vunpack.c.l.b16 %v433
          %v479 = vunpack.c.l.b16 %v434
          %v480 = vunpack.c.l.b16 %v435
          %v481 = vunpack.c.l.b16 %v436
          %v482 = vunpack.c.l.b16 %v437
          %v483 = vunpack.c.l.b16 %v438
          %v484 = vunpack.c.l.b16 %v439
          %v485 = vunpack.c.l.b16 %v440
          %v486 = vunpack.c.l.b16 %v441
          %v487 = vunpack.c.l.b16 %v442
          %v488 = vunpack.c.l.b16 %v443
          %v489 = vunpack.c.l.b16 %v444
          %v490 = vunpack.c.l.b16 %v445
          %v491 = vunpack.c.l.b16 %v446
          %v492 = vpack.c.b16 %v477, %v476
          %v493 = vpack.c.b16 %v479, %v478
          %v494 = vpack.c.b16 %v481, %v480
          %v495 = vpack.c.b16 %v483, %v482
          %v496 = vpack.c.b16 %v485, %v484
          %v497 = vpack.c.b16 %v487, %v486
          %v498 = vpack.c.b16 %v489, %v488
          %v499 = vpack.c.b16 %v491, %v490
          %508 = vmatprep.subr.bf16.mxu0 0
          %509 = vmatpush1.bf16.msra.mxu0 %v492
          %510 = vmatprep.subr.bf16.mxu0 0
          %511 = vmatpush1.bf16.msra.mxu0 %v493
          %512 = vmatprep.subr.bf16.mxu0 0
          %513 = vmatpush1.bf16.msra.mxu0 %v494
          %514 = vmatprep.subr.bf16.mxu0 0
          %515 = vmatpush1.bf16.msra.mxu0 %v495
          %516 = vmatprep.subr.bf16.mxu0 0
          %517 = vmatpush1.bf16.msra.mxu0 %v496
          %518 = vmatprep.subr.bf16.mxu0 0
          %519 = vmatpush1.bf16.msra.mxu0 %v497
          %520 = vmatprep.subr.bf16.mxu0 0
          %521 = vmatpush1.bf16.msra.mxu0 %v498
          %522 = vmatprep.subr.bf16.mxu0 0
          %523 = vmatpush1.bf16.msra.mxu0 %v499
          %524 = vmatprep.subr.bf16.mxu0 0
          %525 = vmatpush1.bf16.msra.mxu0 0
          %526 = vmatprep.subr.bf16.mxu0 0
          %527 = vmatpush1.bf16.msra.mxu0 0
          %528 = vmatprep.subr.bf16.mxu0 0
          %529 = vmatpush1.bf16.msra.mxu0 0
          %530 = vmatprep.subr.bf16.mxu0 0
          %531 = vmatpush1.bf16.msra.mxu0 0
          %532 = vmatprep.subr.bf16.mxu0 0
          %533 = vmatpush1.bf16.msra.mxu0 0
          %534 = vmatprep.subr.bf16.mxu0 0
          %535 = vmatpush1.bf16.msra.mxu0 0
          %536 = vmatprep.subr.bf16.mxu0 0
          %537 = vmatpush1.bf16.msra.mxu0 0
          %538 = vmatprep.subr.bf16.mxu0 0
          %539 = vmatpush1.bf16.msra.mxu0 0
          %540 = vmatprep.mubr.bf16.mxu0 0
          %541 = vmatmul.mubr.bf16.gmra.mrb[0].mxu0 %v458
          %v542 = vpop.f32.mrb[0].mxu0
          %v543 = vadd.f32 %v452, %v542
          %v544 = vpop.f32.mrb[0].mxu0
          %v545 = vpop.f32.mrb[0].mxu0
          %v546 = vadd.f32 %v452, %v545
          %v547 = vpop.f32.mrb[0].mxu0
          %548 = vdwg.mxu0
          %549 = vst [vmem:[#allocation2] sm:$0xff] %v543
          %550 = vst [vmem:[#allocation2 + $0x8] sm:$0xff] %v546
          %v551 = vpack.c.bf16 %v546, %v543
          %vm552 = vcmask 64512
          %553 = vst.msk [vmem:[#allocation3] sm:$0xff] %vm552, %v551
          %555 = vrot.lane.b32.xlu0 %v551, 120
          %v556 = vpop.permute.xlu0 %555
          %s558 = scalar_lea.vmem [#allocation3], 8
          %559 = vst.msk [vmem:[%s558] sm:$0xff] %vm552, %v556
          %560 = vrot.lane.b32.xlu0 %v551, 112
          %v561 = vpop.permute.xlu0 %560
          %s563 = scalar_lea.vmem [#allocation3], 16
          %564 = vst.msk [vmem:[%s563] sm:$0xff] %vm552, %v561
          %565 = vrot.lane.b32.xlu0 %v551, 104
          %v566 = vpop.permute.xlu0 %565
          %s568 = scalar_lea.vmem [#allocation3], 24
          %569 = vst.msk [vmem:[%s568] sm:$0xff] %vm552, %v566
          %vm570 = vcmask 7168
          %571 = vst.msk [vmem:[#allocation4] sm:$0xff] %vm570, -inf
          %572 = vst.msk [vmem:[#allocation4 + $0x8] sm:$0xff] %vm570, -inf
          %573 = vst.msk [vmem:[#allocation4 + $0x10] sm:$0xff] %vm570, -inf
          %574 = vst.msk [vmem:[#allocation4 + $0x18] sm:$0xff] %vm570, -inf
          %575 = vst.msk [vmem:[#allocation4 + $0x20] sm:$0xff] %vm570, -inf
          %576 = vst.msk [vmem:[#allocation4 + $0x28] sm:$0xff] %vm570, -inf
          %577 = vst.msk [vmem:[#allocation4 + $0x30] sm:$0xff] %vm570, -inf
          %578 = vst.msk [vmem:[#allocation4 + $0x38] sm:$0xff] %vm570, -inf
          %579 = vst.msk [vmem:[#allocation5] sm:$0xff] %vm570, 0.0
          %580 = vst.msk [vmem:[#allocation5 + $0x8] sm:$0xff] %vm570, 0.0
          %581 = vst.msk [vmem:[#allocation5 + $0x10] sm:$0xff] %vm570, 0.0
          %582 = vst.msk [vmem:[#allocation5 + $0x18] sm:$0xff] %vm570, 0.0
          %583 = vst.msk [vmem:[#allocation5 + $0x20] sm:$0xff] %vm570, 0.0
          %584 = vst.msk [vmem:[#allocation5 + $0x28] sm:$0xff] %vm570, 0.0
          %585 = vst.msk [vmem:[#allocation5 + $0x30] sm:$0xff] %vm570, 0.0
          %586 = vst.msk [vmem:[#allocation5 + $0x38] sm:$0xff] %vm570, 0.0
          %587 = vst.msk [vmem:[#allocation6] sm:$0xff] %vm552, 0.0
          %588 = vst.msk [vmem:[#allocation6 + $0x8] sm:$0xff] %vm552, 0.0
          %589 = vst.msk [vmem:[#allocation6 + $0x10] sm:$0xff] %vm552, 0.0
          %590 = vst.msk [vmem:[#allocation6 + $0x18] sm:$0xff] %vm552, 0.0
          %591 = vst.msk [vmem:[#allocation6 + $0x20] sm:$0xff] %vm552, 0.0
          %592 = vst.msk [vmem:[#allocation6 + $0x28] sm:$0xff] %vm552, 0.0
          %593 = vst.msk [vmem:[#allocation6 + $0x30] sm:$0xff] %vm552, 0.0
          %594 = vst.msk [vmem:[#allocation6 + $0x38] sm:$0xff] %vm552, 0.0
        $region64: #{ginfpsst_forward.9} parent=59 // pred_fallthru
          _
        %v595 = vld [vmem:[%s422] sm:$0xf]
        %v596 = vld [vmem:[%s4] sm:$0xf]
        %v597 = vld [vmem:[%s4 + $0x4] sm:$0xf]
        %v598 = vld [vmem:[%s4 + $0x8] sm:$0xf]
        %v599 = vld [vmem:[%s4 + $0xc] sm:$0xf]
        %v600 = vld [vmem:[%s4 + $0x10] sm:$0xf]
        %v601 = vld [vmem:[%s4 + $0x14] sm:$0xf]
        %v602 = vld [vmem:[%s4 + $0x18] sm:$0xf]
        %v603 = vld [vmem:[%s4 + $0x1c] sm:$0xf]
        %v604 = vld [vmem:[%s4 + $0x20] sm:$0xf]
        %v605 = vld [vmem:[%s4 + $0x24] sm:$0xf]
        %v606 = vld [vmem:[%s4 + $0x28] sm:$0xf]
        %v607 = vld [vmem:[%s4 + $0x2c] sm:$0xf]
        %v608 = vld [vmem:[%s4 + $0x30] sm:$0xf]
        %v609 = vld [vmem:[%s4 + $0x34] sm:$0xf]
        %v610 = vld [vmem:[%s4 + $0x38] sm:$0xf]
        %v611 = vld [vmem:[%s4 + $0x3c] sm:$0xf]
        %v612 = vld [vmem:[%s5] sm:$0x1]
        %v614 = vlaneseq
        %v615 = vshrl.u32 %v614, 7
        %v616 = vsub.s32 0, %v615
        %v617 = vrot.slane %v612, %v616
        %v635 = vunpack.c.l.b16 %v596
        %v636 = vunpack.c.l.b16 %v597
        %v637 = vunpack.c.l.b16 %v598
        %v638 = vunpack.c.l.b16 %v599
        %v639 = vunpack.c.l.b16 %v600
        %v640 = vunpack.c.l.b16 %v601
        %v641 = vunpack.c.l.b16 %v602
        %v642 = vunpack.c.l.b16 %v603
        %v643 = vunpack.c.l.b16 %v604
        %v644 = vunpack.c.l.b16 %v605
        %v645 = vunpack.c.l.b16 %v606
        %v646 = vunpack.c.l.b16 %v607
        %v647 = vunpack.c.l.b16 %v608
        %v648 = vunpack.c.l.b16 %v609
        %v649 = vunpack.c.l.b16 %v610
        %v650 = vunpack.c.l.b16 %v611
        %v651 = vpack.c.b16 %v636, %v635
        %v652 = vpack.c.b16 %v638, %v637
        %v653 = vpack.c.b16 %v640, %v639
        %v654 = vpack.c.b16 %v642, %v641
        %v655 = vpack.c.b16 %v644, %v643
        %v656 = vpack.c.b16 %v646, %v645
        %v657 = vpack.c.b16 %v648, %v647
        %v658 = vpack.c.b16 %v650, %v649
        %667 = vmatprep.subr.bf16.mxu0 0
        %668 = vmatpush1.bf16.msra.mxu0 %v651
        %669 = vmatprep.subr.bf16.mxu0 0
        %670 = vmatpush1.bf16.msra.mxu0 %v652
        %671 = vmatprep.subr.bf16.mxu0 0
        %672 = vmatpush1.bf16.msra.mxu0 %v653
        %673 = vmatprep.subr.bf16.mxu0 0
        %674 = vmatpush1.bf16.msra.mxu0 %v654
        %675 = vmatprep.subr.bf16.mxu0 0
        %676 = vmatpush1.bf16.msra.mxu0 %v655
        %677 = vmatprep.subr.bf16.mxu0 0
        %678 = vmatpush1.bf16.msra.mxu0 %v656
        %679 = vmatprep.subr.bf16.mxu0 0
        %680 = vmatpush1.bf16.msra.mxu0 %v657
        %681 = vmatprep.subr.bf16.mxu0 0
        %682 = vmatpush1.bf16.msra.mxu0 %v658
        %683 = vmatprep.subr.bf16.mxu0 0
        %684 = vmatpush1.bf16.msra.mxu0 0
        %685 = vmatprep.subr.bf16.mxu0 0
        %686 = vmatpush1.bf16.msra.mxu0 0
        %687 = vmatprep.subr.bf16.mxu0 0
        %688 = vmatpush1.bf16.msra.mxu0 0
        %689 = vmatprep.subr.bf16.mxu0 0
        %690 = vmatpush1.bf16.msra.mxu0 0
        %691 = vmatprep.subr.bf16.mxu0 0
        %692 = vmatpush1.bf16.msra.mxu0 0
        %693 = vmatprep.subr.bf16.mxu0 0
        %694 = vmatpush1.bf16.msra.mxu0 0
        %695 = vmatprep.subr.bf16.mxu0 0
        %696 = vmatpush1.bf16.msra.mxu0 0
        %697 = vmatprep.subr.bf16.mxu0 0
        %698 = vmatpush1.bf16.msra.mxu0 0
        %699 = vmatprep.mubr.bf16.mxu0 0
        %700 = vmatmul.mubr.bf16.gmra.mrb[0].mxu0 %v595
        %v701 = vpop.f32.mrb[0].mxu0
        %v702 = vadd.f32 %v617, %v701
        %v703 = vpop.f32.mrb[0].mxu0
        %v704 = vpop.f32.mrb[0].mxu0
        %v705 = vpop.f32.mrb[0].mxu0
        %706 = vdwg.mxu0
        %v707 = vld [vmem:[%s6] sm:$0xf]
        %v708 = vld [vmem:[%s6 + $0x4] sm:$0xf]
        %v709 = vld [vmem:[%s6 + $0x8] sm:$0xf]
        %v710 = vld [vmem:[%s6 + $0xc] sm:$0xf]
        %v711 = vld [vmem:[%s6 + $0x10] sm:$0xf]
        %v712 = vld [vmem:[%s6 + $0x14] sm:$0xf]
        %v713 = vld [vmem:[%s6 + $0x18] sm:$0xf]
        %v714 = vld [vmem:[%s6 + $0x1c] sm:$0xf]
        %v715 = vld [vmem:[%s6 + $0x20] sm:$0xf]
        %v716 = vld [vmem:[%s6 + $0x24] sm:$0xf]
        %v717 = vld [vmem:[%s6 + $0x28] sm:$0xf]
        %v718 = vld [vmem:[%s6 + $0x2c] sm:$0xf]
        %v719 = vld [vmem:[%s6 + $0x30] sm:$0xf]
        %v720 = vld [vmem:[%s6 + $0x34] sm:$0xf]
        %v721 = vld [vmem:[%s6 + $0x38] sm:$0xf]
        %v722 = vld [vmem:[%s6 + $0x3c] sm:$0xf]
        %v723 = vld [vmem:[%s7] sm:$0x1]
        %v725 = vlaneseq
        %v726 = vshrl.u32 %v725, 7
        %v727 = vsub.s32 0, %v726
        %v728 = vrot.slane %v723, %v727
        %v746 = vunpack.c.l.b16 %v707
        %v747 = vunpack.c.l.b16 %v708
        %v748 = vunpack.c.l.b16 %v709
        %v749 = vunpack.c.l.b16 %v710
        %v750 = vunpack.c.l.b16 %v711
        %v751 = vunpack.c.l.b16 %v712
        %v752 = vunpack.c.l.b16 %v713
        %v753 = vunpack.c.l.b16 %v714
        %v754 = vunpack.c.l.b16 %v715
        %v755 = vunpack.c.l.b16 %v716
        %v756 = vunpack.c.l.b16 %v717
        %v757 = vunpack.c.l.b16 %v718
        %v758 = vunpack.c.l.b16 %v719
        %v759 = vunpack.c.l.b16 %v720
        %v760 = vunpack.c.l.b16 %v721
        %v761 = vunpack.c.l.b16 %v722
        %v762 = vpack.c.b16 %v747, %v746
        %v763 = vpack.c.b16 %v749, %v748
        %v764 = vpack.c.b16 %v751, %v750
        %v765 = vpack.c.b16 %v753, %v752
        %v766 = vpack.c.b16 %v755, %v754
        %v767 = vpack.c.b16 %v757, %v756
        %v768 = vpack.c.b16 %v759, %v758
        %v769 = vpack.c.b16 %v761, %v760
        %778 = vmatprep.subr.bf16.mxu0 0
        %779 = vmatpush1.bf16.msra.mxu0 %v762
        %780 = vmatprep.subr.bf16.mxu0 0
        %781 = vmatpush1.bf16.msra.mxu0 %v763
        %782 = vmatprep.subr.bf16.mxu0 0
        %783 = vmatpush1.bf16.msra.mxu0 %v764
        %784 = vmatprep.subr.bf16.mxu0 0
        %785 = vmatpush1.bf16.msra.mxu0 %v765
        %786 = vmatprep.subr.bf16.mxu0 0
        %787 = vmatpush1.bf16.msra.mxu0 %v766
        %788 = vmatprep.subr.bf16.mxu0 0
        %789 = vmatpush1.bf16.msra.mxu0 %v767
        %790 = vmatprep.subr.bf16.mxu0 0
        %791 = vmatpush1.bf16.msra.mxu0 %v768
        %792 = vmatprep.subr.bf16.mxu0 0
        %793 = vmatpush1.bf16.msra.mxu0 %v769
        %794 = vmatprep.subr.bf16.mxu0 0
        %795 = vmatpush1.bf16.msra.mxu0 0
        %796 = vmatprep.subr.bf16.mxu0 0
        %797 = vmatpush1.bf16.msra.mxu0 0
        %798 = vmatprep.subr.bf16.mxu0 0
        %799 = vmatpush1.bf16.msra.mxu0 0
        %800 = vmatprep.subr.bf16.mxu0 0
        %801 = vmatpush1.bf16.msra.mxu0 0
        %802 = vmatprep.subr.bf16.mxu0 0
        %803 = vmatpush1.bf16.msra.mxu0 0
        %804 = vmatprep.subr.bf16.mxu0 0
        %805 = vmatpush1.bf16.msra.mxu0 0
        %806 = vmatprep.subr.bf16.mxu0 0
        %807 = vmatpush1.bf16.msra.mxu0 0
        %808 = vmatprep.subr.bf16.mxu0 0
        %809 = vmatpush1.bf16.msra.mxu0 0
        %810 = vmatprep.mubr.bf16.mxu0 0
        %811 = vmatmul.mubr.bf16.gmra.mrb[0].mxu0 %v595
        %v812 = vpop.f32.mrb[0].mxu0
        %v813 = vadd.f32 %v728, %v812
        %v814 = vpop.f32.mrb[0].mxu0
        %v815 = vpop.f32.mrb[0].mxu0
        %v816 = vpop.f32.mrb[0].mxu0
        %817 = vdwg.mxu0
        %819 = vrot.lane.b32.xlu0 %v702, 120
        %v820 = vpop.permute.xlu0 %819
        %822 = vrot.lane.b32.xlu0 %v702, 112
        %v823 = vpop.permute.xlu0 %822
        %825 = vrot.lane.b32.xlu0 %v702, 104
        %v826 = vpop.permute.xlu0 %825
        %v828 = vpack.c.bf16 %v702, %v702
        %v829 = vpack.c.bf16 %v820, %v820
        %v830 = vpack.c.bf16 %v823, %v823
        %v831 = vpack.c.bf16 %v826, %v826
        %833 = vrot.lane.b32.xlu0 %v813, 120
        %v834 = vpop.permute.xlu0 %833
        %836 = vrot.lane.b32.xlu0 %v813, 112
        %v837 = vpop.permute.xlu0 %836
        %839 = vrot.lane.b32.xlu0 %v813, 104
        %v840 = vpop.permute.xlu0 %839
        %v842 = vpack.c.bf16 %v813, %v813
        %v843 = vpack.c.bf16 %v834, %v834
        %v844 = vpack.c.bf16 %v837, %v837
        %v845 = vpack.c.bf16 %v840, %v840
        %v846 = vld [vmem:[#allocation3] sm:$0xff]
        %v847 = vld [vmem:[#allocation3 + $0x8] sm:$0xff]
        %v848 = vld [vmem:[#allocation3 + $0x10] sm:$0xff]
        %v849 = vld [vmem:[#allocation3 + $0x18] sm:$0xff]
        %vm850 = vcmask 64512
        %v852 = vsel %vm850, %v846, 0
        %v855 = vsel %vm850, %v828, 0
        %857 = vmatprep.subr.bf16.mxu0 0
        %858 = vmatpush1.bf16.xpose.msra.mxu0 %v855
        %859 = vmatprep.subr.bf16.mxu0 0
        %860 = vmatpush1.bf16.xpose.msra.mxu0 0
        %861 = vmatprep.subr.bf16.mxu0 0
        %862 = vmatpush1.bf16.xpose.msra.mxu0 0
        %863 = vmatprep.subr.bf16.mxu0 0
        %864 = vmatpush1.bf16.xpose.msra.mxu0 0
        %865 = vmatprep.subr.bf16.mxu0 0
        %866 = vmatpush1.bf16.xpose.msra.mxu0 0
        %867 = vmatprep.subr.bf16.mxu0 0
        %868 = vmatpush1.bf16.xpose.msra.mxu0 0
        %869 = vmatprep.subr.bf16.mxu0 0
        %870 = vmatpush1.bf16.xpose.msra.mxu0 0
        %871 = vmatprep.subr.bf16.mxu0 0
        %872 = vmatpush1.bf16.xpose.msra.mxu0 0
        %873 = vmatprep.subr.bf16.mxu0 0
        %874 = vmatpush1.bf16.xpose.msra.mxu0 0
        %875 = vmatprep.subr.bf16.mxu0 0
        %876 = vmatpush1.bf16.xpose.msra.mxu0 0
        %877 = vmatprep.subr.bf16.mxu0 0
        %878 = vmatpush1.bf16.xpose.msra.mxu0 0
        %879 = vmatprep.subr.bf16.mxu0 0
        %880 = vmatpush1.bf16.xpose.msra.mxu0 0
        %881 = vmatprep.subr.bf16.mxu0 0
        %882 = vmatpush1.bf16.xpose.msra.mxu0 0
        %883 = vmatprep.subr.bf16.mxu0 0
        %884 = vmatpush1.bf16.xpose.msra.mxu0 0
        %885 = vmatprep.subr.bf16.mxu0 0
        %886 = vmatpush1.bf16.xpose.msra.mxu0 0
        %887 = vmatprep.subr.bf16.mxu0 0
        %888 = vmatpush1.bf16.xpose.msra.mxu0 0
        %889 = vmatprep.mubr.bf16.mxu0 0
        %890 = vmatmul.mubr.bf16.gmra.mrb[0].mxu0 %v852
        %v891 = vpop.f32.mrb[0].mxu0
        %v892 = vadd.f32 0.0, %v891
        %v893 = vpop.f32.mrb[0].mxu0
        %v894 = vpop.f32.mrb[0].mxu0
        %v895 = vadd.f32 0.0, %v894
        %v896 = vpop.f32.mrb[0].mxu0
        %897 = vdwg.mxu0
        %v899 = vsel %vm850, %v847, 0
        %v902 = vsel %vm850, %v829, 0
        %904 = vmatprep.subr.bf16.mxu0 0
        %905 = vmatpush1.bf16.xpose.msra.mxu0 %v902
        %906 = vmatprep.subr.bf16.mxu0 0
        %907 = vmatpush1.bf16.xpose.msra.mxu0 0
        %908 = vmatprep.subr.bf16.mxu0 0
        %909 = vmatpush1.bf16.xpose.msra.mxu0 0
        %910 = vmatprep.subr.bf16.mxu0 0
        %911 = vmatpush1.bf16.xpose.msra.mxu0 0
        %912 = vmatprep.subr.bf16.mxu0 0
        %913 = vmatpush1.bf16.xpose.msra.mxu0 0
        %914 = vmatprep.subr.bf16.mxu0 0
        %915 = vmatpush1.bf16.xpose.msra.mxu0 0
        %916 = vmatprep.subr.bf16.mxu0 0
        %917 = vmatpush1.bf16.xpose.msra.mxu0 0
        %918 = vmatprep.subr.bf16.mxu0 0
        %919 = vmatpush1.bf16.xpose.msra.mxu0 0
        %920 = vmatprep.subr.bf16.mxu0 0
        %921 = vmatpush1.bf16.xpose.msra.mxu0 0
        %922 = vmatprep.subr.bf16.mxu0 0
        %923 = vmatpush1.bf16.xpose.msra.mxu0 0
        %924 = vmatprep.subr.bf16.mxu0 0
        %925 = vmatpush1.bf16.xpose.msra.mxu0 0
        %926 = vmatprep.subr.bf16.mxu0 0
        %927 = vmatpush1.bf16.xpose.msra.mxu0 0
        %928 = vmatprep.subr.bf16.mxu0 0
        %929 = vmatpush1.bf16.xpose.msra.mxu0 0
        %930 = vmatprep.subr.bf16.mxu0 0
        %931 = vmatpush1.bf16.xpose.msra.mxu0 0
        %932 = vmatprep.subr.bf16.mxu0 0
        %933 = vmatpush1.bf16.xpose.msra.mxu0 0
        %934 = vmatprep.subr.bf16.mxu0 0
        %935 = vmatpush1.bf16.xpose.msra.mxu0 0
        %936 = vmatprep.mubr.bf16.mxu0 0
        %937 = vmatmul.mubr.bf16.gmra.mrb[0].mxu0 %v899
        %v938 = vpop.f32.mrb[0].mxu0
        %v939 = vadd.f32 0.0, %v938
        %v940 = vpop.f32.mrb[0].mxu0
        %v941 = vpop.f32.mrb[0].mxu0
        %v942 = vadd.f32 0.0, %v941
        %v943 = vpop.f32.mrb[0].mxu0
        %944 = vdwg.mxu0
        %v946 = vsel %vm850, %v848, 0
        %v949 = vsel %vm850, %v830, 0
        %951 = vmatprep.subr.bf16.mxu0 0
        %952 = vmatpush1.bf16.xpose.msra.mxu0 %v949
        %953 = vmatprep.subr.bf16.mxu0 0
        %954 = vmatpush1.bf16.xpose.msra.mxu0 0
        %955 = vmatprep.subr.bf16.mxu0 0
        %956 = vmatpush1.bf16.xpose.msra.mxu0 0
        %957 = vmatprep.subr.bf16.mxu0 0
        %958 = vmatpush1.bf16.xpose.msra.mxu0 0
        %959 = vmatprep.subr.bf16.mxu0 0
        %960 = vmatpush1.bf16.xpose.msra.mxu0 0
        %961 = vmatprep.subr.bf16.mxu0 0
        %962 = vmatpush1.bf16.xpose.msra.mxu0 0
        %963 = vmatprep.subr.bf16.mxu0 0
        %964 = vmatpush1.bf16.xpose.msra.mxu0 0
        %965 = vmatprep.subr.bf16.mxu0 0
        %966 = vmatpush1.bf16.xpose.msra.mxu0 0
        %967 = vmatprep.subr.bf16.mxu0 0
        %968 = vmatpush1.bf16.xpose.msra.mxu0 0
        %969 = vmatprep.subr.bf16.mxu0 0
        %970 = vmatpush1.bf16.xpose.msra.mxu0 0
        %971 = vmatprep.subr.bf16.mxu0 0
        %972 = vmatpush1.bf16.xpose.msra.mxu0 0
        %973 = vmatprep.subr.bf16.mxu0 0
        %974 = vmatpush1.bf16.xpose.msra.mxu0 0
        %975 = vmatprep.subr.bf16.mxu0 0
        %976 = vmatpush1.bf16.xpose.msra.mxu0 0
        %977 = vmatprep.subr.bf16.mxu0 0
        %978 = vmatpush1.bf16.xpose.msra.mxu0 0
        %979 = vmatprep.subr.bf16.mxu0 0
        %980 = vmatpush1.bf16.xpose.msra.mxu0 0
        %981 = vmatprep.subr.bf16.mxu0 0
        %982 = vmatpush1.bf16.xpose.msra.mxu0 0
        %983 = vmatprep.mubr.bf16.mxu0 0
        %984 = vmatmul.mubr.bf16.gmra.mrb[0].mxu0 %v946
        %v985 = vpop.f32.mrb[0].mxu0
        %v986 = vadd.f32 0.0, %v985
        %v987 = vpop.f32.mrb[0].mxu0
        %v988 = vpop.f32.mrb[0].mxu0
        %v989 = vadd.f32 0.0, %v988
        %v990 = vpop.f32.mrb[0].mxu0
        %991 = vdwg.mxu0
        %v993 = vsel %vm850, %v849, 0
        %v996 = vsel %vm850, %v831, 0
        %998 = vmatprep.subr.bf16.mxu0 0
        %999 = vmatpush1.bf16.xpose.msra.mxu0 %v996
        %1000 = vmatprep.subr.bf16.mxu0 0
        %1001 = vmatpush1.bf16.xpose.msra.mxu0 0
        %1002 = vmatprep.subr.bf16.mxu0 0
        %1003 = vmatpush1.bf16.xpose.msra.mxu0 0
        %1004 = vmatprep.subr.bf16.mxu0 0
        %1005 = vmatpush1.bf16.xpose.msra.mxu0 0
        %1006 = vmatprep.subr.bf16.mxu0 0
        %1007 = vmatpush1.bf16.xpose.msra.mxu0 0
        %1008 = vmatprep.subr.bf16.mxu0 0
        %1009 = vmatpush1.bf16.xpose.msra.mxu0 0
        %1010 = vmatprep.subr.bf16.mxu0 0
        %1011 = vmatpush1.bf16.xpose.msra.mxu0 0
        %1012 = vmatprep.subr.bf16.mxu0 0
        %1013 = vmatpush1.bf16.xpose.msra.mxu0 0
        %1014 = vmatprep.subr.bf16.mxu0 0
        %1015 = vmatpush1.bf16.xpose.msra.mxu0 0
        %1016 = vmatprep.subr.bf16.mxu0 0
        %1017 = vmatpush1.bf16.xpose.msra.mxu0 0
        %1018 = vmatprep.subr.bf16.mxu0 0
        %1019 = vmatpush1.bf16.xpose.msra.mxu0 0
        %1020 = vmatprep.subr.bf16.mxu0 0
        %1021 = vmatpush1.bf16.xpose.msra.mxu0 0
        %1022 = vmatprep.subr.bf16.mxu0 0
        %1023 = vmatpush1.bf16.xpose.msra.mxu0 0
        %1024 = vmatprep.subr.bf16.mxu0 0
        %1025 = vmatpush1.bf16.xpose.msra.mxu0 0
        %1026 = vmatprep.subr.bf16.mxu0 0
        %1027 = vmatpush1.bf16.xpose.msra.mxu0 0
        %1028 = vmatprep.subr.bf16.mxu0 0
        %1029 = vmatpush1.bf16.xpose.msra.mxu0 0
        %1030 = vmatprep.mubr.bf16.mxu0 0
        %1031 = vmatmul.mubr.bf16.gmra.mrb[0].mxu0 %v993
        %v1032 = vpop.f32.mrb[0].mxu0
        %v1033 = vadd.f32 0.0, %v1032
        %v1034 = vpop.f32.mrb[0].mxu0
        %v1035 = vpop.f32.mrb[0].mxu0
        %v1036 = vadd.f32 0.0, %v1035
        %v1037 = vpop.f32.mrb[0].mxu0
        %1038 = vdwg.mxu0
        %v1039 = vld [vmem:[#allocation4] sm:$0xff]
        %v1040 = vld [vmem:[#allocation4 + $0x8] sm:$0xff]
        %v1041 = vld [vmem:[#allocation4 + $0x10] sm:$0xff]
        %v1042 = vld [vmem:[#allocation4 + $0x18] sm:$0xff]
        %v1043 = vld [vmem:[#allocation4 + $0x20] sm:$0xff]
        %v1044 = vld [vmem:[#allocation4 + $0x28] sm:$0xff]
        %v1045 = vld [vmem:[#allocation4 + $0x30] sm:$0xff]
        %v1046 = vld [vmem:[#allocation4 + $0x38] sm:$0xff]
        %v1047 = vsel %vm850, %v892, -inf
        %1048 = vmax.xlane.f32.xlu0 %v1047
        %v1049 = vpop.xlane.xlu0 %1048
        %v1050 = vsel %vm850, %v895, -inf
        %1051 = vmax.xlane.f32.xlu0 %v1050
        %v1052 = vpop.xlane.xlu0 %1051
        %v1053 = vsel %vm850, %v939, -inf
        %1054 = vmax.xlane.f32.xlu0 %v1053
        %v1055 = vpop.xlane.xlu0 %1054
        %v1056 = vsel %vm850, %v942, -inf
        %1057 = vmax.xlane.f32.xlu0 %v1056
        %v1058 = vpop.xlane.xlu0 %1057
        %v1059 = vsel %vm850, %v986, -inf
        %1060 = vmax.xlane.f32.xlu0 %v1059
        %v1061 = vpop.xlane.xlu0 %1060
        %v1062 = vsel %vm850, %v989, -inf
        %1063 = vmax.xlane.f32.xlu0 %v1062
        %v1064 = vpop.xlane.xlu0 %1063
        %v1065 = vsel %vm850, %v1033, -inf
        %1066 = vmax.xlane.f32.xlu0 %v1065
        %v1067 = vpop.xlane.xlu0 %1066
        %v1068 = vsel %vm850, %v1036, -inf
        %1069 = vmax.xlane.f32.xlu0 %v1068
        %v1070 = vpop.xlane.xlu0 %1069
        %v1071 = vmax.f32 %v1039, %v1049
        %v1072 = vmax.f32 %v1040, %v1052
        %v1073 = vmax.f32 %v1041, %v1055
        %v1074 = vmax.f32 %v1042, %v1058
        %v1075 = vmax.f32 %v1043, %v1061
        %v1076 = vmax.f32 %v1044, %v1064
        %v1077 = vmax.f32 %v1045, %v1067
        %v1078 = vmax.f32 %v1046, %v1070
        %v1079 = vsub.f32 %v1039, %v1071
        %v1080 = vsub.f32 %v1040, %v1072
        %v1081 = vsub.f32 %v1041, %v1073
        %v1082 = vsub.f32 %v1042, %v1074
        %v1083 = vsub.f32 %v1043, %v1075
        %v1084 = vsub.f32 %v1044, %v1076
        %v1085 = vsub.f32 %v1045, %v1077
        %v1086 = vsub.f32 %v1046, %v1078
        %v1087 = vmul.f32 %v1079, 1.442695
        %v1088 = vpow.pop %v1087
        %v1089 = vmul.f32 %v1080, 1.442695
        %v1090 = vpow.pop %v1089
        %v1091 = vmul.f32 %v1081, 1.442695
        %v1092 = vpow.pop %v1091
        %v1093 = vmul.f32 %v1082, 1.442695
        %v1094 = vpow.pop %v1093
        %v1095 = vmul.f32 %v1083, 1.442695
        %v1096 = vpow.pop %v1095
        %v1097 = vmul.f32 %v1084, 1.442695
        %v1098 = vpow.pop %v1097
        %v1099 = vmul.f32 %v1085, 1.442695
        %v1100 = vpow.pop %v1099
        %v1101 = vmul.f32 %v1086, 1.442695
        %v1102 = vpow.pop %v1101
        %1104 = vset.pattern.permute.xlu0 0
        %1105 = vperm.xlu0 %1104, %v1071
        %v1106 = vpop.permute.xlu0 %1105
        %1109 = vset.pattern.permute.xlu0 0
        %1110 = vperm.xlu0 %1109, %v1072
        %v1111 = vpop.permute.xlu0 %1110
        %1114 = vset.pattern.permute.xlu0 0
        %1115 = vperm.xlu0 %1114, %v1073
        %v1116 = vpop.permute.xlu0 %1115
        %1119 = vset.pattern.permute.xlu0 0
        %1120 = vperm.xlu0 %1119, %v1074
        %v1121 = vpop.permute.xlu0 %1120
        %1124 = vset.pattern.permute.xlu0 0
        %1125 = vperm.xlu0 %1124, %v1075
        %v1126 = vpop.permute.xlu0 %1125
        %1129 = vset.pattern.permute.xlu0 0
        %1130 = vperm.xlu0 %1129, %v1076
        %v1131 = vpop.permute.xlu0 %1130
        %1134 = vset.pattern.permute.xlu0 0
        %1135 = vperm.xlu0 %1134, %v1077
        %v1136 = vpop.permute.xlu0 %1135
        %1139 = vset.pattern.permute.xlu0 0
        %1140 = vperm.xlu0 %1139, %v1078
        %v1141 = vpop.permute.xlu0 %1140
        %v1143 = vsub.f32 %v892, %v1106
        %v1144 = vsub.f32 %v895, %v1111
        %v1145 = vsub.f32 %v939, %v1116
        %v1146 = vsub.f32 %v942, %v1121
        %v1147 = vsub.f32 %v986, %v1126
        %v1148 = vsub.f32 %v989, %v1131
        %v1149 = vsub.f32 %v1033, %v1136
        %v1150 = vsub.f32 %v1036, %v1141
        %v1151 = vmul.f32 %v1143, 1.442695
        %v1152 = vpow.pop %v1151
        %v1153 = vmul.f32 %v1144, 1.442695
        %v1154 = vpow.pop %v1153
        %v1155 = vmul.f32 %v1145, 1.442695
        %v1156 = vpow.pop %v1155
        %v1157 = vmul.f32 %v1146, 1.442695
        %v1158 = vpow.pop %v1157
        %v1159 = vmul.f32 %v1147, 1.442695
        %v1160 = vpow.pop %v1159
        %v1161 = vmul.f32 %v1148, 1.442695
        %v1162 = vpow.pop %v1161
        %v1163 = vmul.f32 %v1149, 1.442695
        %v1164 = vpow.pop %v1163
        %v1165 = vmul.f32 %v1150, 1.442695
        %v1166 = vpow.pop %v1165
        %v1167 = vld [vmem:[#allocation5] sm:$0xff]
        %v1168 = vld [vmem:[#allocation5 + $0x8] sm:$0xff]
        %v1169 = vld [vmem:[#allocation5 + $0x10] sm:$0xff]
        %v1170 = vld [vmem:[#allocation5 + $0x18] sm:$0xff]
        %v1171 = vld [vmem:[#allocation5 + $0x20] sm:$0xff]
        %v1172 = vld [vmem:[#allocation5 + $0x28] sm:$0xff]
        %v1173 = vld [vmem:[#allocation5 + $0x30] sm:$0xff]
        %v1174 = vld [vmem:[#allocation5 + $0x38] sm:$0xff]
        %v1175 = vmul.f32 %v1088, %v1167
        %v1176 = vmul.f32 %v1090, %v1168
        %v1177 = vmul.f32 %v1092, %v1169
        %v1178 = vmul.f32 %v1094, %v1170
        %v1179 = vmul.f32 %v1096, %v1171
        %v1180 = vmul.f32 %v1098, %v1172
        %v1181 = vmul.f32 %v1100, %v1173
        %v1182 = vmul.f32 %v1102, %v1174
        %v1183 = vsel %vm850, %v1152, 0.0
        %1184 = vadd.xlane.f32.xlu0 %v1183
        %v1185 = vpop.xlane.xlu0 %1184
        %v1186 = vsel %vm850, %v1154, 0.0
        %1187 = vadd.xlane.f32.xlu0 %v1186
        %v1188 = vpop.xlane.xlu0 %1187
        %v1189 = vsel %vm850, %v1156, 0.0
        %1190 = vadd.xlane.f32.xlu0 %v1189
        %v1191 = vpop.xlane.xlu0 %1190
        %v1192 = vsel %vm850, %v1158, 0.0
        %1193 = vadd.xlane.f32.xlu0 %v1192
        %v1194 = vpop.xlane.xlu0 %1193
        %v1195 = vsel %vm850, %v1160, 0.0
        %1196 = vadd.xlane.f32.xlu0 %v1195
        %v1197 = vpop.xlane.xlu0 %1196
        %v1198 = vsel %vm850, %v1162, 0.0
        %1199 = vadd.xlane.f32.xlu0 %v1198
        %v1200 = vpop.xlane.xlu0 %1199
        %v1201 = vsel %vm850, %v1164, 0.0
        %1202 = vadd.xlane.f32.xlu0 %v1201
        %v1203 = vpop.xlane.xlu0 %1202
        %v1204 = vsel %vm850, %v1166, 0.0
        %1205 = vadd.xlane.f32.xlu0 %v1204
        %v1206 = vpop.xlane.xlu0 %1205
        %v1207 = vadd.f32 %v1175, %v1185
        %v1208 = vadd.f32 %v1176, %v1188
        %v1209 = vadd.f32 %v1177, %v1191
        %v1210 = vadd.f32 %v1178, %v1194
        %v1211 = vadd.f32 %v1179, %v1197
        %v1212 = vadd.f32 %v1180, %v1200
        %v1213 = vadd.f32 %v1181, %v1203
        %v1214 = vadd.f32 %v1182, %v1206
        %vm1215 = vcmask 7168
        %1216 = vst.msk [vmem:[#allocation5] sm:$0xff] %vm1215, %v1207
        %1217 = vst.msk [vmem:[#allocation5 + $0x8] sm:$0xff] %vm1215, %v1208
        %1218 = vst.msk [vmem:[#allocation5 + $0x10] sm:$0xff] %vm1215, %v1209
        %1219 = vst.msk [vmem:[#allocation5 + $0x18] sm:$0xff] %vm1215, %v1210
        %1220 = vst.msk [vmem:[#allocation5 + $0x20] sm:$0xff] %vm1215, %v1211
        %1221 = vst.msk [vmem:[#allocation5 + $0x28] sm:$0xff] %vm1215, %v1212
        %1222 = vst.msk [vmem:[#allocation5 + $0x30] sm:$0xff] %vm1215, %v1213
        %1223 = vst.msk [vmem:[#allocation5 + $0x38] sm:$0xff] %vm1215, %v1214
        %v1224 = vld [vmem:[#allocation6] sm:$0xff]
        %v1225 = vld [vmem:[#allocation6 + $0x8] sm:$0xff]
        %v1226 = vld [vmem:[#allocation6 + $0x10] sm:$0xff]
        %v1227 = vld [vmem:[#allocation6 + $0x18] sm:$0xff]
        %v1228 = vld [vmem:[#allocation6 + $0x20] sm:$0xff]
        %v1229 = vld [vmem:[#allocation6 + $0x28] sm:$0xff]
        %v1230 = vld [vmem:[#allocation6 + $0x30] sm:$0xff]
        %v1231 = vld [vmem:[#allocation6 + $0x38] sm:$0xff]
        %1233 = vset.pattern.permute.xlu0 0
        %1234 = vperm.xlu0 %1233, %v1088
        %v1235 = vpop.permute.xlu0 %1234
        %1238 = vset.pattern.permute.xlu0 0
        %1239 = vperm.xlu0 %1238, %v1090
        %v1240 = vpop.permute.xlu0 %1239
        %1243 = vset.pattern.permute.xlu0 0
        %1244 = vperm.xlu0 %1243, %v1092
        %v1245 = vpop.permute.xlu0 %1244
        %1248 = vset.pattern.permute.xlu0 0
        %1249 = vperm.xlu0 %1248, %v1094
        %v1250 = vpop.permute.xlu0 %1249
        %1253 = vset.pattern.permute.xlu0 0
        %1254 = vperm.xlu0 %1253, %v1096
        %v1255 = vpop.permute.xlu0 %1254
        %1258 = vset.pattern.permute.xlu0 0
        %1259 = vperm.xlu0 %1258, %v1098
        %v1260 = vpop.permute.xlu0 %1259
        %1263 = vset.pattern.permute.xlu0 0
        %1264 = vperm.xlu0 %1263, %v1100
        %v1265 = vpop.permute.xlu0 %1264
        %1268 = vset.pattern.permute.xlu0 0
        %1269 = vperm.xlu0 %1268, %v1102
        %v1270 = vpop.permute.xlu0 %1269
        %v1272 = vmul.f32 %v1235, %v1224
        %v1273 = vmul.f32 %v1240, %v1225
        %v1274 = vmul.f32 %v1245, %v1226
        %v1275 = vmul.f32 %v1250, %v1227
        %v1276 = vmul.f32 %v1255, %v1228
        %v1277 = vmul.f32 %v1260, %v1229
        %v1278 = vmul.f32 %v1265, %v1230
        %v1279 = vmul.f32 %v1270, %v1231
        %v1280 = vpack.c.bf16 %v1154, %v1152
        %v1281 = vpack.c.bf16 %v1158, %v1156
        %v1282 = vpack.c.bf16 %v1162, %v1160
        %v1283 = vpack.c.bf16 %v1166, %v1164
        %v1285 = vsel %vm850, %v1280, 0
        %vm1287 = vcmask 1043456
        %v1289 = vsel %vm1287, %v842, 0
        %1291 = vmatprep.subr.bf16.mxu0 0
        %1292 = vmatpush1.bf16.msra.mxu0 %v1289
        %1293 = vmatprep.subr.bf16.mxu0 0
        %1294 = vmatpush1.bf16.msra.mxu0 0
        %1295 = vmatprep.subr.bf16.mxu0 0
        %1296 = vmatpush1.bf16.msra.mxu0 0
        %1297 = vmatprep.subr.bf16.mxu0 0
        %1298 = vmatpush1.bf16.msra.mxu0 0
        %1299 = vmatprep.subr.bf16.mxu0 0
        %1300 = vmatpush1.bf16.msra.mxu0 0
        %1301 = vmatprep.subr.bf16.mxu0 0
        %1302 = vmatpush1.bf16.msra.mxu0 0
        %1303 = vmatprep.subr.bf16.mxu0 0
        %1304 = vmatpush1.bf16.msra.mxu0 0
        %1305 = vmatprep.subr.bf16.mxu0 0
        %1306 = vmatpush1.bf16.msra.mxu0 0
        %1307 = vmatprep.subr.bf16.mxu0 0
        %1308 = vmatpush1.bf16.msra.mxu0 0
        %1309 = vmatprep.subr.bf16.mxu0 0
        %1310 = vmatpush1.bf16.msra.mxu0 0
        %1311 = vmatprep.subr.bf16.mxu0 0
        %1312 = vmatpush1.bf16.msra.mxu0 0
        %1313 = vmatprep.subr.bf16.mxu0 0
        %1314 = vmatpush1.bf16.msra.mxu0 0
        %1315 = vmatprep.subr.bf16.mxu0 0
        %1316 = vmatpush1.bf16.msra.mxu0 0
        %1317 = vmatprep.subr.bf16.mxu0 0
        %1318 = vmatpush1.bf16.msra.mxu0 0
        %1319 = vmatprep.subr.bf16.mxu0 0
        %1320 = vmatpush1.bf16.msra.mxu0 0
        %1321 = vmatprep.subr.bf16.mxu0 0
        %1322 = vmatpush1.bf16.msra.mxu0 0
        %1323 = vmatprep.mubr.bf16.mxu0 0
        %1324 = vmatmul.mubr.bf16.gmra.mrb[0].mxu0 %v1285
        %v1325 = vpop.f32.mrb[0].mxu0
        %v1326 = vadd.f32 0.0, %v1325
        %v1327 = vpop.f32.mrb[0].mxu0
        %v1328 = vpop.f32.mrb[0].mxu0
        %v1329 = vadd.f32 0.0, %v1328
        %v1330 = vpop.f32.mrb[0].mxu0
        %1331 = vdwg.mxu0
        %v1333 = vsel %vm850, %v1281, 0
        %v1336 = vsel %vm1287, %v843, 0
        %1338 = vmatprep.subr.bf16.mxu0 0
        %1339 = vmatpush1.bf16.msra.mxu0 %v1336
        %1340 = vmatprep.subr.bf16.mxu0 0
        %1341 = vmatpush1.bf16.msra.mxu0 0
        %1342 = vmatprep.subr.bf16.mxu0 0
        %1343 = vmatpush1.bf16.msra.mxu0 0
        %1344 = vmatprep.subr.bf16.mxu0 0
        %1345 = vmatpush1.bf16.msra.mxu0 0
        %1346 = vmatprep.subr.bf16.mxu0 0
        %1347 = vmatpush1.bf16.msra.mxu0 0
        %1348 = vmatprep.subr.bf16.mxu0 0
        %1349 = vmatpush1.bf16.msra.mxu0 0
        %1350 = vmatprep.subr.bf16.mxu0 0
        %1351 = vmatpush1.bf16.msra.mxu0 0
        %1352 = vmatprep.subr.bf16.mxu0 0
        %1353 = vmatpush1.bf16.msra.mxu0 0
        %1354 = vmatprep.subr.bf16.mxu0 0
        %1355 = vmatpush1.bf16.msra.mxu0 0
        %1356 = vmatprep.subr.bf16.mxu0 0
        %1357 = vmatpush1.bf16.msra.mxu0 0
        %1358 = vmatprep.subr.bf16.mxu0 0
        %1359 = vmatpush1.bf16.msra.mxu0 0
        %1360 = vmatprep.subr.bf16.mxu0 0
        %1361 = vmatpush1.bf16.msra.mxu0 0
        %1362 = vmatprep.subr.bf16.mxu0 0
        %1363 = vmatpush1.bf16.msra.mxu0 0
        %1364 = vmatprep.subr.bf16.mxu0 0
        %1365 = vmatpush1.bf16.msra.mxu0 0
        %1366 = vmatprep.subr.bf16.mxu0 0
        %1367 = vmatpush1.bf16.msra.mxu0 0
        %1368 = vmatprep.subr.bf16.mxu0 0
        %1369 = vmatpush1.bf16.msra.mxu0 0
        %1370 = vmatprep.mubr.bf16.mxu0 0
        %1371 = vmatmul.mubr.bf16.gmra.mrb[0].mxu0 %v1333
        %v1372 = vpop.f32.mrb[0].mxu0
        %v1373 = vadd.f32 0.0, %v1372
        %v1374 = vpop.f32.mrb[0].mxu0
        %v1375 = vpop.f32.mrb[0].mxu0
        %v1376 = vadd.f32 0.0, %v1375
        %v1377 = vpop.f32.mrb[0].mxu0
        %1378 = vdwg.mxu0
        %v1380 = vsel %vm850, %v1282, 0
        %v1383 = vsel %vm1287, %v844, 0
        %1385 = vmatprep.subr.bf16.mxu0 0
        %1386 = vmatpush1.bf16.msra.mxu0 %v1383
        %1387 = vmatprep.subr.bf16.mxu0 0
        %1388 = vmatpush1.bf16.msra.mxu0 0
        %1389 = vmatprep.subr.bf16.mxu0 0
        %1390 = vmatpush1.bf16.msra.mxu0 0
        %1391 = vmatprep.subr.bf16.mxu0 0
        %1392 = vmatpush1.bf16.msra.mxu0 0
        %1393 = vmatprep.subr.bf16.mxu0 0
        %1394 = vmatpush1.bf16.msra.mxu0 0
        %1395 = vmatprep.subr.bf16.mxu0 0
        %1396 = vmatpush1.bf16.msra.mxu0 0
        %1397 = vmatprep.subr.bf16.mxu0 0
        %1398 = vmatpush1.bf16.msra.mxu0 0
        %1399 = vmatprep.subr.bf16.mxu0 0
        %1400 = vmatpush1.bf16.msra.mxu0 0
        %1401 = vmatprep.subr.bf16.mxu0 0
        %1402 = vmatpush1.bf16.msra.mxu0 0
        %1403 = vmatprep.subr.bf16.mxu0 0
        %1404 = vmatpush1.bf16.msra.mxu0 0
        %1405 = vmatprep.subr.bf16.mxu0 0
        %1406 = vmatpush1.bf16.msra.mxu0 0
        %1407 = vmatprep.subr.bf16.mxu0 0
        %1408 = vmatpush1.bf16.msra.mxu0 0
        %1409 = vmatprep.subr.bf16.mxu0 0
        %1410 = vmatpush1.bf16.msra.mxu0 0
        %1411 = vmatprep.subr.bf16.mxu0 0
        %1412 = vmatpush1.bf16.msra.mxu0 0
        %1413 = vmatprep.subr.bf16.mxu0 0
        %1414 = vmatpush1.bf16.msra.mxu0 0
        %1415 = vmatprep.subr.bf16.mxu0 0
        %1416 = vmatpush1.bf16.msra.mxu0 0
        %1417 = vmatprep.mubr.bf16.mxu0 0
        %1418 = vmatmul.mubr.bf16.gmra.mrb[0].mxu0 %v1380
        %v1419 = vpop.f32.mrb[0].mxu0
        %v1420 = vadd.f32 0.0, %v1419
        %v1421 = vpop.f32.mrb[0].mxu0
        %v1422 = vpop.f32.mrb[0].mxu0
        %v1423 = vadd.f32 0.0, %v1422
        %v1424 = vpop.f32.mrb[0].mxu0
        %1425 = vdwg.mxu0
        %v1427 = vsel %vm850, %v1283, 0
        %v1430 = vsel %vm1287, %v845, 0
        %1432 = vmatprep.subr.bf16.mxu0 0
        %1433 = vmatpush1.bf16.msra.mxu0 %v1430
        %1434 = vmatprep.subr.bf16.mxu0 0
        %1435 = vmatpush1.bf16.msra.mxu0 0
        %1436 = vmatprep.subr.bf16.mxu0 0
        %1437 = vmatpush1.bf16.msra.mxu0 0
        %1438 = vmatprep.subr.bf16.mxu0 0
        %1439 = vmatpush1.bf16.msra.mxu0 0
        %1440 = vmatprep.subr.bf16.mxu0 0
        %1441 = vmatpush1.bf16.msra.mxu0 0
        %1442 = vmatprep.subr.bf16.mxu0 0
        %1443 = vmatpush1.bf16.msra.mxu0 0
        %1444 = vmatprep.subr.bf16.mxu0 0
        %1445 = vmatpush1.bf16.msra.mxu0 0
        %1446 = vmatprep.subr.bf16.mxu0 0
        %1447 = vmatpush1.bf16.msra.mxu0 0
        %1448 = vmatprep.subr.bf16.mxu0 0
        %1449 = vmatpush1.bf16.msra.mxu0 0
        %1450 = vmatprep.subr.bf16.mxu0 0
        %1451 = vmatpush1.bf16.msra.mxu0 0
        %1452 = vmatprep.subr.bf16.mxu0 0
        %1453 = vmatpush1.bf16.msra.mxu0 0
        %1454 = vmatprep.subr.bf16.mxu0 0
        %1455 = vmatpush1.bf16.msra.mxu0 0
        %1456 = vmatprep.subr.bf16.mxu0 0
        %1457 = vmatpush1.bf16.msra.mxu0 0
        %1458 = vmatprep.subr.bf16.mxu0 0
        %1459 = vmatpush1.bf16.msra.mxu0 0
        %1460 = vmatprep.subr.bf16.mxu0 0
        %1461 = vmatpush1.bf16.msra.mxu0 0
        %1462 = vmatprep.subr.bf16.mxu0 0
        %1463 = vmatpush1.bf16.msra.mxu0 0
        %1464 = vmatprep.mubr.bf16.mxu0 0
        %1465 = vmatmul.mubr.bf16.gmra.mrb[0].mxu0 %v1427
        %v1466 = vpop.f32.mrb[0].mxu0
        %v1467 = vadd.f32 0.0, %v1466
        %v1468 = vpop.f32.mrb[0].mxu0
        %v1469 = vpop.f32.mrb[0].mxu0
        %v1470 = vadd.f32 0.0, %v1469
        %v1471 = vpop.f32.mrb[0].mxu0
        %1472 = vdwg.mxu0
        %v1473 = vadd.f32 %v1272, %v1326
        %v1474 = vadd.f32 %v1273, %v1329
        %v1475 = vadd.f32 %v1274, %v1373
        %v1476 = vadd.f32 %v1275, %v1376
        %v1477 = vadd.f32 %v1276, %v1420
        %v1478 = vadd.f32 %v1277, %v1423
        %v1479 = vadd.f32 %v1278, %v1467
        %v1480 = vadd.f32 %v1279, %v1470
        %1481 = vst.msk [vmem:[#allocation6] sm:$0xff] %vm850, %v1473
        %1482 = vst.msk [vmem:[#allocation6 + $0x8] sm:$0xff] %vm850, %v1474
        %1483 = vst.msk [vmem:[#allocation6 + $0x10] sm:$0xff] %vm850, %v1475
        %1484 = vst.msk [vmem:[#allocation6 + $0x18] sm:$0xff] %vm850, %v1476
        %1485 = vst.msk [vmem:[#allocation6 + $0x20] sm:$0xff] %vm850, %v1477
        %1486 = vst.msk [vmem:[#allocation6 + $0x28] sm:$0xff] %vm850, %v1478
        %1487 = vst.msk [vmem:[#allocation6 + $0x30] sm:$0xff] %vm850, %v1479
        %1488 = vst.msk [vmem:[#allocation6 + $0x38] sm:$0xff] %vm850, %v1480
        %1489 = vst.msk [vmem:[#allocation4] sm:$0xff] %vm1215, %v1071
        %1490 = vst.msk [vmem:[#allocation4 + $0x8] sm:$0xff] %vm1215, %v1072
        %1491 = vst.msk [vmem:[#allocation4 + $0x10] sm:$0xff] %vm1215, %v1073
        %1492 = vst.msk [vmem:[#allocation4 + $0x18] sm:$0xff] %vm1215, %v1074
        %1493 = vst.msk [vmem:[#allocation4 + $0x20] sm:$0xff] %vm1215, %v1075
        %1494 = vst.msk [vmem:[#allocation4 + $0x28] sm:$0xff] %vm1215, %v1076
        %1495 = vst.msk [vmem:[#allocation4 + $0x30] sm:$0xff] %vm1215, %v1077
        %1496 = vst.msk [vmem:[#allocation4 + $0x38] sm:$0xff] %vm1215, %v1078
        // Predicated region
        $region65: #{ginfpsst_forward.9} parent=59 // pred_check
          %p1497 = pneg %p425
        $region66: #{ginfpsst_forward.9} parent=59 // pred_check_branch
          %1499 = sbr.rel (%p1497) target = $region68
        $region67: #{ginfpsst_forward.9} parent=59 // pred_region
          %v1500 = vld [vmem:[#allocation6] sm:$0xff]
          %v1501 = vld [vmem:[#allocation6 + $0x8] sm:$0xff]
          %v1502 = vld [vmem:[#allocation6 + $0x10] sm:$0xff]
          %v1503 = vld [vmem:[#allocation6 + $0x18] sm:$0xff]
          %v1504 = vld [vmem:[#allocation6 + $0x20] sm:$0xff]
          %v1505 = vld [vmem:[#allocation6 + $0x28] sm:$0xff]
          %v1506 = vld [vmem:[#allocation6 + $0x30] sm:$0xff]
          %v1507 = vld [vmem:[#allocation6 + $0x38] sm:$0xff]
          %v1508 = vld [vmem:[#allocation5] sm:$0xff]
          %v1509 = vld [vmem:[#allocation5 + $0x8] sm:$0xff]
          %v1510 = vld [vmem:[#allocation5 + $0x10] sm:$0xff]
          %v1511 = vld [vmem:[#allocation5 + $0x18] sm:$0xff]
          %v1512 = vld [vmem:[#allocation5 + $0x20] sm:$0xff]
          %v1513 = vld [vmem:[#allocation5 + $0x28] sm:$0xff]
          %v1514 = vld [vmem:[#allocation5 + $0x30] sm:$0xff]
          %v1515 = vld [vmem:[#allocation5 + $0x38] sm:$0xff]
          %v1516 = vrcp.pop %v1508
          %v1517 = vrcp.pop %v1509
          %v1518 = vrcp.pop %v1510
          %v1519 = vrcp.pop %v1511
          %v1520 = vrcp.pop %v1512
          %v1521 = vrcp.pop %v1513
          %v1522 = vrcp.pop %v1514
          %v1523 = vrcp.pop %v1515
          %1525 = vset.pattern.permute.xlu0 0
          %1526 = vperm.xlu0 %1525, %v1516
          %v1527 = vpop.permute.xlu0 %1526
          %1530 = vset.pattern.permute.xlu0 0
          %1531 = vperm.xlu0 %1530, %v1517
          %v1532 = vpop.permute.xlu0 %1531
          %1535 = vset.pattern.permute.xlu0 0
          %1536 = vperm.xlu0 %1535, %v1518
          %v1537 = vpop.permute.xlu0 %1536
          %1540 = vset.pattern.permute.xlu0 0
          %1541 = vperm.xlu0 %1540, %v1519
          %v1542 = vpop.permute.xlu0 %1541
          %1545 = vset.pattern.permute.xlu0 0
          %1546 = vperm.xlu0 %1545, %v1520
          %v1547 = vpop.permute.xlu0 %1546
          %1550 = vset.pattern.permute.xlu0 0
          %1551 = vperm.xlu0 %1550, %v1521
          %v1552 = vpop.permute.xlu0 %1551
          %1555 = vset.pattern.permute.xlu0 0
          %1556 = vperm.xlu0 %1555, %v1522
          %v1557 = vpop.permute.xlu0 %1556
          %1560 = vset.pattern.permute.xlu0 0
          %1561 = vperm.xlu0 %1560, %v1523
          %v1562 = vpop.permute.xlu0 %1561
          %v1564 = vmul.f32 %v1500, %v1527
          %v1565 = vmul.f32 %v1501, %v1532
          %v1566 = vmul.f32 %v1502, %v1537
          %v1567 = vmul.f32 %v1503, %v1542
          %v1568 = vmul.f32 %v1504, %v1547
          %v1569 = vmul.f32 %v1505, %v1552
          %v1570 = vmul.f32 %v1506, %v1557
          %v1571 = vmul.f32 %v1507, %v1562
          %1574 = vrot.lane.b32.xlu0 %v1566, 8
          %v1575 = vpop.permute.xlu0 %1574
          %1576 = vrot.lane.b32.xlu0 %v1567, 8
          %v1577 = vpop.permute.xlu0 %1576
          %1582 = vrot.lane.b32.xlu0 %v1568, 16
          %v1583 = vpop.permute.xlu0 %1582
          %1584 = vrot.lane.b32.xlu0 %v1569, 16
          %v1585 = vpop.permute.xlu0 %1584
          %1590 = vrot.lane.b32.xlu0 %v1570, 24
          %v1591 = vpop.permute.xlu0 %1590
          %1592 = vrot.lane.b32.xlu0 %v1571, 24
          %v1593 = vpop.permute.xlu0 %1592
          %v1596 = vsel %vm850, %v1564, %v1575
          %v1597 = vsel %vm850, %v1565, %v1577
          %vm1598 = vcmask 130048
          %v1599 = vsel %vm1598, %v1596, %v1583
          %v1600 = vsel %vm1598, %v1597, %v1585
          %vm1601 = vcmask 195584
          %v1602 = vsel %vm1601, %v1599, %v1591
          %v1603 = vsel %vm1601, %v1600, %v1593
          %vm1604 = vcmask 261120
          %v1605 = vsel %vm1604, %v1602, 0.0
          %v1606 = vsel %vm1604, %v1603, 0.0
          %v1607 = vld [vmem:[#allocation2] sm:$0xff]
          %v1608 = vld [vmem:[#allocation2 + $0x8] sm:$0xff]
          %v1609 = vadd.f32 %v1607, %v1605
          %v1610 = vadd.f32 %v1608, %v1606
          %v1611 = vpack.c.bf16 %v1610, %v1609
          %v1612 = vld [vmem:[%s8] sm:$0xf]
          %v1613 = vld [vmem:[%s8 + $0x4] sm:$0xf]
          %v1614 = vld [vmem:[%s8 + $0x8] sm:$0xf]
          %v1615 = vld [vmem:[%s8 + $0xc] sm:$0xf]
          %v1616 = vld [vmem:[%s8 + $0x10] sm:$0xf]
          %v1617 = vld [vmem:[%s8 + $0x14] sm:$0xf]
          %v1618 = vld [vmem:[%s8 + $0x18] sm:$0xf]
          %v1619 = vld [vmem:[%s8 + $0x1c] sm:$0xf]
          %v1620 = vld [vmem:[%s8 + $0x20] sm:$0xf]
          %v1621 = vld [vmem:[%s8 + $0x24] sm:$0xf]
          %v1622 = vld [vmem:[%s8 + $0x28] sm:$0xf]
          %v1623 = vld [vmem:[%s8 + $0x2c] sm:$0xf]
          %v1624 = vld [vmem:[%s8 + $0x30] sm:$0xf]
          %v1625 = vld [vmem:[%s8 + $0x34] sm:$0xf]
          %v1626 = vld [vmem:[%s8 + $0x38] sm:$0xf]
          %v1627 = vld [vmem:[%s8 + $0x3c] sm:$0xf]
          %v1628 = vld [vmem:[%s9] sm:$0x1]
          %v1630 = vlaneseq
          %v1631 = vshrl.u32 %v1630, 7
          %v1632 = vsub.s32 0, %v1631
          %v1633 = vrot.slane %v1628, %v1632
          %v1651 = vunpack.c.l.b16 %v1612
          %v1652 = vunpack.c.l.b16 %v1613
          %v1653 = vunpack.c.l.b16 %v1614
          %v1654 = vunpack.c.l.b16 %v1615
          %v1655 = vunpack.c.l.b16 %v1616
          %v1656 = vunpack.c.l.b16 %v1617
          %v1657 = vunpack.c.l.b16 %v1618
          %v1658 = vunpack.c.l.b16 %v1619
          %v1659 = vunpack.c.l.b16 %v1620
          %v1660 = vunpack.c.l.b16 %v1621
          %v1661 = vunpack.c.l.b16 %v1622
          %v1662 = vunpack.c.l.b16 %v1623
          %v1663 = vunpack.c.l.b16 %v1624
          %v1664 = vunpack.c.l.b16 %v1625
          %v1665 = vunpack.c.l.b16 %v1626
          %v1666 = vunpack.c.l.b16 %v1627
          %v1667 = vpack.c.b16 %v1652, %v1651
          %v1668 = vpack.c.b16 %v1654, %v1653
          %v1669 = vpack.c.b16 %v1656, %v1655
          %v1670 = vpack.c.b16 %v1658, %v1657
          %v1671 = vpack.c.b16 %v1660, %v1659
          %v1672 = vpack.c.b16 %v1662, %v1661
          %v1673 = vpack.c.b16 %v1664, %v1663
          %v1674 = vpack.c.b16 %v1666, %v1665
          %1683 = vmatprep.subr.bf16.mxu0 0
          %1684 = vmatpush1.bf16.msra.mxu0 %v1667
          %1685 = vmatprep.subr.bf16.mxu0 0
          %1686 = vmatpush1.bf16.msra.mxu0 %v1668
          %1687 = vmatprep.subr.bf16.mxu0 0
          %1688 = vmatpush1.bf16.msra.mxu0 %v1669
          %1689 = vmatprep.subr.bf16.mxu0 0
          %1690 = vmatpush1.bf16.msra.mxu0 %v1670
          %1691 = vmatprep.subr.bf16.mxu0 0
          %1692 = vmatpush1.bf16.msra.mxu0 %v1671
          %1693 = vmatprep.subr.bf16.mxu0 0
          %1694 = vmatpush1.bf16.msra.mxu0 %v1672
          %1695 = vmatprep.subr.bf16.mxu0 0
          %1696 = vmatpush1.bf16.msra.mxu0 %v1673
          %1697 = vmatprep.subr.bf16.mxu0 0
          %1698 = vmatpush1.bf16.msra.mxu0 %v1674
          %1699 = vmatprep.subr.bf16.mxu0 0
          %1700 = vmatpush1.bf16.msra.mxu0 0
          %1701 = vmatprep.subr.bf16.mxu0 0
          %1702 = vmatpush1.bf16.msra.mxu0 0
          %1703 = vmatprep.subr.bf16.mxu0 0
          %1704 = vmatpush1.bf16.msra.mxu0 0
          %1705 = vmatprep.subr.bf16.mxu0 0
          %1706 = vmatpush1.bf16.msra.mxu0 0
          %1707 = vmatprep.subr.bf16.mxu0 0
          %1708 = vmatpush1.bf16.msra.mxu0 0
          %1709 = vmatprep.subr.bf16.mxu0 0
          %1710 = vmatpush1.bf16.msra.mxu0 0
          %1711 = vmatprep.subr.bf16.mxu0 0
          %1712 = vmatpush1.bf16.msra.mxu0 0
          %1713 = vmatprep.subr.bf16.mxu0 0
          %1714 = vmatpush1.bf16.msra.mxu0 0
          %1715 = vmatprep.mubr.bf16.mxu0 0
          %1716 = vmatmul.mubr.bf16.gmra.mrb[0].mxu0 %v1611
          %v1717 = vpop.f32.mrb[0].mxu0
          %v1718 = vadd.f32 %v1633, %v1717
          %v1719 = vpop.f32.mrb[0].mxu0
          %v1720 = vpop.f32.mrb[0].mxu0
          %v1721 = vadd.f32 %v1633, %v1720
          %v1722 = vpop.f32.mrb[0].mxu0
          %1723 = vdwg.mxu0
          %v1724 = vmax.f32 %v1718, 0.0
          %v1725 = vmax.f32 %v1721, 0.0
          %v1726 = vadd.f32 %v1609, %v1724
          %v1727 = vadd.f32 %v1610, %v1725
          %v1728 = vpack.c.bf16 %v1727, %v1726
          %v1730 = vunpack.c.l.b16 %v1728
          %v1731 = vunpack.c.h.b16 %v1728
          %v1732 = vpack.c.b16 %v1730, %v1730
          %v1733 = vpack.c.b16 %v1731, %v1731
          %1736 = vst [vmem:[%s405] sm:$0xf] %v1732
          %1737 = vst [vmem:[%s405 + $0x4] sm:$0xf] %v1733
        $region68: #{ginfpsst_forward.9} parent=59 // pred_fallthru
          _
        %s1738 = sand.u32 %s277, 1
        %s1739 = scalar_lea.sflag [#allocation8], %s1738
        %s1740 = sand.u32 %s277, 1
        %s1741 = smul.addr %s1740, 8
        %s1742 = scalar_lea.vmem [#allocation7], %s1741
        // Predicated region
        $region69: #{ginfpsst_forward.9} parent=59 // pred_check
          %p1743 = pneg %p287
        $region70: #{ginfpsst_forward.9} parent=59 // pred_check_branch
          %1745 = sbr.rel (%p1743) target = $region72
        $region71: #{ginfpsst_forward.9} parent=59 // pred_region
          %s1746 = smul.u32 2, %s30
          %s1748 = ssub.s32 128, 128
          %1749 = vsyncadd %s1739, %s1748
          %s1750 = smul.addr %s29, 2
          %s1751 = sadd.s32 %s1746, %s1750
          %s1752 = smul.addr %s1751, 64
          %s1753 = scalar_lea.hbm %s10, %s1752
          %s1754 = sshll.u32 %s1742, 4
          %s1755 = int_to_ptr.vmem [resolvable:$true] %s1754
          %1760 = dma.vmem_to_hbm [thread:$0]  %s1755, 128, %s1753, %s1739, 64, 64, 4
        $region72: #{ginfpsst_forward.9} parent=59 // pred_fallthru
          _
      $region60: #{ginfpsst_forward.9} parent=5 // pred_fallthru
        _
      %p1761 = scmp.le.s32.totalorder 2, %s19
      // Predicated region
      $region73: #{ginfpsst_forward.9} parent=5 // pred_check
        %p1762 = pneg %p1761
      $region74: #{ginfpsst_forward.9} parent=5 // pred_check_branch
        %1764 = sbr.rel (%p1762) target = $region76
      $region75: #{ginfpsst_forward.9} parent=5 // pred_region
        %s1765 = ssub.s32 %s19, 2
        // Predicated region
        $region77: #{ginfpsst_forward.9} parent=75 // pred_check
          %p1766 = pneg %p293
        $region78: #{ginfpsst_forward.9} parent=75 // pred_check_branch
          %1768 = sbr.rel (%p1766) target = $region80
        $region79: #{ginfpsst_forward.9} parent=75 // pred_region
          %s1769 = sand.u32 %s278, 1
          %s1770 = scalar_lea.sflag [#allocation8], %s1769
          %s1771 = sand.u32 %s278, 1
          %s1772 = smul.addr %s1771, 8
          %s1773 = scalar_lea.vmem [#allocation7], %s1772
          %1774 = dma.done %s1770, 128
        $region80: #{ginfpsst_forward.9} parent=75 // pred_fallthru
          _
      $region76: #{ginfpsst_forward.9} parent=5 // pred_fallthru
        _
    $region6: #{ginfpsst_forward.9} parent=1 // loop_footer
      %s23 = sadd.s32 1, %s19
    $region7: #{ginfpsst_forward.9} parent=1 // loop_footer_branch
      %18 = sbr.rel target = $region3
    $region8: #{ginfpsst_forward.9} parent=1 // loop_exit
      _
    %1775 = vsyncpa [#allocation8], 1
    %s1776 = scalar_lea.sflag [#allocation8], 1
    %1777 = vsyncpa %s1776, 1

// kernel: ginfpsst_forward.13
$region0: #{ginfpsst_forward.13}
  #allocation0 [shape = 'u32[]', space=smem, size = 0x4, offset = 0x4, fixed_abs, tag = 'smem constant byte address 0x4 - core index']
  #allocation1 [shape = 'u32[144,128]{1,0:T(1,128)}', space=vmem, size = 0x12000, scoped, tag = 'internal scratch']
  #allocation2 [shape = 'f32[16,128]{1,0:T(8,128)}', space=vmem, size = 0x2000, scoped, tag = 'scratch operand']
  #allocation3 [shape = 'bf16[4,16,8]{2,1,0:T(16,128)(2,1)}', space=vmem, size = 0x4000, scoped, tag = 'scratch operand']
  #allocation4 [shape = 'f32[4,16,1]{2,1,0:T(8,128)}', space=vmem, size = 0x8000, scoped, tag = 'scratch operand']
  #allocation5 [shape = 'f32[4,16,1]{2,1,0:T(8,128)}', space=vmem, size = 0x8000, scoped, tag = 'scratch operand']
  #allocation6 [shape = 'f32[4,16,8]{2,1,0:T(8,128)}', space=vmem, size = 0x8000, scoped, tag = 'scratch operand']
  %s0 = inlined_call_operand.vmem [shape: bf16[2,16,128], index: 0, kind: input, shape index: {}]
  %s1 = inlined_call_operand.vmem [shape: bf16[2,8,128], index: 1, kind: input, shape index: {}]
  %s2 = inlined_call_operand.vmem [shape: bf16[128,128], index: 2, kind: input, shape index: {}]
  %s3 = inlined_call_operand.vmem [shape: f32[1,128], index: 3, kind: input, shape index: {}]
  %s4 = inlined_call_operand.vmem [shape: bf16[128,128], index: 4, kind: input, shape index: {}]
  %s5 = inlined_call_operand.vmem [shape: f32[1,128], index: 5, kind: input, shape index: {}]
  %s6 = inlined_call_operand.vmem [shape: bf16[128,128], index: 6, kind: input, shape index: {}]
  %s7 = inlined_call_operand.vmem [shape: f32[1,128], index: 7, kind: input, shape index: {}]
  %s8 = inlined_call_operand.vmem [shape: bf16[128,128], index: 8, kind: input, shape index: {}]
  %s9 = inlined_call_operand.vmem [shape: f32[1,128], index: 9, kind: input, shape index: {}]
  %s10 = inlined_call_operand.vmem [shape: bf16[128,128], index: 10, kind: input, shape index: {}]
  %s11 = inlined_call_operand.vmem [shape: f32[1,128], index: 11, kind: input, shape index: {}]
  %s12 = inlined_call_operand.vmem [shape: f32[2,16,128], index: 12, kind: output, shape index: {}]
  %s13 = sld [smem:[#allocation0]]
  $region89: #{ginfpsst_forward.13} parent=0
    _
  %s15 = ssub.s32 1, %s13
  %s16 = scalar_select 0, %s15, %s13
  loop: start=0, step=1, limit=4
  $region2: #{ginfpsst_forward.13} parent=0 // loop_pre_header
    _
  $region3: #{ginfpsst_forward.13} parent=0 // loop_header
    %s18 = sphi 0, %s22
    %p19 = scmp.ge.s32.totalorder %s18, 4
    %s25 = sphi 0, %s44
    %s26 = sphi 0, %s40
    %s27 = sphi 0, %s36
    %s28 = sphi 0, %s25
    %s29 = sphi 0, %s26
    %s30 = sphi 0, %s27
    %s31 = sphi 0, %s28
    %s32 = sphi 0, %s29
    %s33 = sphi 0, %s30
    %s49 = sphi 0, %s51
    %s52 = sphi 0, %s49
    %s53 = sphi 0, %s52
    %s69 = sphi 0, %s53
    %s77 = sphi 0, %s79
    %s80 = sphi 0, %s77
    %s81 = sphi 0, %s80
    %s97 = sphi 0, %s81
    %s101 = sphi 0, %s101
    %s103 = sphi 0, %s101
    %s104 = sphi 0, %s103
    %s118 = sphi 0, %s104
    %s122 = sphi 0, %s122
    %s124 = sphi 0, %s122
    %s125 = sphi 0, %s124
    %s139 = sphi 0, %s125
    %s143 = sphi 0, %s143
    %s145 = sphi 0, %s143
    %s146 = sphi 0, %s145
    %s160 = sphi 0, %s146
    %s164 = sphi 0, %s164
    %s166 = sphi 0, %s164
    %s167 = sphi 0, %s166
    %s181 = sphi 0, %s167
    %s185 = sphi 0, %s185
    %s187 = sphi 0, %s185
    %s188 = sphi 0, %s187
    %s202 = sphi 0, %s188
    %s206 = sphi 0, %s206
    %s208 = sphi 0, %s206
    %s209 = sphi 0, %s208
    %s223 = sphi 0, %s209
    %s227 = sphi 0, %s227
    %s229 = sphi 0, %s227
    %s230 = sphi 0, %s229
    %s244 = sphi 0, %s230
    %s248 = sphi 0, %s248
    %s250 = sphi 0, %s248
    %s251 = sphi 0, %s250
    %s265 = sphi 0, %s251
    %s269 = sphi 0, %s269
    %s271 = sphi 0, %s269
    %s272 = sphi 0, %s271
    %s286 = sphi 0, %s272
    %s290 = sphi 0, %s290
    %s292 = sphi 0, %s290
    %s293 = sphi 0, %s292
    %s307 = sphi 0, %s293
    %s315 = sphi 0, %s317
    %s318 = sphi 0, %s315
    %s319 = sphi 0, %s318
    %s335 = sphi 0, %s319
  $region4: #{ginfpsst_forward.13} parent=0 // loop_header_branch
    %21 = sbr.rel (%p19) target = $region8
  $region5: #{ginfpsst_forward.13} parent=0 // loop_body
    %s23 = ssub.s32 %s18, 1
    %s24 = ssub.s32 %s18, 2
    %s34 = sadd.s32 1, %s27
    %p35 = scmp.ge.s32.totalorder %s34, 1
    %s36 = scalar_select %p35, 0, %s34
    %s37 = sadd.s32 1, %s26
    %s38 = scalar_select %p35, %s37, %s26
    %p39 = scmp.ge.s32.totalorder %s38, 1
    %s40 = scalar_select %p39, 0, %s38
    %s41 = sadd.s32 1, %s25
    %s42 = scalar_select %p39, %s41, %s25
    %p43 = scmp.ge.s32.totalorder %s42, 2
    %s44 = scalar_select %p43, 0, %s42
    %s45 = ssub.s32 %s25, %s44
    %s46 = ssub.s32 %s26, %s40
    %s47 = sor.u32 %s45, %s46
    %p48 = scmp.eq.s32.totalorder %s47, 0
    %s50 = sadd.s32 %s49, 1
    %s51 = scalar_select %p48, %s49, %s50
    %p54 = pneg %p48
    %p55 = scmp.eq.s32.totalorder %s18, 1
    %p56 = por %p54, %p55
    %p57 = scmp.ne.s32.totalorder %s49, %s52
    %p58 = scmp.eq.s32.totalorder %s18, 0
    %p59 = por %p57, %p58
    %p60 = scmp.ne.s32.totalorder %s49, %s52
    %p61 = scmp.eq.s32.totalorder %s23, 1
    %p62 = por %p60, %p61
    %p63 = scmp.ne.s32.totalorder %s52, %s53
    %p64 = scmp.eq.s32.totalorder %s23, 0
    %p65 = por %p63, %p64
    %p66 = scmp.ne.s32.totalorder %s52, %s53
    %p67 = scmp.eq.s32.totalorder %s24, 1
    %p68 = por %p66, %p67
    %p70 = scmp.ne.s32.totalorder %s53, %s69
    %p71 = scmp.eq.s32.totalorder %s24, 0
    %p72 = por %p70, %p71
    %s73 = ssub.s32 %s25, %s44
    %s74 = ssub.s32 %s27, %s36
    %s75 = sor.u32 %s73, %s74
    %p76 = scmp.eq.s32.totalorder %s75, 0
    %s78 = sadd.s32 %s77, 1
    %s79 = scalar_select %p76, %s77, %s78
    %p82 = pneg %p76
    %p83 = scmp.eq.s32.totalorder %s18, 1
    %p84 = por %p82, %p83
    %p85 = scmp.ne.s32.totalorder %s77, %s80
    %p86 = scmp.eq.s32.totalorder %s18, 0
    %p87 = por %p85, %p86
    %p88 = scmp.ne.s32.totalorder %s77, %s80
    %p89 = scmp.eq.s32.totalorder %s23, 1
    %p90 = por %p88, %p89
    %p91 = scmp.ne.s32.totalorder %s80, %s81
    %p92 = scmp.eq.s32.totalorder %s23, 0
    %p93 = por %p91, %p92
    %p94 = scmp.ne.s32.totalorder %s80, %s81
    %p95 = scmp.eq.s32.totalorder %s24, 1
    %p96 = por %p94, %p95
    %p98 = scmp.ne.s32.totalorder %s81, %s97
    %p99 = scmp.eq.s32.totalorder %s24, 0
    %p100 = por %p98, %p99
    %s102 = sadd.s32 %s101, 1
    %p105 = scmp.eq.s32.totalorder %s18, 1
    %p106 = scmp.ne.s32.totalorder %s101, %s103
    %p107 = scmp.eq.s32.totalorder %s18, 0
    %p108 = por %p106, %p107
    %p109 = scmp.ne.s32.totalorder %s101, %s103
    %p110 = scmp.eq.s32.totalorder %s23, 1
    %p111 = por %p109, %p110
    %p112 = scmp.ne.s32.totalorder %s103, %s104
    %p113 = scmp.eq.s32.totalorder %s23, 0
    %p114 = por %p112, %p113
    %p115 = scmp.ne.s32.totalorder %s103, %s104
    %p116 = scmp.eq.s32.totalorder %s24, 1
    %p117 = por %p115, %p116
    %p119 = scmp.ne.s32.totalorder %s104, %s118
    %p120 = scmp.eq.s32.totalorder %s24, 0
    %p121 = por %p119, %p120
    %s123 = sadd.s32 %s122, 1
    %p126 = scmp.eq.s32.totalorder %s18, 1
    %p127 = scmp.ne.s32.totalorder %s122, %s124
    %p128 = scmp.eq.s32.totalorder %s18, 0
    %p129 = por %p127, %p128
    %p130 = scmp.ne.s32.totalorder %s122, %s124
    %p131 = scmp.eq.s32.totalorder %s23, 1
    %p132 = por %p130, %p131
    %p133 = scmp.ne.s32.totalorder %s124, %s125
    %p134 = scmp.eq.s32.totalorder %s23, 0
    %p135 = por %p133, %p134
    %p136 = scmp.ne.s32.totalorder %s124, %s125
    %p137 = scmp.eq.s32.totalorder %s24, 1
    %p138 = por %p136, %p137
    %p140 = scmp.ne.s32.totalorder %s125, %s139
    %p141 = scmp.eq.s32.totalorder %s24, 0
    %p142 = por %p140, %p141
    %s144 = sadd.s32 %s143, 1
    %p147 = scmp.eq.s32.totalorder %s18, 1
    %p148 = scmp.ne.s32.totalorder %s143, %s145
    %p149 = scmp.eq.s32.totalorder %s18, 0
    %p150 = por %p148, %p149
    %p151 = scmp.ne.s32.totalorder %s143, %s145
    %p152 = scmp.eq.s32.totalorder %s23, 1
    %p153 = por %p151, %p152
    %p154 = scmp.ne.s32.totalorder %s145, %s146
    %p155 = scmp.eq.s32.totalorder %s23, 0
    %p156 = por %p154, %p155
    %p157 = scmp.ne.s32.totalorder %s145, %s146
    %p158 = scmp.eq.s32.totalorder %s24, 1
    %p159 = por %p157, %p158
    %p161 = scmp.ne.s32.totalorder %s146, %s160
    %p162 = scmp.eq.s32.totalorder %s24, 0
    %p163 = por %p161, %p162
    %s165 = sadd.s32 %s164, 1
    %p168 = scmp.eq.s32.totalorder %s18, 1
    %p169 = scmp.ne.s32.totalorder %s164, %s166
    %p170 = scmp.eq.s32.totalorder %s18, 0
    %p171 = por %p169, %p170
    %p172 = scmp.ne.s32.totalorder %s164, %s166
    %p173 = scmp.eq.s32.totalorder %s23, 1
    %p174 = por %p172, %p173
    %p175 = scmp.ne.s32.totalorder %s166, %s167
    %p176 = scmp.eq.s32.totalorder %s23, 0
    %p177 = por %p175, %p176
    %p178 = scmp.ne.s32.totalorder %s166, %s167
    %p179 = scmp.eq.s32.totalorder %s24, 1
    %p180 = por %p178, %p179
    %p182 = scmp.ne.s32.totalorder %s167, %s181
    %p183 = scmp.eq.s32.totalorder %s24, 0
    %p184 = por %p182, %p183
    %s186 = sadd.s32 %s185, 1
    %p189 = scmp.eq.s32.totalorder %s18, 1
    %p190 = scmp.ne.s32.totalorder %s185, %s187
    %p191 = scmp.eq.s32.totalorder %s18, 0
    %p192 = por %p190, %p191
    %p193 = scmp.ne.s32.totalorder %s185, %s187
    %p194 = scmp.eq.s32.totalorder %s23, 1
    %p195 = por %p193, %p194
    %p196 = scmp.ne.s32.totalorder %s187, %s188
    %p197 = scmp.eq.s32.totalorder %s23, 0
    %p198 = por %p196, %p197
    %p199 = scmp.ne.s32.totalorder %s187, %s188
    %p200 = scmp.eq.s32.totalorder %s24, 1
    %p201 = por %p199, %p200
    %p203 = scmp.ne.s32.totalorder %s188, %s202
    %p204 = scmp.eq.s32.totalorder %s24, 0
    %p205 = por %p203, %p204
    %s207 = sadd.s32 %s206, 1
    %p210 = scmp.eq.s32.totalorder %s18, 1
    %p211 = scmp.ne.s32.totalorder %s206, %s208
    %p212 = scmp.eq.s32.totalorder %s18, 0
    %p213 = por %p211, %p212
    %p214 = scmp.ne.s32.totalorder %s206, %s208
    %p215 = scmp.eq.s32.totalorder %s23, 1
    %p216 = por %p214, %p215
    %p217 = scmp.ne.s32.totalorder %s208, %s209
    %p218 = scmp.eq.s32.totalorder %s23, 0
    %p219 = por %p217, %p218
    %p220 = scmp.ne.s32.totalorder %s208, %s209
    %p221 = scmp.eq.s32.totalorder %s24, 1
    %p222 = por %p220, %p221
    %p224 = scmp.ne.s32.totalorder %s209, %s223
    %p225 = scmp.eq.s32.totalorder %s24, 0
    %p226 = por %p224, %p225
    %s228 = sadd.s32 %s227, 1
    %p231 = scmp.eq.s32.totalorder %s18, 1
    %p232 = scmp.ne.s32.totalorder %s227, %s229
    %p233 = scmp.eq.s32.totalorder %s18, 0
    %p234 = por %p232, %p233
    %p235 = scmp.ne.s32.totalorder %s227, %s229
    %p236 = scmp.eq.s32.totalorder %s23, 1
    %p237 = por %p235, %p236
    %p238 = scmp.ne.s32.totalorder %s229, %s230
    %p239 = scmp.eq.s32.totalorder %s23, 0
    %p240 = por %p238, %p239
    %p241 = scmp.ne.s32.totalorder %s229, %s230
    %p242 = scmp.eq.s32.totalorder %s24, 1
    %p243 = por %p241, %p242
    %p245 = scmp.ne.s32.totalorder %s230, %s244
    %p246 = scmp.eq.s32.totalorder %s24, 0
    %p247 = por %p245, %p246
    %s249 = sadd.s32 %s248, 1
    %p252 = scmp.eq.s32.totalorder %s18, 1
    %p253 = scmp.ne.s32.totalorder %s248, %s250
    %p254 = scmp.eq.s32.totalorder %s18, 0
    %p255 = por %p253, %p254
    %p256 = scmp.ne.s32.totalorder %s248, %s250
    %p257 = scmp.eq.s32.totalorder %s23, 1
    %p258 = por %p256, %p257
    %p259 = scmp.ne.s32.totalorder %s250, %s251
    %p260 = scmp.eq.s32.totalorder %s23, 0
    %p261 = por %p259, %p260
    %p262 = scmp.ne.s32.totalorder %s250, %s251
    %p263 = scmp.eq.s32.totalorder %s24, 1
    %p264 = por %p262, %p263
    %p266 = scmp.ne.s32.totalorder %s251, %s265
    %p267 = scmp.eq.s32.totalorder %s24, 0
    %p268 = por %p266, %p267
    %s270 = sadd.s32 %s269, 1
    %p273 = scmp.eq.s32.totalorder %s18, 1
    %p274 = scmp.ne.s32.totalorder %s269, %s271
    %p275 = scmp.eq.s32.totalorder %s18, 0
    %p276 = por %p274, %p275
    %p277 = scmp.ne.s32.totalorder %s269, %s271
    %p278 = scmp.eq.s32.totalorder %s23, 1
    %p279 = por %p277, %p278
    %p280 = scmp.ne.s32.totalorder %s271, %s272
    %p281 = scmp.eq.s32.totalorder %s23, 0
    %p282 = por %p280, %p281
    %p283 = scmp.ne.s32.totalorder %s271, %s272
    %p284 = scmp.eq.s32.totalorder %s24, 1
    %p285 = por %p283, %p284
    %p287 = scmp.ne.s32.totalorder %s272, %s286
    %p288 = scmp.eq.s32.totalorder %s24, 0
    %p289 = por %p287, %p288
    %s291 = sadd.s32 %s290, 1
    %p294 = scmp.eq.s32.totalorder %s18, 1
    %p295 = scmp.ne.s32.totalorder %s290, %s292
    %p296 = scmp.eq.s32.totalorder %s18, 0
    %p297 = por %p295, %p296
    %p298 = scmp.ne.s32.totalorder %s290, %s292
    %p299 = scmp.eq.s32.totalorder %s23, 1
    %p300 = por %p298, %p299
    %p301 = scmp.ne.s32.totalorder %s292, %s293
    %p302 = scmp.eq.s32.totalorder %s23, 0
    %p303 = por %p301, %p302
    %p304 = scmp.ne.s32.totalorder %s292, %s293
    %p305 = scmp.eq.s32.totalorder %s24, 1
    %p306 = por %p304, %p305
    %p308 = scmp.ne.s32.totalorder %s293, %s307
    %p309 = scmp.eq.s32.totalorder %s24, 0
    %p310 = por %p308, %p309
    %s311 = ssub.s32 %s25, %s44
    %s312 = ssub.s32 %s26, %s40
    %s313 = sor.u32 %s311, %s312
    %p314 = scmp.eq.s32.totalorder %s313, 0
    %s316 = sadd.s32 %s315, 1
    %s317 = scalar_select %p314, %s315, %s316
    %p320 = pneg %p314
    %p321 = scmp.eq.s32.totalorder %s18, 1
    %p322 = por %p320, %p321
    %p323 = scmp.ne.s32.totalorder %s315, %s318
    %p324 = scmp.eq.s32.totalorder %s18, 0
    %p325 = por %p323, %p324
    %p326 = scmp.ne.s32.totalorder %s315, %s318
    %p327 = scmp.eq.s32.totalorder %s23, 1
    %p328 = por %p326, %p327
    %p329 = scmp.ne.s32.totalorder %s318, %s319
    %p330 = scmp.eq.s32.totalorder %s23, 0
    %p331 = por %p329, %p330
    %p332 = scmp.ne.s32.totalorder %s318, %s319
    %p333 = scmp.eq.s32.totalorder %s24, 1
    %p334 = por %p332, %p333
    %p336 = scmp.ne.s32.totalorder %s319, %s335
    %p337 = scmp.eq.s32.totalorder %s24, 0
    %p338 = por %p336, %p337
    %p339 = scmp.le.s32.totalorder 1, %s18
    %p340 = scmp.lt.s32.totalorder %s18, 3
    %p341 = pnand %p339, %p340
    %p342 = pneg %p341
    // Predicated region
    $region9: #{ginfpsst_forward.13} parent=5 // pred_check
      _
    $region10: #{ginfpsst_forward.13} parent=5 // pred_check_branch
      %344 = sbr.rel (%p341) target = $region12
    $region11: #{ginfpsst_forward.13} parent=5 // pred_region
      %s345 = ssub.s32 %s18, 1
      // Predicated region
      $region13: #{ginfpsst_forward.13} parent=11 // pred_check
        %p346 = pneg %p114
      $region14: #{ginfpsst_forward.13} parent=11 // pred_check_branch
        %348 = sbr.rel (%p346) target = $region16
      $region15: #{ginfpsst_forward.13} parent=11 // pred_region
        _
      $region16: #{ginfpsst_forward.13} parent=11 // pred_fallthru
        _
      // Predicated region
      $region17: #{ginfpsst_forward.13} parent=11 // pred_check
        %p349 = pneg %p135
      $region18: #{ginfpsst_forward.13} parent=11 // pred_check_branch
        %351 = sbr.rel (%p349) target = $region20
      $region19: #{ginfpsst_forward.13} parent=11 // pred_region
        _
      $region20: #{ginfpsst_forward.13} parent=11 // pred_fallthru
        _
      // Predicated region
      $region21: #{ginfpsst_forward.13} parent=11 // pred_check
        %p352 = pneg %p156
      $region22: #{ginfpsst_forward.13} parent=11 // pred_check_branch
        %354 = sbr.rel (%p352) target = $region24
      $region23: #{ginfpsst_forward.13} parent=11 // pred_region
        _
      $region24: #{ginfpsst_forward.13} parent=11 // pred_fallthru
        _
      // Predicated region
      $region25: #{ginfpsst_forward.13} parent=11 // pred_check
        %p355 = pneg %p177
      $region26: #{ginfpsst_forward.13} parent=11 // pred_check_branch
        %357 = sbr.rel (%p355) target = $region28
      $region27: #{ginfpsst_forward.13} parent=11 // pred_region
        _
      $region28: #{ginfpsst_forward.13} parent=11 // pred_fallthru
        _
      // Predicated region
      $region29: #{ginfpsst_forward.13} parent=11 // pred_check
        %p358 = pneg %p198
      $region30: #{ginfpsst_forward.13} parent=11 // pred_check_branch
        %360 = sbr.rel (%p358) target = $region32
      $region31: #{ginfpsst_forward.13} parent=11 // pred_region
        _
      $region32: #{ginfpsst_forward.13} parent=11 // pred_fallthru
        _
      // Predicated region
      $region33: #{ginfpsst_forward.13} parent=11 // pred_check
        %p361 = pneg %p219
      $region34: #{ginfpsst_forward.13} parent=11 // pred_check_branch
        %363 = sbr.rel (%p361) target = $region36
      $region35: #{ginfpsst_forward.13} parent=11 // pred_region
        _
      $region36: #{ginfpsst_forward.13} parent=11 // pred_fallthru
        _
      // Predicated region
      $region37: #{ginfpsst_forward.13} parent=11 // pred_check
        %p364 = pneg %p240
      $region38: #{ginfpsst_forward.13} parent=11 // pred_check_branch
        %366 = sbr.rel (%p364) target = $region40
      $region39: #{ginfpsst_forward.13} parent=11 // pred_region
        _
      $region40: #{ginfpsst_forward.13} parent=11 // pred_fallthru
        _
      // Predicated region
      $region41: #{ginfpsst_forward.13} parent=11 // pred_check
        %p367 = pneg %p261
      $region42: #{ginfpsst_forward.13} parent=11 // pred_check_branch
        %369 = sbr.rel (%p367) target = $region44
      $region43: #{ginfpsst_forward.13} parent=11 // pred_region
        _
      $region44: #{ginfpsst_forward.13} parent=11 // pred_fallthru
        _
      // Predicated region
      $region45: #{ginfpsst_forward.13} parent=11 // pred_check
        %p370 = pneg %p282
      $region46: #{ginfpsst_forward.13} parent=11 // pred_check_branch
        %372 = sbr.rel (%p370) target = $region48
      $region47: #{ginfpsst_forward.13} parent=11 // pred_region
        _
      $region48: #{ginfpsst_forward.13} parent=11 // pred_fallthru
        _
      // Predicated region
      $region49: #{ginfpsst_forward.13} parent=11 // pred_check
        %p373 = pneg %p303
      $region50: #{ginfpsst_forward.13} parent=11 // pred_check_branch
        %375 = sbr.rel (%p373) target = $region52
      $region51: #{ginfpsst_forward.13} parent=11 // pred_region
        _
      $region52: #{ginfpsst_forward.13} parent=11 // pred_fallthru
        _
    $region12: #{ginfpsst_forward.13} parent=5 // pred_fallthru
      _
    %p376 = scmp.lt.s32.totalorder %s18, 2
    // Predicated region
    $region53: #{ginfpsst_forward.13} parent=5 // pred_check
      %p377 = pneg %p376
    $region54: #{ginfpsst_forward.13} parent=5 // pred_check_branch
      %379 = sbr.rel (%p377) target = $region56
    $region55: #{ginfpsst_forward.13} parent=5 // pred_region
      // Predicated region
      $region57: #{ginfpsst_forward.13} parent=55 // pred_check
        %p380 = pneg %p59
      $region58: #{ginfpsst_forward.13} parent=55 // pred_check_branch
        %382 = sbr.rel (%p380) target = $region60
      $region59: #{ginfpsst_forward.13} parent=55 // pred_region
        %s383 = smul.u32 2, %s26
        %p384 = scmp.lt.s32.totalorder %s25, 1
        %s385 = scalar_select %p384, %s25, 1
        %p386 = scmp.lt.s32.totalorder %s383, 1
        %s387 = scalar_select %p386, %s383, 1
        %s388 = smul.addr %s385, 2
        %s389 = sadd.s32 %s387, %s388
        %s390 = smul.addr %s389, 4
        %s391 = scalar_lea.vmem %s0, %s390
        %s392 = smul.u32 2, %s26
      $region60: #{ginfpsst_forward.13} parent=55 // pred_fallthru
        _
      // Predicated region
      $region61: #{ginfpsst_forward.13} parent=55 // pred_check
        %p393 = pneg %p87
      $region62: #{ginfpsst_forward.13} parent=55 // pred_check_branch
        %395 = sbr.rel (%p393) target = $region64
      $region63: #{ginfpsst_forward.13} parent=55 // pred_region
        %p396 = scmp.lt.s32.totalorder %s25, 1
        %s397 = scalar_select %p396, %s25, 1
        %p398 = scmp.lt.s32.totalorder %s27, 0
        %s399 = scalar_select %p398, %s27, 0
        %s400 = sadd.s32 %s399, %s397
        %s401 = smul.addr %s400, 4
        %s402 = scalar_lea.vmem %s1, %s401
      $region64: #{ginfpsst_forward.13} parent=55 // pred_fallthru
        _
    $region56: #{ginfpsst_forward.13} parent=5 // pred_fallthru
      _
    %p403 = scmp.le.s32.totalorder 1, %s18
    %p404 = scmp.lt.s32.totalorder %s18, 3
    %p405 = pnand %p403, %p404
    %p406 = pneg %p405
    // Predicated region
    $region65: #{ginfpsst_forward.13} parent=5 // pred_check
      _
    $region66: #{ginfpsst_forward.13} parent=5 // pred_check_branch
      %408 = sbr.rel (%p405) target = $region68
    $region67: #{ginfpsst_forward.13} parent=5 // pred_region
      %s409 = ssub.s32 %s18, 1
      %s410 = smul.u32 2, %s29
      %p411 = scmp.lt.s32.totalorder %s28, 1
      %s412 = scalar_select %p411, %s28, 1
      %p413 = scmp.lt.s32.totalorder %s410, 1
      %s414 = scalar_select %p413, %s410, 1
      %s415 = smul.addr %s412, 2
      %s416 = sadd.s32 %s414, %s415
      %s417 = smul.addr %s416, 4
      %s418 = scalar_lea.vmem %s0, %s417
      %p419 = pneg %p65
      %p420 = pneg %p62
      %p421 = scmp.lt.s32.totalorder %s28, 1
      %s422 = scalar_select %p421, %s28, 1
      %p423 = scmp.lt.s32.totalorder %s30, 0
      %s424 = scalar_select %p423, %s30, 0
      %s425 = sadd.s32 %s424, %s422
      %s426 = smul.addr %s425, 4
      %s427 = scalar_lea.vmem %s1, %s426
      %p428 = pneg %p93
      %p429 = pneg %p90
      %p430 = pneg %p114
      %p431 = pneg %p111
      %p432 = pneg %p135
      %p433 = pneg %p132
      %p434 = pneg %p156
      %p435 = pneg %p153
      %p436 = pneg %p177
      %p437 = pneg %p174
      %p438 = pneg %p198
      %p439 = pneg %p195
      %p440 = pneg %p219
      %p441 = pneg %p216
      %p442 = pneg %p240
      %p443 = pneg %p237
      %p444 = pneg %p261
      %p445 = pneg %p258
      %p446 = pneg %p282
      %p447 = pneg %p279
      %p448 = pneg %p303
      %p449 = pneg %p300
      %p450 = pneg %p331
      %p451 = pneg %p328
      %s452 = smul.u32 2, %s29
      %p453 = scmp.lt.s32.totalorder %s28, 1
      %s454 = scalar_select %p453, %s28, 1
      %p455 = scmp.lt.s32.totalorder %s452, 1
      %s456 = scalar_select %p455, %s452, 1
      %s457 = smul.addr %s454, 2
      %s458 = sadd.s32 %s456, %s457
      %s459 = smul.addr %s458, 8
      %s460 = scalar_lea.vmem %s12, %s459
      %s461 = smul.u32 2, %s29
      %p462 = scmp.lt.s32.totalorder %s28, 1
      %s463 = scalar_select %p462, %s28, 1
      %p464 = scmp.lt.s32.totalorder %s461, 1
      %s465 = scalar_select %p464, %s461, 1
      %s466 = smul.addr %s463, 2
      %s467 = sadd.s32 %s465, %s466
      %s468 = smul.addr %s467, 4
      %s469 = scalar_lea.vmem %s0, %s468
      %s470 = smul.u32 2, %s29
      %p471 = scmp.lt.s32.totalorder %s28, 1
      %s472 = scalar_select %p471, %s28, 1
      %p473 = scmp.lt.s32.totalorder %s30, 0
      %s474 = scalar_select %p473, %s30, 0
      %s475 = sadd.s32 %s474, %s472
      %s476 = smul.addr %s475, 4
      %s477 = scalar_lea.vmem %s1, %s476
      %s478 = smul.u32 2, %s29
      %p479 = scmp.lt.s32.totalorder %s28, 1
      %s480 = scalar_select %p479, %s28, 1
      %p481 = scmp.lt.s32.totalorder %s478, 1
      %s482 = scalar_select %p481, %s478, 1
      %s483 = smul.addr %s480, 2
      %s484 = sadd.s32 %s482, %s483
      %s485 = smul.addr %s484, 8
      %s486 = scalar_lea.vmem %s12, %s485
      %s487 = smul.u32 2, %s29
      %p489 = scmp.eq.s32.totalorder %s30, 0
      // Predicated region
      $region69: #{ginfpsst_forward.13} parent=67 // pred_check
        %p490 = pneg %p489
      $region70: #{ginfpsst_forward.13} parent=67 // pred_check_branch
        %492 = sbr.rel (%p490) target = $region72
      $region71: #{ginfpsst_forward.13} parent=67 // pred_region
        %v493 = vld [vmem:[%s469] sm:$0xf]
        %v494 = vld [vmem:[%s469 + $0x4] sm:$0xf]
        %v495 = vld [vmem:[%s2] sm:$0xf]
        %v496 = vld [vmem:[%s2 + $0x4] sm:$0xf]
        %v497 = vld [vmem:[%s2 + $0x8] sm:$0xf]
        %v498 = vld [vmem:[%s2 + $0xc] sm:$0xf]
        %v499 = vld [vmem:[%s2 + $0x10] sm:$0xf]
        %v500 = vld [vmem:[%s2 + $0x14] sm:$0xf]
        %v501 = vld [vmem:[%s2 + $0x18] sm:$0xf]
        %v502 = vld [vmem:[%s2 + $0x1c] sm:$0xf]
        %v503 = vld [vmem:[%s2 + $0x20] sm:$0xf]
        %v504 = vld [vmem:[%s2 + $0x24] sm:$0xf]
        %v505 = vld [vmem:[%s2 + $0x28] sm:$0xf]
        %v506 = vld [vmem:[%s2 + $0x2c] sm:$0xf]
        %v507 = vld [vmem:[%s2 + $0x30] sm:$0xf]
        %v508 = vld [vmem:[%s2 + $0x34] sm:$0xf]
        %v509 = vld [vmem:[%s2 + $0x38] sm:$0xf]
        %v510 = vld [vmem:[%s2 + $0x3c] sm:$0xf]
        %v511 = vld [vmem:[%s3] sm:$0x1]
        %v513 = vlaneseq
        %v514 = vshrl.u32 %v513, 7
        %v515 = vsub.s32 0, %v514
        %v516 = vrot.slane %v511, %v515
        %v520 = vunpack.c.l.b16 %v493
        %v521 = vunpack.c.l.b16 %v494
        %v522 = vpack.c.b16 %v521, %v520
        %v540 = vunpack.c.l.b16 %v495
        %v541 = vunpack.c.l.b16 %v496
        %v542 = vunpack.c.l.b16 %v497
        %v543 = vunpack.c.l.b16 %v498
        %v544 = vunpack.c.l.b16 %v499
        %v545 = vunpack.c.l.b16 %v500
        %v546 = vunpack.c.l.b16 %v501
        %v547 = vunpack.c.l.b16 %v502
        %v548 = vunpack.c.l.b16 %v503
        %v549 = vunpack.c.l.b16 %v504
        %v550 = vunpack.c.l.b16 %v505
        %v551 = vunpack.c.l.b16 %v506
        %v552 = vunpack.c.l.b16 %v507
        %v553 = vunpack.c.l.b16 %v508
        %v554 = vunpack.c.l.b16 %v509
        %v555 = vunpack.c.l.b16 %v510
        %v556 = vpack.c.b16 %v541, %v540
        %v557 = vpack.c.b16 %v543, %v542
        %v558 = vpack.c.b16 %v545, %v544
        %v559 = vpack.c.b16 %v547, %v546
        %v560 = vpack.c.b16 %v549, %v548
        %v561 = vpack.c.b16 %v551, %v550
        %v562 = vpack.c.b16 %v553, %v552
        %v563 = vpack.c.b16 %v555, %v554
        %572 = vmatprep.subr.bf16.mxu0 0
        %573 = vmatpush1.bf16.msra.mxu0 %v556
        %574 = vmatprep.subr.bf16.mxu0 0
        %575 = vmatpush1.bf16.msra.mxu0 %v557
        %576 = vmatprep.subr.bf16.mxu0 0
        %577 = vmatpush1.bf16.msra.mxu0 %v558
        %578 = vmatprep.subr.bf16.mxu0 0
        %579 = vmatpush1.bf16.msra.mxu0 %v559
        %580 = vmatprep.subr.bf16.mxu0 0
        %581 = vmatpush1.bf16.msra.mxu0 %v560
        %582 = vmatprep.subr.bf16.mxu0 0
        %583 = vmatpush1.bf16.msra.mxu0 %v561
        %584 = vmatprep.subr.bf16.mxu0 0
        %585 = vmatpush1.bf16.msra.mxu0 %v562
        %586 = vmatprep.subr.bf16.mxu0 0
        %587 = vmatpush1.bf16.msra.mxu0 %v563
        %588 = vmatprep.subr.bf16.mxu0 0
        %589 = vmatpush1.bf16.msra.mxu0 0
        %590 = vmatprep.subr.bf16.mxu0 0
        %591 = vmatpush1.bf16.msra.mxu0 0
        %592 = vmatprep.subr.bf16.mxu0 0
        %593 = vmatpush1.bf16.msra.mxu0 0
        %594 = vmatprep.subr.bf16.mxu0 0
        %595 = vmatpush1.bf16.msra.mxu0 0
        %596 = vmatprep.subr.bf16.mxu0 0
        %597 = vmatpush1.bf16.msra.mxu0 0
        %598 = vmatprep.subr.bf16.mxu0 0
        %599 = vmatpush1.bf16.msra.mxu0 0
        %600 = vmatprep.subr.bf16.mxu0 0
        %601 = vmatpush1.bf16.msra.mxu0 0
        %602 = vmatprep.subr.bf16.mxu0 0
        %603 = vmatpush1.bf16.msra.mxu0 0
        %604 = vmatprep.mubr.bf16.mxu0 0
        %605 = vmatmul.mubr.bf16.gmra.mrb[0].mxu0 %v522
        %v606 = vpop.f32.mrb[0].mxu0
        %v607 = vadd.f32 %v516, %v606
        %v608 = vpop.f32.mrb[0].mxu0
        %v609 = vpop.f32.mrb[0].mxu0
        %v610 = vadd.f32 %v516, %v609
        %v611 = vpop.f32.mrb[0].mxu0
        %612 = vdwg.mxu0
        %613 = vst [vmem:[#allocation2] sm:$0xff] %v607
        %614 = vst [vmem:[#allocation2 + $0x8] sm:$0xff] %v610
        %v615 = vpack.c.bf16 %v610, %v607
        %vm616 = vcmask 64512
        %617 = vst.msk [vmem:[#allocation3] sm:$0xff] %vm616, %v615
        %619 = vrot.lane.b32.xlu0 %v615, 120
        %v620 = vpop.permute.xlu0 %619
        %s622 = scalar_lea.vmem [#allocation3], 8
        %623 = vst.msk [vmem:[%s622] sm:$0xff] %vm616, %v620
        %624 = vrot.lane.b32.xlu0 %v615, 112
        %v625 = vpop.permute.xlu0 %624
        %s627 = scalar_lea.vmem [#allocation3], 16
        %628 = vst.msk [vmem:[%s627] sm:$0xff] %vm616, %v625
        %629 = vrot.lane.b32.xlu0 %v615, 104
        %v630 = vpop.permute.xlu0 %629
        %s632 = scalar_lea.vmem [#allocation3], 24
        %633 = vst.msk [vmem:[%s632] sm:$0xff] %vm616, %v630
        %vm634 = vcmask 7168
        %635 = vst.msk [vmem:[#allocation4] sm:$0xff] %vm634, -inf
        %636 = vst.msk [vmem:[#allocation4 + $0x8] sm:$0xff] %vm634, -inf
        %637 = vst.msk [vmem:[#allocation4 + $0x10] sm:$0xff] %vm634, -inf
        %638 = vst.msk [vmem:[#allocation4 + $0x18] sm:$0xff] %vm634, -inf
        %639 = vst.msk [vmem:[#allocation4 + $0x20] sm:$0xff] %vm634, -inf
        %640 = vst.msk [vmem:[#allocation4 + $0x28] sm:$0xff] %vm634, -inf
        %641 = vst.msk [vmem:[#allocation4 + $0x30] sm:$0xff] %vm634, -inf
        %642 = vst.msk [vmem:[#allocation4 + $0x38] sm:$0xff] %vm634, -inf
        %643 = vst.msk [vmem:[#allocation5] sm:$0xff] %vm634, 0.0
        %644 = vst.msk [vmem:[#allocation5 + $0x8] sm:$0xff] %vm634, 0.0
        %645 = vst.msk [vmem:[#allocation5 + $0x10] sm:$0xff] %vm634, 0.0
        %646 = vst.msk [vmem:[#allocation5 + $0x18] sm:$0xff] %vm634, 0.0
        %647 = vst.msk [vmem:[#allocation5 + $0x20] sm:$0xff] %vm634, 0.0
        %648 = vst.msk [vmem:[#allocation5 + $0x28] sm:$0xff] %vm634, 0.0
        %649 = vst.msk [vmem:[#allocation5 + $0x30] sm:$0xff] %vm634, 0.0
        %650 = vst.msk [vmem:[#allocation5 + $0x38] sm:$0xff] %vm634, 0.0
        %651 = vst.msk [vmem:[#allocation6] sm:$0xff] %vm616, 0.0
        %652 = vst.msk [vmem:[#allocation6 + $0x8] sm:$0xff] %vm616, 0.0
        %653 = vst.msk [vmem:[#allocation6 + $0x10] sm:$0xff] %vm616, 0.0
        %654 = vst.msk [vmem:[#allocation6 + $0x18] sm:$0xff] %vm616, 0.0
        %655 = vst.msk [vmem:[#allocation6 + $0x20] sm:$0xff] %vm616, 0.0
        %656 = vst.msk [vmem:[#allocation6 + $0x28] sm:$0xff] %vm616, 0.0
        %657 = vst.msk [vmem:[#allocation6 + $0x30] sm:$0xff] %vm616, 0.0
        %658 = vst.msk [vmem:[#allocation6 + $0x38] sm:$0xff] %vm616, 0.0
      $region72: #{ginfpsst_forward.13} parent=67 // pred_fallthru
        _
      %v659 = vld [vmem:[%s477] sm:$0xf]
      %v660 = vld [vmem:[%s4] sm:$0xf]
      %v661 = vld [vmem:[%s4 + $0x4] sm:$0xf]
      %v662 = vld [vmem:[%s4 + $0x8] sm:$0xf]
      %v663 = vld [vmem:[%s4 + $0xc] sm:$0xf]
      %v664 = vld [vmem:[%s4 + $0x10] sm:$0xf]
      %v665 = vld [vmem:[%s4 + $0x14] sm:$0xf]
      %v666 = vld [vmem:[%s4 + $0x18] sm:$0xf]
      %v667 = vld [vmem:[%s4 + $0x1c] sm:$0xf]
      %v668 = vld [vmem:[%s4 + $0x20] sm:$0xf]
      %v669 = vld [vmem:[%s4 + $0x24] sm:$0xf]
      %v670 = vld [vmem:[%s4 + $0x28] sm:$0xf]
      %v671 = vld [vmem:[%s4 + $0x2c] sm:$0xf]
      %v672 = vld [vmem:[%s4 + $0x30] sm:$0xf]
      %v673 = vld [vmem:[%s4 + $0x34] sm:$0xf]
      %v674 = vld [vmem:[%s4 + $0x38] sm:$0xf]
      %v675 = vld [vmem:[%s4 + $0x3c] sm:$0xf]
      %v676 = vld [vmem:[%s5] sm:$0x1]
      %v678 = vlaneseq
      %v679 = vshrl.u32 %v678, 7
      %v680 = vsub.s32 0, %v679
      %v681 = vrot.slane %v676, %v680
      %v699 = vunpack.c.l.b16 %v660
      %v700 = vunpack.c.l.b16 %v661
      %v701 = vunpack.c.l.b16 %v662
      %v702 = vunpack.c.l.b16 %v663
      %v703 = vunpack.c.l.b16 %v664
      %v704 = vunpack.c.l.b16 %v665
      %v705 = vunpack.c.l.b16 %v666
      %v706 = vunpack.c.l.b16 %v667
      %v707 = vunpack.c.l.b16 %v668
      %v708 = vunpack.c.l.b16 %v669
      %v709 = vunpack.c.l.b16 %v670
      %v710 = vunpack.c.l.b16 %v671
      %v711 = vunpack.c.l.b16 %v672
      %v712 = vunpack.c.l.b16 %v673
      %v713 = vunpack.c.l.b16 %v674
      %v714 = vunpack.c.l.b16 %v675
      %v715 = vpack.c.b16 %v700, %v699
      %v716 = vpack.c.b16 %v702, %v701
      %v717 = vpack.c.b16 %v704, %v703
      %v718 = vpack.c.b16 %v706, %v705
      %v719 = vpack.c.b16 %v708, %v707
      %v720 = vpack.c.b16 %v710, %v709
      %v721 = vpack.c.b16 %v712, %v711
      %v722 = vpack.c.b16 %v714, %v713
      %731 = vmatprep.subr.bf16.mxu0 0
      %732 = vmatpush1.bf16.msra.mxu0 %v715
      %733 = vmatprep.subr.bf16.mxu0 0
      %734 = vmatpush1.bf16.msra.mxu0 %v716
      %735 = vmatprep.subr.bf16.mxu0 0
      %736 = vmatpush1.bf16.msra.mxu0 %v717
      %737 = vmatprep.subr.bf16.mxu0 0
      %738 = vmatpush1.bf16.msra.mxu0 %v718
      %739 = vmatprep.subr.bf16.mxu0 0
      %740 = vmatpush1.bf16.msra.mxu0 %v719
      %741 = vmatprep.subr.bf16.mxu0 0
      %742 = vmatpush1.bf16.msra.mxu0 %v720
      %743 = vmatprep.subr.bf16.mxu0 0
      %744 = vmatpush1.bf16.msra.mxu0 %v721
      %745 = vmatprep.subr.bf16.mxu0 0
      %746 = vmatpush1.bf16.msra.mxu0 %v722
      %747 = vmatprep.subr.bf16.mxu0 0
      %748 = vmatpush1.bf16.msra.mxu0 0
      %749 = vmatprep.subr.bf16.mxu0 0
      %750 = vmatpush1.bf16.msra.mxu0 0
      %751 = vmatprep.subr.bf16.mxu0 0
      %752 = vmatpush1.bf16.msra.mxu0 0
      %753 = vmatprep.subr.bf16.mxu0 0
      %754 = vmatpush1.bf16.msra.mxu0 0
      %755 = vmatprep.subr.bf16.mxu0 0
      %756 = vmatpush1.bf16.msra.mxu0 0
      %757 = vmatprep.subr.bf16.mxu0 0
      %758 = vmatpush1.bf16.msra.mxu0 0
      %759 = vmatprep.subr.bf16.mxu0 0
      %760 = vmatpush1.bf16.msra.mxu0 0
      %761 = vmatprep.subr.bf16.mxu0 0
      %762 = vmatpush1.bf16.msra.mxu0 0
      %763 = vmatprep.mubr.bf16.mxu0 0
      %764 = vmatmul.mubr.bf16.gmra.mrb[0].mxu0 %v659
      %v765 = vpop.f32.mrb[0].mxu0
      %v766 = vadd.f32 %v681, %v765
      %v767 = vpop.f32.mrb[0].mxu0
      %v768 = vpop.f32.mrb[0].mxu0
      %v769 = vpop.f32.mrb[0].mxu0
      %770 = vdwg.mxu0
      %v771 = vld [vmem:[%s6] sm:$0xf]
      %v772 = vld [vmem:[%s6 + $0x4] sm:$0xf]
      %v773 = vld [vmem:[%s6 + $0x8] sm:$0xf]
      %v774 = vld [vmem:[%s6 + $0xc] sm:$0xf]
      %v775 = vld [vmem:[%s6 + $0x10] sm:$0xf]
      %v776 = vld [vmem:[%s6 + $0x14] sm:$0xf]
      %v777 = vld [vmem:[%s6 + $0x18] sm:$0xf]
      %v778 = vld [vmem:[%s6 + $0x1c] sm:$0xf]
      %v779 = vld [vmem:[%s6 + $0x20] sm:$0xf]
      %v780 = vld [vmem:[%s6 + $0x24] sm:$0xf]
      %v781 = vld [vmem:[%s6 + $0x28] sm:$0xf]
      %v782 = vld [vmem:[%s6 + $0x2c] sm:$0xf]
      %v783 = vld [vmem:[%s6 + $0x30] sm:$0xf]
      %v784 = vld [vmem:[%s6 + $0x34] sm:$0xf]
      %v785 = vld [vmem:[%s6 + $0x38] sm:$0xf]
      %v786 = vld [vmem:[%s6 + $0x3c] sm:$0xf]
      %v787 = vld [vmem:[%s7] sm:$0x1]
      %v789 = vlaneseq
      %v790 = vshrl.u32 %v789, 7
      %v791 = vsub.s32 0, %v790
      %v792 = vrot.slane %v787, %v791
      %v810 = vunpack.c.l.b16 %v771
      %v811 = vunpack.c.l.b16 %v772
      %v812 = vunpack.c.l.b16 %v773
      %v813 = vunpack.c.l.b16 %v774
      %v814 = vunpack.c.l.b16 %v775
      %v815 = vunpack.c.l.b16 %v776
      %v816 = vunpack.c.l.b16 %v777
      %v817 = vunpack.c.l.b16 %v778
      %v818 = vunpack.c.l.b16 %v779
      %v819 = vunpack.c.l.b16 %v780
      %v820 = vunpack.c.l.b16 %v781
      %v821 = vunpack.c.l.b16 %v782
      %v822 = vunpack.c.l.b16 %v783
      %v823 = vunpack.c.l.b16 %v784
      %v824 = vunpack.c.l.b16 %v785
      %v825 = vunpack.c.l.b16 %v786
      %v826 = vpack.c.b16 %v811, %v810
      %v827 = vpack.c.b16 %v813, %v812
      %v828 = vpack.c.b16 %v815, %v814
      %v829 = vpack.c.b16 %v817, %v816
      %v830 = vpack.c.b16 %v819, %v818
      %v831 = vpack.c.b16 %v821, %v820
      %v832 = vpack.c.b16 %v823, %v822
      %v833 = vpack.c.b16 %v825, %v824
      %842 = vmatprep.subr.bf16.mxu0 0
      %843 = vmatpush1.bf16.msra.mxu0 %v826
      %844 = vmatprep.subr.bf16.mxu0 0
      %845 = vmatpush1.bf16.msra.mxu0 %v827
      %846 = vmatprep.subr.bf16.mxu0 0
      %847 = vmatpush1.bf16.msra.mxu0 %v828
      %848 = vmatprep.subr.bf16.mxu0 0
      %849 = vmatpush1.bf16.msra.mxu0 %v829
      %850 = vmatprep.subr.bf16.mxu0 0
      %851 = vmatpush1.bf16.msra.mxu0 %v830
      %852 = vmatprep.subr.bf16.mxu0 0
      %853 = vmatpush1.bf16.msra.mxu0 %v831
      %854 = vmatprep.subr.bf16.mxu0 0
      %855 = vmatpush1.bf16.msra.mxu0 %v832
      %856 = vmatprep.subr.bf16.mxu0 0
      %857 = vmatpush1.bf16.msra.mxu0 %v833
      %858 = vmatprep.subr.bf16.mxu0 0
      %859 = vmatpush1.bf16.msra.mxu0 0
      %860 = vmatprep.subr.bf16.mxu0 0
      %861 = vmatpush1.bf16.msra.mxu0 0
      %862 = vmatprep.subr.bf16.mxu0 0
      %863 = vmatpush1.bf16.msra.mxu0 0
      %864 = vmatprep.subr.bf16.mxu0 0
      %865 = vmatpush1.bf16.msra.mxu0 0
      %866 = vmatprep.subr.bf16.mxu0 0
      %867 = vmatpush1.bf16.msra.mxu0 0
      %868 = vmatprep.subr.bf16.mxu0 0
      %869 = vmatpush1.bf16.msra.mxu0 0
      %870 = vmatprep.subr.bf16.mxu0 0
      %871 = vmatpush1.bf16.msra.mxu0 0
      %872 = vmatprep.subr.bf16.mxu0 0
      %873 = vmatpush1.bf16.msra.mxu0 0
      %874 = vmatprep.mubr.bf16.mxu0 0
      %875 = vmatmul.mubr.bf16.gmra.mrb[0].mxu0 %v659
      %v876 = vpop.f32.mrb[0].mxu0
      %v877 = vadd.f32 %v792, %v876
      %v878 = vpop.f32.mrb[0].mxu0
      %v879 = vpop.f32.mrb[0].mxu0
      %v880 = vpop.f32.mrb[0].mxu0
      %881 = vdwg.mxu0
      %883 = vrot.lane.b32.xlu0 %v766, 120
      %v884 = vpop.permute.xlu0 %883
      %886 = vrot.lane.b32.xlu0 %v766, 112
      %v887 = vpop.permute.xlu0 %886
      %889 = vrot.lane.b32.xlu0 %v766, 104
      %v890 = vpop.permute.xlu0 %889
      %v892 = vpack.c.bf16 %v766, %v766
      %v893 = vpack.c.bf16 %v884, %v884
      %v894 = vpack.c.bf16 %v887, %v887
      %v895 = vpack.c.bf16 %v890, %v890
      %897 = vrot.lane.b32.xlu0 %v877, 120
      %v898 = vpop.permute.xlu0 %897
      %900 = vrot.lane.b32.xlu0 %v877, 112
      %v901 = vpop.permute.xlu0 %900
      %903 = vrot.lane.b32.xlu0 %v877, 104
      %v904 = vpop.permute.xlu0 %903
      %v906 = vpack.c.bf16 %v877, %v877
      %v907 = vpack.c.bf16 %v898, %v898
      %v908 = vpack.c.bf16 %v901, %v901
      %v909 = vpack.c.bf16 %v904, %v904
      %v910 = vld [vmem:[#allocation3] sm:$0xff]
      %v911 = vld [vmem:[#allocation3 + $0x8] sm:$0xff]
      %v912 = vld [vmem:[#allocation3 + $0x10] sm:$0xff]
      %v913 = vld [vmem:[#allocation3 + $0x18] sm:$0xff]
      %vm914 = vcmask 64512
      %v916 = vsel %vm914, %v910, 0
      %v919 = vsel %vm914, %v892, 0
      %921 = vmatprep.subr.bf16.mxu0 0
      %922 = vmatpush1.bf16.xpose.msra.mxu0 %v919
      %923 = vmatprep.subr.bf16.mxu0 0
      %924 = vmatpush1.bf16.xpose.msra.mxu0 0
      %925 = vmatprep.subr.bf16.mxu0 0
      %926 = vmatpush1.bf16.xpose.msra.mxu0 0
      %927 = vmatprep.subr.bf16.mxu0 0
      %928 = vmatpush1.bf16.xpose.msra.mxu0 0
      %929 = vmatprep.subr.bf16.mxu0 0
      %930 = vmatpush1.bf16.xpose.msra.mxu0 0
      %931 = vmatprep.subr.bf16.mxu0 0
      %932 = vmatpush1.bf16.xpose.msra.mxu0 0
      %933 = vmatprep.subr.bf16.mxu0 0
      %934 = vmatpush1.bf16.xpose.msra.mxu0 0
      %935 = vmatprep.subr.bf16.mxu0 0
      %936 = vmatpush1.bf16.xpose.msra.mxu0 0
      %937 = vmatprep.subr.bf16.mxu0 0
      %938 = vmatpush1.bf16.xpose.msra.mxu0 0
      %939 = vmatprep.subr.bf16.mxu0 0
      %940 = vmatpush1.bf16.xpose.msra.mxu0 0
      %941 = vmatprep.subr.bf16.mxu0 0
      %942 = vmatpush1.bf16.xpose.msra.mxu0 0
      %943 = vmatprep.subr.bf16.mxu0 0
      %944 = vmatpush1.bf16.xpose.msra.mxu0 0
      %945 = vmatprep.subr.bf16.mxu0 0
      %946 = vmatpush1.bf16.xpose.msra.mxu0 0
      %947 = vmatprep.subr.bf16.mxu0 0
      %948 = vmatpush1.bf16.xpose.msra.mxu0 0
      %949 = vmatprep.subr.bf16.mxu0 0
      %950 = vmatpush1.bf16.xpose.msra.mxu0 0
      %951 = vmatprep.subr.bf16.mxu0 0
      %952 = vmatpush1.bf16.xpose.msra.mxu0 0
      %953 = vmatprep.mubr.bf16.mxu0 0
      %954 = vmatmul.mubr.bf16.gmra.mrb[0].mxu0 %v916
      %v955 = vpop.f32.mrb[0].mxu0
      %v956 = vadd.f32 0.0, %v955
      %v957 = vpop.f32.mrb[0].mxu0
      %v958 = vpop.f32.mrb[0].mxu0
      %v959 = vadd.f32 0.0, %v958
      %v960 = vpop.f32.mrb[0].mxu0
      %961 = vdwg.mxu0
      %v963 = vsel %vm914, %v911, 0
      %v966 = vsel %vm914, %v893, 0
      %968 = vmatprep.subr.bf16.mxu0 0
      %969 = vmatpush1.bf16.xpose.msra.mxu0 %v966
      %970 = vmatprep.subr.bf16.mxu0 0
      %971 = vmatpush1.bf16.xpose.msra.mxu0 0
      %972 = vmatprep.subr.bf16.mxu0 0
      %973 = vmatpush1.bf16.xpose.msra.mxu0 0
      %974 = vmatprep.subr.bf16.mxu0 0
      %975 = vmatpush1.bf16.xpose.msra.mxu0 0
      %976 = vmatprep.subr.bf16.mxu0 0
      %977 = vmatpush1.bf16.xpose.msra.mxu0 0
      %978 = vmatprep.subr.bf16.mxu0 0
      %979 = vmatpush1.bf16.xpose.msra.mxu0 0
      %980 = vmatprep.subr.bf16.mxu0 0
      %981 = vmatpush1.bf16.xpose.msra.mxu0 0
      %982 = vmatprep.subr.bf16.mxu0 0
      %983 = vmatpush1.bf16.xpose.msra.mxu0 0
      %984 = vmatprep.subr.bf16.mxu0 0
      %985 = vmatpush1.bf16.xpose.msra.mxu0 0
      %986 = vmatprep.subr.bf16.mxu0 0
      %987 = vmatpush1.bf16.xpose.msra.mxu0 0
      %988 = vmatprep.subr.bf16.mxu0 0
      %989 = vmatpush1.bf16.xpose.msra.mxu0 0
      %990 = vmatprep.subr.bf16.mxu0 0
      %991 = vmatpush1.bf16.xpose.msra.mxu0 0
      %992 = vmatprep.subr.bf16.mxu0 0
      %993 = vmatpush1.bf16.xpose.msra.mxu0 0
      %994 = vmatprep.subr.bf16.mxu0 0
      %995 = vmatpush1.bf16.xpose.msra.mxu0 0
      %996 = vmatprep.subr.bf16.mxu0 0
      %997 = vmatpush1.bf16.xpose.msra.mxu0 0
      %998 = vmatprep.subr.bf16.mxu0 0
      %999 = vmatpush1.bf16.xpose.msra.mxu0 0
      %1000 = vmatprep.mubr.bf16.mxu0 0
      %1001 = vmatmul.mubr.bf16.gmra.mrb[0].mxu0 %v963
      %v1002 = vpop.f32.mrb[0].mxu0
      %v1003 = vadd.f32 0.0, %v1002
      %v1004 = vpop.f32.mrb[0].mxu0
      %v1005 = vpop.f32.mrb[0].mxu0
      %v1006 = vadd.f32 0.0, %v1005
      %v1007 = vpop.f32.mrb[0].mxu0
      %1008 = vdwg.mxu0
      %v1010 = vsel %vm914, %v912, 0
      %v1013 = vsel %vm914, %v894, 0
      %1015 = vmatprep.subr.bf16.mxu0 0
      %1016 = vmatpush1.bf16.xpose.msra.mxu0 %v1013
      %1017 = vmatprep.subr.bf16.mxu0 0
      %1018 = vmatpush1.bf16.xpose.msra.mxu0 0
      %1019 = vmatprep.subr.bf16.mxu0 0
      %1020 = vmatpush1.bf16.xpose.msra.mxu0 0
      %1021 = vmatprep.subr.bf16.mxu0 0
      %1022 = vmatpush1.bf16.xpose.msra.mxu0 0
      %1023 = vmatprep.subr.bf16.mxu0 0
      %1024 = vmatpush1.bf16.xpose.msra.mxu0 0
      %1025 = vmatprep.subr.bf16.mxu0 0
      %1026 = vmatpush1.bf16.xpose.msra.mxu0 0
      %1027 = vmatprep.subr.bf16.mxu0 0
      %1028 = vmatpush1.bf16.xpose.msra.mxu0 0
      %1029 = vmatprep.subr.bf16.mxu0 0
      %1030 = vmatpush1.bf16.xpose.msra.mxu0 0
      %1031 = vmatprep.subr.bf16.mxu0 0
      %1032 = vmatpush1.bf16.xpose.msra.mxu0 0
      %1033 = vmatprep.subr.bf16.mxu0 0
      %1034 = vmatpush1.bf16.xpose.msra.mxu0 0
      %1035 = vmatprep.subr.bf16.mxu0 0
      %1036 = vmatpush1.bf16.xpose.msra.mxu0 0
      %1037 = vmatprep.subr.bf16.mxu0 0
      %1038 = vmatpush1.bf16.xpose.msra.mxu0 0
      %1039 = vmatprep.subr.bf16.mxu0 0
      %1040 = vmatpush1.bf16.xpose.msra.mxu0 0
      %1041 = vmatprep.subr.bf16.mxu0 0
      %1042 = vmatpush1.bf16.xpose.msra.mxu0 0
      %1043 = vmatprep.subr.bf16.mxu0 0
      %1044 = vmatpush1.bf16.xpose.msra.mxu0 0
      %1045 = vmatprep.subr.bf16.mxu0 0
      %1046 = vmatpush1.bf16.xpose.msra.mxu0 0
      %1047 = vmatprep.mubr.bf16.mxu0 0
      %1048 = vmatmul.mubr.bf16.gmra.mrb[0].mxu0 %v1010
      %v1049 = vpop.f32.mrb[0].mxu0
      %v1050 = vadd.f32 0.0, %v1049
      %v1051 = vpop.f32.mrb[0].mxu0
      %v1052 = vpop.f32.mrb[0].mxu0
      %v1053 = vadd.f32 0.0, %v1052
      %v1054 = vpop.f32.mrb[0].mxu0
      %1055 = vdwg.mxu0
      %v1057 = vsel %vm914, %v913, 0
      %v1060 = vsel %vm914, %v895, 0
      %1062 = vmatprep.subr.bf16.mxu0 0
      %1063 = vmatpush1.bf16.xpose.msra.mxu0 %v1060
      %1064 = vmatprep.subr.bf16.mxu0 0
      %1065 = vmatpush1.bf16.xpose.msra.mxu0 0
      %1066 = vmatprep.subr.bf16.mxu0 0
      %1067 = vmatpush1.bf16.xpose.msra.mxu0 0
      %1068 = vmatprep.subr.bf16.mxu0 0
      %1069 = vmatpush1.bf16.xpose.msra.mxu0 0
      %1070 = vmatprep.subr.bf16.mxu0 0
      %1071 = vmatpush1.bf16.xpose.msra.mxu0 0
      %1072 = vmatprep.subr.bf16.mxu0 0
      %1073 = vmatpush1.bf16.xpose.msra.mxu0 0
      %1074 = vmatprep.subr.bf16.mxu0 0
      %1075 = vmatpush1.bf16.xpose.msra.mxu0 0
      %1076 = vmatprep.subr.bf16.mxu0 0
      %1077 = vmatpush1.bf16.xpose.msra.mxu0 0
      %1078 = vmatprep.subr.bf16.mxu0 0
      %1079 = vmatpush1.bf16.xpose.msra.mxu0 0
      %1080 = vmatprep.subr.bf16.mxu0 0
      %1081 = vmatpush1.bf16.xpose.msra.mxu0 0
      %1082 = vmatprep.subr.bf16.mxu0 0
      %1083 = vmatpush1.bf16.xpose.msra.mxu0 0
      %1084 = vmatprep.subr.bf16.mxu0 0
      %1085 = vmatpush1.bf16.xpose.msra.mxu0 0
      %1086 = vmatprep.subr.bf16.mxu0 0
      %1087 = vmatpush1.bf16.xpose.msra.mxu0 0
      %1088 = vmatprep.subr.bf16.mxu0 0
      %1089 = vmatpush1.bf16.xpose.msra.mxu0 0
      %1090 = vmatprep.subr.bf16.mxu0 0
      %1091 = vmatpush1.bf16.xpose.msra.mxu0 0
      %1092 = vmatprep.subr.bf16.mxu0 0
      %1093 = vmatpush1.bf16.xpose.msra.mxu0 0
      %1094 = vmatprep.mubr.bf16.mxu0 0
      %1095 = vmatmul.mubr.bf16.gmra.mrb[0].mxu0 %v1057
      %v1096 = vpop.f32.mrb[0].mxu0
      %v1097 = vadd.f32 0.0, %v1096
      %v1098 = vpop.f32.mrb[0].mxu0
      %v1099 = vpop.f32.mrb[0].mxu0
      %v1100 = vadd.f32 0.0, %v1099
      %v1101 = vpop.f32.mrb[0].mxu0
      %1102 = vdwg.mxu0
      %v1103 = vld [vmem:[#allocation4] sm:$0xff]
      %v1104 = vld [vmem:[#allocation4 + $0x8] sm:$0xff]
      %v1105 = vld [vmem:[#allocation4 + $0x10] sm:$0xff]
      %v1106 = vld [vmem:[#allocation4 + $0x18] sm:$0xff]
      %v1107 = vld [vmem:[#allocation4 + $0x20] sm:$0xff]
      %v1108 = vld [vmem:[#allocation4 + $0x28] sm:$0xff]
      %v1109 = vld [vmem:[#allocation4 + $0x30] sm:$0xff]
      %v1110 = vld [vmem:[#allocation4 + $0x38] sm:$0xff]
      %v1111 = vsel %vm914, %v956, -inf
      %1112 = vmax.xlane.f32.xlu0 %v1111
      %v1113 = vpop.xlane.xlu0 %1112
      %v1114 = vsel %vm914, %v959, -inf
      %1115 = vmax.xlane.f32.xlu0 %v1114
      %v1116 = vpop.xlane.xlu0 %1115
      %v1117 = vsel %vm914, %v1003, -inf
      %1118 = vmax.xlane.f32.xlu0 %v1117
      %v1119 = vpop.xlane.xlu0 %1118
      %v1120 = vsel %vm914, %v1006, -inf
      %1121 = vmax.xlane.f32.xlu0 %v1120
      %v1122 = vpop.xlane.xlu0 %1121
      %v1123 = vsel %vm914, %v1050, -inf
      %1124 = vmax.xlane.f32.xlu0 %v1123
      %v1125 = vpop.xlane.xlu0 %1124
      %v1126 = vsel %vm914, %v1053, -inf
      %1127 = vmax.xlane.f32.xlu0 %v1126
      %v1128 = vpop.xlane.xlu0 %1127
      %v1129 = vsel %vm914, %v1097, -inf
      %1130 = vmax.xlane.f32.xlu0 %v1129
      %v1131 = vpop.xlane.xlu0 %1130
      %v1132 = vsel %vm914, %v1100, -inf
      %1133 = vmax.xlane.f32.xlu0 %v1132
      %v1134 = vpop.xlane.xlu0 %1133
      %v1135 = vmax.f32 %v1103, %v1113
      %v1136 = vmax.f32 %v1104, %v1116
      %v1137 = vmax.f32 %v1105, %v1119
      %v1138 = vmax.f32 %v1106, %v1122
      %v1139 = vmax.f32 %v1107, %v1125
      %v1140 = vmax.f32 %v1108, %v1128
      %v1141 = vmax.f32 %v1109, %v1131
      %v1142 = vmax.f32 %v1110, %v1134
      %v1143 = vsub.f32 %v1103, %v1135
      %v1144 = vsub.f32 %v1104, %v1136
      %v1145 = vsub.f32 %v1105, %v1137
      %v1146 = vsub.f32 %v1106, %v1138
      %v1147 = vsub.f32 %v1107, %v1139
      %v1148 = vsub.f32 %v1108, %v1140
      %v1149 = vsub.f32 %v1109, %v1141
      %v1150 = vsub.f32 %v1110, %v1142
      %v1151 = vmul.f32 %v1143, 1.442695
      %v1152 = vpow.pop %v1151
      %v1153 = vmul.f32 %v1144, 1.442695
      %v1154 = vpow.pop %v1153
      %v1155 = vmul.f32 %v1145, 1.442695
      %v1156 = vpow.pop %v1155
      %v1157 = vmul.f32 %v1146, 1.442695
      %v1158 = vpow.pop %v1157
      %v1159 = vmul.f32 %v1147, 1.442695
      %v1160 = vpow.pop %v1159
      %v1161 = vmul.f32 %v1148, 1.442695
      %v1162 = vpow.pop %v1161
      %v1163 = vmul.f32 %v1149, 1.442695
      %v1164 = vpow.pop %v1163
      %v1165 = vmul.f32 %v1150, 1.442695
      %v1166 = vpow.pop %v1165
      %1168 = vset.pattern.permute.xlu0 0
      %1169 = vperm.xlu0 %1168, %v1135
      %v1170 = vpop.permute.xlu0 %1169
      %1173 = vset.pattern.permute.xlu0 0
      %1174 = vperm.xlu0 %1173, %v1136
      %v1175 = vpop.permute.xlu0 %1174
      %1178 = vset.pattern.permute.xlu0 0
      %1179 = vperm.xlu0 %1178, %v1137
      %v1180 = vpop.permute.xlu0 %1179
      %1183 = vset.pattern.permute.xlu0 0
      %1184 = vperm.xlu0 %1183, %v1138
      %v1185 = vpop.permute.xlu0 %1184
      %1188 = vset.pattern.permute.xlu0 0
      %1189 = vperm.xlu0 %1188, %v1139
      %v1190 = vpop.permute.xlu0 %1189
      %1193 = vset.pattern.permute.xlu0 0
      %1194 = vperm.xlu0 %1193, %v1140
      %v1195 = vpop.permute.xlu0 %1194
      %1198 = vset.pattern.permute.xlu0 0
      %1199 = vperm.xlu0 %1198, %v1141
      %v1200 = vpop.permute.xlu0 %1199
      %1203 = vset.pattern.permute.xlu0 0
      %1204 = vperm.xlu0 %1203, %v1142
      %v1205 = vpop.permute.xlu0 %1204
      %v1207 = vsub.f32 %v956, %v1170
      %v1208 = vsub.f32 %v959, %v1175
      %v1209 = vsub.f32 %v1003, %v1180
      %v1210 = vsub.f32 %v1006, %v1185
      %v1211 = vsub.f32 %v1050, %v1190
      %v1212 = vsub.f32 %v1053, %v1195
      %v1213 = vsub.f32 %v1097, %v1200
      %v1214 = vsub.f32 %v1100, %v1205
      %v1215 = vmul.f32 %v1207, 1.442695
      %v1216 = vpow.pop %v1215
      %v1217 = vmul.f32 %v1208, 1.442695
      %v1218 = vpow.pop %v1217
      %v1219 = vmul.f32 %v1209, 1.442695
      %v1220 = vpow.pop %v1219
      %v1221 = vmul.f32 %v1210, 1.442695
      %v1222 = vpow.pop %v1221
      %v1223 = vmul.f32 %v1211, 1.442695
      %v1224 = vpow.pop %v1223
      %v1225 = vmul.f32 %v1212, 1.442695
      %v1226 = vpow.pop %v1225
      %v1227 = vmul.f32 %v1213, 1.442695
      %v1228 = vpow.pop %v1227
      %v1229 = vmul.f32 %v1214, 1.442695
      %v1230 = vpow.pop %v1229
      %v1231 = vld [vmem:[#allocation5] sm:$0xff]
      %v1232 = vld [vmem:[#allocation5 + $0x8] sm:$0xff]
      %v1233 = vld [vmem:[#allocation5 + $0x10] sm:$0xff]
      %v1234 = vld [vmem:[#allocation5 + $0x18] sm:$0xff]
      %v1235 = vld [vmem:[#allocation5 + $0x20] sm:$0xff]
      %v1236 = vld [vmem:[#allocation5 + $0x28] sm:$0xff]
      %v1237 = vld [vmem:[#allocation5 + $0x30] sm:$0xff]
      %v1238 = vld [vmem:[#allocation5 + $0x38] sm:$0xff]
      %v1239 = vmul.f32 %v1152, %v1231
      %v1240 = vmul.f32 %v1154, %v1232
      %v1241 = vmul.f32 %v1156, %v1233
      %v1242 = vmul.f32 %v1158, %v1234
      %v1243 = vmul.f32 %v1160, %v1235
      %v1244 = vmul.f32 %v1162, %v1236
      %v1245 = vmul.f32 %v1164, %v1237
      %v1246 = vmul.f32 %v1166, %v1238
      %v1247 = vsel %vm914, %v1216, 0.0
      %1248 = vadd.xlane.f32.xlu0 %v1247
      %v1249 = vpop.xlane.xlu0 %1248
      %v1250 = vsel %vm914, %v1218, 0.0
      %1251 = vadd.xlane.f32.xlu0 %v1250
      %v1252 = vpop.xlane.xlu0 %1251
      %v1253 = vsel %vm914, %v1220, 0.0
      %1254 = vadd.xlane.f32.xlu0 %v1253
      %v1255 = vpop.xlane.xlu0 %1254
      %v1256 = vsel %vm914, %v1222, 0.0
      %1257 = vadd.xlane.f32.xlu0 %v1256
      %v1258 = vpop.xlane.xlu0 %1257
      %v1259 = vsel %vm914, %v1224, 0.0
      %1260 = vadd.xlane.f32.xlu0 %v1259
      %v1261 = vpop.xlane.xlu0 %1260
      %v1262 = vsel %vm914, %v1226, 0.0
      %1263 = vadd.xlane.f32.xlu0 %v1262
      %v1264 = vpop.xlane.xlu0 %1263
      %v1265 = vsel %vm914, %v1228, 0.0
      %1266 = vadd.xlane.f32.xlu0 %v1265
      %v1267 = vpop.xlane.xlu0 %1266
      %v1268 = vsel %vm914, %v1230, 0.0
      %1269 = vadd.xlane.f32.xlu0 %v1268
      %v1270 = vpop.xlane.xlu0 %1269
      %v1271 = vadd.f32 %v1239, %v1249
      %v1272 = vadd.f32 %v1240, %v1252
      %v1273 = vadd.f32 %v1241, %v1255
      %v1274 = vadd.f32 %v1242, %v1258
      %v1275 = vadd.f32 %v1243, %v1261
      %v1276 = vadd.f32 %v1244, %v1264
      %v1277 = vadd.f32 %v1245, %v1267
      %v1278 = vadd.f32 %v1246, %v1270
      %vm1279 = vcmask 7168
      %1280 = vst.msk [vmem:[#allocation5] sm:$0xff] %vm1279, %v1271
      %1281 = vst.msk [vmem:[#allocation5 + $0x8] sm:$0xff] %vm1279, %v1272
      %1282 = vst.msk [vmem:[#allocation5 + $0x10] sm:$0xff] %vm1279, %v1273
      %1283 = vst.msk [vmem:[#allocation5 + $0x18] sm:$0xff] %vm1279, %v1274
      %1284 = vst.msk [vmem:[#allocation5 + $0x20] sm:$0xff] %vm1279, %v1275
      %1285 = vst.msk [vmem:[#allocation5 + $0x28] sm:$0xff] %vm1279, %v1276
      %1286 = vst.msk [vmem:[#allocation5 + $0x30] sm:$0xff] %vm1279, %v1277
      %1287 = vst.msk [vmem:[#allocation5 + $0x38] sm:$0xff] %vm1279, %v1278
      %v1288 = vld [vmem:[#allocation6] sm:$0xff]
      %v1289 = vld [vmem:[#allocation6 + $0x8] sm:$0xff]
      %v1290 = vld [vmem:[#allocation6 + $0x10] sm:$0xff]
      %v1291 = vld [vmem:[#allocation6 + $0x18] sm:$0xff]
      %v1292 = vld [vmem:[#allocation6 + $0x20] sm:$0xff]
      %v1293 = vld [vmem:[#allocation6 + $0x28] sm:$0xff]
      %v1294 = vld [vmem:[#allocation6 + $0x30] sm:$0xff]
      %v1295 = vld [vmem:[#allocation6 + $0x38] sm:$0xff]
      %1297 = vset.pattern.permute.xlu0 0
      %1298 = vperm.xlu0 %1297, %v1152
      %v1299 = vpop.permute.xlu0 %1298
      %1302 = vset.pattern.permute.xlu0 0
      %1303 = vperm.xlu0 %1302, %v1154
      %v1304 = vpop.permute.xlu0 %1303
      %1307 = vset.pattern.permute.xlu0 0
      %1308 = vperm.xlu0 %1307, %v1156
      %v1309 = vpop.permute.xlu0 %1308
      %1312 = vset.pattern.permute.xlu0 0
      %1313 = vperm.xlu0 %1312, %v1158
      %v1314 = vpop.permute.xlu0 %1313
      %1317 = vset.pattern.permute.xlu0 0
      %1318 = vperm.xlu0 %1317, %v1160
      %v1319 = vpop.permute.xlu0 %1318
      %1322 = vset.pattern.permute.xlu0 0
      %1323 = vperm.xlu0 %1322, %v1162
      %v1324 = vpop.permute.xlu0 %1323
      %1327 = vset.pattern.permute.xlu0 0
      %1328 = vperm.xlu0 %1327, %v1164
      %v1329 = vpop.permute.xlu0 %1328
      %1332 = vset.pattern.permute.xlu0 0
      %1333 = vperm.xlu0 %1332, %v1166
      %v1334 = vpop.permute.xlu0 %1333
      %v1336 = vmul.f32 %v1299, %v1288
      %v1337 = vmul.f32 %v1304, %v1289
      %v1338 = vmul.f32 %v1309, %v1290
      %v1339 = vmul.f32 %v1314, %v1291
      %v1340 = vmul.f32 %v1319, %v1292
      %v1341 = vmul.f32 %v1324, %v1293
      %v1342 = vmul.f32 %v1329, %v1294
      %v1343 = vmul.f32 %v1334, %v1295
      %v1344 = vpack.c.bf16 %v1218, %v1216
      %v1345 = vpack.c.bf16 %v1222, %v1220
      %v1346 = vpack.c.bf16 %v1226, %v1224
      %v1347 = vpack.c.bf16 %v1230, %v1228
      %v1349 = vsel %vm914, %v1344, 0
      %vm1351 = vcmask 1043456
      %v1353 = vsel %vm1351, %v906, 0
      %1355 = vmatprep.subr.bf16.mxu0 0
      %1356 = vmatpush1.bf16.msra.mxu0 %v1353
      %1357 = vmatprep.subr.bf16.mxu0 0
      %1358 = vmatpush1.bf16.msra.mxu0 0
      %1359 = vmatprep.subr.bf16.mxu0 0
      %1360 = vmatpush1.bf16.msra.mxu0 0
      %1361 = vmatprep.subr.bf16.mxu0 0
      %1362 = vmatpush1.bf16.msra.mxu0 0
      %1363 = vmatprep.subr.bf16.mxu0 0
      %1364 = vmatpush1.bf16.msra.mxu0 0
      %1365 = vmatprep.subr.bf16.mxu0 0
      %1366 = vmatpush1.bf16.msra.mxu0 0
      %1367 = vmatprep.subr.bf16.mxu0 0
      %1368 = vmatpush1.bf16.msra.mxu0 0
      %1369 = vmatprep.subr.bf16.mxu0 0
      %1370 = vmatpush1.bf16.msra.mxu0 0
      %1371 = vmatprep.subr.bf16.mxu0 0
      %1372 = vmatpush1.bf16.msra.mxu0 0
      %1373 = vmatprep.subr.bf16.mxu0 0
      %1374 = vmatpush1.bf16.msra.mxu0 0
      %1375 = vmatprep.subr.bf16.mxu0 0
      %1376 = vmatpush1.bf16.msra.mxu0 0
      %1377 = vmatprep.subr.bf16.mxu0 0
      %1378 = vmatpush1.bf16.msra.mxu0 0
      %1379 = vmatprep.subr.bf16.mxu0 0
      %1380 = vmatpush1.bf16.msra.mxu0 0
      %1381 = vmatprep.subr.bf16.mxu0 0
      %1382 = vmatpush1.bf16.msra.mxu0 0
      %1383 = vmatprep.subr.bf16.mxu0 0
      %1384 = vmatpush1.bf16.msra.mxu0 0
      %1385 = vmatprep.subr.bf16.mxu0 0
      %1386 = vmatpush1.bf16.msra.mxu0 0
      %1387 = vmatprep.mubr.bf16.mxu0 0
      %1388 = vmatmul.mubr.bf16.gmra.mrb[0].mxu0 %v1349
      %v1389 = vpop.f32.mrb[0].mxu0
      %v1390 = vadd.f32 0.0, %v1389
      %v1391 = vpop.f32.mrb[0].mxu0
      %v1392 = vpop.f32.mrb[0].mxu0
      %v1393 = vadd.f32 0.0, %v1392
      %v1394 = vpop.f32.mrb[0].mxu0
      %1395 = vdwg.mxu0
      %v1397 = vsel %vm914, %v1345, 0
      %v1400 = vsel %vm1351, %v907, 0
      %1402 = vmatprep.subr.bf16.mxu0 0
      %1403 = vmatpush1.bf16.msra.mxu0 %v1400
      %1404 = vmatprep.subr.bf16.mxu0 0
      %1405 = vmatpush1.bf16.msra.mxu0 0
      %1406 = vmatprep.subr.bf16.mxu0 0
      %1407 = vmatpush1.bf16.msra.mxu0 0
      %1408 = vmatprep.subr.bf16.mxu0 0
      %1409 = vmatpush1.bf16.msra.mxu0 0
      %1410 = vmatprep.subr.bf16.mxu0 0
      %1411 = vmatpush1.bf16.msra.mxu0 0
      %1412 = vmatprep.subr.bf16.mxu0 0
      %1413 = vmatpush1.bf16.msra.mxu0 0
      %1414 = vmatprep.subr.bf16.mxu0 0
      %1415 = vmatpush1.bf16.msra.mxu0 0
      %1416 = vmatprep.subr.bf16.mxu0 0
      %1417 = vmatpush1.bf16.msra.mxu0 0
      %1418 = vmatprep.subr.bf16.mxu0 0
      %1419 = vmatpush1.bf16.msra.mxu0 0
      %1420 = vmatprep.subr.bf16.mxu0 0
      %1421 = vmatpush1.bf16.msra.mxu0 0
      %1422 = vmatprep.subr.bf16.mxu0 0
      %1423 = vmatpush1.bf16.msra.mxu0 0
      %1424 = vmatprep.subr.bf16.mxu0 0
      %1425 = vmatpush1.bf16.msra.mxu0 0
      %1426 = vmatprep.subr.bf16.mxu0 0
      %1427 = vmatpush1.bf16.msra.mxu0 0
      %1428 = vmatprep.subr.bf16.mxu0 0
      %1429 = vmatpush1.bf16.msra.mxu0 0
      %1430 = vmatprep.subr.bf16.mxu0 0
      %1431 = vmatpush1.bf16.msra.mxu0 0
      %1432 = vmatprep.subr.bf16.mxu0 0
      %1433 = vmatpush1.bf16.msra.mxu0 0
      %1434 = vmatprep.mubr.bf16.mxu0 0
      %1435 = vmatmul.mubr.bf16.gmra.mrb[0].mxu0 %v1397
      %v1436 = vpop.f32.mrb[0].mxu0
      %v1437 = vadd.f32 0.0, %v1436
      %v1438 = vpop.f32.mrb[0].mxu0
      %v1439 = vpop.f32.mrb[0].mxu0
      %v1440 = vadd.f32 0.0, %v1439
      %v1441 = vpop.f32.mrb[0].mxu0
      %1442 = vdwg.mxu0
      %v1444 = vsel %vm914, %v1346, 0
      %v1447 = vsel %vm1351, %v908, 0
      %1449 = vmatprep.subr.bf16.mxu0 0
      %1450 = vmatpush1.bf16.msra.mxu0 %v1447
      %1451 = vmatprep.subr.bf16.mxu0 0
      %1452 = vmatpush1.bf16.msra.mxu0 0
      %1453 = vmatprep.subr.bf16.mxu0 0
      %1454 = vmatpush1.bf16.msra.mxu0 0
      %1455 = vmatprep.subr.bf16.mxu0 0
      %1456 = vmatpush1.bf16.msra.mxu0 0
      %1457 = vmatprep.subr.bf16.mxu0 0
      %1458 = vmatpush1.bf16.msra.mxu0 0
      %1459 = vmatprep.subr.bf16.mxu0 0
      %1460 = vmatpush1.bf16.msra.mxu0 0
      %1461 = vmatprep.subr.bf16.mxu0 0
      %1462 = vmatpush1.bf16.msra.mxu0 0
      %1463 = vmatprep.subr.bf16.mxu0 0
      %1464 = vmatpush1.bf16.msra.mxu0 0
      %1465 = vmatprep.subr.bf16.mxu0 0
      %1466 = vmatpush1.bf16.msra.mxu0 0
      %1467 = vmatprep.subr.bf16.mxu0 0
      %1468 = vmatpush1.bf16.msra.mxu0 0
      %1469 = vmatprep.subr.bf16.mxu0 0
      %1470 = vmatpush1.bf16.msra.mxu0 0
      %1471 = vmatprep.subr.bf16.mxu0 0
      %1472 = vmatpush1.bf16.msra.mxu0 0
      %1473 = vmatprep.subr.bf16.mxu0 0
      %1474 = vmatpush1.bf16.msra.mxu0 0
      %1475 = vmatprep.subr.bf16.mxu0 0
      %1476 = vmatpush1.bf16.msra.mxu0 0
      %1477 = vmatprep.subr.bf16.mxu0 0
      %1478 = vmatpush1.bf16.msra.mxu0 0
      %1479 = vmatprep.subr.bf16.mxu0 0
      %1480 = vmatpush1.bf16.msra.mxu0 0
      %1481 = vmatprep.mubr.bf16.mxu0 0
      %1482 = vmatmul.mubr.bf16.gmra.mrb[0].mxu0 %v1444
      %v1483 = vpop.f32.mrb[0].mxu0
      %v1484 = vadd.f32 0.0, %v1483
      %v1485 = vpop.f32.mrb[0].mxu0
      %v1486 = vpop.f32.mrb[0].mxu0
      %v1487 = vadd.f32 0.0, %v1486
      %v1488 = vpop.f32.mrb[0].mxu0
      %1489 = vdwg.mxu0
      %v1491 = vsel %vm914, %v1347, 0
      %v1494 = vsel %vm1351, %v909, 0
      %1496 = vmatprep.subr.bf16.mxu0 0
      %1497 = vmatpush1.bf16.msra.mxu0 %v1494
      %1498 = vmatprep.subr.bf16.mxu0 0
      %1499 = vmatpush1.bf16.msra.mxu0 0
      %1500 = vmatprep.subr.bf16.mxu0 0
      %1501 = vmatpush1.bf16.msra.mxu0 0
      %1502 = vmatprep.subr.bf16.mxu0 0
      %1503 = vmatpush1.bf16.msra.mxu0 0
      %1504 = vmatprep.subr.bf16.mxu0 0
      %1505 = vmatpush1.bf16.msra.mxu0 0
      %1506 = vmatprep.subr.bf16.mxu0 0
      %1507 = vmatpush1.bf16.msra.mxu0 0
      %1508 = vmatprep.subr.bf16.mxu0 0
      %1509 = vmatpush1.bf16.msra.mxu0 0
      %1510 = vmatprep.subr.bf16.mxu0 0
      %1511 = vmatpush1.bf16.msra.mxu0 0
      %1512 = vmatprep.subr.bf16.mxu0 0
      %1513 = vmatpush1.bf16.msra.mxu0 0
      %1514 = vmatprep.subr.bf16.mxu0 0
      %1515 = vmatpush1.bf16.msra.mxu0 0
      %1516 = vmatprep.subr.bf16.mxu0 0
      %1517 = vmatpush1.bf16.msra.mxu0 0
      %1518 = vmatprep.subr.bf16.mxu0 0
      %1519 = vmatpush1.bf16.msra.mxu0 0
      %1520 = vmatprep.subr.bf16.mxu0 0
      %1521 = vmatpush1.bf16.msra.mxu0 0
      %1522 = vmatprep.subr.bf16.mxu0 0
      %1523 = vmatpush1.bf16.msra.mxu0 0
      %1524 = vmatprep.subr.bf16.mxu0 0
      %1525 = vmatpush1.bf16.msra.mxu0 0
      %1526 = vmatprep.subr.bf16.mxu0 0
      %1527 = vmatpush1.bf16.msra.mxu0 0
      %1528 = vmatprep.mubr.bf16.mxu0 0
      %1529 = vmatmul.mubr.bf16.gmra.mrb[0].mxu0 %v1491
      %v1530 = vpop.f32.mrb[0].mxu0
      %v1531 = vadd.f32 0.0, %v1530
      %v1532 = vpop.f32.mrb[0].mxu0
      %v1533 = vpop.f32.mrb[0].mxu0
      %v1534 = vadd.f32 0.0, %v1533
      %v1535 = vpop.f32.mrb[0].mxu0
      %1536 = vdwg.mxu0
      %v1537 = vadd.f32 %v1336, %v1390
      %v1538 = vadd.f32 %v1337, %v1393
      %v1539 = vadd.f32 %v1338, %v1437
      %v1540 = vadd.f32 %v1339, %v1440
      %v1541 = vadd.f32 %v1340, %v1484
      %v1542 = vadd.f32 %v1341, %v1487
      %v1543 = vadd.f32 %v1342, %v1531
      %v1544 = vadd.f32 %v1343, %v1534
      %1545 = vst.msk [vmem:[#allocation6] sm:$0xff] %vm914, %v1537
      %1546 = vst.msk [vmem:[#allocation6 + $0x8] sm:$0xff] %vm914, %v1538
      %1547 = vst.msk [vmem:[#allocation6 + $0x10] sm:$0xff] %vm914, %v1539
      %1548 = vst.msk [vmem:[#allocation6 + $0x18] sm:$0xff] %vm914, %v1540
      %1549 = vst.msk [vmem:[#allocation6 + $0x20] sm:$0xff] %vm914, %v1541
      %1550 = vst.msk [vmem:[#allocation6 + $0x28] sm:$0xff] %vm914, %v1542
      %1551 = vst.msk [vmem:[#allocation6 + $0x30] sm:$0xff] %vm914, %v1543
      %1552 = vst.msk [vmem:[#allocation6 + $0x38] sm:$0xff] %vm914, %v1544
      %1553 = vst.msk [vmem:[#allocation4] sm:$0xff] %vm1279, %v1135
      %1554 = vst.msk [vmem:[#allocation4 + $0x8] sm:$0xff] %vm1279, %v1136
      %1555 = vst.msk [vmem:[#allocation4 + $0x10] sm:$0xff] %vm1279, %v1137
      %1556 = vst.msk [vmem:[#allocation4 + $0x18] sm:$0xff] %vm1279, %v1138
      %1557 = vst.msk [vmem:[#allocation4 + $0x20] sm:$0xff] %vm1279, %v1139
      %1558 = vst.msk [vmem:[#allocation4 + $0x28] sm:$0xff] %vm1279, %v1140
      %1559 = vst.msk [vmem:[#allocation4 + $0x30] sm:$0xff] %vm1279, %v1141
      %1560 = vst.msk [vmem:[#allocation4 + $0x38] sm:$0xff] %vm1279, %v1142
      // Predicated region
      $region73: #{ginfpsst_forward.13} parent=67 // pred_check
        %p1561 = pneg %p489
      $region74: #{ginfpsst_forward.13} parent=67 // pred_check_branch
        %1563 = sbr.rel (%p1561) target = $region76
      $region75: #{ginfpsst_forward.13} parent=67 // pred_region
        %v1564 = vld [vmem:[#allocation6] sm:$0xff]
        %v1565 = vld [vmem:[#allocation6 + $0x8] sm:$0xff]
        %v1566 = vld [vmem:[#allocation6 + $0x10] sm:$0xff]
        %v1567 = vld [vmem:[#allocation6 + $0x18] sm:$0xff]
        %v1568 = vld [vmem:[#allocation6 + $0x20] sm:$0xff]
        %v1569 = vld [vmem:[#allocation6 + $0x28] sm:$0xff]
        %v1570 = vld [vmem:[#allocation6 + $0x30] sm:$0xff]
        %v1571 = vld [vmem:[#allocation6 + $0x38] sm:$0xff]
        %v1572 = vld [vmem:[#allocation5] sm:$0xff]
        %v1573 = vld [vmem:[#allocation5 + $0x8] sm:$0xff]
        %v1574 = vld [vmem:[#allocation5 + $0x10] sm:$0xff]
        %v1575 = vld [vmem:[#allocation5 + $0x18] sm:$0xff]
        %v1576 = vld [vmem:[#allocation5 + $0x20] sm:$0xff]
        %v1577 = vld [vmem:[#allocation5 + $0x28] sm:$0xff]
        %v1578 = vld [vmem:[#allocation5 + $0x30] sm:$0xff]
        %v1579 = vld [vmem:[#allocation5 + $0x38] sm:$0xff]
        %v1580 = vrcp.pop %v1572
        %v1581 = vrcp.pop %v1573
        %v1582 = vrcp.pop %v1574
        %v1583 = vrcp.pop %v1575
        %v1584 = vrcp.pop %v1576
        %v1585 = vrcp.pop %v1577
        %v1586 = vrcp.pop %v1578
        %v1587 = vrcp.pop %v1579
        %1589 = vset.pattern.permute.xlu0 0
        %1590 = vperm.xlu0 %1589, %v1580
        %v1591 = vpop.permute.xlu0 %1590
        %1594 = vset.pattern.permute.xlu0 0
        %1595 = vperm.xlu0 %1594, %v1581
        %v1596 = vpop.permute.xlu0 %1595
        %1599 = vset.pattern.permute.xlu0 0
        %1600 = vperm.xlu0 %1599, %v1582
        %v1601 = vpop.permute.xlu0 %1600
        %1604 = vset.pattern.permute.xlu0 0
        %1605 = vperm.xlu0 %1604, %v1583
        %v1606 = vpop.permute.xlu0 %1605
        %1609 = vset.pattern.permute.xlu0 0
        %1610 = vperm.xlu0 %1609, %v1584
        %v1611 = vpop.permute.xlu0 %1610
        %1614 = vset.pattern.permute.xlu0 0
        %1615 = vperm.xlu0 %1614, %v1585
        %v1616 = vpop.permute.xlu0 %1615
        %1619 = vset.pattern.permute.xlu0 0
        %1620 = vperm.xlu0 %1619, %v1586
        %v1621 = vpop.permute.xlu0 %1620
        %1624 = vset.pattern.permute.xlu0 0
        %1625 = vperm.xlu0 %1624, %v1587
        %v1626 = vpop.permute.xlu0 %1625
        %v1628 = vmul.f32 %v1564, %v1591
        %v1629 = vmul.f32 %v1565, %v1596
        %v1630 = vmul.f32 %v1566, %v1601
        %v1631 = vmul.f32 %v1567, %v1606
        %v1632 = vmul.f32 %v1568, %v1611
        %v1633 = vmul.f32 %v1569, %v1616
        %v1634 = vmul.f32 %v1570, %v1621
        %v1635 = vmul.f32 %v1571, %v1626
        %1638 = vrot.lane.b32.xlu0 %v1630, 8
        %v1639 = vpop.permute.xlu0 %1638
        %1640 = vrot.lane.b32.xlu0 %v1631, 8
        %v1641 = vpop.permute.xlu0 %1640
        %1646 = vrot.lane.b32.xlu0 %v1632, 16
        %v1647 = vpop.permute.xlu0 %1646
        %1648 = vrot.lane.b32.xlu0 %v1633, 16
        %v1649 = vpop.permute.xlu0 %1648
        %1654 = vrot.lane.b32.xlu0 %v1634, 24
        %v1655 = vpop.permute.xlu0 %1654
        %1656 = vrot.lane.b32.xlu0 %v1635, 24
        %v1657 = vpop.permute.xlu0 %1656
        %v1660 = vsel %vm914, %v1628, %v1639
        %v1661 = vsel %vm914, %v1629, %v1641
        %vm1662 = vcmask 130048
        %v1663 = vsel %vm1662, %v1660, %v1647
        %v1664 = vsel %vm1662, %v1661, %v1649
        %vm1665 = vcmask 195584
        %v1666 = vsel %vm1665, %v1663, %v1655
        %v1667 = vsel %vm1665, %v1664, %v1657
        %vm1668 = vcmask 261120
        %v1669 = vsel %vm1668, %v1666, 0.0
        %v1670 = vsel %vm1668, %v1667, 0.0
        %v1671 = vld [vmem:[#allocation2] sm:$0xff]
        %v1672 = vld [vmem:[#allocation2 + $0x8] sm:$0xff]
        %v1673 = vadd.f32 %v1671, %v1669
        %v1674 = vadd.f32 %v1672, %v1670
        %v1675 = vpack.c.bf16 %v1674, %v1673
        %v1676 = vld [vmem:[%s8] sm:$0xf]
        %v1677 = vld [vmem:[%s8 + $0x4] sm:$0xf]
        %v1678 = vld [vmem:[%s8 + $0x8] sm:$0xf]
        %v1679 = vld [vmem:[%s8 + $0xc] sm:$0xf]
        %v1680 = vld [vmem:[%s8 + $0x10] sm:$0xf]
        %v1681 = vld [vmem:[%s8 + $0x14] sm:$0xf]
        %v1682 = vld [vmem:[%s8 + $0x18] sm:$0xf]
        %v1683 = vld [vmem:[%s8 + $0x1c] sm:$0xf]
        %v1684 = vld [vmem:[%s8 + $0x20] sm:$0xf]
        %v1685 = vld [vmem:[%s8 + $0x24] sm:$0xf]
        %v1686 = vld [vmem:[%s8 + $0x28] sm:$0xf]
        %v1687 = vld [vmem:[%s8 + $0x2c] sm:$0xf]
        %v1688 = vld [vmem:[%s8 + $0x30] sm:$0xf]
        %v1689 = vld [vmem:[%s8 + $0x34] sm:$0xf]
        %v1690 = vld [vmem:[%s8 + $0x38] sm:$0xf]
        %v1691 = vld [vmem:[%s8 + $0x3c] sm:$0xf]
        %v1692 = vld [vmem:[%s9] sm:$0x1]
        %v1694 = vlaneseq
        %v1695 = vshrl.u32 %v1694, 7
        %v1696 = vsub.s32 0, %v1695
        %v1697 = vrot.slane %v1692, %v1696
        %v1715 = vunpack.c.l.b16 %v1676
        %v1716 = vunpack.c.l.b16 %v1677
        %v1717 = vunpack.c.l.b16 %v1678
        %v1718 = vunpack.c.l.b16 %v1679
        %v1719 = vunpack.c.l.b16 %v1680
        %v1720 = vunpack.c.l.b16 %v1681
        %v1721 = vunpack.c.l.b16 %v1682
        %v1722 = vunpack.c.l.b16 %v1683
        %v1723 = vunpack.c.l.b16 %v1684
        %v1724 = vunpack.c.l.b16 %v1685
        %v1725 = vunpack.c.l.b16 %v1686
        %v1726 = vunpack.c.l.b16 %v1687
        %v1727 = vunpack.c.l.b16 %v1688
        %v1728 = vunpack.c.l.b16 %v1689
        %v1729 = vunpack.c.l.b16 %v1690
        %v1730 = vunpack.c.l.b16 %v1691
        %v1731 = vpack.c.b16 %v1716, %v1715
        %v1732 = vpack.c.b16 %v1718, %v1717
        %v1733 = vpack.c.b16 %v1720, %v1719
        %v1734 = vpack.c.b16 %v1722, %v1721
        %v1735 = vpack.c.b16 %v1724, %v1723
        %v1736 = vpack.c.b16 %v1726, %v1725
        %v1737 = vpack.c.b16 %v1728, %v1727
        %v1738 = vpack.c.b16 %v1730, %v1729
        %1747 = vmatprep.subr.bf16.mxu0 0
        %1748 = vmatpush1.bf16.msra.mxu0 %v1731
        %1749 = vmatprep.subr.bf16.mxu0 0
        %1750 = vmatpush1.bf16.msra.mxu0 %v1732
        %1751 = vmatprep.subr.bf16.mxu0 0
        %1752 = vmatpush1.bf16.msra.mxu0 %v1733
        %1753 = vmatprep.subr.bf16.mxu0 0
        %1754 = vmatpush1.bf16.msra.mxu0 %v1734
        %1755 = vmatprep.subr.bf16.mxu0 0
        %1756 = vmatpush1.bf16.msra.mxu0 %v1735
        %1757 = vmatprep.subr.bf16.mxu0 0
        %1758 = vmatpush1.bf16.msra.mxu0 %v1736
        %1759 = vmatprep.subr.bf16.mxu0 0
        %1760 = vmatpush1.bf16.msra.mxu0 %v1737
        %1761 = vmatprep.subr.bf16.mxu0 0
        %1762 = vmatpush1.bf16.msra.mxu0 %v1738
        %1763 = vmatprep.subr.bf16.mxu0 0
        %1764 = vmatpush1.bf16.msra.mxu0 0
        %1765 = vmatprep.subr.bf16.mxu0 0
        %1766 = vmatpush1.bf16.msra.mxu0 0
        %1767 = vmatprep.subr.bf16.mxu0 0
        %1768 = vmatpush1.bf16.msra.mxu0 0
        %1769 = vmatprep.subr.bf16.mxu0 0
        %1770 = vmatpush1.bf16.msra.mxu0 0
        %1771 = vmatprep.subr.bf16.mxu0 0
        %1772 = vmatpush1.bf16.msra.mxu0 0
        %1773 = vmatprep.subr.bf16.mxu0 0
        %1774 = vmatpush1.bf16.msra.mxu0 0
        %1775 = vmatprep.subr.bf16.mxu0 0
        %1776 = vmatpush1.bf16.msra.mxu0 0
        %1777 = vmatprep.subr.bf16.mxu0 0
        %1778 = vmatpush1.bf16.msra.mxu0 0
        %1779 = vmatprep.mubr.bf16.mxu0 0
        %1780 = vmatmul.mubr.bf16.gmra.mrb[0].mxu0 %v1675
        %v1781 = vpop.f32.mrb[0].mxu0
        %v1782 = vadd.f32 %v1697, %v1781
        %v1783 = vpop.f32.mrb[0].mxu0
        %v1784 = vpop.f32.mrb[0].mxu0
        %v1785 = vadd.f32 %v1697, %v1784
        %v1786 = vpop.f32.mrb[0].mxu0
        %1787 = vdwg.mxu0
        %v1788 = vmax.f32 %v1782, 0.0
        %v1789 = vmax.f32 %v1785, 0.0
        %v1790 = vadd.f32 %v1673, %v1788
        %v1791 = vadd.f32 %v1674, %v1789
        %v1792 = vpack.c.bf16 %v1791, %v1790
        %v1793 = vld [vmem:[%s10] sm:$0xf]
        %v1794 = vld [vmem:[%s10 + $0x4] sm:$0xf]
        %v1795 = vld [vmem:[%s10 + $0x8] sm:$0xf]
        %v1796 = vld [vmem:[%s10 + $0xc] sm:$0xf]
        %v1797 = vld [vmem:[%s10 + $0x10] sm:$0xf]
        %v1798 = vld [vmem:[%s10 + $0x14] sm:$0xf]
        %v1799 = vld [vmem:[%s10 + $0x18] sm:$0xf]
        %v1800 = vld [vmem:[%s10 + $0x1c] sm:$0xf]
        %v1801 = vld [vmem:[%s10 + $0x20] sm:$0xf]
        %v1802 = vld [vmem:[%s10 + $0x24] sm:$0xf]
        %v1803 = vld [vmem:[%s10 + $0x28] sm:$0xf]
        %v1804 = vld [vmem:[%s10 + $0x2c] sm:$0xf]
        %v1805 = vld [vmem:[%s10 + $0x30] sm:$0xf]
        %v1806 = vld [vmem:[%s10 + $0x34] sm:$0xf]
        %v1807 = vld [vmem:[%s10 + $0x38] sm:$0xf]
        %v1808 = vld [vmem:[%s10 + $0x3c] sm:$0xf]
        %v1809 = vld [vmem:[%s11] sm:$0x1]
        %v1811 = vlaneseq
        %v1812 = vshrl.u32 %v1811, 7
        %v1813 = vsub.s32 0, %v1812
        %v1814 = vrot.slane %v1809, %v1813
        %v1832 = vunpack.c.l.b16 %v1793
        %v1833 = vunpack.c.l.b16 %v1794
        %v1834 = vunpack.c.l.b16 %v1795
        %v1835 = vunpack.c.l.b16 %v1796
        %v1836 = vunpack.c.l.b16 %v1797
        %v1837 = vunpack.c.l.b16 %v1798
        %v1838 = vunpack.c.l.b16 %v1799
        %v1839 = vunpack.c.l.b16 %v1800
        %v1840 = vunpack.c.l.b16 %v1801
        %v1841 = vunpack.c.l.b16 %v1802
        %v1842 = vunpack.c.l.b16 %v1803
        %v1843 = vunpack.c.l.b16 %v1804
        %v1844 = vunpack.c.l.b16 %v1805
        %v1845 = vunpack.c.l.b16 %v1806
        %v1846 = vunpack.c.l.b16 %v1807
        %v1847 = vunpack.c.l.b16 %v1808
        %v1848 = vpack.c.b16 %v1833, %v1832
        %v1849 = vpack.c.b16 %v1835, %v1834
        %v1850 = vpack.c.b16 %v1837, %v1836
        %v1851 = vpack.c.b16 %v1839, %v1838
        %v1852 = vpack.c.b16 %v1841, %v1840
        %v1853 = vpack.c.b16 %v1843, %v1842
        %v1854 = vpack.c.b16 %v1845, %v1844
        %v1855 = vpack.c.b16 %v1847, %v1846
        %1864 = vmatprep.subr.bf16.mxu0 0
        %1865 = vmatpush1.bf16.msra.mxu0 %v1848
        %1866 = vmatprep.subr.bf16.mxu0 0
        %1867 = vmatpush1.bf16.msra.mxu0 %v1849
        %1868 = vmatprep.subr.bf16.mxu0 0
        %1869 = vmatpush1.bf16.msra.mxu0 %v1850
        %1870 = vmatprep.subr.bf16.mxu0 0
        %1871 = vmatpush1.bf16.msra.mxu0 %v1851
        %1872 = vmatprep.subr.bf16.mxu0 0
        %1873 = vmatpush1.bf16.msra.mxu0 %v1852
        %1874 = vmatprep.subr.bf16.mxu0 0
        %1875 = vmatpush1.bf16.msra.mxu0 %v1853
        %1876 = vmatprep.subr.bf16.mxu0 0
        %1877 = vmatpush1.bf16.msra.mxu0 %v1854
        %1878 = vmatprep.subr.bf16.mxu0 0
        %1879 = vmatpush1.bf16.msra.mxu0 %v1855
        %1880 = vmatprep.subr.bf16.mxu0 0
        %1881 = vmatpush1.bf16.msra.mxu0 0
        %1882 = vmatprep.subr.bf16.mxu0 0
        %1883 = vmatpush1.bf16.msra.mxu0 0
        %1884 = vmatprep.subr.bf16.mxu0 0
        %1885 = vmatpush1.bf16.msra.mxu0 0
        %1886 = vmatprep.subr.bf16.mxu0 0
        %1887 = vmatpush1.bf16.msra.mxu0 0
        %1888 = vmatprep.subr.bf16.mxu0 0
        %1889 = vmatpush1.bf16.msra.mxu0 0
        %1890 = vmatprep.subr.bf16.mxu0 0
        %1891 = vmatpush1.bf16.msra.mxu0 0
        %1892 = vmatprep.subr.bf16.mxu0 0
        %1893 = vmatpush1.bf16.msra.mxu0 0
        %1894 = vmatprep.subr.bf16.mxu0 0
        %1895 = vmatpush1.bf16.msra.mxu0 0
        %1896 = vmatprep.mubr.bf16.mxu0 0
        %1897 = vmatmul.mubr.bf16.gmra.mrb[0].mxu0 %v1792
        %v1898 = vpop.f32.mrb[0].mxu0
        %v1899 = vadd.f32 %v1814, %v1898
        %v1900 = vpop.f32.mrb[0].mxu0
        %v1901 = vpop.f32.mrb[0].mxu0
        %v1902 = vadd.f32 %v1814, %v1901
        %v1903 = vpop.f32.mrb[0].mxu0
        %1904 = vdwg.mxu0
        %1905 = vst [vmem:[%s486] sm:$0xff] %v1899
        %1906 = vst [vmem:[%s486 + $0x8] sm:$0xff] %v1902
      $region76: #{ginfpsst_forward.13} parent=67 // pred_fallthru
        _
      %s1907 = smul.u32 2, %s29
      %p1908 = scmp.lt.s32.totalorder %s28, 1
      %s1909 = scalar_select %p1908, %s28, 1
      %p1910 = scmp.lt.s32.totalorder %s1907, 1
      %s1911 = scalar_select %p1910, %s1907, 1
      %s1912 = smul.addr %s1909, 2
      %s1913 = sadd.s32 %s1911, %s1912
      %s1914 = smul.addr %s1913, 8
      %s1915 = scalar_lea.vmem %s12, %s1914
      // Predicated region
      $region77: #{ginfpsst_forward.13} parent=67 // pred_check
        %p1916 = pneg %p328
      $region78: #{ginfpsst_forward.13} parent=67 // pred_check_branch
        %1918 = sbr.rel (%p1916) target = $region80
      $region79: #{ginfpsst_forward.13} parent=67 // pred_region
        %s1919 = smul.u32 2, %s29
      $region80: #{ginfpsst_forward.13} parent=67 // pred_fallthru
        _
    $region68: #{ginfpsst_forward.13} parent=5 // pred_fallthru
      _
    %p1920 = scmp.le.s32.totalorder 2, %s18
    // Predicated region
    $region81: #{ginfpsst_forward.13} parent=5 // pred_check
      %p1921 = pneg %p1920
    $region82: #{ginfpsst_forward.13} parent=5 // pred_check_branch
      %1923 = sbr.rel (%p1921) target = $region84
    $region83: #{ginfpsst_forward.13} parent=5 // pred_region
      %s1924 = ssub.s32 %s18, 2
      // Predicated region
      $region85: #{ginfpsst_forward.13} parent=83 // pred_check
        %p1925 = pneg %p334
      $region86: #{ginfpsst_forward.13} parent=83 // pred_check_branch
        %1927 = sbr.rel (%p1925) target = $region88
      $region87: #{ginfpsst_forward.13} parent=83 // pred_region
        %s1928 = smul.u32 2, %s32
        %p1929 = scmp.lt.s32.totalorder %s31, 1
        %s1930 = scalar_select %p1929, %s31, 1
        %p1931 = scmp.lt.s32.totalorder %s1928, 1
        %s1932 = scalar_select %p1931, %s1928, 1
        %s1933 = smul.addr %s1930, 2
        %s1934 = sadd.s32 %s1932, %s1933
        %s1935 = smul.addr %s1934, 8
        %s1936 = scalar_lea.vmem %s12, %s1935
      $region88: #{ginfpsst_forward.13} parent=83 // pred_fallthru
        _
    $region84: #{ginfpsst_forward.13} parent=5 // pred_fallthru
      _
  $region6: #{ginfpsst_forward.13} parent=0 // loop_footer
    %s22 = sadd.s32 1, %s18
  $region7: #{ginfpsst_forward.13} parent=0 // loop_footer_branch
    %17 = sbr.rel target = $region3
  $region8: #{ginfpsst_forward.13} parent=0 // loop_exit
    _

</llo_original>
